<compile_context>
chip_gen: v7x
topology: tpu7x:2x2x1
jax: 0.10.0
libtpu: 0.0.40
codegen_flags: <defaults>
</compile_context>

<pallas_src>
import jax
import jax.numpy as jnp
from jax.experimental import pallas as pl
from jax.experimental.pallas import tpu as pltpu


# -----------------------------------------------------------------------------------
# kernel 1: bidirectional ViLBlock (mLSTM), (C, S) tokens-on-lanes, directions fused
# -----------------------------------------------------------------------------------
def _vil_kernel(x_ref, wu_ref, wqkv_ref, wif_ref, wd_ref, vi_ref, vc_ref, o_ref):
    f32, bf16 = jnp.float32, jnp.bfloat16
    s = x_ref.shape[2]
    inner = wu_ref.shape[0] // 2
    nh = wif_ref.shape[0] // 2
    dh = inner // nh
    ktaps = vi_ref.shape[1] - 9

    x = x_ref[0]                                       # (C, S), tokens on lanes
    vi = vi_ref[...]                                   # (I, 9 + K) packed columns
    vc = vc_ref[...]                                   # (C, 3)    packed columns

    # ---------------- direction-invariant work (done ONCE) ----------------
    # pre-LayerNorm over channels (per token)
    mu = jnp.mean(x, axis=0, keepdims=True)
    var = jnp.mean(jnp.square(x - mu), axis=0, keepdims=True)
    xn = (x - mu) * jax.lax.rsqrt(var + 1e-5) * vc[:, 0:1] + vc[:, 1:2]

    # up-projection: mLSTM branch x_m and gating branch z in one bf16 matmul
    wu = wu_ref[...].astype(bf16)                                        # (2I, C)
    up = jnp.dot(wu, xn.astype(bf16), preferred_element_type=f32)        # (2I, S)
    x_m = up[:inner] + vi[:, 0:1]                                        # (I, S)
    z = up[inner:] + vi[:, 1:2]
    silu_z = z * jax.nn.sigmoid(z)

    wqkv = wqkv_ref[...]                                                 # (3I, I)
    v = jnp.dot(wqkv[2 * inner:].astype(bf16), x_m.astype(bf16),
                preferred_element_type=f32) + vi[:, 5:6]                 # (I, S)

    wif = wif_ref[...]                                                   # (2NH, 3I+1+2NH)
    wif_w = wif[:, :3 * inner].astype(bf16)                              # (2NH, 3I)
    b_if = wif[:, 3 * inner:3 * inner + 1]                               # (2NH, 1)
    eye_t = wif[:, 3 * inner + 1:]                                       # (2NH, 2NH)

    wd = wd_ref[...].astype(bf16)                                        # (C, I)

    lane = jax.lax.broadcasted_iota(jnp.int32, (1, s), 1)
    r2 = jax.lax.broadcasted_iota(jnp.int32, (s, s), 0)
    c2 = jax.lax.broadcasted_iota(jnp.int32, (s, s), 1)
    inv_sqrt_dh = 1.0 / float(dh) ** 0.5
    NEG = -1e30

    def lane_scan(val, op, pad, rev):
        """Inclusive prefix (rev=False) / suffix (rev=True) scan along lanes."""
        y = val
        shift = 1
        while shift < s:
            if rev:
                rolled = pltpu.roll(y, s - shift, axis=1)     # y[t + shift]
                ok = lane < (s - shift)
            else:
                rolled = pltpu.roll(y, shift, axis=1)         # y[t - shift]
                ok = lane >= shift
            y = op(y, jnp.where(ok, rolled, pad))
            shift *= 2
        return y

    h_state_sum = jnp.zeros((inner, s), f32)
    for rev in (False, True):
        # causal (fwd) / anti-causal (rev) depthwise conv1d: lane rolls + edge mask
        conv = vi[:, 2:3] + jnp.zeros((inner, s), f32)
        for k in range(ktaps):
            d = ktaps - 1 - k
            if d == 0:
                tap = x_m
            elif rev:
                tap = jnp.where(lane < s - d, pltpu.roll(x_m, s - d, axis=1), 0.0)
            else:
                tap = jnp.where(lane >= d, pltpu.roll(x_m, d, axis=1), 0.0)
            conv = conv + tap * vi[:, 9 + k:10 + k]
        conv_act = conv * jax.nn.sigmoid(conv)                 # SiLU
        ca16 = conv_act.astype(bf16)

        # headwise (block-diagonal) q / k projections
        q = jnp.dot(wqkv[:inner].astype(bf16), ca16,
                    preferred_element_type=f32) + vi[:, 3:4]             # (I, S)
        kk = jnp.dot(wqkv[inner:2 * inner].astype(bf16), ca16,
                     preferred_element_type=f32) + vi[:, 4:5]            # (I, S)

        # i / f gate pre-activations from cat([q, k, v]) in one lane-dense matmul
        qkv = jnp.concatenate([q, kk, v], axis=0).astype(bf16)           # (3I, S)
        if_pre = jnp.dot(wif_w, qkv, preferred_element_type=f32) + b_if  # (2NH, S)
        i_pre = if_pre[:nh]
        f_pre = if_pre[nh:]
        log_f = jnp.minimum(f_pre, 0.0) - jnp.log(1.0 + jnp.exp(-jnp.abs(f_pre)))

        cum = lane_scan(log_f, jnp.add, 0.0, rev)       # (NH, S) prefix/suffix sums
        g = i_pre - cum                                 # (NH, S)  i[s'] - cum[s']
        gmax = lane_scan(g, jnp.maximum, NEG, rev)      # running max of g

        # token-on-sublane (column) views of cum / gmax via one tiny TN matmul
        cols = jax.lax.dot_general(jnp.concatenate([cum, gmax], axis=0), eye_t,
                                   (((0,), (0,)), ((), ())),
                                   preferred_element_type=f32)           # (S, 2NH)
        mask = (c2 >= r2) if rev else (c2 <= r2)        # anti-causal / causal

        head_outs = []
        for hd in range(nh):
            cum_col = cols[:, hd:hd + 1]                # (S, 1)  cum[t]
            gmax_col = cols[:, nh + hd:nh + hd + 1]     # (S, 1)  running max of g
            g_row = g[hd:hd + 1, :]                     # (1, S)  g[s']
            # log D[t,s'] = cum[t] + g[s']; row max m[t] = cum[t] + gmax[t]
            # => exp(log D - m) = exp(g[s'] - gmax[t])  (<= 1 inside the mask)
            dmat = jnp.where(mask, jnp.exp(jnp.minimum(g_row - gmax_col, 0.0)), 0.0)

            qh = q[hd * dh:(hd + 1) * dh].astype(bf16)  # (DH, S)
            kh = kk[hd * dh:(hd + 1) * dh].astype(bf16)
            vh = v[hd * dh:(hd + 1) * dh].astype(bf16)
            qk = jax.lax.dot_general(qh, kh, (((0,), (0,)), ((), ())),
                                     preferred_element_type=f32)         # (S, S)[t,s']
            cmat = qk * inv_sqrt_dh * dmat
            row_sum = jnp.sum(cmat, axis=1, keepdims=True)               # (S, 1)
            m_col = cum_col + gmax_col
            norm = jnp.maximum(jnp.abs(row_sum), jnp.exp(jnp.minimum(-m_col, 60.0)))
            cn = cmat * pl.reciprocal(norm + 1e-6, approx=True)
            hh = jax.lax.dot_general(vh, cn.astype(bf16), (((1,), (1,)), ((), ())),
                                     preferred_element_type=f32)         # (DH, S)[d,t]
            # per-head group norm over DH (MultiHeadLayerNorm; affine after concat)
            hmu = jnp.mean(hh, axis=0, keepdims=True)
            hvar = jnp.mean(jnp.square(hh - hmu), axis=0, keepdims=True)
            head_outs.append((hh - hmu) * jax.lax.rsqrt(hvar + 1e-5))

        h_cat = jnp.concatenate(head_outs, axis=0)      # (I, S)
        h_cat = h_cat * vi[:, 7:8] + vi[:, 8:9]
        h_skip = h_cat + vi[:, 6:7] * conv_act          # learnable skip
        h_state_sum = h_state_sum + h_skip * silu_z     # gate with SiLU(z)

    # (x + out_fwd) + (x + out_rev) = 2 x + Wd (h_fwd + h_rev) + 2 bd
    out = jnp.dot(wd, h_state_sum.astype(bf16), preferred_element_type=f32)
    o_ref[0] = 2.0 * x + out + 2.0 * vc[:, 2:3]


def vil_bidirectional(p, x_cp):
    """Bidirectional ViLBlock over (B, C, P) tokens (channels on sublanes)."""
    b, c, s = x_cp.shape
    nh = p["bi"].shape[0]
    ktaps = p["convw"].shape[0]

    wu = jnp.concatenate([p["wum"], p["wuz"]], axis=0)                       # (2I, C)
    wqkv = jnp.concatenate([p["wq"], p["wk"], p["wv"]], axis=0)              # (3I, I)
    wif = jnp.concatenate([
        jnp.concatenate([p["wiq"], p["wik"], p["wiv"], p["bi"][:, None]], axis=1),
        jnp.concatenate([p["wfq"], p["wfk"], p["wfv"], p["bf"][:, None]], axis=1),
    ], axis=0)
    wif = jnp.concatenate([wif, jnp.eye(2 * nh, dtype=jnp.float32)], axis=1)
    vec_i = jnp.stack([p["bum"], p["buz"], p["convb"], p["bq"], p["bk"], p["bv"],
                       p["skip"], p["mhg"], p["mhb"]]
                      + [p["convw"][k] for k in range(ktaps)], axis=1)       # (I, 9+K)
    vec_c = jnp.stack([p["ln_g"], p["ln_b"], p["bd"]], axis=1)               # (C, 3)

    args = [x_cp, wu, wqkv, wif, p["wd"], vec_i, vec_c]
    seq_spec = pl.BlockSpec((1, c, s), lambda i: (i, 0, 0))
    in_specs = [seq_spec] + [
        pl.BlockSpec(a.shape, lambda i, _nd=a.ndim: (0,) * _nd) for a in args[1:]
    ]
    return pl.pallas_call(
        _vil_kernel,
        out_shape=jax.ShapeDtypeStruct((b, c, s), jnp.float32),
        grid=(b,),
        in_specs=in_specs,
        out_specs=pl.BlockSpec((1, c, s), lambda i: (i, 0, 0)),
        compiler_params=pltpu.CompilerParams(
            dimension_semantics=("parallel",),
            vmem_limit_bytes=32 * 1024 * 1024),
    )(*args)


# -----------------------------------------------------------------------------------
# kernel 2: fused dsconvA/B -> sigmoid gates -> gate x_xlstm -> final dsconv
# -----------------------------------------------------------------------------------
def _fold_dsconv(p):
    """Fold depthwise 3x3 + pointwise 1x1 + BatchNorm(eval) into one matmul + bias."""
    eps = 1e-5
    scale = p["bn_gamma"] / jnp.sqrt(p["bn_var"] + eps)                  # (Cout,)
    shift = p["bn_beta"] - p["bn_mean"] * scale
    cin = p["dw_w"].shape[-1]
    cout = p["pw_w"].shape[-1]
    w = p["dw_w"].reshape(9, cin)[:, :, None] * p["pw_w"][None, :, :]    # (9, Cin, Cout)
    w = w.reshape(9 * cin, cout) * scale[None, :]
    bias = (p["pw_b"] + p["dw_b"] @ p["pw_w"]) * scale + shift           # (Cout,)
    return w.T, bias[:, None]                                            # (Cout, 9Cin), (Cout, 1)


def fused_atten_conv(params, xa_cp, xb_cp, xl_cp, img_h, img_w):
    """All conv/gate ops of XLSTM_atten in one pallas_call; (C, H*W) lane-dense layout."""
    b, c, pp = xa_cp.shape
    w_a, b_a = _fold_dsconv(params["catconvA"])
    w_b, b_b = _fold_dsconv(params["catconvB"])
    w_f, b_f = _fold_dsconv(params["catconv"])
    cout = w_f.shape[0]

    wg_a = params["convA_w"].reshape(c, 1)
    wg_b = params["convB_w"].reshape(c, 1)
    bg = jnp.concatenate([params["convA_b"], params["convB_b"]]).reshape(2, 1)

    # roll offsets + validity masks for the 9 taps of a 3x3 conv with padding=1
    yy = jnp.arange(pp, dtype=jnp.int32) // img_w
    xx = jnp.arange(pp, dtype=jnp.int32) % img_w
    shifts, masks = [], []
    for dy in (-1, 0, 1):
        for dx in (-1, 0, 1):
            shifts.append((-(dy * img_w + dx)) % pp)
            ok = ((yy + dy >= 0) & (yy + dy < img_h) &
                  (xx + dx >= 0) & (xx + dx < img_w))
            masks.append(ok.astype(jnp.float32))
    tapmask = jnp.stack(masks, axis=0)                                   # (9, P)

    def kernel(xa_ref, xb_ref, xl_ref, tm_ref, wa_ref, ba_ref, wb_ref, bb_ref,
               wga_ref, wgb_ref, bg_ref, wf_ref, bf_ref, o_ref):
        f32, bf16 = jnp.float32, jnp.bfloat16
        xa = xa_ref[0]                                     # (C, P)
        xb = xb_ref[0]
        xl = xl_ref[0]
        xd = xa - xb                                       # x_diff formed in-kernel
        tm = tm_ref[...]

        def dsconv(x2c, wt_ref, bcol_ref):
            # folded dw3x3 + pw1x1 + BN + ReLU: roll-based im2col + one bf16 matmul
            taps = []
            for idx in range(9):
                sh = shifts[idx]
                t = x2c if sh == 0 else pltpu.roll(x2c, sh, axis=1)
                taps.append(t * tm[idx:idx + 1, :])
            im = jnp.concatenate(taps, axis=0).astype(bf16)              # (9*Cin, P)
            y = jnp.dot(wt_ref[...].astype(bf16), im,
                        preferred_element_type=f32) + bcol_ref[...]
            return jnp.maximum(y, 0.0)

        feat_a = dsconv(jnp.concatenate([xd, xa], axis=0), wa_ref, ba_ref)   # (C, P)
        feat_b = dsconv(jnp.concatenate([xd, xb], axis=0), wb_ref, bb_ref)
        # 1x1 -> 1-channel gate convs as sublane reductions (no narrow M=2 matmul)
        g_a = jax.nn.sigmoid(jnp.sum(feat_a * wga_ref[...], axis=0, keepdims=True)
                             + bg_ref[0:1, :])
        g_b = jax.nn.sigmoid(jnp.sum(feat_b * wgb_ref[...], axis=0, keepdims=True)
                             + bg_ref[1:2, :])
        gated = jnp.concatenate([g_a * xl, g_b * xl], axis=0)            # (2C, P)
        o_ref[0] = dsconv(gated, wf_ref, bf_ref)                         # (Cout, P)

    img_spec = pl.BlockSpec((1, c, pp), lambda i: (i, 0, 0))
    weights = [tapmask, w_a, b_a, w_b, b_b, wg_a, wg_b, bg, w_f, b_f]
    full = lambda a: pl.BlockSpec(a.shape, lambda i, _nd=a.ndim: (0,) * _nd)
    # TODO(synk): for larger B, block 2 rows per grid step so 2*C fills 8 sublanes;
    #             kept at 1 row/step here so both v7x TCs stay busy at B=2.
    return pl.pallas_call(
        kernel,
        out_shape=jax.ShapeDtypeStruct((b, cout, pp), jnp.float32),
        grid=(b,),
        in_specs=[img_spec, img_spec, img_spec] + [full(a) for a in weights],
        out_specs=pl.BlockSpec((1, cout, pp), lambda i: (i, 0, 0)),
        compiler_params=pltpu.CompilerParams(
            dimension_semantics=("parallel",),
            vmem_limit_bytes=32 * 1024 * 1024),
    )(xa_cp, xb_cp, xl_cp, *weights)


# -----------------------------------------------------------------------------------
# parameter init (deterministic, synthetic)
# -----------------------------------------------------------------------------------
def init_vil_params(key, dim, expand=2, conv_k=4, head_dim=4):
    inner = expand * dim
    nh = max(1, inner // head_dim)
    dh = inner // nh
    ks = jax.random.split(key, 13)

    def nrm(k, shape, sc=0.02):
        return sc * jax.random.normal(k, shape, jnp.float32)

    def bdiag(k, sc=0.02):
        blocks = [nrm(kk, (dh, dh), sc) for kk in jax.random.split(k, nh)]
        return jax.scipy.linalg.block_diag(*blocks).astype(jnp.float32)

    return dict(
        ln_g=jnp.ones((dim,), jnp.float32), ln_b=jnp.zeros((dim,), jnp.float32),
        wum=nrm(ks[0], (inner, dim)), wuz=nrm(ks[1], (inner, dim)),
        bum=jnp.zeros((inner,), jnp.float32), buz=jnp.zeros((inner,), jnp.float32),
        convw=nrm(ks[2], (conv_k, inner), 0.1), convb=jnp.zeros((inner,), jnp.float32),
        wq=bdiag(ks[3]), bq=jnp.zeros((inner,), jnp.float32),
        wk=bdiag(ks[4]), bk=jnp.zeros((inner,), jnp.float32),
        wv=bdiag(ks[5]), bv=jnp.zeros((inner,), jnp.float32),
        wiq=nrm(ks[6], (nh, inner)), wik=nrm(ks[7], (nh, inner)),
        wiv=nrm(ks[8], (nh, inner)), bi=jnp.zeros((nh,), jnp.float32),
        wfq=nrm(ks[9], (nh, inner)), wfk=nrm(ks[10], (nh, inner)),
        wfv=nrm(ks[11], (nh, inner)),
        bf=jnp.full((nh,), 3.0, jnp.float32),          # forget-gate bias (vision-lstm style)
        skip=jnp.ones((inner,), jnp.float32),
        mhg=jnp.ones((inner,), jnp.float32), mhb=jnp.zeros((inner,), jnp.float32),
        wd=nrm(ks[12], (dim, inner)), bd=jnp.zeros((dim,), jnp.float32),
    )


def init_dsconv_params(key, cin, cout):
    k1, k2 = jax.random.split(key)
    return dict(
        dw_w=0.1 * jax.random.normal(k1, (3, 3, cin), jnp.float32),
        dw_b=jnp.zeros((cin,), jnp.float32),
        pw_w=0.1 * jax.random.normal(k2, (cin, cout), jnp.float32),
        pw_b=jnp.zeros((cout,), jnp.float32),
        bn_gamma=jnp.ones((cout,), jnp.float32),
        bn_beta=jnp.zeros((cout,), jnp.float32),
        bn_mean=jnp.zeros((cout,), jnp.float32),
        bn_var=jnp.ones((cout,), jnp.float32),
    )


def init_params(key, in_channel, out_channel):
    ks = jax.random.split(key, 6)
    return dict(
        vil=init_vil_params(ks[0], in_channel),
        catconvA=init_dsconv_params(ks[1], 2 * in_channel, in_channel),
        catconvB=init_dsconv_params(ks[2], 2 * in_channel, in_channel),
        catconv=init_dsconv_params(ks[3], 2 * in_channel, out_channel),
        convA_w=0.1 * jax.random.normal(ks[4], (in_channel, 1), jnp.float32),
        convA_b=jnp.zeros((1,), jnp.float32),
        convB_w=0.1 * jax.random.normal(ks[5], (in_channel, 1), jnp.float32),
        convB_b=jnp.zeros((1,), jnp.float32),
    )


# -----------------------------------------------------------------------------------
# XLSTM_atten.forward
# -----------------------------------------------------------------------------------
def xlstm_atten_forward(params, xa, xb):
    """xa, xb: (B, C, H, W) float32 (PyTorch NCHW convention)."""
    b, c, h, w = xa.shape
    pp = h * w
    xa_cp = xa.reshape(b, c, pp)                       # free reshapes of NCHW
    xb_cp = xb.reshape(b, c, pp)

    # ViL / xLSTM branch on the difference tokens.  flip([-1, -2]) of the image is a
    # token reversal; fwd + rev scans (incl. both residuals) are computed inside one
    # pallas_call in the same (B, C, P) layout as the conv branch -- no host transposes.
    x_xlstm = vil_bidirectional(params["vil"], xa_cp - xb_cp)          # (B, C, P)

    out = fused_atten_conv(params, xa_cp, xb_cp, x_xlstm, h, w)        # (B, Cout, P)
    return out.reshape(b, out.shape[1], h, w)                          # NCHW


if __name__ == "__main__":
    key = jax.random.PRNGKey(0)
    B, C, H, W = 2, 4, 16, 16
    OUT_C = 4
    k_a, k_b, k_p = jax.random.split(key, 3)
    xA = jax.random.normal(k_a, (B, C, H, W), jnp.float32)
    xB = jax.random.normal(k_b, (B, C, H, W), jnp.float32)
    params = init_params(k_p, C, OUT_C)

    fn = jax.jit(lambda a_, b_: xlstm_atten_forward(params, a_, b_))
    out = jax.block_until_ready(fn(xA, xB))
    assert out.shape == (B, OUT_C, H, W), out.shape
    assert bool(jnp.all(jnp.isfinite(out)))
    print("KERNEL_OK")
</pallas_src>

<mosaic_0001>
module attributes {stable_mosaic.version = 11 : i64} {
  func.func @_vil_kernel(%arg0: i32, %arg1: memref<1x4x256xf32, #tpu.memory_space<vmem>>, %arg2: memref<16x4xf32, #tpu.memory_space<vmem>>, %arg3: memref<24x8xf32, #tpu.memory_space<vmem>>, %arg4: memref<4x29xf32, #tpu.memory_space<vmem>>, %arg5: memref<4x8xf32, #tpu.memory_space<vmem>>, %arg6: memref<8x13xf32, #tpu.memory_space<vmem>>, %arg7: memref<4x3xf32, #tpu.memory_space<vmem>>, %arg8: memref<1x4x256xf32, #tpu.memory_space<vmem>>) attributes {dimension_semantics = [#tpu.dimension_semantics<parallel>], iteration_bounds = array<i64: 2>, scalar_prefetch = 0 : i64, scratch_operands = 0 : i64, tpu.core_type = #tpu.core_type<tc>, window_params = [{transform_indices = @transform_0, window_bounds = array<i64: 1, 4, 256>}, {pipeline_mode = #tpu.pipeline_mode<synchronous>, transform_indices = @transform_1, window_bounds = array<i64: 16, 4>}, {pipeline_mode = #tpu.pipeline_mode<synchronous>, transform_indices = @transform_2, window_bounds = array<i64: 24, 8>}, {pipeline_mode = #tpu.pipeline_mode<synchronous>, transform_indices = @transform_3, window_bounds = array<i64: 4, 29>}, {pipeline_mode = #tpu.pipeline_mode<synchronous>, transform_indices = @transform_4, window_bounds = array<i64: 4, 8>}, {pipeline_mode = #tpu.pipeline_mode<synchronous>, transform_indices = @transform_5, window_bounds = array<i64: 8, 13>}, {pipeline_mode = #tpu.pipeline_mode<synchronous>, transform_indices = @transform_6, window_bounds = array<i64: 4, 3>}, {transform_indices = @transform_7, window_bounds = array<i64: 1, 4, 256>}]} {
    %c0 = arith.constant 0 : index
    %c0_0 = arith.constant 0 : index
    %c0_1 = arith.constant 0 : index
    %0 = vector.load %arg1[%c0, %c0_0, %c0_1] : memref<1x4x256xf32, #tpu.memory_space<vmem>>, vector<1x4x256xf32>
    %1 = vector.shape_cast %0 : vector<1x4x256xf32> to vector<4x256xf32>
    %c0_2 = arith.constant 0 : index
    %c0_3 = arith.constant 0 : index
    %2 = vector.load %arg6[%c0_2, %c0_3] : memref<8x13xf32, #tpu.memory_space<vmem>>, vector<8x13xf32>
    %c0_4 = arith.constant 0 : index
    %c0_5 = arith.constant 0 : index
    %3 = vector.load %arg7[%c0_4, %c0_5] : memref<4x3xf32, #tpu.memory_space<vmem>>, vector<4x3xf32>
    %cst = arith.constant dense<0.000000e+00> : vector<256xf32>
    %4 = vector.multi_reduction <add>, %1, %cst [0] : vector<4x256xf32> to vector<256xf32>
    %5 = vector.shape_cast %4 : vector<256xf32> to vector<1x256xf32>
    %cst_6 = arith.constant 4.000000e+00 : f32
    %6 = vector.broadcast %cst_6 : f32 to vector<1x256xf32>
    %7 = arith.divf %5, %6 : vector<1x256xf32>
    %8 = vector.broadcast %7 : vector<1x256xf32> to vector<4x256xf32>
    %9 = arith.subf %1, %8 : vector<4x256xf32>
    %10 = arith.mulf %9, %9 : vector<4x256xf32>
    %cst_7 = arith.constant dense<0.000000e+00> : vector<256xf32>
    %11 = vector.multi_reduction <add>, %10, %cst_7 [0] : vector<4x256xf32> to vector<256xf32>
    %12 = vector.shape_cast %11 : vector<256xf32> to vector<1x256xf32>
    %cst_8 = arith.constant 4.000000e+00 : f32
    %13 = vector.broadcast %cst_8 : f32 to vector<1x256xf32>
    %14 = arith.divf %12, %13 : vector<1x256xf32>
    %15 = vector.broadcast %7 : vector<1x256xf32> to vector<4x256xf32>
    %16 = arith.subf %1, %15 : vector<4x256xf32>
    %cst_9 = arith.constant 9.99999974E-6 : f32
    %17 = vector.broadcast %cst_9 : f32 to vector<1x256xf32>
    %18 = arith.addf %14, %17 : vector<1x256xf32>
    %19 = math.rsqrt %18 : vector<1x256xf32>
    %20 = vector.broadcast %19 : vector<1x256xf32> to vector<4x256xf32>
    %21 = arith.mulf %16, %20 : vector<4x256xf32>
    %22 = vector.extract_strided_slice %3 {offsets = [0, 0], sizes = [4, 1], strides = [1, 1]} : vector<4x3xf32> to vector<4x1xf32>
    %23 = vector.broadcast %22 : vector<4x1xf32> to vector<4x256xf32>
    %24 = arith.mulf %21, %23 : vector<4x256xf32>
    %25 = vector.extract_strided_slice %3 {offsets = [0, 1], sizes = [4, 1], strides = [1, 1]} : vector<4x3xf32> to vector<4x1xf32>
    %26 = vector.broadcast %25 : vector<4x1xf32> to vector<4x256xf32>
    %27 = arith.addf %24, %26 : vector<4x256xf32>
    %c0_10 = arith.constant 0 : index
    %c0_11 = arith.constant 0 : index
    %28 = vector.load %arg2[%c0_10, %c0_11] : memref<16x4xf32, #tpu.memory_space<vmem>>, vector<16x4xf32>
    %29 = arith.truncf %28 : vector<16x4xf32> to vector<16x4xbf16>
    %30 = arith.truncf %27 : vector<4x256xf32> to vector<4x256xbf16>
    %cst_12 = arith.constant dense<0.000000e+00> : vector<16x256xf32>
    %31 = tpu.matmul %29, %30, %cst_12 {dimension_numbers = #tpu.dot_dimension_numbers<[1], [0], [0], [1], [0, 0, 1, 1], [], []>} : vector<16x4xbf16>, vector<4x256xbf16>, vector<16x256xf32> -> vector<16x256xf32>
    %32 = vector.extract_strided_slice %31 {offsets = [0, 0], sizes = [8, 256], strides = [1, 1]} : vector<16x256xf32> to vector<8x256xf32>
    %33 = vector.extract_strided_slice %2 {offsets = [0, 0], sizes = [8, 1], strides = [1, 1]} : vector<8x13xf32> to vector<8x1xf32>
    %34 = vector.broadcast %33 : vector<8x1xf32> to vector<8x256xf32>
    %35 = arith.addf %32, %34 : vector<8x256xf32>
    %36 = vector.extract_strided_slice %31 {offsets = [8, 0], sizes = [8, 256], strides = [1, 1]} : vector<16x256xf32> to vector<8x256xf32>
    %37 = vector.extract_strided_slice %2 {offsets = [0, 1], sizes = [8, 1], strides = [1, 1]} : vector<8x13xf32> to vector<8x1xf32>
    %38 = vector.broadcast %37 : vector<8x1xf32> to vector<8x256xf32>
    %39 = arith.addf %36, %38 : vector<8x256xf32>
    %40 = arith.negf %39 : vector<8x256xf32>
    %41 = math.exp %40 : vector<8x256xf32>
    %cst_13 = arith.constant 1.000000e+00 : f32
    %42 = vector.broadcast %cst_13 : f32 to vector<8x256xf32>
    %43 = arith.addf %42, %41 : vector<8x256xf32>
    %44 = arith.divf %42, %43 : vector<8x256xf32>
    %45 = arith.mulf %39, %44 : vector<8x256xf32>
    %c0_14 = arith.constant 0 : index
    %c0_15 = arith.constant 0 : index
    %46 = vector.load %arg3[%c0_14, %c0_15] : memref<24x8xf32, #tpu.memory_space<vmem>>, vector<24x8xf32>
    %47 = vector.extract_strided_slice %46 {offsets = [16, 0], sizes = [8, 8], strides = [1, 1]} : vector<24x8xf32> to vector<8x8xf32>
    %48 = arith.truncf %47 : vector<8x8xf32> to vector<8x8xbf16>
    %49 = arith.truncf %35 : vector<8x256xf32> to vector<8x256xbf16>
    %cst_16 = arith.constant dense<0.000000e+00> : vector<8x256xf32>
    %50 = tpu.matmul %48, %49, %cst_16 {dimension_numbers = #tpu.dot_dimension_numbers<[1], [0], [0], [1], [0, 0, 1, 1], [], []>} : vector<8x8xbf16>, vector<8x256xbf16>, vector<8x256xf32> -> vector<8x256xf32>
    %51 = vector.extract_strided_slice %2 {offsets = [0, 5], sizes = [8, 1], strides = [1, 1]} : vector<8x13xf32> to vector<8x1xf32>
    %52 = vector.broadcast %51 : vector<8x1xf32> to vector<8x256xf32>
    %53 = arith.addf %50, %52 : vector<8x256xf32>
    %c0_17 = arith.constant 0 : index
    %c0_18 = arith.constant 0 : index
    %54 = vector.load %arg4[%c0_17, %c0_18] : memref<4x29xf32, #tpu.memory_space<vmem>>, vector<4x29xf32>
    %55 = vector.extract_strided_slice %54 {offsets = [0, 0], sizes = [4, 24], strides = [1, 1]} : vector<4x29xf32> to vector<4x24xf32>
    %56 = arith.truncf %55 : vector<4x24xf32> to vector<4x24xbf16>
    %57 = vector.extract_strided_slice %54 {offsets = [0, 24], sizes = [4, 1], strides = [1, 1]} : vector<4x29xf32> to vector<4x1xf32>
    %58 = vector.extract_strided_slice %54 {offsets = [0, 25], sizes = [4, 4], strides = [1, 1]} : vector<4x29xf32> to vector<4x4xf32>
    %c0_19 = arith.constant 0 : index
    %c0_20 = arith.constant 0 : index
    %59 = vector.load %arg5[%c0_19, %c0_20] : memref<4x8xf32, #tpu.memory_space<vmem>>, vector<4x8xf32>
    %60 = arith.truncf %59 : vector<4x8xf32> to vector<4x8xbf16>
    %61 = tpu.iota {dimensions = array<i32: 1>} : vector<1x256xi32>
    %62 = tpu.iota {dimensions = array<i32: 0>} : vector<256x256xi32>
    %63 = tpu.iota {dimensions = array<i32: 1>} : vector<256x256xi32>
    %cst_21 = arith.constant 0.000000e+00 : f32
    %64 = vector.broadcast %cst_21 : f32 to vector<8x256xf32>
    %65 = vector.extract_strided_slice %2 {offsets = [0, 2], sizes = [8, 1], strides = [1, 1]} : vector<8x13xf32> to vector<8x1xf32>
    %cst_22 = arith.constant 0.000000e+00 : f32
    %66 = vector.broadcast %cst_22 : f32 to vector<8x256xf32>
    %67 = vector.broadcast %65 : vector<8x1xf32> to vector<8x256xf32>
    %68 = arith.addf %67, %66 : vector<8x256xf32>
    %c3_i32 = arith.constant 3 : i32
    %69 = vector.broadcast %c3_i32 : i32 to vector<1x256xi32>
    %70 = arith.cmpi sge, %61, %69 : vector<1x256xi32>
    %c3_i32_23 = arith.constant 3 : i32
    %71 = tpu.dynamic_rotate %35 by %c3_i32_23 dim 1 : vector<8x256xf32>, i32 -> vector<8x256xf32>
    %cst_24 = arith.constant 0.000000e+00 : f32
    %72 = vector.shape_cast %70 : vector<1x256xi1> to vector<1x256xi1>
    %73 = vector.broadcast %72 : vector<1x256xi1> to vector<8x256xi1>
    %74 = vector.broadcast %cst_24 : f32 to vector<8x256xf32>
    %75 = arith.select %73, %71, %74 : vector<8x256xi1>, vector<8x256xf32>
    %76 = vector.extract_strided_slice %2 {offsets = [0, 9], sizes = [8, 1], strides = [1, 1]} : vector<8x13xf32> to vector<8x1xf32>
    %77 = vector.broadcast %76 : vector<8x1xf32> to vector<8x256xf32>
    %78 = arith.mulf %75, %77 : vector<8x256xf32>
    %79 = arith.addf %68, %78 : vector<8x256xf32>
    %c2_i32 = arith.constant 2 : i32
    %80 = vector.broadcast %c2_i32 : i32 to vector<1x256xi32>
    %81 = arith.cmpi sge, %61, %80 : vector<1x256xi32>
    %c2_i32_25 = arith.constant 2 : i32
    %82 = tpu.dynamic_rotate %35 by %c2_i32_25 dim 1 : vector<8x256xf32>, i32 -> vector<8x256xf32>
    %cst_26 = arith.constant 0.000000e+00 : f32
    %83 = vector.shape_cast %81 : vector<1x256xi1> to vector<1x256xi1>
    %84 = vector.broadcast %83 : vector<1x256xi1> to vector<8x256xi1>
    %85 = vector.broadcast %cst_26 : f32 to vector<8x256xf32>
    %86 = arith.select %84, %82, %85 : vector<8x256xi1>, vector<8x256xf32>
    %87 = vector.extract_strided_slice %2 {offsets = [0, 10], sizes = [8, 1], strides = [1, 1]} : vector<8x13xf32> to vector<8x1xf32>
    %88 = vector.broadcast %87 : vector<8x1xf32> to vector<8x256xf32>
    %89 = arith.mulf %86, %88 : vector<8x256xf32>
    %90 = arith.addf %79, %89 : vector<8x256xf32>
    %c1_i32 = arith.constant 1 : i32
    %91 = vector.broadcast %c1_i32 : i32 to vector<1x256xi32>
    %92 = arith.cmpi sge, %61, %91 : vector<1x256xi32>
    %c1_i32_27 = arith.constant 1 : i32
    %93 = tpu.dynamic_rotate %35 by %c1_i32_27 dim 1 : vector<8x256xf32>, i32 -> vector<8x256xf32>
    %cst_28 = arith.constant 0.000000e+00 : f32
    %94 = vector.shape_cast %92 : vector<1x256xi1> to vector<1x256xi1>
    %95 = vector.broadcast %94 : vector<1x256xi1> to vector<8x256xi1>
    %96 = vector.broadcast %cst_28 : f32 to vector<8x256xf32>
    %97 = arith.select %95, %93, %96 : vector<8x256xi1>, vector<8x256xf32>
    %98 = vector.extract_strided_slice %2 {offsets = [0, 11], sizes = [8, 1], strides = [1, 1]} : vector<8x13xf32> to vector<8x1xf32>
    %99 = vector.broadcast %98 : vector<8x1xf32> to vector<8x256xf32>
    %100 = arith.mulf %97, %99 : vector<8x256xf32>
    %101 = arith.addf %90, %100 : vector<8x256xf32>
    %102 = vector.extract_strided_slice %2 {offsets = [0, 12], sizes = [8, 1], strides = [1, 1]} : vector<8x13xf32> to vector<8x1xf32>
    %103 = vector.broadcast %102 : vector<8x1xf32> to vector<8x256xf32>
    %104 = arith.mulf %35, %103 : vector<8x256xf32>
    %105 = arith.addf %101, %104 : vector<8x256xf32>
    %106 = arith.negf %105 : vector<8x256xf32>
    %107 = math.exp %106 : vector<8x256xf32>
    %cst_29 = arith.constant 1.000000e+00 : f32
    %108 = vector.broadcast %cst_29 : f32 to vector<8x256xf32>
    %109 = arith.addf %108, %107 : vector<8x256xf32>
    %110 = arith.divf %108, %109 : vector<8x256xf32>
    %111 = arith.mulf %105, %110 : vector<8x256xf32>
    %112 = arith.truncf %111 : vector<8x256xf32> to vector<8x256xbf16>
    %113 = vector.extract_strided_slice %46 {offsets = [0, 0], sizes = [8, 8], strides = [1, 1]} : vector<24x8xf32> to vector<8x8xf32>
    %114 = arith.truncf %113 : vector<8x8xf32> to vector<8x8xbf16>
    %cst_30 = arith.constant dense<0.000000e+00> : vector<8x256xf32>
    %115 = tpu.matmul %114, %112, %cst_30 {dimension_numbers = #tpu.dot_dimension_numbers<[1], [0], [0], [1], [0, 0, 1, 1], [], []>} : vector<8x8xbf16>, vector<8x256xbf16>, vector<8x256xf32> -> vector<8x256xf32>
    %116 = vector.extract_strided_slice %2 {offsets = [0, 3], sizes = [8, 1], strides = [1, 1]} : vector<8x13xf32> to vector<8x1xf32>
    %117 = vector.broadcast %116 : vector<8x1xf32> to vector<8x256xf32>
    %118 = arith.addf %115, %117 : vector<8x256xf32>
    %119 = vector.extract_strided_slice %46 {offsets = [8, 0], sizes = [8, 8], strides = [1, 1]} : vector<24x8xf32> to vector<8x8xf32>
    %120 = arith.truncf %119 : vector<8x8xf32> to vector<8x8xbf16>
    %cst_31 = arith.constant dense<0.000000e+00> : vector<8x256xf32>
    %121 = tpu.matmul %120, %112, %cst_31 {dimension_numbers = #tpu.dot_dimension_numbers<[1], [0], [0], [1], [0, 0, 1, 1], [], []>} : vector<8x8xbf16>, vector<8x256xbf16>, vector<8x256xf32> -> vector<8x256xf32>
    %122 = vector.extract_strided_slice %2 {offsets = [0, 4], sizes = [8, 1], strides = [1, 1]} : vector<8x13xf32> to vector<8x1xf32>
    %123 = vector.broadcast %122 : vector<8x1xf32> to vector<8x256xf32>
    %124 = arith.addf %121, %123 : vector<8x256xf32>
    %125 = tpu.concatenate %118, %124, %53 in 0 : vector<8x256xf32>, vector<8x256xf32>, vector<8x256xf32> -> vector<24x256xf32>
    %126 = arith.truncf %125 : vector<24x256xf32> to vector<24x256xbf16>
    %cst_32 = arith.constant dense<0.000000e+00> : vector<4x256xf32>
    %127 = tpu.matmul %56, %126, %cst_32 {dimension_numbers = #tpu.dot_dimension_numbers<[1], [0], [0], [1], [0, 0, 1, 1], [], []>} : vector<4x24xbf16>, vector<24x256xbf16>, vector<4x256xf32> -> vector<4x256xf32>
    %128 = vector.broadcast %57 : vector<4x1xf32> to vector<4x256xf32>
    %129 = arith.addf %127, %128 : vector<4x256xf32>
    %130 = vector.extract_strided_slice %129 {offsets = [0, 0], sizes = [2, 256], strides = [1, 1]} : vector<4x256xf32> to vector<2x256xf32>
    %131 = vector.extract_strided_slice %129 {offsets = [2, 0], sizes = [2, 256], strides = [1, 1]} : vector<4x256xf32> to vector<2x256xf32>
    %cst_33 = arith.constant 0.000000e+00 : f32
    %132 = vector.broadcast %cst_33 : f32 to vector<2x256xf32>
    %133 = arith.minimumf %131, %132 : vector<2x256xf32>
    %134 = math.absf %131 : vector<2x256xf32>
    %cst_34 = arith.constant 0.000000e+00 : f32
    %135 = vector.broadcast %cst_34 : f32 to vector<2x256xf32>
    %136 = arith.subf %135, %134 : vector<2x256xf32>
    %137 = math.exp %136 : vector<2x256xf32>
    %cst_35 = arith.constant 1.000000e+00 : f32
    %138 = vector.broadcast %cst_35 : f32 to vector<2x256xf32>
    %139 = arith.addf %138, %137 : vector<2x256xf32>
    %140 = math.log %139 : vector<2x256xf32>
    %141 = arith.subf %133, %140 : vector<2x256xf32>
    %c1_i32_36 = arith.constant 1 : i32
    %142 = tpu.dynamic_rotate %141 by %c1_i32_36 dim 1 : vector<2x256xf32>, i32 -> vector<2x256xf32>
    %c1_i32_37 = arith.constant 1 : i32
    %143 = vector.broadcast %c1_i32_37 : i32 to vector<1x256xi32>
    %144 = arith.cmpi sge, %61, %143 : vector<1x256xi32>
    %cst_38 = arith.constant 0.000000e+00 : f32
    %145 = vector.shape_cast %144 : vector<1x256xi1> to vector<1x256xi1>
    %146 = vector.broadcast %145 : vector<1x256xi1> to vector<2x256xi1>
    %147 = vector.broadcast %cst_38 : f32 to vector<2x256xf32>
    %148 = arith.select %146, %142, %147 : vector<2x256xi1>, vector<2x256xf32>
    %149 = arith.addf %141, %148 : vector<2x256xf32>
    %c2_i32_39 = arith.constant 2 : i32
    %150 = tpu.dynamic_rotate %149 by %c2_i32_39 dim 1 : vector<2x256xf32>, i32 -> vector<2x256xf32>
    %c2_i32_40 = arith.constant 2 : i32
    %151 = vector.broadcast %c2_i32_40 : i32 to vector<1x256xi32>
    %152 = arith.cmpi sge, %61, %151 : vector<1x256xi32>
    %cst_41 = arith.constant 0.000000e+00 : f32
    %153 = vector.shape_cast %152 : vector<1x256xi1> to vector<1x256xi1>
    %154 = vector.broadcast %153 : vector<1x256xi1> to vector<2x256xi1>
    %155 = vector.broadcast %cst_41 : f32 to vector<2x256xf32>
    %156 = arith.select %154, %150, %155 : vector<2x256xi1>, vector<2x256xf32>
    %157 = arith.addf %149, %156 : vector<2x256xf32>
    %c4_i32 = arith.constant 4 : i32
    %158 = tpu.dynamic_rotate %157 by %c4_i32 dim 1 : vector<2x256xf32>, i32 -> vector<2x256xf32>
    %c4_i32_42 = arith.constant 4 : i32
    %159 = vector.broadcast %c4_i32_42 : i32 to vector<1x256xi32>
    %160 = arith.cmpi sge, %61, %159 : vector<1x256xi32>
    %cst_43 = arith.constant 0.000000e+00 : f32
    %161 = vector.shape_cast %160 : vector<1x256xi1> to vector<1x256xi1>
    %162 = vector.broadcast %161 : vector<1x256xi1> to vector<2x256xi1>
    %163 = vector.broadcast %cst_43 : f32 to vector<2x256xf32>
    %164 = arith.select %162, %158, %163 : vector<2x256xi1>, vector<2x256xf32>
    %165 = arith.addf %157, %164 : vector<2x256xf32>
    %c8_i32 = arith.constant 8 : i32
    %166 = tpu.dynamic_rotate %165 by %c8_i32 dim 1 : vector<2x256xf32>, i32 -> vector<2x256xf32>
    %c8_i32_44 = arith.constant 8 : i32
    %167 = vector.broadcast %c8_i32_44 : i32 to vector<1x256xi32>
    %168 = arith.cmpi sge, %61, %167 : vector<1x256xi32>
    %cst_45 = arith.constant 0.000000e+00 : f32
    %169 = vector.shape_cast %168 : vector<1x256xi1> to vector<1x256xi1>
    %170 = vector.broadcast %169 : vector<1x256xi1> to vector<2x256xi1>
    %171 = vector.broadcast %cst_45 : f32 to vector<2x256xf32>
    %172 = arith.select %170, %166, %171 : vector<2x256xi1>, vector<2x256xf32>
    %173 = arith.addf %165, %172 : vector<2x256xf32>
    %c16_i32 = arith.constant 16 : i32
    %174 = tpu.dynamic_rotate %173 by %c16_i32 dim 1 : vector<2x256xf32>, i32 -> vector<2x256xf32>
    %c16_i32_46 = arith.constant 16 : i32
    %175 = vector.broadcast %c16_i32_46 : i32 to vector<1x256xi32>
    %176 = arith.cmpi sge, %61, %175 : vector<1x256xi32>
    %cst_47 = arith.constant 0.000000e+00 : f32
    %177 = vector.shape_cast %176 : vector<1x256xi1> to vector<1x256xi1>
    %178 = vector.broadcast %177 : vector<1x256xi1> to vector<2x256xi1>
    %179 = vector.broadcast %cst_47 : f32 to vector<2x256xf32>
    %180 = arith.select %178, %174, %179 : vector<2x256xi1>, vector<2x256xf32>
    %181 = arith.addf %173, %180 : vector<2x256xf32>
    %c32_i32 = arith.constant 32 : i32
    %182 = tpu.dynamic_rotate %181 by %c32_i32 dim 1 : vector<2x256xf32>, i32 -> vector<2x256xf32>
    %c32_i32_48 = arith.constant 32 : i32
    %183 = vector.broadcast %c32_i32_48 : i32 to vector<1x256xi32>
    %184 = arith.cmpi sge, %61, %183 : vector<1x256xi32>
    %cst_49 = arith.constant 0.000000e+00 : f32
    %185 = vector.shape_cast %184 : vector<1x256xi1> to vector<1x256xi1>
    %186 = vector.broadcast %185 : vector<1x256xi1> to vector<2x256xi1>
    %187 = vector.broadcast %cst_49 : f32 to vector<2x256xf32>
    %188 = arith.select %186, %182, %187 : vector<2x256xi1>, vector<2x256xf32>
    %189 = arith.addf %181, %188 : vector<2x256xf32>
    %c64_i32 = arith.constant 64 : i32
    %190 = tpu.dynamic_rotate %189 by %c64_i32 dim 1 : vector<2x256xf32>, i32 -> vector<2x256xf32>
    %c64_i32_50 = arith.constant 64 : i32
    %191 = vector.broadcast %c64_i32_50 : i32 to vector<1x256xi32>
    %192 = arith.cmpi sge, %61, %191 : vector<1x256xi32>
    %cst_51 = arith.constant 0.000000e+00 : f32
    %193 = vector.shape_cast %192 : vector<1x256xi1> to vector<1x256xi1>
    %194 = vector.broadcast %193 : vector<1x256xi1> to vector<2x256xi1>
    %195 = vector.broadcast %cst_51 : f32 to vector<2x256xf32>
    %196 = arith.select %194, %190, %195 : vector<2x256xi1>, vector<2x256xf32>
    %197 = arith.addf %189, %196 : vector<2x256xf32>
    %c128_i32 = arith.constant 128 : i32
    %198 = tpu.dynamic_rotate %197 by %c128_i32 dim 1 : vector<2x256xf32>, i32 -> vector<2x256xf32>
    %c128_i32_52 = arith.constant 128 : i32
    %199 = vector.broadcast %c128_i32_52 : i32 to vector<1x256xi32>
    %200 = arith.cmpi sge, %61, %199 : vector<1x256xi32>
    %cst_53 = arith.constant 0.000000e+00 : f32
    %201 = vector.shape_cast %200 : vector<1x256xi1> to vector<1x256xi1>
    %202 = vector.broadcast %201 : vector<1x256xi1> to vector<2x256xi1>
    %203 = vector.broadcast %cst_53 : f32 to vector<2x256xf32>
    %204 = arith.select %202, %198, %203 : vector<2x256xi1>, vector<2x256xf32>
    %205 = arith.addf %197, %204 : vector<2x256xf32>
    %206 = arith.subf %130, %205 : vector<2x256xf32>
    %c1_i32_54 = arith.constant 1 : i32
    %207 = tpu.dynamic_rotate %206 by %c1_i32_54 dim 1 : vector<2x256xf32>, i32 -> vector<2x256xf32>
    %c1_i32_55 = arith.constant 1 : i32
    %208 = vector.broadcast %c1_i32_55 : i32 to vector<1x256xi32>
    %209 = arith.cmpi sge, %61, %208 : vector<1x256xi32>
    %cst_56 = arith.constant -1.000000e+30 : f32
    %210 = vector.shape_cast %209 : vector<1x256xi1> to vector<1x256xi1>
    %211 = vector.broadcast %210 : vector<1x256xi1> to vector<2x256xi1>
    %212 = vector.broadcast %cst_56 : f32 to vector<2x256xf32>
    %213 = arith.select %211, %207, %212 : vector<2x256xi1>, vector<2x256xf32>
    %214 = arith.maximumf %206, %213 : vector<2x256xf32>
    %c2_i32_57 = arith.constant 2 : i32
    %215 = tpu.dynamic_rotate %214 by %c2_i32_57 dim 1 : vector<2x256xf32>, i32 -> vector<2x256xf32>
    %c2_i32_58 = arith.constant 2 : i32
    %216 = vector.broadcast %c2_i32_58 : i32 to vector<1x256xi32>
    %217 = arith.cmpi sge, %61, %216 : vector<1x256xi32>
    %cst_59 = arith.constant -1.000000e+30 : f32
    %218 = vector.shape_cast %217 : vector<1x256xi1> to vector<1x256xi1>
    %219 = vector.broadcast %218 : vector<1x256xi1> to vector<2x256xi1>
    %220 = vector.broadcast %cst_59 : f32 to vector<2x256xf32>
    %221 = arith.select %219, %215, %220 : vector<2x256xi1>, vector<2x256xf32>
    %222 = arith.maximumf %214, %221 : vector<2x256xf32>
    %c4_i32_60 = arith.constant 4 : i32
    %223 = tpu.dynamic_rotate %222 by %c4_i32_60 dim 1 : vector<2x256xf32>, i32 -> vector<2x256xf32>
    %c4_i32_61 = arith.constant 4 : i32
    %224 = vector.broadcast %c4_i32_61 : i32 to vector<1x256xi32>
    %225 = arith.cmpi sge, %61, %224 : vector<1x256xi32>
    %cst_62 = arith.constant -1.000000e+30 : f32
    %226 = vector.shape_cast %225 : vector<1x256xi1> to vector<1x256xi1>
    %227 = vector.broadcast %226 : vector<1x256xi1> to vector<2x256xi1>
    %228 = vector.broadcast %cst_62 : f32 to vector<2x256xf32>
    %229 = arith.select %227, %223, %228 : vector<2x256xi1>, vector<2x256xf32>
    %230 = arith.maximumf %222, %229 : vector<2x256xf32>
    %c8_i32_63 = arith.constant 8 : i32
    %231 = tpu.dynamic_rotate %230 by %c8_i32_63 dim 1 : vector<2x256xf32>, i32 -> vector<2x256xf32>
    %c8_i32_64 = arith.constant 8 : i32
    %232 = vector.broadcast %c8_i32_64 : i32 to vector<1x256xi32>
    %233 = arith.cmpi sge, %61, %232 : vector<1x256xi32>
    %cst_65 = arith.constant -1.000000e+30 : f32
    %234 = vector.shape_cast %233 : vector<1x256xi1> to vector<1x256xi1>
    %235 = vector.broadcast %234 : vector<1x256xi1> to vector<2x256xi1>
    %236 = vector.broadcast %cst_65 : f32 to vector<2x256xf32>
    %237 = arith.select %235, %231, %236 : vector<2x256xi1>, vector<2x256xf32>
    %238 = arith.maximumf %230, %237 : vector<2x256xf32>
    %c16_i32_66 = arith.constant 16 : i32
    %239 = tpu.dynamic_rotate %238 by %c16_i32_66 dim 1 : vector<2x256xf32>, i32 -> vector<2x256xf32>
    %c16_i32_67 = arith.constant 16 : i32
    %240 = vector.broadcast %c16_i32_67 : i32 to vector<1x256xi32>
    %241 = arith.cmpi sge, %61, %240 : vector<1x256xi32>
    %cst_68 = arith.constant -1.000000e+30 : f32
    %242 = vector.shape_cast %241 : vector<1x256xi1> to vector<1x256xi1>
    %243 = vector.broadcast %242 : vector<1x256xi1> to vector<2x256xi1>
    %244 = vector.broadcast %cst_68 : f32 to vector<2x256xf32>
    %245 = arith.select %243, %239, %244 : vector<2x256xi1>, vector<2x256xf32>
    %246 = arith.maximumf %238, %245 : vector<2x256xf32>
    %c32_i32_69 = arith.constant 32 : i32
    %247 = tpu.dynamic_rotate %246 by %c32_i32_69 dim 1 : vector<2x256xf32>, i32 -> vector<2x256xf32>
    %c32_i32_70 = arith.constant 32 : i32
    %248 = vector.broadcast %c32_i32_70 : i32 to vector<1x256xi32>
    %249 = arith.cmpi sge, %61, %248 : vector<1x256xi32>
    %cst_71 = arith.constant -1.000000e+30 : f32
    %250 = vector.shape_cast %249 : vector<1x256xi1> to vector<1x256xi1>
    %251 = vector.broadcast %250 : vector<1x256xi1> to vector<2x256xi1>
    %252 = vector.broadcast %cst_71 : f32 to vector<2x256xf32>
    %253 = arith.select %251, %247, %252 : vector<2x256xi1>, vector<2x256xf32>
    %254 = arith.maximumf %246, %253 : vector<2x256xf32>
    %c64_i32_72 = arith.constant 64 : i32
    %255 = tpu.dynamic_rotate %254 by %c64_i32_72 dim 1 : vector<2x256xf32>, i32 -> vector<2x256xf32>
    %c64_i32_73 = arith.constant 64 : i32
    %256 = vector.broadcast %c64_i32_73 : i32 to vector<1x256xi32>
    %257 = arith.cmpi sge, %61, %256 : vector<1x256xi32>
    %cst_74 = arith.constant -1.000000e+30 : f32
    %258 = vector.shape_cast %257 : vector<1x256xi1> to vector<1x256xi1>
    %259 = vector.broadcast %258 : vector<1x256xi1> to vector<2x256xi1>
    %260 = vector.broadcast %cst_74 : f32 to vector<2x256xf32>
    %261 = arith.select %259, %255, %260 : vector<2x256xi1>, vector<2x256xf32>
    %262 = arith.maximumf %254, %261 : vector<2x256xf32>
    %c128_i32_75 = arith.constant 128 : i32
    %263 = tpu.dynamic_rotate %262 by %c128_i32_75 dim 1 : vector<2x256xf32>, i32 -> vector<2x256xf32>
    %c128_i32_76 = arith.constant 128 : i32
    %264 = vector.broadcast %c128_i32_76 : i32 to vector<1x256xi32>
    %265 = arith.cmpi sge, %61, %264 : vector<1x256xi32>
    %cst_77 = arith.constant -1.000000e+30 : f32
    %266 = vector.shape_cast %265 : vector<1x256xi1> to vector<1x256xi1>
    %267 = vector.broadcast %266 : vector<1x256xi1> to vector<2x256xi1>
    %268 = vector.broadcast %cst_77 : f32 to vector<2x256xf32>
    %269 = arith.select %267, %263, %268 : vector<2x256xi1>, vector<2x256xf32>
    %270 = arith.maximumf %262, %269 : vector<2x256xf32>
    %271 = tpu.concatenate %205, %270 in 0 : vector<2x256xf32>, vector<2x256xf32> -> vector<4x256xf32>
    %cst_78 = arith.constant dense<0.000000e+00> : vector<256x4xf32>
    %272 = tpu.matmul %271, %58, %cst_78 {dimension_numbers = #tpu.dot_dimension_numbers<[0], [0], [1], [1], [0, 1, 1, 1], [], []>} : vector<4x256xf32>, vector<4x4xf32>, vector<256x4xf32> -> vector<256x4xf32>
    %273 = arith.cmpi sle, %63, %62 : vector<256x256xi32>
    %274 = vector.extract_strided_slice %272 {offsets = [0, 0], sizes = [256, 1], strides = [1, 1]} : vector<256x4xf32> to vector<256x1xf32>
    %275 = vector.extract_strided_slice %272 {offsets = [0, 2], sizes = [256, 1], strides = [1, 1]} : vector<256x4xf32> to vector<256x1xf32>
    %276 = vector.extract_strided_slice %206 {offsets = [0, 0], sizes = [1, 256], strides = [1, 1]} : vector<2x256xf32> to vector<1x256xf32>
    %277 = vector.broadcast %276 : vector<1x256xf32> to vector<256x256xf32>
    %278 = vector.broadcast %275 : vector<256x1xf32> to vector<256x256xf32>
    %279 = arith.subf %277, %278 : vector<256x256xf32>
    %cst_79 = arith.constant 0.000000e+00 : f32
    %280 = vector.broadcast %cst_79 : f32 to vector<256x256xf32>
    %281 = arith.minimumf %279, %280 : vector<256x256xf32>
    %282 = math.exp %281 : vector<256x256xf32>
    %cst_80 = arith.constant 0.000000e+00 : f32
    %283 = vector.broadcast %cst_80 : f32 to vector<256x256xf32>
    %284 = arith.select %273, %282, %283 : vector<256x256xi1>, vector<256x256xf32>
    %285 = vector.extract_strided_slice %118 {offsets = [0, 0], sizes = [4, 256], strides = [1, 1]} : vector<8x256xf32> to vector<4x256xf32>
    %286 = arith.truncf %285 : vector<4x256xf32> to vector<4x256xbf16>
    %287 = vector.extract_strided_slice %124 {offsets = [0, 0], sizes = [4, 256], strides = [1, 1]} : vector<8x256xf32> to vector<4x256xf32>
    %288 = arith.truncf %287 : vector<4x256xf32> to vector<4x256xbf16>
    %289 = vector.extract_strided_slice %53 {offsets = [0, 0], sizes = [4, 256], strides = [1, 1]} : vector<8x256xf32> to vector<4x256xf32>
    %290 = arith.truncf %289 : vector<4x256xf32> to vector<4x256xbf16>
    %cst_81 = arith.constant dense<0.000000e+00> : vector<256x256xf32>
    %291 = tpu.matmul %286, %288, %cst_81 {dimension_numbers = #tpu.dot_dimension_numbers<[0], [0], [1], [1], [0, 1, 1, 1], [], []>} : vector<4x256xbf16>, vector<4x256xbf16>, vector<256x256xf32> -> vector<256x256xf32>
    %cst_82 = arith.constant 5.000000e-01 : f32
    %292 = vector.broadcast %cst_82 : f32 to vector<256x256xf32>
    %293 = arith.mulf %291, %292 : vector<256x256xf32>
    %294 = arith.mulf %293, %284 : vector<256x256xf32>
    %cst_83 = arith.constant dense<0.000000e+00> : vector<256xf32>
    %295 = vector.multi_reduction <add>, %294, %cst_83 [1] : vector<256x256xf32> to vector<256xf32>
    %296 = vector.shape_cast %295 : vector<256xf32> to vector<256x1xf32>
    %297 = arith.addf %274, %275 : vector<256x1xf32>
    %298 = math.absf %296 : vector<256x1xf32>
    %cst_84 = arith.constant 0.000000e+00 : f32
    %299 = vector.broadcast %cst_84 : f32 to vector<256x1xf32>
    %300 = arith.subf %299, %297 : vector<256x1xf32>
    %cst_85 = arith.constant 6.000000e+01 : f32
    %301 = vector.broadcast %cst_85 : f32 to vector<256x1xf32>
    %302 = arith.minimumf %300, %301 : vector<256x1xf32>
    %303 = math.exp %302 : vector<256x1xf32>
    %304 = arith.maximumf %298, %303 : vector<256x1xf32>
    %cst_86 = arith.constant 9.99999997E-7 : f32
    %305 = vector.broadcast %cst_86 : f32 to vector<256x1xf32>
    %306 = arith.addf %304, %305 : vector<256x1xf32>
    %307 = tpu.reciprocal %306 {approx = true} : vector<256x1xf32> -> vector<256x1xf32>
    %308 = vector.broadcast %307 : vector<256x1xf32> to vector<256x256xf32>
    %309 = arith.mulf %294, %308 : vector<256x256xf32>
    %310 = arith.truncf %309 : vector<256x256xf32> to vector<256x256xbf16>
    %cst_87 = arith.constant dense<0.000000e+00> : vector<4x256xf32>
    %311 = tpu.matmul %290, %310, %cst_87 {dimension_numbers = #tpu.dot_dimension_numbers<[1], [1], [0], [0], [0, 0, 1, 0], [], []>} : vector<4x256xbf16>, vector<256x256xbf16>, vector<4x256xf32> -> vector<4x256xf32>
    %cst_88 = arith.constant dense<0.000000e+00> : vector<256xf32>
    %312 = vector.multi_reduction <add>, %311, %cst_88 [0] : vector<4x256xf32> to vector<256xf32>
    %313 = vector.shape_cast %312 : vector<256xf32> to vector<1x256xf32>
    %cst_89 = arith.constant 4.000000e+00 : f32
    %314 = vector.broadcast %cst_89 : f32 to vector<1x256xf32>
    %315 = arith.divf %313, %314 : vector<1x256xf32>
    %316 = vector.broadcast %315 : vector<1x256xf32> to vector<4x256xf32>
    %317 = arith.subf %311, %316 : vector<4x256xf32>
    %318 = arith.mulf %317, %317 : vector<4x256xf32>
    %cst_90 = arith.constant dense<0.000000e+00> : vector<256xf32>
    %319 = vector.multi_reduction <add>, %318, %cst_90 [0] : vector<4x256xf32> to vector<256xf32>
    %320 = vector.shape_cast %319 : vector<256xf32> to vector<1x256xf32>
    %cst_91 = arith.constant 4.000000e+00 : f32
    %321 = vector.broadcast %cst_91 : f32 to vector<1x256xf32>
    %322 = arith.divf %320, %321 : vector<1x256xf32>
    %323 = vector.broadcast %315 : vector<1x256xf32> to vector<4x256xf32>
    %324 = arith.subf %311, %323 : vector<4x256xf32>
    %cst_92 = arith.constant 9.99999974E-6 : f32
    %325 = vector.broadcast %cst_92 : f32 to vector<1x256xf32>
    %326 = arith.addf %322, %325 : vector<1x256xf32>
    %327 = math.rsqrt %326 : vector<1x256xf32>
    %328 = vector.broadcast %327 : vector<1x256xf32> to vector<4x256xf32>
    %329 = arith.mulf %324, %328 : vector<4x256xf32>
    %330 = vector.extract_strided_slice %272 {offsets = [0, 1], sizes = [256, 1], strides = [1, 1]} : vector<256x4xf32> to vector<256x1xf32>
    %331 = vector.extract_strided_slice %272 {offsets = [0, 3], sizes = [256, 1], strides = [1, 1]} : vector<256x4xf32> to vector<256x1xf32>
    %332 = vector.extract_strided_slice %206 {offsets = [1, 0], sizes = [1, 256], strides = [1, 1]} : vector<2x256xf32> to vector<1x256xf32>
    %333 = vector.broadcast %332 : vector<1x256xf32> to vector<256x256xf32>
    %334 = vector.broadcast %331 : vector<256x1xf32> to vector<256x256xf32>
    %335 = arith.subf %333, %334 : vector<256x256xf32>
    %cst_93 = arith.constant 0.000000e+00 : f32
    %336 = vector.broadcast %cst_93 : f32 to vector<256x256xf32>
    %337 = arith.minimumf %335, %336 : vector<256x256xf32>
    %338 = math.exp %337 : vector<256x256xf32>
    %cst_94 = arith.constant 0.000000e+00 : f32
    %339 = vector.broadcast %cst_94 : f32 to vector<256x256xf32>
    %340 = arith.select %273, %338, %339 : vector<256x256xi1>, vector<256x256xf32>
    %341 = vector.extract_strided_slice %118 {offsets = [4, 0], sizes = [4, 256], strides = [1, 1]} : vector<8x256xf32> to vector<4x256xf32>
    %342 = arith.truncf %341 : vector<4x256xf32> to vector<4x256xbf16>
    %343 = vector.extract_strided_slice %124 {offsets = [4, 0], sizes = [4, 256], strides = [1, 1]} : vector<8x256xf32> to vector<4x256xf32>
    %344 = arith.truncf %343 : vector<4x256xf32> to vector<4x256xbf16>
    %345 = vector.extract_strided_slice %53 {offsets = [4, 0], sizes = [4, 256], strides = [1, 1]} : vector<8x256xf32> to vector<4x256xf32>
    %346 = arith.truncf %345 : vector<4x256xf32> to vector<4x256xbf16>
    %cst_95 = arith.constant dense<0.000000e+00> : vector<256x256xf32>
    %347 = tpu.matmul %342, %344, %cst_95 {dimension_numbers = #tpu.dot_dimension_numbers<[0], [0], [1], [1], [0, 1, 1, 1], [], []>} : vector<4x256xbf16>, vector<4x256xbf16>, vector<256x256xf32> -> vector<256x256xf32>
    %cst_96 = arith.constant 5.000000e-01 : f32
    %348 = vector.broadcast %cst_96 : f32 to vector<256x256xf32>
    %349 = arith.mulf %347, %348 : vector<256x256xf32>
    %350 = arith.mulf %349, %340 : vector<256x256xf32>
    %cst_97 = arith.constant dense<0.000000e+00> : vector<256xf32>
    %351 = vector.multi_reduction <add>, %350, %cst_97 [1] : vector<256x256xf32> to vector<256xf32>
    %352 = vector.shape_cast %351 : vector<256xf32> to vector<256x1xf32>
    %353 = arith.addf %330, %331 : vector<256x1xf32>
    %354 = math.absf %352 : vector<256x1xf32>
    %cst_98 = arith.constant 0.000000e+00 : f32
    %355 = vector.broadcast %cst_98 : f32 to vector<256x1xf32>
    %356 = arith.subf %355, %353 : vector<256x1xf32>
    %cst_99 = arith.constant 6.000000e+01 : f32
    %357 = vector.broadcast %cst_99 : f32 to vector<256x1xf32>
    %358 = arith.minimumf %356, %357 : vector<256x1xf32>
    %359 = math.exp %358 : vector<256x1xf32>
    %360 = arith.maximumf %354, %359 : vector<256x1xf32>
    %cst_100 = arith.constant 9.99999997E-7 : f32
    %361 = vector.broadcast %cst_100 : f32 to vector<256x1xf32>
    %362 = arith.addf %360, %361 : vector<256x1xf32>
    %363 = tpu.reciprocal %362 {approx = true} : vector<256x1xf32> -> vector<256x1xf32>
    %364 = vector.broadcast %363 : vector<256x1xf32> to vector<256x256xf32>
    %365 = arith.mulf %350, %364 : vector<256x256xf32>
    %366 = arith.truncf %365 : vector<256x256xf32> to vector<256x256xbf16>
    %cst_101 = arith.constant dense<0.000000e+00> : vector<4x256xf32>
    %367 = tpu.matmul %346, %366, %cst_101 {dimension_numbers = #tpu.dot_dimension_numbers<[1], [1], [0], [0], [0, 0, 1, 0], [], []>} : vector<4x256xbf16>, vector<256x256xbf16>, vector<4x256xf32> -> vector<4x256xf32>
    %cst_102 = arith.constant dense<0.000000e+00> : vector<256xf32>
    %368 = vector.multi_reduction <add>, %367, %cst_102 [0] : vector<4x256xf32> to vector<256xf32>
    %369 = vector.shape_cast %368 : vector<256xf32> to vector<1x256xf32>
    %cst_103 = arith.constant 4.000000e+00 : f32
    %370 = vector.broadcast %cst_103 : f32 to vector<1x256xf32>
    %371 = arith.divf %369, %370 : vector<1x256xf32>
    %372 = vector.broadcast %371 : vector<1x256xf32> to vector<4x256xf32>
    %373 = arith.subf %367, %372 : vector<4x256xf32>
    %374 = arith.mulf %373, %373 : vector<4x256xf32>
    %cst_104 = arith.constant dense<0.000000e+00> : vector<256xf32>
    %375 = vector.multi_reduction <add>, %374, %cst_104 [0] : vector<4x256xf32> to vector<256xf32>
    %376 = vector.shape_cast %375 : vector<256xf32> to vector<1x256xf32>
    %cst_105 = arith.constant 4.000000e+00 : f32
    %377 = vector.broadcast %cst_105 : f32 to vector<1x256xf32>
    %378 = arith.divf %376, %377 : vector<1x256xf32>
    %379 = vector.broadcast %371 : vector<1x256xf32> to vector<4x256xf32>
    %380 = arith.subf %367, %379 : vector<4x256xf32>
    %cst_106 = arith.constant 9.99999974E-6 : f32
    %381 = vector.broadcast %cst_106 : f32 to vector<1x256xf32>
    %382 = arith.addf %378, %381 : vector<1x256xf32>
    %383 = math.rsqrt %382 : vector<1x256xf32>
    %384 = vector.broadcast %383 : vector<1x256xf32> to vector<4x256xf32>
    %385 = arith.mulf %380, %384 : vector<4x256xf32>
    %386 = tpu.concatenate %329, %385 in 0 : vector<4x256xf32>, vector<4x256xf32> -> vector<8x256xf32>
    %387 = vector.extract_strided_slice %2 {offsets = [0, 7], sizes = [8, 1], strides = [1, 1]} : vector<8x13xf32> to vector<8x1xf32>
    %388 = vector.broadcast %387 : vector<8x1xf32> to vector<8x256xf32>
    %389 = arith.mulf %386, %388 : vector<8x256xf32>
    %390 = vector.extract_strided_slice %2 {offsets = [0, 8], sizes = [8, 1], strides = [1, 1]} : vector<8x13xf32> to vector<8x1xf32>
    %391 = vector.broadcast %390 : vector<8x1xf32> to vector<8x256xf32>
    %392 = arith.addf %389, %391 : vector<8x256xf32>
    %393 = vector.extract_strided_slice %2 {offsets = [0, 6], sizes = [8, 1], strides = [1, 1]} : vector<8x13xf32> to vector<8x1xf32>
    %394 = vector.broadcast %393 : vector<8x1xf32> to vector<8x256xf32>
    %395 = arith.mulf %394, %111 : vector<8x256xf32>
    %396 = arith.addf %392, %395 : vector<8x256xf32>
    %397 = arith.mulf %396, %45 : vector<8x256xf32>
    %398 = arith.addf %64, %397 : vector<8x256xf32>
    %399 = vector.extract_strided_slice %2 {offsets = [0, 2], sizes = [8, 1], strides = [1, 1]} : vector<8x13xf32> to vector<8x1xf32>
    %cst_107 = arith.constant 0.000000e+00 : f32
    %400 = vector.broadcast %cst_107 : f32 to vector<8x256xf32>
    %401 = vector.broadcast %399 : vector<8x1xf32> to vector<8x256xf32>
    %402 = arith.addf %401, %400 : vector<8x256xf32>
    %c253_i32 = arith.constant 253 : i32
    %403 = vector.broadcast %c253_i32 : i32 to vector<1x256xi32>
    %404 = arith.cmpi slt, %61, %403 : vector<1x256xi32>
    %c253_i32_108 = arith.constant 253 : i32
    %405 = tpu.dynamic_rotate %35 by %c253_i32_108 dim 1 : vector<8x256xf32>, i32 -> vector<8x256xf32>
    %cst_109 = arith.constant 0.000000e+00 : f32
    %406 = vector.shape_cast %404 : vector<1x256xi1> to vector<1x256xi1>
    %407 = vector.broadcast %406 : vector<1x256xi1> to vector<8x256xi1>
    %408 = vector.broadcast %cst_109 : f32 to vector<8x256xf32>
    %409 = arith.select %407, %405, %408 : vector<8x256xi1>, vector<8x256xf32>
    %410 = vector.extract_strided_slice %2 {offsets = [0, 9], sizes = [8, 1], strides = [1, 1]} : vector<8x13xf32> to vector<8x1xf32>
    %411 = vector.broadcast %410 : vector<8x1xf32> to vector<8x256xf32>
    %412 = arith.mulf %409, %411 : vector<8x256xf32>
    %413 = arith.addf %402, %412 : vector<8x256xf32>
    %c254_i32 = arith.constant 254 : i32
    %414 = vector.broadcast %c254_i32 : i32 to vector<1x256xi32>
    %415 = arith.cmpi slt, %61, %414 : vector<1x256xi32>
    %c254_i32_110 = arith.constant 254 : i32
    %416 = tpu.dynamic_rotate %35 by %c254_i32_110 dim 1 : vector<8x256xf32>, i32 -> vector<8x256xf32>
    %cst_111 = arith.constant 0.000000e+00 : f32
    %417 = vector.shape_cast %415 : vector<1x256xi1> to vector<1x256xi1>
    %418 = vector.broadcast %417 : vector<1x256xi1> to vector<8x256xi1>
    %419 = vector.broadcast %cst_111 : f32 to vector<8x256xf32>
    %420 = arith.select %418, %416, %419 : vector<8x256xi1>, vector<8x256xf32>
    %421 = vector.extract_strided_slice %2 {offsets = [0, 10], sizes = [8, 1], strides = [1, 1]} : vector<8x13xf32> to vector<8x1xf32>
    %422 = vector.broadcast %421 : vector<8x1xf32> to vector<8x256xf32>
    %423 = arith.mulf %420, %422 : vector<8x256xf32>
    %424 = arith.addf %413, %423 : vector<8x256xf32>
    %c255_i32 = arith.constant 255 : i32
    %425 = vector.broadcast %c255_i32 : i32 to vector<1x256xi32>
    %426 = arith.cmpi slt, %61, %425 : vector<1x256xi32>
    %c255_i32_112 = arith.constant 255 : i32
    %427 = tpu.dynamic_rotate %35 by %c255_i32_112 dim 1 : vector<8x256xf32>, i32 -> vector<8x256xf32>
    %cst_113 = arith.constant 0.000000e+00 : f32
    %428 = vector.shape_cast %426 : vector<1x256xi1> to vector<1x256xi1>
    %429 = vector.broadcast %428 : vector<1x256xi1> to vector<8x256xi1>
    %430 = vector.broadcast %cst_113 : f32 to vector<8x256xf32>
    %431 = arith.select %429, %427, %430 : vector<8x256xi1>, vector<8x256xf32>
    %432 = vector.extract_strided_slice %2 {offsets = [0, 11], sizes = [8, 1], strides = [1, 1]} : vector<8x13xf32> to vector<8x1xf32>
    %433 = vector.broadcast %432 : vector<8x1xf32> to vector<8x256xf32>
    %434 = arith.mulf %431, %433 : vector<8x256xf32>
    %435 = arith.addf %424, %434 : vector<8x256xf32>
    %436 = vector.extract_strided_slice %2 {offsets = [0, 12], sizes = [8, 1], strides = [1, 1]} : vector<8x13xf32> to vector<8x1xf32>
    %437 = vector.broadcast %436 : vector<8x1xf32> to vector<8x256xf32>
    %438 = arith.mulf %35, %437 : vector<8x256xf32>
    %439 = arith.addf %435, %438 : vector<8x256xf32>
    %440 = arith.negf %439 : vector<8x256xf32>
    %441 = math.exp %440 : vector<8x256xf32>
    %cst_114 = arith.constant 1.000000e+00 : f32
    %442 = vector.broadcast %cst_114 : f32 to vector<8x256xf32>
    %443 = arith.addf %442, %441 : vector<8x256xf32>
    %444 = arith.divf %442, %443 : vector<8x256xf32>
    %445 = arith.mulf %439, %444 : vector<8x256xf32>
    %446 = arith.truncf %445 : vector<8x256xf32> to vector<8x256xbf16>
    %447 = vector.extract_strided_slice %46 {offsets = [0, 0], sizes = [8, 8], strides = [1, 1]} : vector<24x8xf32> to vector<8x8xf32>
    %448 = arith.truncf %447 : vector<8x8xf32> to vector<8x8xbf16>
    %cst_115 = arith.constant dense<0.000000e+00> : vector<8x256xf32>
    %449 = tpu.matmul %448, %446, %cst_115 {dimension_numbers = #tpu.dot_dimension_numbers<[1], [0], [0], [1], [0, 0, 1, 1], [], []>} : vector<8x8xbf16>, vector<8x256xbf16>, vector<8x256xf32> -> vector<8x256xf32>
    %450 = vector.extract_strided_slice %2 {offsets = [0, 3], sizes = [8, 1], strides = [1, 1]} : vector<8x13xf32> to vector<8x1xf32>
    %451 = vector.broadcast %450 : vector<8x1xf32> to vector<8x256xf32>
    %452 = arith.addf %449, %451 : vector<8x256xf32>
    %453 = vector.extract_strided_slice %46 {offsets = [8, 0], sizes = [8, 8], strides = [1, 1]} : vector<24x8xf32> to vector<8x8xf32>
    %454 = arith.truncf %453 : vector<8x8xf32> to vector<8x8xbf16>
    %cst_116 = arith.constant dense<0.000000e+00> : vector<8x256xf32>
    %455 = tpu.matmul %454, %446, %cst_116 {dimension_numbers = #tpu.dot_dimension_numbers<[1], [0], [0], [1], [0, 0, 1, 1], [], []>} : vector<8x8xbf16>, vector<8x256xbf16>, vector<8x256xf32> -> vector<8x256xf32>
    %456 = vector.extract_strided_slice %2 {offsets = [0, 4], sizes = [8, 1], strides = [1, 1]} : vector<8x13xf32> to vector<8x1xf32>
    %457 = vector.broadcast %456 : vector<8x1xf32> to vector<8x256xf32>
    %458 = arith.addf %455, %457 : vector<8x256xf32>
    %459 = tpu.concatenate %452, %458, %53 in 0 : vector<8x256xf32>, vector<8x256xf32>, vector<8x256xf32> -> vector<24x256xf32>
    %460 = arith.truncf %459 : vector<24x256xf32> to vector<24x256xbf16>
    %cst_117 = arith.constant dense<0.000000e+00> : vector<4x256xf32>
    %461 = tpu.matmul %56, %460, %cst_117 {dimension_numbers = #tpu.dot_dimension_numbers<[1], [0], [0], [1], [0, 0, 1, 1], [], []>} : vector<4x24xbf16>, vector<24x256xbf16>, vector<4x256xf32> -> vector<4x256xf32>
    %462 = vector.broadcast %57 : vector<4x1xf32> to vector<4x256xf32>
    %463 = arith.addf %461, %462 : vector<4x256xf32>
    %464 = vector.extract_strided_slice %463 {offsets = [0, 0], sizes = [2, 256], strides = [1, 1]} : vector<4x256xf32> to vector<2x256xf32>
    %465 = vector.extract_strided_slice %463 {offsets = [2, 0], sizes = [2, 256], strides = [1, 1]} : vector<4x256xf32> to vector<2x256xf32>
    %cst_118 = arith.constant 0.000000e+00 : f32
    %466 = vector.broadcast %cst_118 : f32 to vector<2x256xf32>
    %467 = arith.minimumf %465, %466 : vector<2x256xf32>
    %468 = math.absf %465 : vector<2x256xf32>
    %cst_119 = arith.constant 0.000000e+00 : f32
    %469 = vector.broadcast %cst_119 : f32 to vector<2x256xf32>
    %470 = arith.subf %469, %468 : vector<2x256xf32>
    %471 = math.exp %470 : vector<2x256xf32>
    %cst_120 = arith.constant 1.000000e+00 : f32
    %472 = vector.broadcast %cst_120 : f32 to vector<2x256xf32>
    %473 = arith.addf %472, %471 : vector<2x256xf32>
    %474 = math.log %473 : vector<2x256xf32>
    %475 = arith.subf %467, %474 : vector<2x256xf32>
    %c255_i32_121 = arith.constant 255 : i32
    %476 = tpu.dynamic_rotate %475 by %c255_i32_121 dim 1 : vector<2x256xf32>, i32 -> vector<2x256xf32>
    %c255_i32_122 = arith.constant 255 : i32
    %477 = vector.broadcast %c255_i32_122 : i32 to vector<1x256xi32>
    %478 = arith.cmpi slt, %61, %477 : vector<1x256xi32>
    %cst_123 = arith.constant 0.000000e+00 : f32
    %479 = vector.shape_cast %478 : vector<1x256xi1> to vector<1x256xi1>
    %480 = vector.broadcast %479 : vector<1x256xi1> to vector<2x256xi1>
    %481 = vector.broadcast %cst_123 : f32 to vector<2x256xf32>
    %482 = arith.select %480, %476, %481 : vector<2x256xi1>, vector<2x256xf32>
    %483 = arith.addf %475, %482 : vector<2x256xf32>
    %c254_i32_124 = arith.constant 254 : i32
    %484 = tpu.dynamic_rotate %483 by %c254_i32_124 dim 1 : vector<2x256xf32>, i32 -> vector<2x256xf32>
    %c254_i32_125 = arith.constant 254 : i32
    %485 = vector.broadcast %c254_i32_125 : i32 to vector<1x256xi32>
    %486 = arith.cmpi slt, %61, %485 : vector<1x256xi32>
    %cst_126 = arith.constant 0.000000e+00 : f32
    %487 = vector.shape_cast %486 : vector<1x256xi1> to vector<1x256xi1>
    %488 = vector.broadcast %487 : vector<1x256xi1> to vector<2x256xi1>
    %489 = vector.broadcast %cst_126 : f32 to vector<2x256xf32>
    %490 = arith.select %488, %484, %489 : vector<2x256xi1>, vector<2x256xf32>
    %491 = arith.addf %483, %490 : vector<2x256xf32>
    %c252_i32 = arith.constant 252 : i32
    %492 = tpu.dynamic_rotate %491 by %c252_i32 dim 1 : vector<2x256xf32>, i32 -> vector<2x256xf32>
    %c252_i32_127 = arith.constant 252 : i32
    %493 = vector.broadcast %c252_i32_127 : i32 to vector<1x256xi32>
    %494 = arith.cmpi slt, %61, %493 : vector<1x256xi32>
    %cst_128 = arith.constant 0.000000e+00 : f32
    %495 = vector.shape_cast %494 : vector<1x256xi1> to vector<1x256xi1>
    %496 = vector.broadcast %495 : vector<1x256xi1> to vector<2x256xi1>
    %497 = vector.broadcast %cst_128 : f32 to vector<2x256xf32>
    %498 = arith.select %496, %492, %497 : vector<2x256xi1>, vector<2x256xf32>
    %499 = arith.addf %491, %498 : vector<2x256xf32>
    %c248_i32 = arith.constant 248 : i32
    %500 = tpu.dynamic_rotate %499 by %c248_i32 dim 1 : vector<2x256xf32>, i32 -> vector<2x256xf32>
    %c248_i32_129 = arith.constant 248 : i32
    %501 = vector.broadcast %c248_i32_129 : i32 to vector<1x256xi32>
    %502 = arith.cmpi slt, %61, %501 : vector<1x256xi32>
    %cst_130 = arith.constant 0.000000e+00 : f32
    %503 = vector.shape_cast %502 : vector<1x256xi1> to vector<1x256xi1>
    %504 = vector.broadcast %503 : vector<1x256xi1> to vector<2x256xi1>
    %505 = vector.broadcast %cst_130 : f32 to vector<2x256xf32>
    %506 = arith.select %504, %500, %505 : vector<2x256xi1>, vector<2x256xf32>
    %507 = arith.addf %499, %506 : vector<2x256xf32>
    %c240_i32 = arith.constant 240 : i32
    %508 = tpu.dynamic_rotate %507 by %c240_i32 dim 1 : vector<2x256xf32>, i32 -> vector<2x256xf32>
    %c240_i32_131 = arith.constant 240 : i32
    %509 = vector.broadcast %c240_i32_131 : i32 to vector<1x256xi32>
    %510 = arith.cmpi slt, %61, %509 : vector<1x256xi32>
    %cst_132 = arith.constant 0.000000e+00 : f32
    %511 = vector.shape_cast %510 : vector<1x256xi1> to vector<1x256xi1>
    %512 = vector.broadcast %511 : vector<1x256xi1> to vector<2x256xi1>
    %513 = vector.broadcast %cst_132 : f32 to vector<2x256xf32>
    %514 = arith.select %512, %508, %513 : vector<2x256xi1>, vector<2x256xf32>
    %515 = arith.addf %507, %514 : vector<2x256xf32>
    %c224_i32 = arith.constant 224 : i32
    %516 = tpu.dynamic_rotate %515 by %c224_i32 dim 1 : vector<2x256xf32>, i32 -> vector<2x256xf32>
    %c224_i32_133 = arith.constant 224 : i32
    %517 = vector.broadcast %c224_i32_133 : i32 to vector<1x256xi32>
    %518 = arith.cmpi slt, %61, %517 : vector<1x256xi32>
    %cst_134 = arith.constant 0.000000e+00 : f32
    %519 = vector.shape_cast %518 : vector<1x256xi1> to vector<1x256xi1>
    %520 = vector.broadcast %519 : vector<1x256xi1> to vector<2x256xi1>
    %521 = vector.broadcast %cst_134 : f32 to vector<2x256xf32>
    %522 = arith.select %520, %516, %521 : vector<2x256xi1>, vector<2x256xf32>
    %523 = arith.addf %515, %522 : vector<2x256xf32>
    %c192_i32 = arith.constant 192 : i32
    %524 = tpu.dynamic_rotate %523 by %c192_i32 dim 1 : vector<2x256xf32>, i32 -> vector<2x256xf32>
    %c192_i32_135 = arith.constant 192 : i32
    %525 = vector.broadcast %c192_i32_135 : i32 to vector<1x256xi32>
    %526 = arith.cmpi slt, %61, %525 : vector<1x256xi32>
    %cst_136 = arith.constant 0.000000e+00 : f32
    %527 = vector.shape_cast %526 : vector<1x256xi1> to vector<1x256xi1>
    %528 = vector.broadcast %527 : vector<1x256xi1> to vector<2x256xi1>
    %529 = vector.broadcast %cst_136 : f32 to vector<2x256xf32>
    %530 = arith.select %528, %524, %529 : vector<2x256xi1>, vector<2x256xf32>
    %531 = arith.addf %523, %530 : vector<2x256xf32>
    %c128_i32_137 = arith.constant 128 : i32
    %532 = tpu.dynamic_rotate %531 by %c128_i32_137 dim 1 : vector<2x256xf32>, i32 -> vector<2x256xf32>
    %c128_i32_138 = arith.constant 128 : i32
    %533 = vector.broadcast %c128_i32_138 : i32 to vector<1x256xi32>
    %534 = arith.cmpi slt, %61, %533 : vector<1x256xi32>
    %cst_139 = arith.constant 0.000000e+00 : f32
    %535 = vector.shape_cast %534 : vector<1x256xi1> to vector<1x256xi1>
    %536 = vector.broadcast %535 : vector<1x256xi1> to vector<2x256xi1>
    %537 = vector.broadcast %cst_139 : f32 to vector<2x256xf32>
    %538 = arith.select %536, %532, %537 : vector<2x256xi1>, vector<2x256xf32>
    %539 = arith.addf %531, %538 : vector<2x256xf32>
    %540 = arith.subf %464, %539 : vector<2x256xf32>
    %c255_i32_140 = arith.constant 255 : i32
    %541 = tpu.dynamic_rotate %540 by %c255_i32_140 dim 1 : vector<2x256xf32>, i32 -> vector<2x256xf32>
    %c255_i32_141 = arith.constant 255 : i32
    %542 = vector.broadcast %c255_i32_141 : i32 to vector<1x256xi32>
    %543 = arith.cmpi slt, %61, %542 : vector<1x256xi32>
    %cst_142 = arith.constant -1.000000e+30 : f32
    %544 = vector.shape_cast %543 : vector<1x256xi1> to vector<1x256xi1>
    %545 = vector.broadcast %544 : vector<1x256xi1> to vector<2x256xi1>
    %546 = vector.broadcast %cst_142 : f32 to vector<2x256xf32>
    %547 = arith.select %545, %541, %546 : vector<2x256xi1>, vector<2x256xf32>
    %548 = arith.maximumf %540, %547 : vector<2x256xf32>
    %c254_i32_143 = arith.constant 254 : i32
    %549 = tpu.dynamic_rotate %548 by %c254_i32_143 dim 1 : vector<2x256xf32>, i32 -> vector<2x256xf32>
    %c254_i32_144 = arith.constant 254 : i32
    %550 = vector.broadcast %c254_i32_144 : i32 to vector<1x256xi32>
    %551 = arith.cmpi slt, %61, %550 : vector<1x256xi32>
    %cst_145 = arith.constant -1.000000e+30 : f32
    %552 = vector.shape_cast %551 : vector<1x256xi1> to vector<1x256xi1>
    %553 = vector.broadcast %552 : vector<1x256xi1> to vector<2x256xi1>
    %554 = vector.broadcast %cst_145 : f32 to vector<2x256xf32>
    %555 = arith.select %553, %549, %554 : vector<2x256xi1>, vector<2x256xf32>
    %556 = arith.maximumf %548, %555 : vector<2x256xf32>
    %c252_i32_146 = arith.constant 252 : i32
    %557 = tpu.dynamic_rotate %556 by %c252_i32_146 dim 1 : vector<2x256xf32>, i32 -> vector<2x256xf32>
    %c252_i32_147 = arith.constant 252 : i32
    %558 = vector.broadcast %c252_i32_147 : i32 to vector<1x256xi32>
    %559 = arith.cmpi slt, %61, %558 : vector<1x256xi32>
    %cst_148 = arith.constant -1.000000e+30 : f32
    %560 = vector.shape_cast %559 : vector<1x256xi1> to vector<1x256xi1>
    %561 = vector.broadcast %560 : vector<1x256xi1> to vector<2x256xi1>
    %562 = vector.broadcast %cst_148 : f32 to vector<2x256xf32>
    %563 = arith.select %561, %557, %562 : vector<2x256xi1>, vector<2x256xf32>
    %564 = arith.maximumf %556, %563 : vector<2x256xf32>
    %c248_i32_149 = arith.constant 248 : i32
    %565 = tpu.dynamic_rotate %564 by %c248_i32_149 dim 1 : vector<2x256xf32>, i32 -> vector<2x256xf32>
    %c248_i32_150 = arith.constant 248 : i32
    %566 = vector.broadcast %c248_i32_150 : i32 to vector<1x256xi32>
    %567 = arith.cmpi slt, %61, %566 : vector<1x256xi32>
    %cst_151 = arith.constant -1.000000e+30 : f32
    %568 = vector.shape_cast %567 : vector<1x256xi1> to vector<1x256xi1>
    %569 = vector.broadcast %568 : vector<1x256xi1> to vector<2x256xi1>
    %570 = vector.broadcast %cst_151 : f32 to vector<2x256xf32>
    %571 = arith.select %569, %565, %570 : vector<2x256xi1>, vector<2x256xf32>
    %572 = arith.maximumf %564, %571 : vector<2x256xf32>
    %c240_i32_152 = arith.constant 240 : i32
    %573 = tpu.dynamic_rotate %572 by %c240_i32_152 dim 1 : vector<2x256xf32>, i32 -> vector<2x256xf32>
    %c240_i32_153 = arith.constant 240 : i32
    %574 = vector.broadcast %c240_i32_153 : i32 to vector<1x256xi32>
    %575 = arith.cmpi slt, %61, %574 : vector<1x256xi32>
    %cst_154 = arith.constant -1.000000e+30 : f32
    %576 = vector.shape_cast %575 : vector<1x256xi1> to vector<1x256xi1>
    %577 = vector.broadcast %576 : vector<1x256xi1> to vector<2x256xi1>
    %578 = vector.broadcast %cst_154 : f32 to vector<2x256xf32>
    %579 = arith.select %577, %573, %578 : vector<2x256xi1>, vector<2x256xf32>
    %580 = arith.maximumf %572, %579 : vector<2x256xf32>
    %c224_i32_155 = arith.constant 224 : i32
    %581 = tpu.dynamic_rotate %580 by %c224_i32_155 dim 1 : vector<2x256xf32>, i32 -> vector<2x256xf32>
    %c224_i32_156 = arith.constant 224 : i32
    %582 = vector.broadcast %c224_i32_156 : i32 to vector<1x256xi32>
    %583 = arith.cmpi slt, %61, %582 : vector<1x256xi32>
    %cst_157 = arith.constant -1.000000e+30 : f32
    %584 = vector.shape_cast %583 : vector<1x256xi1> to vector<1x256xi1>
    %585 = vector.broadcast %584 : vector<1x256xi1> to vector<2x256xi1>
    %586 = vector.broadcast %cst_157 : f32 to vector<2x256xf32>
    %587 = arith.select %585, %581, %586 : vector<2x256xi1>, vector<2x256xf32>
    %588 = arith.maximumf %580, %587 : vector<2x256xf32>
    %c192_i32_158 = arith.constant 192 : i32
    %589 = tpu.dynamic_rotate %588 by %c192_i32_158 dim 1 : vector<2x256xf32>, i32 -> vector<2x256xf32>
    %c192_i32_159 = arith.constant 192 : i32
    %590 = vector.broadcast %c192_i32_159 : i32 to vector<1x256xi32>
    %591 = arith.cmpi slt, %61, %590 : vector<1x256xi32>
    %cst_160 = arith.constant -1.000000e+30 : f32
    %592 = vector.shape_cast %591 : vector<1x256xi1> to vector<1x256xi1>
    %593 = vector.broadcast %592 : vector<1x256xi1> to vector<2x256xi1>
    %594 = vector.broadcast %cst_160 : f32 to vector<2x256xf32>
    %595 = arith.select %593, %589, %594 : vector<2x256xi1>, vector<2x256xf32>
    %596 = arith.maximumf %588, %595 : vector<2x256xf32>
    %c128_i32_161 = arith.constant 128 : i32
    %597 = tpu.dynamic_rotate %596 by %c128_i32_161 dim 1 : vector<2x256xf32>, i32 -> vector<2x256xf32>
    %c128_i32_162 = arith.constant 128 : i32
    %598 = vector.broadcast %c128_i32_162 : i32 to vector<1x256xi32>
    %599 = arith.cmpi slt, %61, %598 : vector<1x256xi32>
    %cst_163 = arith.constant -1.000000e+30 : f32
    %600 = vector.shape_cast %599 : vector<1x256xi1> to vector<1x256xi1>
    %601 = vector.broadcast %600 : vector<1x256xi1> to vector<2x256xi1>
    %602 = vector.broadcast %cst_163 : f32 to vector<2x256xf32>
    %603 = arith.select %601, %597, %602 : vector<2x256xi1>, vector<2x256xf32>
    %604 = arith.maximumf %596, %603 : vector<2x256xf32>
    %605 = tpu.concatenate %539, %604 in 0 : vector<2x256xf32>, vector<2x256xf32> -> vector<4x256xf32>
    %cst_164 = arith.constant dense<0.000000e+00> : vector<256x4xf32>
    %606 = tpu.matmul %605, %58, %cst_164 {dimension_numbers = #tpu.dot_dimension_numbers<[0], [0], [1], [1], [0, 1, 1, 1], [], []>} : vector<4x256xf32>, vector<4x4xf32>, vector<256x4xf32> -> vector<256x4xf32>
    %607 = arith.cmpi sge, %63, %62 : vector<256x256xi32>
    %608 = vector.extract_strided_slice %606 {offsets = [0, 0], sizes = [256, 1], strides = [1, 1]} : vector<256x4xf32> to vector<256x1xf32>
    %609 = vector.extract_strided_slice %606 {offsets = [0, 2], sizes = [256, 1], strides = [1, 1]} : vector<256x4xf32> to vector<256x1xf32>
    %610 = vector.extract_strided_slice %540 {offsets = [0, 0], sizes = [1, 256], strides = [1, 1]} : vector<2x256xf32> to vector<1x256xf32>
    %611 = vector.broadcast %610 : vector<1x256xf32> to vector<256x256xf32>
    %612 = vector.broadcast %609 : vector<256x1xf32> to vector<256x256xf32>
    %613 = arith.subf %611, %612 : vector<256x256xf32>
    %cst_165 = arith.constant 0.000000e+00 : f32
    %614 = vector.broadcast %cst_165 : f32 to vector<256x256xf32>
    %615 = arith.minimumf %613, %614 : vector<256x256xf32>
    %616 = math.exp %615 : vector<256x256xf32>
    %cst_166 = arith.constant 0.000000e+00 : f32
    %617 = vector.broadcast %cst_166 : f32 to vector<256x256xf32>
    %618 = arith.select %607, %616, %617 : vector<256x256xi1>, vector<256x256xf32>
    %619 = vector.extract_strided_slice %452 {offsets = [0, 0], sizes = [4, 256], strides = [1, 1]} : vector<8x256xf32> to vector<4x256xf32>
    %620 = arith.truncf %619 : vector<4x256xf32> to vector<4x256xbf16>
    %621 = vector.extract_strided_slice %458 {offsets = [0, 0], sizes = [4, 256], strides = [1, 1]} : vector<8x256xf32> to vector<4x256xf32>
    %622 = arith.truncf %621 : vector<4x256xf32> to vector<4x256xbf16>
    %623 = vector.extract_strided_slice %53 {offsets = [0, 0], sizes = [4, 256], strides = [1, 1]} : vector<8x256xf32> to vector<4x256xf32>
    %624 = arith.truncf %623 : vector<4x256xf32> to vector<4x256xbf16>
    %cst_167 = arith.constant dense<0.000000e+00> : vector<256x256xf32>
    %625 = tpu.matmul %620, %622, %cst_167 {dimension_numbers = #tpu.dot_dimension_numbers<[0], [0], [1], [1], [0, 1, 1, 1], [], []>} : vector<4x256xbf16>, vector<4x256xbf16>, vector<256x256xf32> -> vector<256x256xf32>
    %cst_168 = arith.constant 5.000000e-01 : f32
    %626 = vector.broadcast %cst_168 : f32 to vector<256x256xf32>
    %627 = arith.mulf %625, %626 : vector<256x256xf32>
    %628 = arith.mulf %627, %618 : vector<256x256xf32>
    %cst_169 = arith.constant dense<0.000000e+00> : vector<256xf32>
    %629 = vector.multi_reduction <add>, %628, %cst_169 [1] : vector<256x256xf32> to vector<256xf32>
    %630 = vector.shape_cast %629 : vector<256xf32> to vector<256x1xf32>
    %631 = arith.addf %608, %609 : vector<256x1xf32>
    %632 = math.absf %630 : vector<256x1xf32>
    %cst_170 = arith.constant 0.000000e+00 : f32
    %633 = vector.broadcast %cst_170 : f32 to vector<256x1xf32>
    %634 = arith.subf %633, %631 : vector<256x1xf32>
    %cst_171 = arith.constant 6.000000e+01 : f32
    %635 = vector.broadcast %cst_171 : f32 to vector<256x1xf32>
    %636 = arith.minimumf %634, %635 : vector<256x1xf32>
    %637 = math.exp %636 : vector<256x1xf32>
    %638 = arith.maximumf %632, %637 : vector<256x1xf32>
    %cst_172 = arith.constant 9.99999997E-7 : f32
    %639 = vector.broadcast %cst_172 : f32 to vector<256x1xf32>
    %640 = arith.addf %638, %639 : vector<256x1xf32>
    %641 = tpu.reciprocal %640 {approx = true} : vector<256x1xf32> -> vector<256x1xf32>
    %642 = vector.broadcast %641 : vector<256x1xf32> to vector<256x256xf32>
    %643 = arith.mulf %628, %642 : vector<256x256xf32>
    %644 = arith.truncf %643 : vector<256x256xf32> to vector<256x256xbf16>
    %cst_173 = arith.constant dense<0.000000e+00> : vector<4x256xf32>
    %645 = tpu.matmul %624, %644, %cst_173 {dimension_numbers = #tpu.dot_dimension_numbers<[1], [1], [0], [0], [0, 0, 1, 0], [], []>} : vector<4x256xbf16>, vector<256x256xbf16>, vector<4x256xf32> -> vector<4x256xf32>
    %cst_174 = arith.constant dense<0.000000e+00> : vector<256xf32>
    %646 = vector.multi_reduction <add>, %645, %cst_174 [0] : vector<4x256xf32> to vector<256xf32>
    %647 = vector.shape_cast %646 : vector<256xf32> to vector<1x256xf32>
    %cst_175 = arith.constant 4.000000e+00 : f32
    %648 = vector.broadcast %cst_175 : f32 to vector<1x256xf32>
    %649 = arith.divf %647, %648 : vector<1x256xf32>
    %650 = vector.broadcast %649 : vector<1x256xf32> to vector<4x256xf32>
    %651 = arith.subf %645, %650 : vector<4x256xf32>
    %652 = arith.mulf %651, %651 : vector<4x256xf32>
    %cst_176 = arith.constant dense<0.000000e+00> : vector<256xf32>
    %653 = vector.multi_reduction <add>, %652, %cst_176 [0] : vector<4x256xf32> to vector<256xf32>
    %654 = vector.shape_cast %653 : vector<256xf32> to vector<1x256xf32>
    %cst_177 = arith.constant 4.000000e+00 : f32
    %655 = vector.broadcast %cst_177 : f32 to vector<1x256xf32>
    %656 = arith.divf %654, %655 : vector<1x256xf32>
    %657 = vector.broadcast %649 : vector<1x256xf32> to vector<4x256xf32>
    %658 = arith.subf %645, %657 : vector<4x256xf32>
    %cst_178 = arith.constant 9.99999974E-6 : f32
    %659 = vector.broadcast %cst_178 : f32 to vector<1x256xf32>
    %660 = arith.addf %656, %659 : vector<1x256xf32>
    %661 = math.rsqrt %660 : vector<1x256xf32>
    %662 = vector.broadcast %661 : vector<1x256xf32> to vector<4x256xf32>
    %663 = arith.mulf %658, %662 : vector<4x256xf32>
    %664 = vector.extract_strided_slice %606 {offsets = [0, 1], sizes = [256, 1], strides = [1, 1]} : vector<256x4xf32> to vector<256x1xf32>
    %665 = vector.extract_strided_slice %606 {offsets = [0, 3], sizes = [256, 1], strides = [1, 1]} : vector<256x4xf32> to vector<256x1xf32>
    %666 = vector.extract_strided_slice %540 {offsets = [1, 0], sizes = [1, 256], strides = [1, 1]} : vector<2x256xf32> to vector<1x256xf32>
    %667 = vector.broadcast %666 : vector<1x256xf32> to vector<256x256xf32>
    %668 = vector.broadcast %665 : vector<256x1xf32> to vector<256x256xf32>
    %669 = arith.subf %667, %668 : vector<256x256xf32>
    %cst_179 = arith.constant 0.000000e+00 : f32
    %670 = vector.broadcast %cst_179 : f32 to vector<256x256xf32>
    %671 = arith.minimumf %669, %670 : vector<256x256xf32>
    %672 = math.exp %671 : vector<256x256xf32>
    %cst_180 = arith.constant 0.000000e+00 : f32
    %673 = vector.broadcast %cst_180 : f32 to vector<256x256xf32>
    %674 = arith.select %607, %672, %673 : vector<256x256xi1>, vector<256x256xf32>
    %675 = vector.extract_strided_slice %452 {offsets = [4, 0], sizes = [4, 256], strides = [1, 1]} : vector<8x256xf32> to vector<4x256xf32>
    %676 = arith.truncf %675 : vector<4x256xf32> to vector<4x256xbf16>
    %677 = vector.extract_strided_slice %458 {offsets = [4, 0], sizes = [4, 256], strides = [1, 1]} : vector<8x256xf32> to vector<4x256xf32>
    %678 = arith.truncf %677 : vector<4x256xf32> to vector<4x256xbf16>
    %679 = vector.extract_strided_slice %53 {offsets = [4, 0], sizes = [4, 256], strides = [1, 1]} : vector<8x256xf32> to vector<4x256xf32>
    %680 = arith.truncf %679 : vector<4x256xf32> to vector<4x256xbf16>
    %cst_181 = arith.constant dense<0.000000e+00> : vector<256x256xf32>
    %681 = tpu.matmul %676, %678, %cst_181 {dimension_numbers = #tpu.dot_dimension_numbers<[0], [0], [1], [1], [0, 1, 1, 1], [], []>} : vector<4x256xbf16>, vector<4x256xbf16>, vector<256x256xf32> -> vector<256x256xf32>
    %cst_182 = arith.constant 5.000000e-01 : f32
    %682 = vector.broadcast %cst_182 : f32 to vector<256x256xf32>
    %683 = arith.mulf %681, %682 : vector<256x256xf32>
    %684 = arith.mulf %683, %674 : vector<256x256xf32>
    %cst_183 = arith.constant dense<0.000000e+00> : vector<256xf32>
    %685 = vector.multi_reduction <add>, %684, %cst_183 [1] : vector<256x256xf32> to vector<256xf32>
    %686 = vector.shape_cast %685 : vector<256xf32> to vector<256x1xf32>
    %687 = arith.addf %664, %665 : vector<256x1xf32>
    %688 = math.absf %686 : vector<256x1xf32>
    %cst_184 = arith.constant 0.000000e+00 : f32
    %689 = vector.broadcast %cst_184 : f32 to vector<256x1xf32>
    %690 = arith.subf %689, %687 : vector<256x1xf32>
    %cst_185 = arith.constant 6.000000e+01 : f32
    %691 = vector.broadcast %cst_185 : f32 to vector<256x1xf32>
    %692 = arith.minimumf %690, %691 : vector<256x1xf32>
    %693 = math.exp %692 : vector<256x1xf32>
    %694 = arith.maximumf %688, %693 : vector<256x1xf32>
    %cst_186 = arith.constant 9.99999997E-7 : f32
    %695 = vector.broadcast %cst_186 : f32 to vector<256x1xf32>
    %696 = arith.addf %694, %695 : vector<256x1xf32>
    %697 = tpu.reciprocal %696 {approx = true} : vector<256x1xf32> -> vector<256x1xf32>
    %698 = vector.broadcast %697 : vector<256x1xf32> to vector<256x256xf32>
    %699 = arith.mulf %684, %698 : vector<256x256xf32>
    %700 = arith.truncf %699 : vector<256x256xf32> to vector<256x256xbf16>
    %cst_187 = arith.constant dense<0.000000e+00> : vector<4x256xf32>
    %701 = tpu.matmul %680, %700, %cst_187 {dimension_numbers = #tpu.dot_dimension_numbers<[1], [1], [0], [0], [0, 0, 1, 0], [], []>} : vector<4x256xbf16>, vector<256x256xbf16>, vector<4x256xf32> -> vector<4x256xf32>
    %cst_188 = arith.constant dense<0.000000e+00> : vector<256xf32>
    %702 = vector.multi_reduction <add>, %701, %cst_188 [0] : vector<4x256xf32> to vector<256xf32>
    %703 = vector.shape_cast %702 : vector<256xf32> to vector<1x256xf32>
    %cst_189 = arith.constant 4.000000e+00 : f32
    %704 = vector.broadcast %cst_189 : f32 to vector<1x256xf32>
    %705 = arith.divf %703, %704 : vector<1x256xf32>
    %706 = vector.broadcast %705 : vector<1x256xf32> to vector<4x256xf32>
    %707 = arith.subf %701, %706 : vector<4x256xf32>
    %708 = arith.mulf %707, %707 : vector<4x256xf32>
    %cst_190 = arith.constant dense<0.000000e+00> : vector<256xf32>
    %709 = vector.multi_reduction <add>, %708, %cst_190 [0] : vector<4x256xf32> to vector<256xf32>
    %710 = vector.shape_cast %709 : vector<256xf32> to vector<1x256xf32>
    %cst_191 = arith.constant 4.000000e+00 : f32
    %711 = vector.broadcast %cst_191 : f32 to vector<1x256xf32>
    %712 = arith.divf %710, %711 : vector<1x256xf32>
    %713 = vector.broadcast %705 : vector<1x256xf32> to vector<4x256xf32>
    %714 = arith.subf %701, %713 : vector<4x256xf32>
    %cst_192 = arith.constant 9.99999974E-6 : f32
    %715 = vector.broadcast %cst_192 : f32 to vector<1x256xf32>
    %716 = arith.addf %712, %715 : vector<1x256xf32>
    %717 = math.rsqrt %716 : vector<1x256xf32>
    %718 = vector.broadcast %717 : vector<1x256xf32> to vector<4x256xf32>
    %719 = arith.mulf %714, %718 : vector<4x256xf32>
    %720 = tpu.concatenate %663, %719 in 0 : vector<4x256xf32>, vector<4x256xf32> -> vector<8x256xf32>
    %721 = vector.extract_strided_slice %2 {offsets = [0, 7], sizes = [8, 1], strides = [1, 1]} : vector<8x13xf32> to vector<8x1xf32>
    %722 = vector.broadcast %721 : vector<8x1xf32> to vector<8x256xf32>
    %723 = arith.mulf %720, %722 : vector<8x256xf32>
    %724 = vector.extract_strided_slice %2 {offsets = [0, 8], sizes = [8, 1], strides = [1, 1]} : vector<8x13xf32> to vector<8x1xf32>
    %725 = vector.broadcast %724 : vector<8x1xf32> to vector<8x256xf32>
    %726 = arith.addf %723, %725 : vector<8x256xf32>
    %727 = vector.extract_strided_slice %2 {offsets = [0, 6], sizes = [8, 1], strides = [1, 1]} : vector<8x13xf32> to vector<8x1xf32>
    %728 = vector.broadcast %727 : vector<8x1xf32> to vector<8x256xf32>
    %729 = arith.mulf %728, %445 : vector<8x256xf32>
    %730 = arith.addf %726, %729 : vector<8x256xf32>
    %731 = arith.mulf %730, %45 : vector<8x256xf32>
    %732 = arith.addf %398, %731 : vector<8x256xf32>
    %733 = arith.truncf %732 : vector<8x256xf32> to vector<8x256xbf16>
    %cst_193 = arith.constant dense<0.000000e+00> : vector<4x256xf32>
    %734 = tpu.matmul %60, %733, %cst_193 {dimension_numbers = #tpu.dot_dimension_numbers<[1], [0], [0], [1], [0, 0, 1, 1], [], []>} : vector<4x8xbf16>, vector<8x256xbf16>, vector<4x256xf32> -> vector<4x256xf32>
    %cst_194 = arith.constant 2.000000e+00 : f32
    %735 = vector.broadcast %cst_194 : f32 to vector<4x256xf32>
    %736 = arith.mulf %735, %1 : vector<4x256xf32>
    %737 = arith.addf %736, %734 : vector<4x256xf32>
    %738 = vector.extract_strided_slice %3 {offsets = [0, 2], sizes = [4, 1], strides = [1, 1]} : vector<4x3xf32> to vector<4x1xf32>
    %cst_195 = arith.constant 2.000000e+00 : f32
    %739 = vector.broadcast %cst_195 : f32 to vector<4x1xf32>
    %740 = arith.mulf %739, %738 : vector<4x1xf32>
    %741 = vector.broadcast %740 : vector<4x1xf32> to vector<4x256xf32>
    %742 = arith.addf %737, %741 : vector<4x256xf32>
    %c0_196 = arith.constant 0 : index
    %c0_197 = arith.constant 0 : index
    %c0_198 = arith.constant 0 : index
    %743 = vector.load %arg8[%c0_196, %c0_197, %c0_198] : memref<1x4x256xf32, #tpu.memory_space<vmem>>, vector<1x4x256xf32>
    %744 = vector.shape_cast %743 : vector<1x4x256xf32> to vector<4x256xf32>
    %745 = vector.shape_cast %742 : vector<4x256xf32> to vector<1x4x256xf32>
    tpu.vector_store %arg8[%c0_196, %c0_197, %c0_198], %745 {strides = array<i32>} : memref<1x4x256xf32, #tpu.memory_space<vmem>>, vector<1x4x256xf32>,
    return
  }
  func.func @transform_0(%arg0: i32) -> (i32, i32, i32) {
    %c0_i32 = arith.constant 0 : i32
    %c0_i32_0 = arith.constant 0 : i32
    %c0_i32_1 = arith.constant 0 : i32
    return %arg0, %c0_i32, %c0_i32_0 : i32, i32, i32
  }
  func.func @transform_1(%arg0: i32) -> (i32, i32) {
    %c0_i32 = arith.constant 0 : i32
    %c0_i32_0 = arith.constant 0 : i32
    %c0_i32_1 = arith.constant 0 : i32
    return %c0_i32, %c0_i32_0 : i32, i32
  }
  func.func @transform_2(%arg0: i32) -> (i32, i32) {
    %c0_i32 = arith.constant 0 : i32
    %c0_i32_0 = arith.constant 0 : i32
    %c0_i32_1 = arith.constant 0 : i32
    return %c0_i32, %c0_i32_0 : i32, i32
  }
  func.func @transform_3(%arg0: i32) -> (i32, i32) {
    %c0_i32 = arith.constant 0 : i32
    %c0_i32_0 = arith.constant 0 : i32
    %c0_i32_1 = arith.constant 0 : i32
    return %c0_i32, %c0_i32_0 : i32, i32
  }
  func.func @transform_4(%arg0: i32) -> (i32, i32) {
    %c0_i32 = arith.constant 0 : i32
    %c0_i32_0 = arith.constant 0 : i32
    %c0_i32_1 = arith.constant 0 : i32
    return %c0_i32, %c0_i32_0 : i32, i32
  }
  func.func @transform_5(%arg0: i32) -> (i32, i32) {
    %c0_i32 = arith.constant 0 : i32
    %c0_i32_0 = arith.constant 0 : i32
    %c0_i32_1 = arith.constant 0 : i32
    return %c0_i32, %c0_i32_0 : i32, i32
  }
  func.func @transform_6(%arg0: i32) -> (i32, i32) {
    %c0_i32 = arith.constant 0 : i32
    %c0_i32_0 = arith.constant 0 : i32
    %c0_i32_1 = arith.constant 0 : i32
    return %c0_i32, %c0_i32_0 : i32, i32
  }
  func.func @transform_7(%arg0: i32) -> (i32, i32, i32) {
    %c0_i32 = arith.constant 0 : i32
    %c0_i32_0 = arith.constant 0 : i32
    %c0_i32_1 = arith.constant 0 : i32
    return %arg0, %c0_i32, %c0_i32_0 : i32, i32, i32
  }
}

module attributes {stable_mosaic.version = 11 : i64} {
  func.func @kernel(%arg0: i32, %arg1: memref<1x4x256xf32, #tpu.memory_space<vmem>>, %arg2: memref<1x4x256xf32, #tpu.memory_space<vmem>>, %arg3: memref<1x4x256xf32, #tpu.memory_space<vmem>>, %arg4: memref<9x256xf32, #tpu.memory_space<vmem>>, %arg5: memref<4x72xf32, #tpu.memory_space<vmem>>, %arg6: memref<4x1xf32, #tpu.memory_space<vmem>>, %arg7: memref<4x72xf32, #tpu.memory_space<vmem>>, %arg8: memref<4x1xf32, #tpu.memory_space<vmem>>, %arg9: memref<4x1xf32, #tpu.memory_space<vmem>>, %arg10: memref<4x1xf32, #tpu.memory_space<vmem>>, %arg11: memref<2x1xf32, #tpu.memory_space<vmem>>, %arg12: memref<4x72xf32, #tpu.memory_space<vmem>>, %arg13: memref<4x1xf32, #tpu.memory_space<vmem>>, %arg14: memref<1x4x256xf32, #tpu.memory_space<vmem>>) attributes {dimension_semantics = [#tpu.dimension_semantics<parallel>], iteration_bounds = array<i64: 2>, scalar_prefetch = 0 : i64, scratch_operands = 0 : i64, tpu.core_type = #tpu.core_type<tc>, window_params = [{transform_indices = @transform_0, window_bounds = array<i64: 1, 4, 256>}, {transform_indices = @transform_1, window_bounds = array<i64: 1, 4, 256>}, {transform_indices = @transform_2, window_bounds = array<i64: 1, 4, 256>}, {pipeline_mode = #tpu.pipeline_mode<synchronous>, transform_indices = @transform_3, window_bounds = array<i64: 9, 256>}, {pipeline_mode = #tpu.pipeline_mode<synchronous>, transform_indices = @transform_4, window_bounds = array<i64: 4, 72>}, {pipeline_mode = #tpu.pipeline_mode<synchronous>, transform_indices = @transform_5, window_bounds = array<i64: 4, 1>}, {pipeline_mode = #tpu.pipeline_mode<synchronous>, transform_indices = @transform_6, window_bounds = array<i64: 4, 72>}, {pipeline_mode = #tpu.pipeline_mode<synchronous>, transform_indices = @transform_7, window_bounds = array<i64: 4, 1>}, {pipeline_mode = #tpu.pipeline_mode<synchronous>, transform_indices = @transform_8, window_bounds = array<i64: 4, 1>}, {pipeline_mode = #tpu.pipeline_mode<synchronous>, transform_indices = @transform_9, window_bounds = array<i64: 4, 1>}, {pipeline_mode = #tpu.pipeline_mode<synchronous>, transform_indices = @transform_10, window_bounds = array<i64: 2, 1>}, {pipeline_mode = #tpu.pipeline_mode<synchronous>, transform_indices = @transform_11, window_bounds = array<i64: 4, 72>}, {pipeline_mode = #tpu.pipeline_mode<synchronous>, transform_indices = @transform_12, window_bounds = array<i64: 4, 1>}, {transform_indices = @transform_13, window_bounds = array<i64: 1, 4, 256>}]} {
    %c0 = arith.constant 0 : index
    %c0_0 = arith.constant 0 : index
    %c0_1 = arith.constant 0 : index
    %0 = vector.load %arg1[%c0, %c0_0, %c0_1] : memref<1x4x256xf32, #tpu.memory_space<vmem>>, vector<1x4x256xf32>
    %1 = vector.shape_cast %0 : vector<1x4x256xf32> to vector<4x256xf32>
    %c0_2 = arith.constant 0 : index
    %c0_3 = arith.constant 0 : index
    %c0_4 = arith.constant 0 : index
    %2 = vector.load %arg2[%c0_2, %c0_3, %c0_4] : memref<1x4x256xf32, #tpu.memory_space<vmem>>, vector<1x4x256xf32>
    %3 = vector.shape_cast %2 : vector<1x4x256xf32> to vector<4x256xf32>
    %c0_5 = arith.constant 0 : index
    %c0_6 = arith.constant 0 : index
    %c0_7 = arith.constant 0 : index
    %4 = vector.load %arg3[%c0_5, %c0_6, %c0_7] : memref<1x4x256xf32, #tpu.memory_space<vmem>>, vector<1x4x256xf32>
    %5 = vector.shape_cast %4 : vector<1x4x256xf32> to vector<4x256xf32>
    %6 = arith.subf %1, %3 : vector<4x256xf32>
    %c0_8 = arith.constant 0 : index
    %c0_9 = arith.constant 0 : index
    %7 = vector.load %arg4[%c0_8, %c0_9] : memref<9x256xf32, #tpu.memory_space<vmem>>, vector<9x256xf32>
    %8 = tpu.concatenate %6, %1 in 0 : vector<4x256xf32>, vector<4x256xf32> -> vector<8x256xf32>
    %c17_i32 = arith.constant 17 : i32
    %9 = tpu.dynamic_rotate %8 by %c17_i32 dim 1 : vector<8x256xf32>, i32 -> vector<8x256xf32>
    %10 = vector.extract_strided_slice %7 {offsets = [0, 0], sizes = [1, 256], strides = [1, 1]} : vector<9x256xf32> to vector<1x256xf32>
    %11 = vector.broadcast %10 : vector<1x256xf32> to vector<8x256xf32>
    %12 = arith.mulf %9, %11 : vector<8x256xf32>
    %c16_i32 = arith.constant 16 : i32
    %13 = tpu.dynamic_rotate %8 by %c16_i32 dim 1 : vector<8x256xf32>, i32 -> vector<8x256xf32>
    %14 = vector.extract_strided_slice %7 {offsets = [1, 0], sizes = [1, 256], strides = [1, 1]} : vector<9x256xf32> to vector<1x256xf32>
    %15 = vector.broadcast %14 : vector<1x256xf32> to vector<8x256xf32>
    %16 = arith.mulf %13, %15 : vector<8x256xf32>
    %c15_i32 = arith.constant 15 : i32
    %17 = tpu.dynamic_rotate %8 by %c15_i32 dim 1 : vector<8x256xf32>, i32 -> vector<8x256xf32>
    %18 = vector.extract_strided_slice %7 {offsets = [2, 0], sizes = [1, 256], strides = [1, 1]} : vector<9x256xf32> to vector<1x256xf32>
    %19 = vector.broadcast %18 : vector<1x256xf32> to vector<8x256xf32>
    %20 = arith.mulf %17, %19 : vector<8x256xf32>
    %c1_i32 = arith.constant 1 : i32
    %21 = tpu.dynamic_rotate %8 by %c1_i32 dim 1 : vector<8x256xf32>, i32 -> vector<8x256xf32>
    %22 = vector.extract_strided_slice %7 {offsets = [3, 0], sizes = [1, 256], strides = [1, 1]} : vector<9x256xf32> to vector<1x256xf32>
    %23 = vector.broadcast %22 : vector<1x256xf32> to vector<8x256xf32>
    %24 = arith.mulf %21, %23 : vector<8x256xf32>
    %25 = vector.extract_strided_slice %7 {offsets = [4, 0], sizes = [1, 256], strides = [1, 1]} : vector<9x256xf32> to vector<1x256xf32>
    %26 = vector.broadcast %25 : vector<1x256xf32> to vector<8x256xf32>
    %27 = arith.mulf %8, %26 : vector<8x256xf32>
    %c255_i32 = arith.constant 255 : i32
    %28 = tpu.dynamic_rotate %8 by %c255_i32 dim 1 : vector<8x256xf32>, i32 -> vector<8x256xf32>
    %29 = vector.extract_strided_slice %7 {offsets = [5, 0], sizes = [1, 256], strides = [1, 1]} : vector<9x256xf32> to vector<1x256xf32>
    %30 = vector.broadcast %29 : vector<1x256xf32> to vector<8x256xf32>
    %31 = arith.mulf %28, %30 : vector<8x256xf32>
    %c241_i32 = arith.constant 241 : i32
    %32 = tpu.dynamic_rotate %8 by %c241_i32 dim 1 : vector<8x256xf32>, i32 -> vector<8x256xf32>
    %33 = vector.extract_strided_slice %7 {offsets = [6, 0], sizes = [1, 256], strides = [1, 1]} : vector<9x256xf32> to vector<1x256xf32>
    %34 = vector.broadcast %33 : vector<1x256xf32> to vector<8x256xf32>
    %35 = arith.mulf %32, %34 : vector<8x256xf32>
    %c240_i32 = arith.constant 240 : i32
    %36 = tpu.dynamic_rotate %8 by %c240_i32 dim 1 : vector<8x256xf32>, i32 -> vector<8x256xf32>
    %37 = vector.extract_strided_slice %7 {offsets = [7, 0], sizes = [1, 256], strides = [1, 1]} : vector<9x256xf32> to vector<1x256xf32>
    %38 = vector.broadcast %37 : vector<1x256xf32> to vector<8x256xf32>
    %39 = arith.mulf %36, %38 : vector<8x256xf32>
    %c239_i32 = arith.constant 239 : i32
    %40 = tpu.dynamic_rotate %8 by %c239_i32 dim 1 : vector<8x256xf32>, i32 -> vector<8x256xf32>
    %41 = vector.extract_strided_slice %7 {offsets = [8, 0], sizes = [1, 256], strides = [1, 1]} : vector<9x256xf32> to vector<1x256xf32>
    %42 = vector.broadcast %41 : vector<1x256xf32> to vector<8x256xf32>
    %43 = arith.mulf %40, %42 : vector<8x256xf32>
    %44 = tpu.concatenate %12, %16, %20, %24, %27, %31, %35, %39, %43 in 0 : vector<8x256xf32>, vector<8x256xf32>, vector<8x256xf32>, vector<8x256xf32>, vector<8x256xf32>, vector<8x256xf32>, vector<8x256xf32>, vector<8x256xf32>, vector<8x256xf32> -> vector<72x256xf32>
    %45 = arith.truncf %44 : vector<72x256xf32> to vector<72x256xbf16>
    %c0_10 = arith.constant 0 : index
    %c0_11 = arith.constant 0 : index
    %46 = vector.load %arg5[%c0_10, %c0_11] : memref<4x72xf32, #tpu.memory_space<vmem>>, vector<4x72xf32>
    %47 = arith.truncf %46 : vector<4x72xf32> to vector<4x72xbf16>
    %cst = arith.constant dense<0.000000e+00> : vector<4x256xf32>
    %48 = tpu.matmul %47, %45, %cst {dimension_numbers = #tpu.dot_dimension_numbers<[1], [0], [0], [1], [0, 0, 1, 1], [], []>} : vector<4x72xbf16>, vector<72x256xbf16>, vector<4x256xf32> -> vector<4x256xf32>
    %c0_12 = arith.constant 0 : index
    %c0_13 = arith.constant 0 : index
    %49 = vector.load %arg6[%c0_12, %c0_13] : memref<4x1xf32, #tpu.memory_space<vmem>>, vector<4x1xf32>
    %50 = vector.broadcast %49 : vector<4x1xf32> to vector<4x256xf32>
    %51 = arith.addf %48, %50 : vector<4x256xf32>
    %cst_14 = arith.constant 0.000000e+00 : f32
    %52 = vector.broadcast %cst_14 : f32 to vector<4x256xf32>
    %53 = arith.maximumf %51, %52 : vector<4x256xf32>
    %54 = tpu.concatenate %6, %3 in 0 : vector<4x256xf32>, vector<4x256xf32> -> vector<8x256xf32>
    %c17_i32_15 = arith.constant 17 : i32
    %55 = tpu.dynamic_rotate %54 by %c17_i32_15 dim 1 : vector<8x256xf32>, i32 -> vector<8x256xf32>
    %56 = vector.extract_strided_slice %7 {offsets = [0, 0], sizes = [1, 256], strides = [1, 1]} : vector<9x256xf32> to vector<1x256xf32>
    %57 = vector.broadcast %56 : vector<1x256xf32> to vector<8x256xf32>
    %58 = arith.mulf %55, %57 : vector<8x256xf32>
    %c16_i32_16 = arith.constant 16 : i32
    %59 = tpu.dynamic_rotate %54 by %c16_i32_16 dim 1 : vector<8x256xf32>, i32 -> vector<8x256xf32>
    %60 = vector.extract_strided_slice %7 {offsets = [1, 0], sizes = [1, 256], strides = [1, 1]} : vector<9x256xf32> to vector<1x256xf32>
    %61 = vector.broadcast %60 : vector<1x256xf32> to vector<8x256xf32>
    %62 = arith.mulf %59, %61 : vector<8x256xf32>
    %c15_i32_17 = arith.constant 15 : i32
    %63 = tpu.dynamic_rotate %54 by %c15_i32_17 dim 1 : vector<8x256xf32>, i32 -> vector<8x256xf32>
    %64 = vector.extract_strided_slice %7 {offsets = [2, 0], sizes = [1, 256], strides = [1, 1]} : vector<9x256xf32> to vector<1x256xf32>
    %65 = vector.broadcast %64 : vector<1x256xf32> to vector<8x256xf32>
    %66 = arith.mulf %63, %65 : vector<8x256xf32>
    %c1_i32_18 = arith.constant 1 : i32
    %67 = tpu.dynamic_rotate %54 by %c1_i32_18 dim 1 : vector<8x256xf32>, i32 -> vector<8x256xf32>
    %68 = vector.extract_strided_slice %7 {offsets = [3, 0], sizes = [1, 256], strides = [1, 1]} : vector<9x256xf32> to vector<1x256xf32>
    %69 = vector.broadcast %68 : vector<1x256xf32> to vector<8x256xf32>
    %70 = arith.mulf %67, %69 : vector<8x256xf32>
    %71 = vector.extract_strided_slice %7 {offsets = [4, 0], sizes = [1, 256], strides = [1, 1]} : vector<9x256xf32> to vector<1x256xf32>
    %72 = vector.broadcast %71 : vector<1x256xf32> to vector<8x256xf32>
    %73 = arith.mulf %54, %72 : vector<8x256xf32>
    %c255_i32_19 = arith.constant 255 : i32
    %74 = tpu.dynamic_rotate %54 by %c255_i32_19 dim 1 : vector<8x256xf32>, i32 -> vector<8x256xf32>
    %75 = vector.extract_strided_slice %7 {offsets = [5, 0], sizes = [1, 256], strides = [1, 1]} : vector<9x256xf32> to vector<1x256xf32>
    %76 = vector.broadcast %75 : vector<1x256xf32> to vector<8x256xf32>
    %77 = arith.mulf %74, %76 : vector<8x256xf32>
    %c241_i32_20 = arith.constant 241 : i32
    %78 = tpu.dynamic_rotate %54 by %c241_i32_20 dim 1 : vector<8x256xf32>, i32 -> vector<8x256xf32>
    %79 = vector.extract_strided_slice %7 {offsets = [6, 0], sizes = [1, 256], strides = [1, 1]} : vector<9x256xf32> to vector<1x256xf32>
    %80 = vector.broadcast %79 : vector<1x256xf32> to vector<8x256xf32>
    %81 = arith.mulf %78, %80 : vector<8x256xf32>
    %c240_i32_21 = arith.constant 240 : i32
    %82 = tpu.dynamic_rotate %54 by %c240_i32_21 dim 1 : vector<8x256xf32>, i32 -> vector<8x256xf32>
    %83 = vector.extract_strided_slice %7 {offsets = [7, 0], sizes = [1, 256], strides = [1, 1]} : vector<9x256xf32> to vector<1x256xf32>
    %84 = vector.broadcast %83 : vector<1x256xf32> to vector<8x256xf32>
    %85 = arith.mulf %82, %84 : vector<8x256xf32>
    %c239_i32_22 = arith.constant 239 : i32
    %86 = tpu.dynamic_rotate %54 by %c239_i32_22 dim 1 : vector<8x256xf32>, i32 -> vector<8x256xf32>
    %87 = vector.extract_strided_slice %7 {offsets = [8, 0], sizes = [1, 256], strides = [1, 1]} : vector<9x256xf32> to vector<1x256xf32>
    %88 = vector.broadcast %87 : vector<1x256xf32> to vector<8x256xf32>
    %89 = arith.mulf %86, %88 : vector<8x256xf32>
    %90 = tpu.concatenate %58, %62, %66, %70, %73, %77, %81, %85, %89 in 0 : vector<8x256xf32>, vector<8x256xf32>, vector<8x256xf32>, vector<8x256xf32>, vector<8x256xf32>, vector<8x256xf32>, vector<8x256xf32>, vector<8x256xf32>, vector<8x256xf32> -> vector<72x256xf32>
    %91 = arith.truncf %90 : vector<72x256xf32> to vector<72x256xbf16>
    %c0_23 = arith.constant 0 : index
    %c0_24 = arith.constant 0 : index
    %92 = vector.load %arg7[%c0_23, %c0_24] : memref<4x72xf32, #tpu.memory_space<vmem>>, vector<4x72xf32>
    %93 = arith.truncf %92 : vector<4x72xf32> to vector<4x72xbf16>
    %cst_25 = arith.constant dense<0.000000e+00> : vector<4x256xf32>
    %94 = tpu.matmul %93, %91, %cst_25 {dimension_numbers = #tpu.dot_dimension_numbers<[1], [0], [0], [1], [0, 0, 1, 1], [], []>} : vector<4x72xbf16>, vector<72x256xbf16>, vector<4x256xf32> -> vector<4x256xf32>
    %c0_26 = arith.constant 0 : index
    %c0_27 = arith.constant 0 : index
    %95 = vector.load %arg8[%c0_26, %c0_27] : memref<4x1xf32, #tpu.memory_space<vmem>>, vector<4x1xf32>
    %96 = vector.broadcast %95 : vector<4x1xf32> to vector<4x256xf32>
    %97 = arith.addf %94, %96 : vector<4x256xf32>
    %cst_28 = arith.constant 0.000000e+00 : f32
    %98 = vector.broadcast %cst_28 : f32 to vector<4x256xf32>
    %99 = arith.maximumf %97, %98 : vector<4x256xf32>
    %c0_29 = arith.constant 0 : index
    %c0_30 = arith.constant 0 : index
    %100 = vector.load %arg9[%c0_29, %c0_30] : memref<4x1xf32, #tpu.memory_space<vmem>>, vector<4x1xf32>
    %101 = vector.broadcast %100 : vector<4x1xf32> to vector<4x256xf32>
    %102 = arith.mulf %53, %101 : vector<4x256xf32>
    %cst_31 = arith.constant dense<0.000000e+00> : vector<256xf32>
    %103 = vector.multi_reduction <add>, %102, %cst_31 [0] : vector<4x256xf32> to vector<256xf32>
    %104 = vector.shape_cast %103 : vector<256xf32> to vector<1x256xf32>
    %c0_32 = arith.constant 0 : index
    %c0_33 = arith.constant 0 : index
    %105 = vector.load %arg11[%c0_32, %c0_33] : memref<2x1xf32, #tpu.memory_space<vmem>>, vector<1x1xf32>
    %106 = vector.broadcast %105 : vector<1x1xf32> to vector<1x256xf32>
    %107 = arith.addf %104, %106 : vector<1x256xf32>
    %108 = arith.negf %107 : vector<1x256xf32>
    %109 = math.exp %108 : vector<1x256xf32>
    %cst_34 = arith.constant 1.000000e+00 : f32
    %110 = vector.broadcast %cst_34 : f32 to vector<1x256xf32>
    %111 = arith.addf %110, %109 : vector<1x256xf32>
    %112 = arith.divf %110, %111 : vector<1x256xf32>
    %c0_35 = arith.constant 0 : index
    %c0_36 = arith.constant 0 : index
    %113 = vector.load %arg10[%c0_35, %c0_36] : memref<4x1xf32, #tpu.memory_space<vmem>>, vector<4x1xf32>
    %114 = vector.broadcast %113 : vector<4x1xf32> to vector<4x256xf32>
    %115 = arith.mulf %99, %114 : vector<4x256xf32>
    %cst_37 = arith.constant dense<0.000000e+00> : vector<256xf32>
    %116 = vector.multi_reduction <add>, %115, %cst_37 [0] : vector<4x256xf32> to vector<256xf32>
    %117 = vector.shape_cast %116 : vector<256xf32> to vector<1x256xf32>
    %c1 = arith.constant 1 : index
    %c0_38 = arith.constant 0 : index
    %118 = vector.load %arg11[%c1, %c0_38] : memref<2x1xf32, #tpu.memory_space<vmem>>, vector<1x1xf32>
    %119 = vector.broadcast %118 : vector<1x1xf32> to vector<1x256xf32>
    %120 = arith.addf %117, %119 : vector<1x256xf32>
    %121 = arith.negf %120 : vector<1x256xf32>
    %122 = math.exp %121 : vector<1x256xf32>
    %cst_39 = arith.constant 1.000000e+00 : f32
    %123 = vector.broadcast %cst_39 : f32 to vector<1x256xf32>
    %124 = arith.addf %123, %122 : vector<1x256xf32>
    %125 = arith.divf %123, %124 : vector<1x256xf32>
    %126 = vector.broadcast %112 : vector<1x256xf32> to vector<4x256xf32>
    %127 = arith.mulf %126, %5 : vector<4x256xf32>
    %128 = vector.broadcast %125 : vector<1x256xf32> to vector<4x256xf32>
    %129 = arith.mulf %128, %5 : vector<4x256xf32>
    %130 = tpu.concatenate %127, %129 in 0 : vector<4x256xf32>, vector<4x256xf32> -> vector<8x256xf32>
    %c17_i32_40 = arith.constant 17 : i32
    %131 = tpu.dynamic_rotate %130 by %c17_i32_40 dim 1 : vector<8x256xf32>, i32 -> vector<8x256xf32>
    %132 = vector.extract_strided_slice %7 {offsets = [0, 0], sizes = [1, 256], strides = [1, 1]} : vector<9x256xf32> to vector<1x256xf32>
    %133 = vector.broadcast %132 : vector<1x256xf32> to vector<8x256xf32>
    %134 = arith.mulf %131, %133 : vector<8x256xf32>
    %c16_i32_41 = arith.constant 16 : i32
    %135 = tpu.dynamic_rotate %130 by %c16_i32_41 dim 1 : vector<8x256xf32>, i32 -> vector<8x256xf32>
    %136 = vector.extract_strided_slice %7 {offsets = [1, 0], sizes = [1, 256], strides = [1, 1]} : vector<9x256xf32> to vector<1x256xf32>
    %137 = vector.broadcast %136 : vector<1x256xf32> to vector<8x256xf32>
    %138 = arith.mulf %135, %137 : vector<8x256xf32>
    %c15_i32_42 = arith.constant 15 : i32
    %139 = tpu.dynamic_rotate %130 by %c15_i32_42 dim 1 : vector<8x256xf32>, i32 -> vector<8x256xf32>
    %140 = vector.extract_strided_slice %7 {offsets = [2, 0], sizes = [1, 256], strides = [1, 1]} : vector<9x256xf32> to vector<1x256xf32>
    %141 = vector.broadcast %140 : vector<1x256xf32> to vector<8x256xf32>
    %142 = arith.mulf %139, %141 : vector<8x256xf32>
    %c1_i32_43 = arith.constant 1 : i32
    %143 = tpu.dynamic_rotate %130 by %c1_i32_43 dim 1 : vector<8x256xf32>, i32 -> vector<8x256xf32>
    %144 = vector.extract_strided_slice %7 {offsets = [3, 0], sizes = [1, 256], strides = [1, 1]} : vector<9x256xf32> to vector<1x256xf32>
    %145 = vector.broadcast %144 : vector<1x256xf32> to vector<8x256xf32>
    %146 = arith.mulf %143, %145 : vector<8x256xf32>
    %147 = vector.extract_strided_slice %7 {offsets = [4, 0], sizes = [1, 256], strides = [1, 1]} : vector<9x256xf32> to vector<1x256xf32>
    %148 = vector.broadcast %147 : vector<1x256xf32> to vector<8x256xf32>
    %149 = arith.mulf %130, %148 : vector<8x256xf32>
    %c255_i32_44 = arith.constant 255 : i32
    %150 = tpu.dynamic_rotate %130 by %c255_i32_44 dim 1 : vector<8x256xf32>, i32 -> vector<8x256xf32>
    %151 = vector.extract_strided_slice %7 {offsets = [5, 0], sizes = [1, 256], strides = [1, 1]} : vector<9x256xf32> to vector<1x256xf32>
    %152 = vector.broadcast %151 : vector<1x256xf32> to vector<8x256xf32>
    %153 = arith.mulf %150, %152 : vector<8x256xf32>
    %c241_i32_45 = arith.constant 241 : i32
    %154 = tpu.dynamic_rotate %130 by %c241_i32_45 dim 1 : vector<8x256xf32>, i32 -> vector<8x256xf32>
    %155 = vector.extract_strided_slice %7 {offsets = [6, 0], sizes = [1, 256], strides = [1, 1]} : vector<9x256xf32> to vector<1x256xf32>
    %156 = vector.broadcast %155 : vector<1x256xf32> to vector<8x256xf32>
    %157 = arith.mulf %154, %156 : vector<8x256xf32>
    %c240_i32_46 = arith.constant 240 : i32
    %158 = tpu.dynamic_rotate %130 by %c240_i32_46 dim 1 : vector<8x256xf32>, i32 -> vector<8x256xf32>
    %159 = vector.extract_strided_slice %7 {offsets = [7, 0], sizes = [1, 256], strides = [1, 1]} : vector<9x256xf32> to vector<1x256xf32>
    %160 = vector.broadcast %159 : vector<1x256xf32> to vector<8x256xf32>
    %161 = arith.mulf %158, %160 : vector<8x256xf32>
    %c239_i32_47 = arith.constant 239 : i32
    %162 = tpu.dynamic_rotate %130 by %c239_i32_47 dim 1 : vector<8x256xf32>, i32 -> vector<8x256xf32>
    %163 = vector.extract_strided_slice %7 {offsets = [8, 0], sizes = [1, 256], strides = [1, 1]} : vector<9x256xf32> to vector<1x256xf32>
    %164 = vector.broadcast %163 : vector<1x256xf32> to vector<8x256xf32>
    %165 = arith.mulf %162, %164 : vector<8x256xf32>
    %166 = tpu.concatenate %134, %138, %142, %146, %149, %153, %157, %161, %165 in 0 : vector<8x256xf32>, vector<8x256xf32>, vector<8x256xf32>, vector<8x256xf32>, vector<8x256xf32>, vector<8x256xf32>, vector<8x256xf32>, vector<8x256xf32>, vector<8x256xf32> -> vector<72x256xf32>
    %167 = arith.truncf %166 : vector<72x256xf32> to vector<72x256xbf16>
    %c0_48 = arith.constant 0 : index
    %c0_49 = arith.constant 0 : index
    %168 = vector.load %arg12[%c0_48, %c0_49] : memref<4x72xf32, #tpu.memory_space<vmem>>, vector<4x72xf32>
    %169 = arith.truncf %168 : vector<4x72xf32> to vector<4x72xbf16>
    %cst_50 = arith.constant dense<0.000000e+00> : vector<4x256xf32>
    %170 = tpu.matmul %169, %167, %cst_50 {dimension_numbers = #tpu.dot_dimension_numbers<[1], [0], [0], [1], [0, 0, 1, 1], [], []>} : vector<4x72xbf16>, vector<72x256xbf16>, vector<4x256xf32> -> vector<4x256xf32>
    %c0_51 = arith.constant 0 : index
    %c0_52 = arith.constant 0 : index
    %171 = vector.load %arg13[%c0_51, %c0_52] : memref<4x1xf32, #tpu.memory_space<vmem>>, vector<4x1xf32>
    %172 = vector.broadcast %171 : vector<4x1xf32> to vector<4x256xf32>
    %173 = arith.addf %170, %172 : vector<4x256xf32>
    %cst_53 = arith.constant 0.000000e+00 : f32
    %174 = vector.broadcast %cst_53 : f32 to vector<4x256xf32>
    %175 = arith.maximumf %173, %174 : vector<4x256xf32>
    %c0_54 = arith.constant 0 : index
    %c0_55 = arith.constant 0 : index
    %c0_56 = arith.constant 0 : index
    %176 = vector.load %arg14[%c0_54, %c0_55, %c0_56] : memref<1x4x256xf32, #tpu.memory_space<vmem>>, vector<1x4x256xf32>
    %177 = vector.shape_cast %176 : vector<1x4x256xf32> to vector<4x256xf32>
    %178 = vector.shape_cast %175 : vector<4x256xf32> to vector<1x4x256xf32>
    tpu.vector_store %arg14[%c0_54, %c0_55, %c0_56], %178 {strides = array<i32>} : memref<1x4x256xf32, #tpu.memory_space<vmem>>, vector<1x4x256xf32>,
    return
  }
  func.func @transform_0(%arg0: i32) -> (i32, i32, i32) {
    %c0_i32 = arith.constant 0 : i32
    %c0_i32_0 = arith.constant 0 : i32
    %c0_i32_1 = arith.constant 0 : i32
    return %arg0, %c0_i32, %c0_i32_0 : i32, i32, i32
  }
  func.func @transform_1(%arg0: i32) -> (i32, i32, i32) {
    %c0_i32 = arith.constant 0 : i32
    %c0_i32_0 = arith.constant 0 : i32
    %c0_i32_1 = arith.constant 0 : i32
    return %arg0, %c0_i32, %c0_i32_0 : i32, i32, i32
  }
  func.func @transform_2(%arg0: i32) -> (i32, i32, i32) {
    %c0_i32 = arith.constant 0 : i32
    %c0_i32_0 = arith.constant 0 : i32
    %c0_i32_1 = arith.constant 0 : i32
    return %arg0, %c0_i32, %c0_i32_0 : i32, i32, i32
  }
  func.func @transform_3(%arg0: i32) -> (i32, i32) {
    %c0_i32 = arith.constant 0 : i32
    %c0_i32_0 = arith.constant 0 : i32
    %c0_i32_1 = arith.constant 0 : i32
    return %c0_i32, %c0_i32_0 : i32, i32
  }
  func.func @transform_4(%arg0: i32) -> (i32, i32) {
    %c0_i32 = arith.constant 0 : i32
    %c0_i32_0 = arith.constant 0 : i32
    %c0_i32_1 = arith.constant 0 : i32
    return %c0_i32, %c0_i32_0 : i32, i32
  }
  func.func @transform_5(%arg0: i32) -> (i32, i32) {
    %c0_i32 = arith.constant 0 : i32
    %c0_i32_0 = arith.constant 0 : i32
    %c0_i32_1 = arith.constant 0 : i32
    return %c0_i32, %c0_i32_0 : i32, i32
  }
  func.func @transform_6(%arg0: i32) -> (i32, i32) {
    %c0_i32 = arith.constant 0 : i32
    %c0_i32_0 = arith.constant 0 : i32
    %c0_i32_1 = arith.constant 0 : i32
    return %c0_i32, %c0_i32_0 : i32, i32
  }
  func.func @transform_7(%arg0: i32) -> (i32, i32) {
    %c0_i32 = arith.constant 0 : i32
    %c0_i32_0 = arith.constant 0 : i32
    %c0_i32_1 = arith.constant 0 : i32
    return %c0_i32, %c0_i32_0 : i32, i32
  }
  func.func @transform_8(%arg0: i32) -> (i32, i32) {
    %c0_i32 = arith.constant 0 : i32
    %c0_i32_0 = arith.constant 0 : i32
    %c0_i32_1 = arith.constant 0 : i32
    return %c0_i32, %c0_i32_0 : i32, i32
  }
  func.func @transform_9(%arg0: i32) -> (i32, i32) {
    %c0_i32 = arith.constant 0 : i32
    %c0_i32_0 = arith.constant 0 : i32
    %c0_i32_1 = arith.constant 0 : i32
    return %c0_i32, %c0_i32_0 : i32, i32
  }
  func.func @transform_10(%arg0: i32) -> (i32, i32) {
    %c0_i32 = arith.constant 0 : i32
    %c0_i32_0 = arith.constant 0 : i32
    %c0_i32_1 = arith.constant 0 : i32
    return %c0_i32, %c0_i32_0 : i32, i32
  }
  func.func @transform_11(%arg0: i32) -> (i32, i32) {
    %c0_i32 = arith.constant 0 : i32
    %c0_i32_0 = arith.constant 0 : i32
    %c0_i32_1 = arith.constant 0 : i32
    return %c0_i32, %c0_i32_0 : i32, i32
  }
  func.func @transform_12(%arg0: i32) -> (i32, i32) {
    %c0_i32 = arith.constant 0 : i32
    %c0_i32_0 = arith.constant 0 : i32
    %c0_i32_1 = arith.constant 0 : i32
    return %c0_i32, %c0_i32_0 : i32, i32
  }
  func.func @transform_13(%arg0: i32) -> (i32, i32, i32) {
    %c0_i32 = arith.constant 0 : i32
    %c0_i32_0 = arith.constant 0 : i32
    %c0_i32_1 = arith.constant 0 : i32
    return %arg0, %c0_i32, %c0_i32_0 : i32, i32, i32
  }
}

</mosaic_0001>

<llo_original>
// kernel: sub.5
$region0: #{sub.5}
  #allocation0 [shape = 's32[1]{0}', space=sflag, size = 0x4, scoped, tag = 'scoped memory for sub.5']
  %s0 = inlined_call_operand.vmem [shape: f32[2,4,256], index: 0, kind: input, shape index: {}]
  %s1 = inlined_call_operand.vmem [shape: f32[2,4,256], index: 1, kind: input, shape index: {}]
  %s2 = inlined_call_operand.vmem [shape: f32[2,4,256], index: 2, kind: output, shape index: {}]
  %v3 = vld [vmem:[%s0] sm:$0xf]
  %v4 = vld [vmem:[%s1] sm:$0xf]
  %5 = xla_tuple %v3, %v4
  %6 = xla_tuple %5
  %v7 = vsub.f32 %v3, %v4
  %8 = xla_tuple %v7
  %9 = vst [vmem:[%s2] sm:$0xf] %v7
  %s10 = scalar_lea.vmem %s0, 8
  %v11 = vld [vmem:[%s10] sm:$0xf]
  %s12 = scalar_lea.vmem %s1, 8
  %v13 = vld [vmem:[%s12] sm:$0xf]
  %14 = xla_tuple %v11, %v13
  %15 = xla_tuple %14
  %v16 = vsub.f32 %v11, %v13
  %17 = xla_tuple %v16
  %s18 = scalar_lea.vmem %s2, 8
  %19 = vst [vmem:[%s18] sm:$0xf] %v16
  %s20 = scalar_lea.vmem %s0, 4
  %v21 = vld [vmem:[%s20] sm:$0xf]
  %s22 = scalar_lea.vmem %s1, 4
  %v23 = vld [vmem:[%s22] sm:$0xf]
  %24 = xla_tuple %v21, %v23
  %25 = xla_tuple %24
  %v26 = vsub.f32 %v21, %v23
  %27 = xla_tuple %v26
  %s28 = scalar_lea.vmem %s2, 4
  %29 = vst [vmem:[%s28] sm:$0xf] %v26
  %s30 = scalar_lea.vmem %s0, 12
  %v31 = vld [vmem:[%s30] sm:$0xf]
  %s32 = scalar_lea.vmem %s1, 12
  %v33 = vld [vmem:[%s32] sm:$0xf]
  %34 = xla_tuple %v31, %v33
  %35 = xla_tuple %34
  %v36 = vsub.f32 %v31, %v33
  %37 = xla_tuple %v36
  %s38 = scalar_lea.vmem %s2, 12
  %39 = vst [vmem:[%s38] sm:$0xf] %v36

// kernel: _lambda_.3
$region0: #{_lambda_.3}
  #allocation0 [shape = 'u32[]', space=smem, size = 0x4, offset = 0x4, fixed_abs, tag = 'smem constant byte address 0x4 - core index']
  #allocation1 [shape = 'u32[144,128]{1,0:T(1,128)}', space=vmem, size = 0x12000, scoped, tag = 'internal scratch']
  %s0 = inlined_call_operand.vmem [shape: f32[2,4,256], index: 0, kind: input, shape index: {}]
  %s1 = inlined_call_operand.vmem [shape: f32[2,4,256], index: 1, kind: input, shape index: {}]
  %s2 = inlined_call_operand.vmem [shape: f32[2,4,256], index: 2, kind: input, shape index: {}]
  %s3 = inlined_call_operand.vmem [shape: f32[9,256], index: 3, kind: input, shape index: {}]
  %s4 = inlined_call_operand.vmem [shape: f32[4,72], index: 4, kind: input, shape index: {}]
  %s5 = inlined_call_operand.vmem [shape: f32[4,1], index: 5, kind: input, shape index: {}, may-alias: {5,7,12}]
  %s6 = inlined_call_operand.vmem [shape: f32[4,72], index: 6, kind: input, shape index: {}]
  %s7 = inlined_call_operand.vmem [shape: f32[4,1], index: 7, kind: input, shape index: {}, may-alias: {5,7,12}]
  %s8 = inlined_call_operand.vmem [shape: f32[4,1], index: 8, kind: input, shape index: {}]
  %s9 = inlined_call_operand.vmem [shape: f32[4,1], index: 9, kind: input, shape index: {}]
  %s10 = inlined_call_operand.vmem [shape: f32[2,1], index: 10, kind: input, shape index: {}]
  %s11 = inlined_call_operand.vmem [shape: f32[4,72], index: 11, kind: input, shape index: {}]
  %s12 = inlined_call_operand.vmem [shape: f32[4,1], index: 12, kind: input, shape index: {}, may-alias: {5,7,12}]
  %s13 = inlined_call_operand.vmem [shape: f32[2,4,256], index: 13, kind: output, shape index: {}]
  %s14 = sld [smem:[#allocation0]]
  $region85: #{_lambda_.3} parent=0
    _
  %s16 = ssub.s32 1, %s14
  %s17 = scalar_select 0, %s16, %s14
  loop: start=0, step=1, limit=4
  $region2: #{_lambda_.3} parent=0 // loop_pre_header
    _
  $region3: #{_lambda_.3} parent=0 // loop_header
    %s19 = sphi 0, %s23
    %p20 = scmp.ge.s32.totalorder %s19, 4
    %s29 = sphi 0, %s31
    %s32 = sphi 0, %s29
    %s33 = sphi 0, %s32
    %s49 = sphi 0, %s33
    %s55 = sphi 0, %s57
    %s58 = sphi 0, %s55
    %s59 = sphi 0, %s58
    %s75 = sphi 0, %s59
    %s81 = sphi 0, %s83
    %s84 = sphi 0, %s81
    %s85 = sphi 0, %s84
    %s101 = sphi 0, %s85
    %s105 = sphi 0, %s105
    %s107 = sphi 0, %s105
    %s108 = sphi 0, %s107
    %s122 = sphi 0, %s108
    %s126 = sphi 0, %s126
    %s128 = sphi 0, %s126
    %s129 = sphi 0, %s128
    %s143 = sphi 0, %s129
    %s147 = sphi 0, %s147
    %s149 = sphi 0, %s147
    %s150 = sphi 0, %s149
    %s164 = sphi 0, %s150
    %s168 = sphi 0, %s168
    %s170 = sphi 0, %s168
    %s171 = sphi 0, %s170
    %s185 = sphi 0, %s171
    %s189 = sphi 0, %s189
    %s191 = sphi 0, %s189
    %s192 = sphi 0, %s191
    %s206 = sphi 0, %s192
    %s210 = sphi 0, %s210
    %s212 = sphi 0, %s210
    %s213 = sphi 0, %s212
    %s227 = sphi 0, %s213
    %s231 = sphi 0, %s231
    %s233 = sphi 0, %s231
    %s234 = sphi 0, %s233
    %s248 = sphi 0, %s234
    %s252 = sphi 0, %s252
    %s254 = sphi 0, %s252
    %s255 = sphi 0, %s254
    %s269 = sphi 0, %s255
    %s273 = sphi 0, %s273
    %s275 = sphi 0, %s273
    %s276 = sphi 0, %s275
    %s290 = sphi 0, %s276
    %s294 = sphi 0, %s294
    %s296 = sphi 0, %s294
    %s297 = sphi 0, %s296
    %s311 = sphi 0, %s297
    %s317 = sphi 0, %s319
    %s320 = sphi 0, %s317
    %s321 = sphi 0, %s320
    %s337 = sphi 0, %s321
  $region4: #{_lambda_.3} parent=0 // loop_header_branch
    %22 = sbr.rel (%p20) target = $region8
  $region5: #{_lambda_.3} parent=0 // loop_body
    %s24 = ssub.s32 %s19, 1
    %s25 = ssub.s32 %s19, 2
    %s26 = sadd.s32 %s19, 1
    %s27 = ssub.s32 %s19, %s26
    %p28 = scmp.eq.s32.totalorder %s27, 0
    %s30 = sadd.s32 %s29, 1
    %s31 = scalar_select %p28, %s29, %s30
    %p34 = pneg %p28
    %p35 = scmp.eq.s32.totalorder %s19, 1
    %p36 = por %p34, %p35
    %p37 = scmp.ne.s32.totalorder %s29, %s32
    %p38 = scmp.eq.s32.totalorder %s19, 0
    %p39 = por %p37, %p38
    %p40 = scmp.ne.s32.totalorder %s29, %s32
    %p41 = scmp.eq.s32.totalorder %s24, 1
    %p42 = por %p40, %p41
    %p43 = scmp.ne.s32.totalorder %s32, %s33
    %p44 = scmp.eq.s32.totalorder %s24, 0
    %p45 = por %p43, %p44
    %p46 = scmp.ne.s32.totalorder %s32, %s33
    %p47 = scmp.eq.s32.totalorder %s25, 1
    %p48 = por %p46, %p47
    %p50 = scmp.ne.s32.totalorder %s33, %s49
    %p51 = scmp.eq.s32.totalorder %s25, 0
    %p52 = por %p50, %p51
    %s53 = ssub.s32 %s19, %s26
    %p54 = scmp.eq.s32.totalorder %s53, 0
    %s56 = sadd.s32 %s55, 1
    %s57 = scalar_select %p54, %s55, %s56
    %p60 = pneg %p54
    %p61 = scmp.eq.s32.totalorder %s19, 1
    %p62 = por %p60, %p61
    %p63 = scmp.ne.s32.totalorder %s55, %s58
    %p64 = scmp.eq.s32.totalorder %s19, 0
    %p65 = por %p63, %p64
    %p66 = scmp.ne.s32.totalorder %s55, %s58
    %p67 = scmp.eq.s32.totalorder %s24, 1
    %p68 = por %p66, %p67
    %p69 = scmp.ne.s32.totalorder %s58, %s59
    %p70 = scmp.eq.s32.totalorder %s24, 0
    %p71 = por %p69, %p70
    %p72 = scmp.ne.s32.totalorder %s58, %s59
    %p73 = scmp.eq.s32.totalorder %s25, 1
    %p74 = por %p72, %p73
    %p76 = scmp.ne.s32.totalorder %s59, %s75
    %p77 = scmp.eq.s32.totalorder %s25, 0
    %p78 = por %p76, %p77
    %s79 = ssub.s32 %s19, %s26
    %p80 = scmp.eq.s32.totalorder %s79, 0
    %s82 = sadd.s32 %s81, 1
    %s83 = scalar_select %p80, %s81, %s82
    %p86 = pneg %p80
    %p87 = scmp.eq.s32.totalorder %s19, 1
    %p88 = por %p86, %p87
    %p89 = scmp.ne.s32.totalorder %s81, %s84
    %p90 = scmp.eq.s32.totalorder %s19, 0
    %p91 = por %p89, %p90
    %p92 = scmp.ne.s32.totalorder %s81, %s84
    %p93 = scmp.eq.s32.totalorder %s24, 1
    %p94 = por %p92, %p93
    %p95 = scmp.ne.s32.totalorder %s84, %s85
    %p96 = scmp.eq.s32.totalorder %s24, 0
    %p97 = por %p95, %p96
    %p98 = scmp.ne.s32.totalorder %s84, %s85
    %p99 = scmp.eq.s32.totalorder %s25, 1
    %p100 = por %p98, %p99
    %p102 = scmp.ne.s32.totalorder %s85, %s101
    %p103 = scmp.eq.s32.totalorder %s25, 0
    %p104 = por %p102, %p103
    %s106 = sadd.s32 %s105, 1
    %p109 = scmp.eq.s32.totalorder %s19, 1
    %p110 = scmp.ne.s32.totalorder %s105, %s107
    %p111 = scmp.eq.s32.totalorder %s19, 0
    %p112 = por %p110, %p111
    %p113 = scmp.ne.s32.totalorder %s105, %s107
    %p114 = scmp.eq.s32.totalorder %s24, 1
    %p115 = por %p113, %p114
    %p116 = scmp.ne.s32.totalorder %s107, %s108
    %p117 = scmp.eq.s32.totalorder %s24, 0
    %p118 = por %p116, %p117
    %p119 = scmp.ne.s32.totalorder %s107, %s108
    %p120 = scmp.eq.s32.totalorder %s25, 1
    %p121 = por %p119, %p120
    %p123 = scmp.ne.s32.totalorder %s108, %s122
    %p124 = scmp.eq.s32.totalorder %s25, 0
    %p125 = por %p123, %p124
    %s127 = sadd.s32 %s126, 1
    %p130 = scmp.eq.s32.totalorder %s19, 1
    %p131 = scmp.ne.s32.totalorder %s126, %s128
    %p132 = scmp.eq.s32.totalorder %s19, 0
    %p133 = por %p131, %p132
    %p134 = scmp.ne.s32.totalorder %s126, %s128
    %p135 = scmp.eq.s32.totalorder %s24, 1
    %p136 = por %p134, %p135
    %p137 = scmp.ne.s32.totalorder %s128, %s129
    %p138 = scmp.eq.s32.totalorder %s24, 0
    %p139 = por %p137, %p138
    %p140 = scmp.ne.s32.totalorder %s128, %s129
    %p141 = scmp.eq.s32.totalorder %s25, 1
    %p142 = por %p140, %p141
    %p144 = scmp.ne.s32.totalorder %s129, %s143
    %p145 = scmp.eq.s32.totalorder %s25, 0
    %p146 = por %p144, %p145
    %s148 = sadd.s32 %s147, 1
    %p151 = scmp.eq.s32.totalorder %s19, 1
    %p152 = scmp.ne.s32.totalorder %s147, %s149
    %p153 = scmp.eq.s32.totalorder %s19, 0
    %p154 = por %p152, %p153
    %p155 = scmp.ne.s32.totalorder %s147, %s149
    %p156 = scmp.eq.s32.totalorder %s24, 1
    %p157 = por %p155, %p156
    %p158 = scmp.ne.s32.totalorder %s149, %s150
    %p159 = scmp.eq.s32.totalorder %s24, 0
    %p160 = por %p158, %p159
    %p161 = scmp.ne.s32.totalorder %s149, %s150
    %p162 = scmp.eq.s32.totalorder %s25, 1
    %p163 = por %p161, %p162
    %p165 = scmp.ne.s32.totalorder %s150, %s164
    %p166 = scmp.eq.s32.totalorder %s25, 0
    %p167 = por %p165, %p166
    %s169 = sadd.s32 %s168, 1
    %p172 = scmp.eq.s32.totalorder %s19, 1
    %p173 = scmp.ne.s32.totalorder %s168, %s170
    %p174 = scmp.eq.s32.totalorder %s19, 0
    %p175 = por %p173, %p174
    %p176 = scmp.ne.s32.totalorder %s168, %s170
    %p177 = scmp.eq.s32.totalorder %s24, 1
    %p178 = por %p176, %p177
    %p179 = scmp.ne.s32.totalorder %s170, %s171
    %p180 = scmp.eq.s32.totalorder %s24, 0
    %p181 = por %p179, %p180
    %p182 = scmp.ne.s32.totalorder %s170, %s171
    %p183 = scmp.eq.s32.totalorder %s25, 1
    %p184 = por %p182, %p183
    %p186 = scmp.ne.s32.totalorder %s171, %s185
    %p187 = scmp.eq.s32.totalorder %s25, 0
    %p188 = por %p186, %p187
    %s190 = sadd.s32 %s189, 1
    %p193 = scmp.eq.s32.totalorder %s19, 1
    %p194 = scmp.ne.s32.totalorder %s189, %s191
    %p195 = scmp.eq.s32.totalorder %s19, 0
    %p196 = por %p194, %p195
    %p197 = scmp.ne.s32.totalorder %s189, %s191
    %p198 = scmp.eq.s32.totalorder %s24, 1
    %p199 = por %p197, %p198
    %p200 = scmp.ne.s32.totalorder %s191, %s192
    %p201 = scmp.eq.s32.totalorder %s24, 0
    %p202 = por %p200, %p201
    %p203 = scmp.ne.s32.totalorder %s191, %s192
    %p204 = scmp.eq.s32.totalorder %s25, 1
    %p205 = por %p203, %p204
    %p207 = scmp.ne.s32.totalorder %s192, %s206
    %p208 = scmp.eq.s32.totalorder %s25, 0
    %p209 = por %p207, %p208
    %s211 = sadd.s32 %s210, 1
    %p214 = scmp.eq.s32.totalorder %s19, 1
    %p215 = scmp.ne.s32.totalorder %s210, %s212
    %p216 = scmp.eq.s32.totalorder %s19, 0
    %p217 = por %p215, %p216
    %p218 = scmp.ne.s32.totalorder %s210, %s212
    %p219 = scmp.eq.s32.totalorder %s24, 1
    %p220 = por %p218, %p219
    %p221 = scmp.ne.s32.totalorder %s212, %s213
    %p222 = scmp.eq.s32.totalorder %s24, 0
    %p223 = por %p221, %p222
    %p224 = scmp.ne.s32.totalorder %s212, %s213
    %p225 = scmp.eq.s32.totalorder %s25, 1
    %p226 = por %p224, %p225
    %p228 = scmp.ne.s32.totalorder %s213, %s227
    %p229 = scmp.eq.s32.totalorder %s25, 0
    %p230 = por %p228, %p229
    %s232 = sadd.s32 %s231, 1
    %p235 = scmp.eq.s32.totalorder %s19, 1
    %p236 = scmp.ne.s32.totalorder %s231, %s233
    %p237 = scmp.eq.s32.totalorder %s19, 0
    %p238 = por %p236, %p237
    %p239 = scmp.ne.s32.totalorder %s231, %s233
    %p240 = scmp.eq.s32.totalorder %s24, 1
    %p241 = por %p239, %p240
    %p242 = scmp.ne.s32.totalorder %s233, %s234
    %p243 = scmp.eq.s32.totalorder %s24, 0
    %p244 = por %p242, %p243
    %p245 = scmp.ne.s32.totalorder %s233, %s234
    %p246 = scmp.eq.s32.totalorder %s25, 1
    %p247 = por %p245, %p246
    %p249 = scmp.ne.s32.totalorder %s234, %s248
    %p250 = scmp.eq.s32.totalorder %s25, 0
    %p251 = por %p249, %p250
    %s253 = sadd.s32 %s252, 1
    %p256 = scmp.eq.s32.totalorder %s19, 1
    %p257 = scmp.ne.s32.totalorder %s252, %s254
    %p258 = scmp.eq.s32.totalorder %s19, 0
    %p259 = por %p257, %p258
    %p260 = scmp.ne.s32.totalorder %s252, %s254
    %p261 = scmp.eq.s32.totalorder %s24, 1
    %p262 = por %p260, %p261
    %p263 = scmp.ne.s32.totalorder %s254, %s255
    %p264 = scmp.eq.s32.totalorder %s24, 0
    %p265 = por %p263, %p264
    %p266 = scmp.ne.s32.totalorder %s254, %s255
    %p267 = scmp.eq.s32.totalorder %s25, 1
    %p268 = por %p266, %p267
    %p270 = scmp.ne.s32.totalorder %s255, %s269
    %p271 = scmp.eq.s32.totalorder %s25, 0
    %p272 = por %p270, %p271
    %s274 = sadd.s32 %s273, 1
    %p277 = scmp.eq.s32.totalorder %s19, 1
    %p278 = scmp.ne.s32.totalorder %s273, %s275
    %p279 = scmp.eq.s32.totalorder %s19, 0
    %p280 = por %p278, %p279
    %p281 = scmp.ne.s32.totalorder %s273, %s275
    %p282 = scmp.eq.s32.totalorder %s24, 1
    %p283 = por %p281, %p282
    %p284 = scmp.ne.s32.totalorder %s275, %s276
    %p285 = scmp.eq.s32.totalorder %s24, 0
    %p286 = por %p284, %p285
    %p287 = scmp.ne.s32.totalorder %s275, %s276
    %p288 = scmp.eq.s32.totalorder %s25, 1
    %p289 = por %p287, %p288
    %p291 = scmp.ne.s32.totalorder %s276, %s290
    %p292 = scmp.eq.s32.totalorder %s25, 0
    %p293 = por %p291, %p292
    %s295 = sadd.s32 %s294, 1
    %p298 = scmp.eq.s32.totalorder %s19, 1
    %p299 = scmp.ne.s32.totalorder %s294, %s296
    %p300 = scmp.eq.s32.totalorder %s19, 0
    %p301 = por %p299, %p300
    %p302 = scmp.ne.s32.totalorder %s294, %s296
    %p303 = scmp.eq.s32.totalorder %s24, 1
    %p304 = por %p302, %p303
    %p305 = scmp.ne.s32.totalorder %s296, %s297
    %p306 = scmp.eq.s32.totalorder %s24, 0
    %p307 = por %p305, %p306
    %p308 = scmp.ne.s32.totalorder %s296, %s297
    %p309 = scmp.eq.s32.totalorder %s25, 1
    %p310 = por %p308, %p309
    %p312 = scmp.ne.s32.totalorder %s297, %s311
    %p313 = scmp.eq.s32.totalorder %s25, 0
    %p314 = por %p312, %p313
    %s315 = ssub.s32 %s19, %s26
    %p316 = scmp.eq.s32.totalorder %s315, 0
    %s318 = sadd.s32 %s317, 1
    %s319 = scalar_select %p316, %s317, %s318
    %p322 = pneg %p316
    %p323 = scmp.eq.s32.totalorder %s19, 1
    %p324 = por %p322, %p323
    %p325 = scmp.ne.s32.totalorder %s317, %s320
    %p326 = scmp.eq.s32.totalorder %s19, 0
    %p327 = por %p325, %p326
    %p328 = scmp.ne.s32.totalorder %s317, %s320
    %p329 = scmp.eq.s32.totalorder %s24, 1
    %p330 = por %p328, %p329
    %p331 = scmp.ne.s32.totalorder %s320, %s321
    %p332 = scmp.eq.s32.totalorder %s24, 0
    %p333 = por %p331, %p332
    %p334 = scmp.ne.s32.totalorder %s320, %s321
    %p335 = scmp.eq.s32.totalorder %s25, 1
    %p336 = por %p334, %p335
    %p338 = scmp.ne.s32.totalorder %s321, %s337
    %p339 = scmp.eq.s32.totalorder %s25, 0
    %p340 = por %p338, %p339
    %p341 = scmp.le.s32.totalorder 1, %s19
    %p342 = scmp.lt.s32.totalorder %s19, 3
    %p343 = pnand %p341, %p342
    %p344 = pneg %p343
    // Predicated region
    $region9: #{_lambda_.3} parent=5 // pred_check
      _
    $region10: #{_lambda_.3} parent=5 // pred_check_branch
      %346 = sbr.rel (%p343) target = $region12
    $region11: #{_lambda_.3} parent=5 // pred_region
      %s347 = ssub.s32 %s19, 1
      // Predicated region
      $region13: #{_lambda_.3} parent=11 // pred_check
        %p348 = pneg %p118
      $region14: #{_lambda_.3} parent=11 // pred_check_branch
        %350 = sbr.rel (%p348) target = $region16
      $region15: #{_lambda_.3} parent=11 // pred_region
        _
      $region16: #{_lambda_.3} parent=11 // pred_fallthru
        _
      // Predicated region
      $region17: #{_lambda_.3} parent=11 // pred_check
        %p351 = pneg %p139
      $region18: #{_lambda_.3} parent=11 // pred_check_branch
        %353 = sbr.rel (%p351) target = $region20
      $region19: #{_lambda_.3} parent=11 // pred_region
        _
      $region20: #{_lambda_.3} parent=11 // pred_fallthru
        _
      // Predicated region
      $region21: #{_lambda_.3} parent=11 // pred_check
        %p354 = pneg %p160
      $region22: #{_lambda_.3} parent=11 // pred_check_branch
        %356 = sbr.rel (%p354) target = $region24
      $region23: #{_lambda_.3} parent=11 // pred_region
        _
      $region24: #{_lambda_.3} parent=11 // pred_fallthru
        _
      // Predicated region
      $region25: #{_lambda_.3} parent=11 // pred_check
        %p357 = pneg %p181
      $region26: #{_lambda_.3} parent=11 // pred_check_branch
        %359 = sbr.rel (%p357) target = $region28
      $region27: #{_lambda_.3} parent=11 // pred_region
        _
      $region28: #{_lambda_.3} parent=11 // pred_fallthru
        _
      // Predicated region
      $region29: #{_lambda_.3} parent=11 // pred_check
        %p360 = pneg %p202
      $region30: #{_lambda_.3} parent=11 // pred_check_branch
        %362 = sbr.rel (%p360) target = $region32
      $region31: #{_lambda_.3} parent=11 // pred_region
        _
      $region32: #{_lambda_.3} parent=11 // pred_fallthru
        _
      // Predicated region
      $region33: #{_lambda_.3} parent=11 // pred_check
        %p363 = pneg %p223
      $region34: #{_lambda_.3} parent=11 // pred_check_branch
        %365 = sbr.rel (%p363) target = $region36
      $region35: #{_lambda_.3} parent=11 // pred_region
        _
      $region36: #{_lambda_.3} parent=11 // pred_fallthru
        _
      // Predicated region
      $region37: #{_lambda_.3} parent=11 // pred_check
        %p366 = pneg %p244
      $region38: #{_lambda_.3} parent=11 // pred_check_branch
        %368 = sbr.rel (%p366) target = $region40
      $region39: #{_lambda_.3} parent=11 // pred_region
        _
      $region40: #{_lambda_.3} parent=11 // pred_fallthru
        _
      // Predicated region
      $region41: #{_lambda_.3} parent=11 // pred_check
        %p369 = pneg %p265
      $region42: #{_lambda_.3} parent=11 // pred_check_branch
        %371 = sbr.rel (%p369) target = $region44
      $region43: #{_lambda_.3} parent=11 // pred_region
        _
      $region44: #{_lambda_.3} parent=11 // pred_fallthru
        _
      // Predicated region
      $region45: #{_lambda_.3} parent=11 // pred_check
        %p372 = pneg %p286
      $region46: #{_lambda_.3} parent=11 // pred_check_branch
        %374 = sbr.rel (%p372) target = $region48
      $region47: #{_lambda_.3} parent=11 // pred_region
        _
      $region48: #{_lambda_.3} parent=11 // pred_fallthru
        _
      // Predicated region
      $region49: #{_lambda_.3} parent=11 // pred_check
        %p375 = pneg %p307
      $region50: #{_lambda_.3} parent=11 // pred_check_branch
        %377 = sbr.rel (%p375) target = $region52
      $region51: #{_lambda_.3} parent=11 // pred_region
        _
      $region52: #{_lambda_.3} parent=11 // pred_fallthru
        _
    $region12: #{_lambda_.3} parent=5 // pred_fallthru
      _
    %p378 = scmp.lt.s32.totalorder %s19, 2
    // Predicated region
    $region53: #{_lambda_.3} parent=5 // pred_check
      %p379 = pneg %p378
    $region54: #{_lambda_.3} parent=5 // pred_check_branch
      %381 = sbr.rel (%p379) target = $region56
    $region55: #{_lambda_.3} parent=5 // pred_region
      // Predicated region
      $region57: #{_lambda_.3} parent=55 // pred_check
        %p382 = pneg %p39
      $region58: #{_lambda_.3} parent=55 // pred_check_branch
        %384 = sbr.rel (%p382) target = $region60
      $region59: #{_lambda_.3} parent=55 // pred_region
        %p385 = scmp.lt.s32.totalorder %s19, 1
        %s386 = scalar_select %p385, %s19, 1
        %s387 = smul.addr %s386, 2
        %s388 = smul.addr %s387, 4
        %s389 = scalar_lea.vmem %s0, %s388
      $region60: #{_lambda_.3} parent=55 // pred_fallthru
        _
      // Predicated region
      $region61: #{_lambda_.3} parent=55 // pred_check
        %p390 = pneg %p65
      $region62: #{_lambda_.3} parent=55 // pred_check_branch
        %392 = sbr.rel (%p390) target = $region64
      $region63: #{_lambda_.3} parent=55 // pred_region
        %p393 = scmp.lt.s32.totalorder %s19, 1
        %s394 = scalar_select %p393, %s19, 1
        %s395 = smul.addr %s394, 2
        %s396 = smul.addr %s395, 4
        %s397 = scalar_lea.vmem %s1, %s396
      $region64: #{_lambda_.3} parent=55 // pred_fallthru
        _
      // Predicated region
      $region65: #{_lambda_.3} parent=55 // pred_check
        %p398 = pneg %p91
      $region66: #{_lambda_.3} parent=55 // pred_check_branch
        %400 = sbr.rel (%p398) target = $region68
      $region67: #{_lambda_.3} parent=55 // pred_region
        %p401 = scmp.lt.s32.totalorder %s19, 1
        %s402 = scalar_select %p401, %s19, 1
        %s403 = smul.addr %s402, 2
        %s404 = smul.addr %s403, 4
        %s405 = scalar_lea.vmem %s2, %s404
      $region68: #{_lambda_.3} parent=55 // pred_fallthru
        _
    $region56: #{_lambda_.3} parent=5 // pred_fallthru
      _
    %p406 = scmp.le.s32.totalorder 1, %s19
    %p407 = scmp.lt.s32.totalorder %s19, 3
    %p408 = pnand %p406, %p407
    %p409 = pneg %p408
    // Predicated region
    $region69: #{_lambda_.3} parent=5 // pred_check
      _
    $region70: #{_lambda_.3} parent=5 // pred_check_branch
      %411 = sbr.rel (%p408) target = $region72
    $region71: #{_lambda_.3} parent=5 // pred_region
      %s412 = ssub.s32 %s19, 1
      %p413 = scmp.lt.s32.totalorder %s24, 1
      %s414 = scalar_select %p413, %s24, 1
      %s415 = smul.addr %s414, 2
      %s416 = smul.addr %s415, 4
      %s417 = scalar_lea.vmem %s0, %s416
      %p418 = pneg %p45
      %p419 = pneg %p42
      %p420 = scmp.lt.s32.totalorder %s24, 1
      %s421 = scalar_select %p420, %s24, 1
      %s422 = smul.addr %s421, 2
      %s423 = smul.addr %s422, 4
      %s424 = scalar_lea.vmem %s1, %s423
      %p425 = pneg %p71
      %p426 = pneg %p68
      %p427 = scmp.lt.s32.totalorder %s24, 1
      %s428 = scalar_select %p427, %s24, 1
      %s429 = smul.addr %s428, 2
      %s430 = smul.addr %s429, 4
      %s431 = scalar_lea.vmem %s2, %s430
      %p432 = pneg %p97
      %p433 = pneg %p94
      %p434 = pneg %p118
      %p435 = pneg %p115
      %p436 = pneg %p139
      %p437 = pneg %p136
      %p438 = pneg %p160
      %p439 = pneg %p157
      %p440 = pneg %p181
      %p441 = pneg %p178
      %p442 = pneg %p202
      %p443 = pneg %p199
      %p444 = pneg %p223
      %p445 = pneg %p220
      %p446 = pneg %p244
      %p447 = pneg %p241
      %p448 = pneg %p265
      %p449 = pneg %p262
      %p450 = pneg %p286
      %p451 = pneg %p283
      %p452 = pneg %p307
      %p453 = pneg %p304
      %p454 = pneg %p333
      %p455 = pneg %p330
      %p456 = scmp.lt.s32.totalorder %s24, 1
      %s457 = scalar_select %p456, %s24, 1
      %s458 = smul.addr %s457, 2
      %s459 = smul.addr %s458, 4
      %s460 = scalar_lea.vmem %s13, %s459
      %p461 = scmp.lt.s32.totalorder %s24, 1
      %s462 = scalar_select %p461, %s24, 1
      %s463 = smul.addr %s462, 2
      %s464 = smul.addr %s463, 4
      %s465 = scalar_lea.vmem %s0, %s464
      %p466 = scmp.lt.s32.totalorder %s24, 1
      %s467 = scalar_select %p466, %s24, 1
      %s468 = smul.addr %s467, 2
      %s469 = smul.addr %s468, 4
      %s470 = scalar_lea.vmem %s1, %s469
      %p471 = scmp.lt.s32.totalorder %s24, 1
      %s472 = scalar_select %p471, %s24, 1
      %s473 = smul.addr %s472, 2
      %s474 = smul.addr %s473, 4
      %s475 = scalar_lea.vmem %s2, %s474
      %p476 = scmp.lt.s32.totalorder %s24, 1
      %s477 = scalar_select %p476, %s24, 1
      %s478 = smul.addr %s477, 2
      %s479 = smul.addr %s478, 4
      %s480 = scalar_lea.vmem %s13, %s479
      %v482 = vld [vmem:[%s465] sm:$0xff]
      %v483 = vld [vmem:[%s470] sm:$0xff]
      %v484 = vld [vmem:[%s475] sm:$0xff]
      %v485 = vsub.f32 %v482, %v483
      %v486 = vld [vmem:[%s3] sm:$0xff]
      %v487 = vld [vmem:[%s3 + $0x8] sm:$0xff]
      %v488 = vld [vmem:[%s3 + $0x10] sm:$0x1]
      %v489 = vld [vmem:[%s3 + $0x18] sm:$0x1]
      %v491 = vcombine.high %v485, %v485
      %v494 = vcombine.low %v482, %v482
      %vm496 = vcmask 1043456
      %v497 = vsel %vm496, %v485, %v494
      %v498 = vsel %vm496, %v491, %v482
      %499 = vrot.lane.b32.xlu0 %v497, 17
      %v500 = vpop.permute.xlu0 %499
      %501 = vrot.lane.b32.xlu0 %v498, 17
      %v502 = vpop.permute.xlu0 %501
      %v503 = vlaneseq
      %v504 = vand.u32 %v503, 127
      %vm505 = vcmp.lt.s32.totalorder %v504, 17
      %v506 = vsel %vm505, %v500, %v502
      %v507 = vsel %vm505, %v502, %v500
      %v508 = vlaneseq
      %v509 = vshrl.u32 %v508, 7
      %v510 = vsub.s32 0, %v509
      %v511 = vrot.slane %v486, %v510
      %v512 = vlaneseq
      %v513 = vshrl.u32 %v512, 7
      %v514 = vsub.s32 0, %v513
      %v515 = vrot.slane %v487, %v514
      %v516 = vmul.f32 %v507, %v511
      %v517 = vmul.f32 %v506, %v515
      %518 = vrot.lane.b32.xlu0 %v497, 16
      %v519 = vpop.permute.xlu0 %518
      %520 = vrot.lane.b32.xlu0 %v498, 16
      %v521 = vpop.permute.xlu0 %520
      %vm522 = vcmp.lt.s32.totalorder %v504, 16
      %v523 = vsel %vm522, %v519, %v521
      %v524 = vsel %vm522, %v521, %v519
      %v525 = vlaneseq
      %v526 = vshrl.u32 %v525, 7
      %v527 = vsub.s32 1, %v526
      %v528 = vrot.slane %v486, %v527
      %v529 = vlaneseq
      %v530 = vshrl.u32 %v529, 7
      %v531 = vsub.s32 1, %v530
      %v532 = vrot.slane %v487, %v531
      %v533 = vmul.f32 %v524, %v528
      %v534 = vmul.f32 %v523, %v532
      %535 = vrot.lane.b32.xlu0 %v497, 15
      %v536 = vpop.permute.xlu0 %535
      %537 = vrot.lane.b32.xlu0 %v498, 15
      %v538 = vpop.permute.xlu0 %537
      %vm539 = vcmp.lt.s32.totalorder %v504, 15
      %v540 = vsel %vm539, %v536, %v538
      %v541 = vsel %vm539, %v538, %v536
      %v542 = vlaneseq
      %v543 = vshrl.u32 %v542, 7
      %v544 = vsub.s32 2, %v543
      %v545 = vrot.slane %v486, %v544
      %v546 = vlaneseq
      %v547 = vshrl.u32 %v546, 7
      %v548 = vsub.s32 2, %v547
      %v549 = vrot.slane %v487, %v548
      %v550 = vmul.f32 %v541, %v545
      %v551 = vmul.f32 %v540, %v549
      %552 = vrot.lane.b32.xlu0 %v497, 1
      %v553 = vpop.permute.xlu0 %552
      %554 = vrot.lane.b32.xlu0 %v498, 1
      %v555 = vpop.permute.xlu0 %554
      %vm556 = vcmp.lt.s32.totalorder %v504, 1
      %v557 = vsel %vm556, %v553, %v555
      %v558 = vsel %vm556, %v555, %v553
      %v559 = vlaneseq
      %v560 = vshrl.u32 %v559, 7
      %v561 = vsub.s32 3, %v560
      %v562 = vrot.slane %v486, %v561
      %v563 = vlaneseq
      %v564 = vshrl.u32 %v563, 7
      %v565 = vsub.s32 3, %v564
      %v566 = vrot.slane %v487, %v565
      %v567 = vmul.f32 %v558, %v562
      %v568 = vmul.f32 %v557, %v566
      %v569 = vlaneseq
      %v570 = vshrl.u32 %v569, 7
      %v571 = vsub.s32 4, %v570
      %v572 = vrot.slane %v486, %v571
      %v573 = vlaneseq
      %v574 = vshrl.u32 %v573, 7
      %v575 = vsub.s32 4, %v574
      %v576 = vrot.slane %v487, %v575
      %v577 = vmul.f32 %v497, %v572
      %v578 = vmul.f32 %v498, %v576
      %579 = vrot.lane.b32.xlu0 %v497, 127
      %v580 = vpop.permute.xlu0 %579
      %581 = vrot.lane.b32.xlu0 %v498, 127
      %v582 = vpop.permute.xlu0 %581
      %vm583 = vcmp.lt.s32.totalorder %v504, 127
      %v584 = vsel %vm583, %v580, %v582
      %v585 = vsel %vm583, %v582, %v580
      %v586 = vlaneseq
      %v587 = vshrl.u32 %v586, 7
      %v588 = vsub.s32 5, %v587
      %v589 = vrot.slane %v486, %v588
      %v590 = vlaneseq
      %v591 = vshrl.u32 %v590, 7
      %v592 = vsub.s32 5, %v591
      %v593 = vrot.slane %v487, %v592
      %v594 = vmul.f32 %v584, %v589
      %v595 = vmul.f32 %v585, %v593
      %596 = vrot.lane.b32.xlu0 %v497, 113
      %v597 = vpop.permute.xlu0 %596
      %598 = vrot.lane.b32.xlu0 %v498, 113
      %v599 = vpop.permute.xlu0 %598
      %vm600 = vcmp.lt.s32.totalorder %v504, 113
      %v601 = vsel %vm600, %v597, %v599
      %v602 = vsel %vm600, %v599, %v597
      %v603 = vlaneseq
      %v604 = vshrl.u32 %v603, 7
      %v605 = vsub.s32 6, %v604
      %v606 = vrot.slane %v486, %v605
      %v607 = vlaneseq
      %v608 = vshrl.u32 %v607, 7
      %v609 = vsub.s32 6, %v608
      %v610 = vrot.slane %v487, %v609
      %v611 = vmul.f32 %v601, %v606
      %v612 = vmul.f32 %v602, %v610
      %613 = vrot.lane.b32.xlu0 %v497, 112
      %v614 = vpop.permute.xlu0 %613
      %615 = vrot.lane.b32.xlu0 %v498, 112
      %v616 = vpop.permute.xlu0 %615
      %vm617 = vcmp.lt.s32.totalorder %v504, 112
      %v618 = vsel %vm617, %v614, %v616
      %v619 = vsel %vm617, %v616, %v614
      %v620 = vlaneseq
      %v621 = vshrl.u32 %v620, 7
      %v622 = vsub.s32 7, %v621
      %v623 = vrot.slane %v486, %v622
      %v624 = vlaneseq
      %v625 = vshrl.u32 %v624, 7
      %v626 = vsub.s32 7, %v625
      %v627 = vrot.slane %v487, %v626
      %v628 = vmul.f32 %v618, %v623
      %v629 = vmul.f32 %v619, %v627
      %630 = vrot.lane.b32.xlu0 %v497, 111
      %v631 = vpop.permute.xlu0 %630
      %632 = vrot.lane.b32.xlu0 %v498, 111
      %v633 = vpop.permute.xlu0 %632
      %vm634 = vcmp.lt.s32.totalorder %v504, 111
      %v635 = vsel %vm634, %v631, %v633
      %v636 = vsel %vm634, %v633, %v631
      %v637 = vlaneseq
      %v638 = vshrl.u32 %v637, 7
      %v639 = vsub.s32 0, %v638
      %v640 = vrot.slane %v488, %v639
      %v641 = vlaneseq
      %v642 = vshrl.u32 %v641, 7
      %v643 = vsub.s32 0, %v642
      %v644 = vrot.slane %v489, %v643
      %v645 = vmul.f32 %v635, %v640
      %v646 = vmul.f32 %v636, %v644
      %v647 = vpack.c.bf16 %v533, %v516
      %v648 = vpack.c.bf16 %v534, %v517
      %v649 = vpack.c.bf16 %v567, %v550
      %v650 = vpack.c.bf16 %v568, %v551
      %v651 = vpack.c.bf16 %v594, %v577
      %v652 = vpack.c.bf16 %v595, %v578
      %v653 = vpack.c.bf16 %v628, %v611
      %v654 = vpack.c.bf16 %v629, %v612
      %v655 = vpack.c.bf16 %v645, %v645
      %v656 = vpack.c.bf16 %v646, %v646
      %v657 = vld [vmem:[%s4] sm:$0xf]
      %v658 = vpack.c.bf16 %v657, %v657
      %v659 = vld [vmem:[%s5] sm:$0xf]
      %661 = vset.pattern.permute.xlu0 0
      %662 = vperm.xlu0 %661, %v659
      %v663 = vpop.permute.xlu0 %662
      %vm665 = vcmask 588800
      %v667 = vsel %vm665, %v658, 0
      %v670 = vsel %vm496, %v655, 0
      %v673 = vsel %vm496, %v656, 0
      %675 = vmatprep.subr.bf16.mxu0 %v648
      %676 = vmatpush1.bf16.msra.mxu0 %v647
      %677 = vmatprep.subr.bf16.mxu0 %v650
      %678 = vmatpush1.bf16.msra.mxu0 %v649
      %679 = vmatprep.subr.bf16.mxu0 %v652
      %680 = vmatpush1.bf16.msra.mxu0 %v651
      %681 = vmatprep.subr.bf16.mxu0 %v654
      %682 = vmatpush1.bf16.msra.mxu0 %v653
      %683 = vmatprep.subr.bf16.mxu0 %v673
      %684 = vmatpush1.bf16.msra.mxu0 %v670
      %685 = vmatprep.subr.bf16.mxu0 0
      %686 = vmatpush1.bf16.msra.mxu0 0
      %687 = vmatprep.subr.bf16.mxu0 0
      %688 = vmatpush1.bf16.msra.mxu0 0
      %689 = vmatprep.subr.bf16.mxu0 0
      %690 = vmatpush1.bf16.msra.mxu0 0
      %691 = vmatprep.subr.bf16.mxu0 0
      %692 = vmatpush1.bf16.msra.mxu0 0
      %693 = vmatprep.subr.bf16.mxu0 0
      %694 = vmatpush1.bf16.msra.mxu0 0
      %695 = vmatprep.subr.bf16.mxu0 0
      %696 = vmatpush1.bf16.msra.mxu0 0
      %697 = vmatprep.subr.bf16.mxu0 0
      %698 = vmatpush1.bf16.msra.mxu0 0
      %699 = vmatprep.subr.bf16.mxu0 0
      %700 = vmatpush1.bf16.msra.mxu0 0
      %701 = vmatprep.subr.bf16.mxu0 0
      %702 = vmatpush1.bf16.msra.mxu0 0
      %703 = vmatprep.subr.bf16.mxu0 0
      %704 = vmatpush1.bf16.msra.mxu0 0
      %705 = vmatprep.subr.bf16.mxu0 0
      %706 = vmatpush1.bf16.msra.mxu0 0
      %707 = vmatprep.mubr.bf16.mxu0 0
      %708 = vmatmul.mubr.bf16.gmra.mrb[0].mxu0 %v667
      %v709 = vpop.f32.mrb[0].mxu0
      %v710 = vadd.f32 %v663, %v709
      %v711 = vpop.f32.mrb[0].mxu0
      %v712 = vadd.f32 %v663, %v711
      %v713 = vpop.f32.mrb[0].mxu0
      %v714 = vpop.f32.mrb[0].mxu0
      %715 = vdwg.mxu0
      %v716 = vmax.f32 %v710, 0.0
      %v717 = vmax.f32 %v712, 0.0
      %v719 = vcombine.low %v483, %v483
      %v721 = vsel %vm496, %v485, %v719
      %v722 = vsel %vm496, %v491, %v483
      %723 = vrot.lane.b32.xlu0 %v721, 17
      %v724 = vpop.permute.xlu0 %723
      %725 = vrot.lane.b32.xlu0 %v722, 17
      %v726 = vpop.permute.xlu0 %725
      %v727 = vsel %vm505, %v724, %v726
      %v728 = vsel %vm505, %v726, %v724
      %v729 = vmul.f32 %v728, %v511
      %v730 = vmul.f32 %v727, %v515
      %731 = vrot.lane.b32.xlu0 %v721, 16
      %v732 = vpop.permute.xlu0 %731
      %733 = vrot.lane.b32.xlu0 %v722, 16
      %v734 = vpop.permute.xlu0 %733
      %v735 = vsel %vm522, %v732, %v734
      %v736 = vsel %vm522, %v734, %v732
      %v737 = vmul.f32 %v736, %v528
      %v738 = vmul.f32 %v735, %v532
      %739 = vrot.lane.b32.xlu0 %v721, 15
      %v740 = vpop.permute.xlu0 %739
      %741 = vrot.lane.b32.xlu0 %v722, 15
      %v742 = vpop.permute.xlu0 %741
      %v743 = vsel %vm539, %v740, %v742
      %v744 = vsel %vm539, %v742, %v740
      %v745 = vmul.f32 %v744, %v545
      %v746 = vmul.f32 %v743, %v549
      %747 = vrot.lane.b32.xlu0 %v721, 1
      %v748 = vpop.permute.xlu0 %747
      %749 = vrot.lane.b32.xlu0 %v722, 1
      %v750 = vpop.permute.xlu0 %749
      %v751 = vsel %vm556, %v748, %v750
      %v752 = vsel %vm556, %v750, %v748
      %v753 = vmul.f32 %v752, %v562
      %v754 = vmul.f32 %v751, %v566
      %v755 = vmul.f32 %v721, %v572
      %v756 = vmul.f32 %v722, %v576
      %757 = vrot.lane.b32.xlu0 %v721, 127
      %v758 = vpop.permute.xlu0 %757
      %759 = vrot.lane.b32.xlu0 %v722, 127
      %v760 = vpop.permute.xlu0 %759
      %v761 = vsel %vm583, %v758, %v760
      %v762 = vsel %vm583, %v760, %v758
      %v763 = vmul.f32 %v761, %v589
      %v764 = vmul.f32 %v762, %v593
      %765 = vrot.lane.b32.xlu0 %v721, 113
      %v766 = vpop.permute.xlu0 %765
      %767 = vrot.lane.b32.xlu0 %v722, 113
      %v768 = vpop.permute.xlu0 %767
      %v769 = vsel %vm600, %v766, %v768
      %v770 = vsel %vm600, %v768, %v766
      %v771 = vmul.f32 %v769, %v606
      %v772 = vmul.f32 %v770, %v610
      %773 = vrot.lane.b32.xlu0 %v721, 112
      %v774 = vpop.permute.xlu0 %773
      %775 = vrot.lane.b32.xlu0 %v722, 112
      %v776 = vpop.permute.xlu0 %775
      %v777 = vsel %vm617, %v774, %v776
      %v778 = vsel %vm617, %v776, %v774
      %v779 = vmul.f32 %v777, %v623
      %v780 = vmul.f32 %v778, %v627
      %781 = vrot.lane.b32.xlu0 %v721, 111
      %v782 = vpop.permute.xlu0 %781
      %783 = vrot.lane.b32.xlu0 %v722, 111
      %v784 = vpop.permute.xlu0 %783
      %v785 = vsel %vm634, %v782, %v784
      %v786 = vsel %vm634, %v784, %v782
      %v787 = vmul.f32 %v785, %v640
      %v788 = vmul.f32 %v786, %v644
      %v789 = vpack.c.bf16 %v737, %v729
      %v790 = vpack.c.bf16 %v738, %v730
      %v791 = vpack.c.bf16 %v753, %v745
      %v792 = vpack.c.bf16 %v754, %v746
      %v793 = vpack.c.bf16 %v763, %v755
      %v794 = vpack.c.bf16 %v764, %v756
      %v795 = vpack.c.bf16 %v779, %v771
      %v796 = vpack.c.bf16 %v780, %v772
      %v797 = vpack.c.bf16 %v787, %v787
      %v798 = vpack.c.bf16 %v788, %v788
      %v799 = vld [vmem:[%s6] sm:$0xf]
      %v800 = vpack.c.bf16 %v799, %v799
      %v801 = vld [vmem:[%s7] sm:$0xf]
      %803 = vset.pattern.permute.xlu0 0
      %804 = vperm.xlu0 %803, %v801
      %v805 = vpop.permute.xlu0 %804
      %v808 = vsel %vm665, %v800, 0
      %v811 = vsel %vm496, %v797, 0
      %v814 = vsel %vm496, %v798, 0
      %816 = vmatprep.subr.bf16.mxu0 %v790
      %817 = vmatpush1.bf16.msra.mxu0 %v789
      %818 = vmatprep.subr.bf16.mxu0 %v792
      %819 = vmatpush1.bf16.msra.mxu0 %v791
      %820 = vmatprep.subr.bf16.mxu0 %v794
      %821 = vmatpush1.bf16.msra.mxu0 %v793
      %822 = vmatprep.subr.bf16.mxu0 %v796
      %823 = vmatpush1.bf16.msra.mxu0 %v795
      %824 = vmatprep.subr.bf16.mxu0 %v814
      %825 = vmatpush1.bf16.msra.mxu0 %v811
      %826 = vmatprep.subr.bf16.mxu0 0
      %827 = vmatpush1.bf16.msra.mxu0 0
      %828 = vmatprep.subr.bf16.mxu0 0
      %829 = vmatpush1.bf16.msra.mxu0 0
      %830 = vmatprep.subr.bf16.mxu0 0
      %831 = vmatpush1.bf16.msra.mxu0 0
      %832 = vmatprep.subr.bf16.mxu0 0
      %833 = vmatpush1.bf16.msra.mxu0 0
      %834 = vmatprep.subr.bf16.mxu0 0
      %835 = vmatpush1.bf16.msra.mxu0 0
      %836 = vmatprep.subr.bf16.mxu0 0
      %837 = vmatpush1.bf16.msra.mxu0 0
      %838 = vmatprep.subr.bf16.mxu0 0
      %839 = vmatpush1.bf16.msra.mxu0 0
      %840 = vmatprep.subr.bf16.mxu0 0
      %841 = vmatpush1.bf16.msra.mxu0 0
      %842 = vmatprep.subr.bf16.mxu0 0
      %843 = vmatpush1.bf16.msra.mxu0 0
      %844 = vmatprep.subr.bf16.mxu0 0
      %845 = vmatpush1.bf16.msra.mxu0 0
      %846 = vmatprep.subr.bf16.mxu0 0
      %847 = vmatpush1.bf16.msra.mxu0 0
      %848 = vmatprep.mubr.bf16.mxu0 0
      %849 = vmatmul.mubr.bf16.gmra.mrb[0].mxu0 %v808
      %v850 = vpop.f32.mrb[0].mxu0
      %v851 = vadd.f32 %v805, %v850
      %v852 = vpop.f32.mrb[0].mxu0
      %v853 = vadd.f32 %v805, %v852
      %v854 = vpop.f32.mrb[0].mxu0
      %v855 = vpop.f32.mrb[0].mxu0
      %856 = vdwg.mxu0
      %v857 = vmax.f32 %v851, 0.0
      %v858 = vmax.f32 %v853, 0.0
      %v859 = vld [vmem:[%s8] sm:$0xf]
      %861 = vset.pattern.permute.xlu0 0
      %862 = vperm.xlu0 %861, %v859
      %v863 = vpop.permute.xlu0 %862
      %v865 = vmul.f32 %v716, %v863
      %v866 = vmul.f32 %v717, %v863
      %v867 = vsel %vm496, %v865, 0.0
      %v868 = vrot.slane %v867, 4
      %v869 = vadd.f32 %v867, %v868
      %v870 = vrot.slane %v869, 2
      %v871 = vadd.f32 %v869, %v870
      %v872 = vrot.slane %v871, 1
      %v873 = vadd.f32 %v871, %v872
      %v874 = vsel %vm496, %v866, 0.0
      %v875 = vrot.slane %v874, 4
      %v876 = vadd.f32 %v874, %v875
      %v877 = vrot.slane %v876, 2
      %v878 = vadd.f32 %v876, %v877
      %v879 = vrot.slane %v878, 1
      %v880 = vadd.f32 %v878, %v879
      %v881 = vld [vmem:[%s10] sm:$0x1]
      %883 = vset.pattern.permute.xlu0 0
      %884 = vperm.xlu0 %883, %v881
      %v885 = vpop.permute.xlu0 %884
      %v887 = vadd.f32 %v873, %v885
      %v888 = vadd.f32 %v880, %v885
      %v889 = vxor.u32 %v887, 2147483648
      %v890 = vxor.u32 %v888, 2147483648
      %v891 = vmul.f32 %v889, 1.442695
      %v892 = vpow.pop %v891
      %v893 = vmul.f32 %v890, 1.442695
      %v894 = vpow.pop %v893
      %v895 = vadd.f32 %v892, 1.0
      %v896 = vadd.f32 %v894, 1.0
      %v897 = vrcp.pop %v895
      %v898 = vmul.f32 1.0, %v897
      %v899 = vrcp.pop %v896
      %v900 = vmul.f32 1.0, %v899
      %v901 = vld [vmem:[%s9] sm:$0xf]
      %903 = vset.pattern.permute.xlu0 0
      %904 = vperm.xlu0 %903, %v901
      %v905 = vpop.permute.xlu0 %904
      %v907 = vmul.f32 %v857, %v905
      %v908 = vmul.f32 %v858, %v905
      %v909 = vsel %vm496, %v907, 0.0
      %v910 = vrot.slane %v909, 4
      %v911 = vadd.f32 %v909, %v910
      %v912 = vrot.slane %v911, 2
      %v913 = vadd.f32 %v911, %v912
      %v914 = vrot.slane %v913, 1
      %v915 = vadd.f32 %v913, %v914
      %v916 = vsel %vm496, %v908, 0.0
      %v917 = vrot.slane %v916, 4
      %v918 = vadd.f32 %v916, %v917
      %v919 = vrot.slane %v918, 2
      %v920 = vadd.f32 %v918, %v919
      %v921 = vrot.slane %v920, 1
      %v922 = vadd.f32 %v920, %v921
      %v923 = vld [vmem:[%s10 + $0x1] sm:$0x1]
      %925 = vset.pattern.permute.xlu0 0
      %926 = vperm.xlu0 %925, %v923
      %v927 = vpop.permute.xlu0 %926
      %v929 = vadd.f32 %v915, %v927
      %v930 = vadd.f32 %v922, %v927
      %v931 = vxor.u32 %v929, 2147483648
      %v932 = vxor.u32 %v930, 2147483648
      %v933 = vmul.f32 %v931, 1.442695
      %v934 = vpow.pop %v933
      %v935 = vmul.f32 %v932, 1.442695
      %v936 = vpow.pop %v935
      %v937 = vadd.f32 %v934, 1.0
      %v938 = vadd.f32 %v936, 1.0
      %v939 = vrcp.pop %v937
      %v940 = vmul.f32 1.0, %v939
      %v941 = vrcp.pop %v938
      %v942 = vmul.f32 1.0, %v941
      %v943 = vlaneseq
      %v944 = vshrl.u32 %v943, 7
      %v945 = vsub.s32 0, %v944
      %v946 = vrot.slane %v898, %v945
      %v947 = vlaneseq
      %v948 = vshrl.u32 %v947, 7
      %v949 = vsub.s32 0, %v948
      %v950 = vrot.slane %v900, %v949
      %v952 = vcombine.high %v484, %v484
      %v954 = vmul.f32 %v946, %v484
      %v955 = vmul.f32 %v950, %v952
      %v956 = vlaneseq
      %v957 = vshrl.u32 %v956, 7
      %v958 = vsub.s32 0, %v957
      %v959 = vrot.slane %v940, %v958
      %v960 = vlaneseq
      %v961 = vshrl.u32 %v960, 7
      %v962 = vsub.s32 0, %v961
      %v963 = vrot.slane %v942, %v962
      %v964 = vmul.f32 %v959, %v484
      %v965 = vmul.f32 %v963, %v952
      %v968 = vrot.slane %v964, 4
      %v969 = vrot.slane %v965, 4
      %v972 = vsel %vm496, %v954, %v968
      %v973 = vsel %vm496, %v955, %v969
      %974 = vrot.lane.b32.xlu0 %v972, 17
      %v975 = vpop.permute.xlu0 %974
      %976 = vrot.lane.b32.xlu0 %v973, 17
      %v977 = vpop.permute.xlu0 %976
      %v978 = vsel %vm505, %v975, %v977
      %v979 = vsel %vm505, %v977, %v975
      %v980 = vmul.f32 %v979, %v511
      %v981 = vmul.f32 %v978, %v515
      %982 = vrot.lane.b32.xlu0 %v972, 16
      %v983 = vpop.permute.xlu0 %982
      %984 = vrot.lane.b32.xlu0 %v973, 16
      %v985 = vpop.permute.xlu0 %984
      %v986 = vsel %vm522, %v983, %v985
      %v987 = vsel %vm522, %v985, %v983
      %v988 = vmul.f32 %v987, %v528
      %v989 = vmul.f32 %v986, %v532
      %990 = vrot.lane.b32.xlu0 %v972, 15
      %v991 = vpop.permute.xlu0 %990
      %992 = vrot.lane.b32.xlu0 %v973, 15
      %v993 = vpop.permute.xlu0 %992
      %v994 = vsel %vm539, %v991, %v993
      %v995 = vsel %vm539, %v993, %v991
      %v996 = vmul.f32 %v995, %v545
      %v997 = vmul.f32 %v994, %v549
      %998 = vrot.lane.b32.xlu0 %v972, 1
      %v999 = vpop.permute.xlu0 %998
      %1000 = vrot.lane.b32.xlu0 %v973, 1
      %v1001 = vpop.permute.xlu0 %1000
      %v1002 = vsel %vm556, %v999, %v1001
      %v1003 = vsel %vm556, %v1001, %v999
      %v1004 = vmul.f32 %v1003, %v562
      %v1005 = vmul.f32 %v1002, %v566
      %v1006 = vmul.f32 %v972, %v572
      %v1007 = vmul.f32 %v973, %v576
      %1008 = vrot.lane.b32.xlu0 %v972, 127
      %v1009 = vpop.permute.xlu0 %1008
      %1010 = vrot.lane.b32.xlu0 %v973, 127
      %v1011 = vpop.permute.xlu0 %1010
      %v1012 = vsel %vm583, %v1009, %v1011
      %v1013 = vsel %vm583, %v1011, %v1009
      %v1014 = vmul.f32 %v1012, %v589
      %v1015 = vmul.f32 %v1013, %v593
      %1016 = vrot.lane.b32.xlu0 %v972, 113
      %v1017 = vpop.permute.xlu0 %1016
      %1018 = vrot.lane.b32.xlu0 %v973, 113
      %v1019 = vpop.permute.xlu0 %1018
      %v1020 = vsel %vm600, %v1017, %v1019
      %v1021 = vsel %vm600, %v1019, %v1017
      %v1022 = vmul.f32 %v1020, %v606
      %v1023 = vmul.f32 %v1021, %v610
      %1024 = vrot.lane.b32.xlu0 %v972, 112
      %v1025 = vpop.permute.xlu0 %1024
      %1026 = vrot.lane.b32.xlu0 %v973, 112
      %v1027 = vpop.permute.xlu0 %1026
      %v1028 = vsel %vm617, %v1025, %v1027
      %v1029 = vsel %vm617, %v1027, %v1025
      %v1030 = vmul.f32 %v1028, %v623
      %v1031 = vmul.f32 %v1029, %v627
      %1032 = vrot.lane.b32.xlu0 %v972, 111
      %v1033 = vpop.permute.xlu0 %1032
      %1034 = vrot.lane.b32.xlu0 %v973, 111
      %v1035 = vpop.permute.xlu0 %1034
      %v1036 = vsel %vm634, %v1033, %v1035
      %v1037 = vsel %vm634, %v1035, %v1033
      %v1038 = vmul.f32 %v1036, %v640
      %v1039 = vmul.f32 %v1037, %v644
      %v1040 = vpack.c.bf16 %v988, %v980
      %v1041 = vpack.c.bf16 %v989, %v981
      %v1042 = vpack.c.bf16 %v1004, %v996
      %v1043 = vpack.c.bf16 %v1005, %v997
      %v1044 = vpack.c.bf16 %v1014, %v1006
      %v1045 = vpack.c.bf16 %v1015, %v1007
      %v1046 = vpack.c.bf16 %v1030, %v1022
      %v1047 = vpack.c.bf16 %v1031, %v1023
      %v1048 = vpack.c.bf16 %v1038, %v1038
      %v1049 = vpack.c.bf16 %v1039, %v1039
      %v1050 = vld [vmem:[%s11] sm:$0xf]
      %v1051 = vpack.c.bf16 %v1050, %v1050
      %v1052 = vld [vmem:[%s12] sm:$0xf]
      %1054 = vset.pattern.permute.xlu0 0
      %1055 = vperm.xlu0 %1054, %v1052
      %v1056 = vpop.permute.xlu0 %1055
      %v1059 = vsel %vm665, %v1051, 0
      %v1062 = vsel %vm496, %v1048, 0
      %v1065 = vsel %vm496, %v1049, 0
      %1067 = vmatprep.subr.bf16.mxu0 %v1041
      %1068 = vmatpush1.bf16.msra.mxu0 %v1040
      %1069 = vmatprep.subr.bf16.mxu0 %v1043
      %1070 = vmatpush1.bf16.msra.mxu0 %v1042
      %1071 = vmatprep.subr.bf16.mxu0 %v1045
      %1072 = vmatpush1.bf16.msra.mxu0 %v1044
      %1073 = vmatprep.subr.bf16.mxu0 %v1047
      %1074 = vmatpush1.bf16.msra.mxu0 %v1046
      %1075 = vmatprep.subr.bf16.mxu0 %v1065
      %1076 = vmatpush1.bf16.msra.mxu0 %v1062
      %1077 = vmatprep.subr.bf16.mxu0 0
      %1078 = vmatpush1.bf16.msra.mxu0 0
      %1079 = vmatprep.subr.bf16.mxu0 0
      %1080 = vmatpush1.bf16.msra.mxu0 0
      %1081 = vmatprep.subr.bf16.mxu0 0
      %1082 = vmatpush1.bf16.msra.mxu0 0
      %1083 = vmatprep.subr.bf16.mxu0 0
      %1084 = vmatpush1.bf16.msra.mxu0 0
      %1085 = vmatprep.subr.bf16.mxu0 0
      %1086 = vmatpush1.bf16.msra.mxu0 0
      %1087 = vmatprep.subr.bf16.mxu0 0
      %1088 = vmatpush1.bf16.msra.mxu0 0
      %1089 = vmatprep.subr.bf16.mxu0 0
      %1090 = vmatpush1.bf16.msra.mxu0 0
      %1091 = vmatprep.subr.bf16.mxu0 0
      %1092 = vmatpush1.bf16.msra.mxu0 0
      %1093 = vmatprep.subr.bf16.mxu0 0
      %1094 = vmatpush1.bf16.msra.mxu0 0
      %1095 = vmatprep.subr.bf16.mxu0 0
      %1096 = vmatpush1.bf16.msra.mxu0 0
      %1097 = vmatprep.subr.bf16.mxu0 0
      %1098 = vmatpush1.bf16.msra.mxu0 0
      %1099 = vmatprep.mubr.bf16.mxu0 0
      %1100 = vmatmul.mubr.bf16.gmra.mrb[0].mxu0 %v1059
      %v1101 = vpop.f32.mrb[0].mxu0
      %v1102 = vadd.f32 %v1056, %v1101
      %v1103 = vpop.f32.mrb[0].mxu0
      %v1104 = vadd.f32 %v1056, %v1103
      %v1105 = vpop.f32.mrb[0].mxu0
      %v1106 = vpop.f32.mrb[0].mxu0
      %1107 = vdwg.mxu0
      %v1108 = vmax.f32 %v1102, 0.0
      %v1109 = vmax.f32 %v1104, 0.0
      %v1112 = vcombine.low %v1108, %v1109
      %1114 = vst [vmem:[%s480] sm:$0xff] %v1112
      %p1115 = scmp.lt.s32.totalorder %s24, 1
      %s1116 = scalar_select %p1115, %s24, 1
      %s1117 = smul.addr %s1116, 2
      %s1118 = smul.addr %s1117, 4
      %s1119 = scalar_lea.vmem %s13, %s1118
      // Predicated region
      $region73: #{_lambda_.3} parent=71 // pred_check
        %p1120 = pneg %p330
      $region74: #{_lambda_.3} parent=71 // pred_check_branch
        %1122 = sbr.rel (%p1120) target = $region76
      $region75: #{_lambda_.3} parent=71 // pred_region
        _
      $region76: #{_lambda_.3} parent=71 // pred_fallthru
        _
    $region72: #{_lambda_.3} parent=5 // pred_fallthru
      _
    %p1123 = scmp.le.s32.totalorder 2, %s19
    // Predicated region
    $region77: #{_lambda_.3} parent=5 // pred_check
      %p1124 = pneg %p1123
    $region78: #{_lambda_.3} parent=5 // pred_check_branch
      %1126 = sbr.rel (%p1124) target = $region80
    $region79: #{_lambda_.3} parent=5 // pred_region
      %s1127 = ssub.s32 %s19, 2
      // Predicated region
      $region81: #{_lambda_.3} parent=79 // pred_check
        %p1128 = pneg %p336
      $region82: #{_lambda_.3} parent=79 // pred_check_branch
        %1130 = sbr.rel (%p1128) target = $region84
      $region83: #{_lambda_.3} parent=79 // pred_region
        %p1131 = scmp.lt.s32.totalorder %s25, 1
        %s1132 = scalar_select %p1131, %s25, 1
        %s1133 = smul.addr %s1132, 2
        %s1134 = smul.addr %s1133, 4
        %s1135 = scalar_lea.vmem %s13, %s1134
      $region84: #{_lambda_.3} parent=79 // pred_fallthru
        _
    $region80: #{_lambda_.3} parent=5 // pred_fallthru
      _
  $region6: #{_lambda_.3} parent=0 // loop_footer
    %s23 = sadd.s32 1, %s19
  $region7: #{_lambda_.3} parent=0 // loop_footer_branch
    %18 = sbr.rel target = $region3
  $region8: #{_lambda_.3} parent=0 // loop_exit
    _

// kernel: _lambda_.2
$region0: #{_lambda_.2}
  #allocation0 [shape = 'u32[]', space=smem, size = 0x4, offset = 0x4, fixed_abs, tag = 'smem constant byte address 0x4 - core index']
  #allocation1 [shape = 'u32[144,128]{1,0:T(1,128)}', space=vmem, size = 0x12000, scoped, tag = 'internal scratch']
  %s0 = inlined_call_operand.vmem [shape: f32[2,4,256], index: 0, kind: input, shape index: {}]
  %s1 = inlined_call_operand.vmem [shape: f32[16,4], index: 1, kind: input, shape index: {}]
  %s2 = inlined_call_operand.vmem [shape: f32[24,8], index: 2, kind: input, shape index: {}]
  %s3 = inlined_call_operand.vmem [shape: f32[4,29], index: 3, kind: input, shape index: {}]
  %s4 = inlined_call_operand.vmem [shape: f32[4,8], index: 4, kind: input, shape index: {}]
  %s5 = inlined_call_operand.vmem [shape: f32[8,13], index: 5, kind: input, shape index: {}]
  %s6 = inlined_call_operand.vmem [shape: f32[4,3], index: 6, kind: input, shape index: {}]
  %s7 = inlined_call_operand.vmem [shape: f32[2,4,256], index: 7, kind: output, shape index: {}]
  %s8 = sld [smem:[#allocation0]]
  $region61: #{_lambda_.2} parent=0
    _
  %s10 = ssub.s32 1, %s8
  %s11 = scalar_select 0, %s10, %s8
  loop: start=0, step=1, limit=4
  $region2: #{_lambda_.2} parent=0 // loop_pre_header
    _
  $region3: #{_lambda_.2} parent=0 // loop_header
    %s13 = sphi 0, %s17
    %p14 = scmp.ge.s32.totalorder %s13, 4
    %s23 = sphi 0, %s25
    %s26 = sphi 0, %s23
    %s27 = sphi 0, %s26
    %s43 = sphi 0, %s27
    %s47 = sphi 0, %s47
    %s49 = sphi 0, %s47
    %s50 = sphi 0, %s49
    %s64 = sphi 0, %s50
    %s68 = sphi 0, %s68
    %s70 = sphi 0, %s68
    %s71 = sphi 0, %s70
    %s85 = sphi 0, %s71
    %s89 = sphi 0, %s89
    %s91 = sphi 0, %s89
    %s92 = sphi 0, %s91
    %s106 = sphi 0, %s92
    %s110 = sphi 0, %s110
    %s112 = sphi 0, %s110
    %s113 = sphi 0, %s112
    %s127 = sphi 0, %s113
    %s131 = sphi 0, %s131
    %s133 = sphi 0, %s131
    %s134 = sphi 0, %s133
    %s148 = sphi 0, %s134
    %s152 = sphi 0, %s152
    %s154 = sphi 0, %s152
    %s155 = sphi 0, %s154
    %s169 = sphi 0, %s155
    %s175 = sphi 0, %s177
    %s178 = sphi 0, %s175
    %s179 = sphi 0, %s178
    %s195 = sphi 0, %s179
  $region4: #{_lambda_.2} parent=0 // loop_header_branch
    %16 = sbr.rel (%p14) target = $region8
  $region5: #{_lambda_.2} parent=0 // loop_body
    %s18 = ssub.s32 %s13, 1
    %s19 = ssub.s32 %s13, 2
    %s20 = sadd.s32 %s13, 1
    %s21 = ssub.s32 %s13, %s20
    %p22 = scmp.eq.s32.totalorder %s21, 0
    %s24 = sadd.s32 %s23, 1
    %s25 = scalar_select %p22, %s23, %s24
    %p28 = pneg %p22
    %p29 = scmp.eq.s32.totalorder %s13, 1
    %p30 = por %p28, %p29
    %p31 = scmp.ne.s32.totalorder %s23, %s26
    %p32 = scmp.eq.s32.totalorder %s13, 0
    %p33 = por %p31, %p32
    %p34 = scmp.ne.s32.totalorder %s23, %s26
    %p35 = scmp.eq.s32.totalorder %s18, 1
    %p36 = por %p34, %p35
    %p37 = scmp.ne.s32.totalorder %s26, %s27
    %p38 = scmp.eq.s32.totalorder %s18, 0
    %p39 = por %p37, %p38
    %p40 = scmp.ne.s32.totalorder %s26, %s27
    %p41 = scmp.eq.s32.totalorder %s19, 1
    %p42 = por %p40, %p41
    %p44 = scmp.ne.s32.totalorder %s27, %s43
    %p45 = scmp.eq.s32.totalorder %s19, 0
    %p46 = por %p44, %p45
    %s48 = sadd.s32 %s47, 1
    %p51 = scmp.eq.s32.totalorder %s13, 1
    %p52 = scmp.ne.s32.totalorder %s47, %s49
    %p53 = scmp.eq.s32.totalorder %s13, 0
    %p54 = por %p52, %p53
    %p55 = scmp.ne.s32.totalorder %s47, %s49
    %p56 = scmp.eq.s32.totalorder %s18, 1
    %p57 = por %p55, %p56
    %p58 = scmp.ne.s32.totalorder %s49, %s50
    %p59 = scmp.eq.s32.totalorder %s18, 0
    %p60 = por %p58, %p59
    %p61 = scmp.ne.s32.totalorder %s49, %s50
    %p62 = scmp.eq.s32.totalorder %s19, 1
    %p63 = por %p61, %p62
    %p65 = scmp.ne.s32.totalorder %s50, %s64
    %p66 = scmp.eq.s32.totalorder %s19, 0
    %p67 = por %p65, %p66
    %s69 = sadd.s32 %s68, 1
    %p72 = scmp.eq.s32.totalorder %s13, 1
    %p73 = scmp.ne.s32.totalorder %s68, %s70
    %p74 = scmp.eq.s32.totalorder %s13, 0
    %p75 = por %p73, %p74
    %p76 = scmp.ne.s32.totalorder %s68, %s70
    %p77 = scmp.eq.s32.totalorder %s18, 1
    %p78 = por %p76, %p77
    %p79 = scmp.ne.s32.totalorder %s70, %s71
    %p80 = scmp.eq.s32.totalorder %s18, 0
    %p81 = por %p79, %p80
    %p82 = scmp.ne.s32.totalorder %s70, %s71
    %p83 = scmp.eq.s32.totalorder %s19, 1
    %p84 = por %p82, %p83
    %p86 = scmp.ne.s32.totalorder %s71, %s85
    %p87 = scmp.eq.s32.totalorder %s19, 0
    %p88 = por %p86, %p87
    %s90 = sadd.s32 %s89, 1
    %p93 = scmp.eq.s32.totalorder %s13, 1
    %p94 = scmp.ne.s32.totalorder %s89, %s91
    %p95 = scmp.eq.s32.totalorder %s13, 0
    %p96 = por %p94, %p95
    %p97 = scmp.ne.s32.totalorder %s89, %s91
    %p98 = scmp.eq.s32.totalorder %s18, 1
    %p99 = por %p97, %p98
    %p100 = scmp.ne.s32.totalorder %s91, %s92
    %p101 = scmp.eq.s32.totalorder %s18, 0
    %p102 = por %p100, %p101
    %p103 = scmp.ne.s32.totalorder %s91, %s92
    %p104 = scmp.eq.s32.totalorder %s19, 1
    %p105 = por %p103, %p104
    %p107 = scmp.ne.s32.totalorder %s92, %s106
    %p108 = scmp.eq.s32.totalorder %s19, 0
    %p109 = por %p107, %p108
    %s111 = sadd.s32 %s110, 1
    %p114 = scmp.eq.s32.totalorder %s13, 1
    %p115 = scmp.ne.s32.totalorder %s110, %s112
    %p116 = scmp.eq.s32.totalorder %s13, 0
    %p117 = por %p115, %p116
    %p118 = scmp.ne.s32.totalorder %s110, %s112
    %p119 = scmp.eq.s32.totalorder %s18, 1
    %p120 = por %p118, %p119
    %p121 = scmp.ne.s32.totalorder %s112, %s113
    %p122 = scmp.eq.s32.totalorder %s18, 0
    %p123 = por %p121, %p122
    %p124 = scmp.ne.s32.totalorder %s112, %s113
    %p125 = scmp.eq.s32.totalorder %s19, 1
    %p126 = por %p124, %p125
    %p128 = scmp.ne.s32.totalorder %s113, %s127
    %p129 = scmp.eq.s32.totalorder %s19, 0
    %p130 = por %p128, %p129
    %s132 = sadd.s32 %s131, 1
    %p135 = scmp.eq.s32.totalorder %s13, 1
    %p136 = scmp.ne.s32.totalorder %s131, %s133
    %p137 = scmp.eq.s32.totalorder %s13, 0
    %p138 = por %p136, %p137
    %p139 = scmp.ne.s32.totalorder %s131, %s133
    %p140 = scmp.eq.s32.totalorder %s18, 1
    %p141 = por %p139, %p140
    %p142 = scmp.ne.s32.totalorder %s133, %s134
    %p143 = scmp.eq.s32.totalorder %s18, 0
    %p144 = por %p142, %p143
    %p145 = scmp.ne.s32.totalorder %s133, %s134
    %p146 = scmp.eq.s32.totalorder %s19, 1
    %p147 = por %p145, %p146
    %p149 = scmp.ne.s32.totalorder %s134, %s148
    %p150 = scmp.eq.s32.totalorder %s19, 0
    %p151 = por %p149, %p150
    %s153 = sadd.s32 %s152, 1
    %p156 = scmp.eq.s32.totalorder %s13, 1
    %p157 = scmp.ne.s32.totalorder %s152, %s154
    %p158 = scmp.eq.s32.totalorder %s13, 0
    %p159 = por %p157, %p158
    %p160 = scmp.ne.s32.totalorder %s152, %s154
    %p161 = scmp.eq.s32.totalorder %s18, 1
    %p162 = por %p160, %p161
    %p163 = scmp.ne.s32.totalorder %s154, %s155
    %p164 = scmp.eq.s32.totalorder %s18, 0
    %p165 = por %p163, %p164
    %p166 = scmp.ne.s32.totalorder %s154, %s155
    %p167 = scmp.eq.s32.totalorder %s19, 1
    %p168 = por %p166, %p167
    %p170 = scmp.ne.s32.totalorder %s155, %s169
    %p171 = scmp.eq.s32.totalorder %s19, 0
    %p172 = por %p170, %p171
    %s173 = ssub.s32 %s13, %s20
    %p174 = scmp.eq.s32.totalorder %s173, 0
    %s176 = sadd.s32 %s175, 1
    %s177 = scalar_select %p174, %s175, %s176
    %p180 = pneg %p174
    %p181 = scmp.eq.s32.totalorder %s13, 1
    %p182 = por %p180, %p181
    %p183 = scmp.ne.s32.totalorder %s175, %s178
    %p184 = scmp.eq.s32.totalorder %s13, 0
    %p185 = por %p183, %p184
    %p186 = scmp.ne.s32.totalorder %s175, %s178
    %p187 = scmp.eq.s32.totalorder %s18, 1
    %p188 = por %p186, %p187
    %p189 = scmp.ne.s32.totalorder %s178, %s179
    %p190 = scmp.eq.s32.totalorder %s18, 0
    %p191 = por %p189, %p190
    %p192 = scmp.ne.s32.totalorder %s178, %s179
    %p193 = scmp.eq.s32.totalorder %s19, 1
    %p194 = por %p192, %p193
    %p196 = scmp.ne.s32.totalorder %s179, %s195
    %p197 = scmp.eq.s32.totalorder %s19, 0
    %p198 = por %p196, %p197
    %p199 = scmp.le.s32.totalorder 1, %s13
    %p200 = scmp.lt.s32.totalorder %s13, 3
    %p201 = pnand %p199, %p200
    %p202 = pneg %p201
    // Predicated region
    $region9: #{_lambda_.2} parent=5 // pred_check
      _
    $region10: #{_lambda_.2} parent=5 // pred_check_branch
      %204 = sbr.rel (%p201) target = $region12
    $region11: #{_lambda_.2} parent=5 // pred_region
      %s205 = ssub.s32 %s13, 1
      // Predicated region
      $region13: #{_lambda_.2} parent=11 // pred_check
        %p206 = pneg %p60
      $region14: #{_lambda_.2} parent=11 // pred_check_branch
        %208 = sbr.rel (%p206) target = $region16
      $region15: #{_lambda_.2} parent=11 // pred_region
        _
      $region16: #{_lambda_.2} parent=11 // pred_fallthru
        _
      // Predicated region
      $region17: #{_lambda_.2} parent=11 // pred_check
        %p209 = pneg %p81
      $region18: #{_lambda_.2} parent=11 // pred_check_branch
        %211 = sbr.rel (%p209) target = $region20
      $region19: #{_lambda_.2} parent=11 // pred_region
        _
      $region20: #{_lambda_.2} parent=11 // pred_fallthru
        _
      // Predicated region
      $region21: #{_lambda_.2} parent=11 // pred_check
        %p212 = pneg %p102
      $region22: #{_lambda_.2} parent=11 // pred_check_branch
        %214 = sbr.rel (%p212) target = $region24
      $region23: #{_lambda_.2} parent=11 // pred_region
        _
      $region24: #{_lambda_.2} parent=11 // pred_fallthru
        _
      // Predicated region
      $region25: #{_lambda_.2} parent=11 // pred_check
        %p215 = pneg %p123
      $region26: #{_lambda_.2} parent=11 // pred_check_branch
        %217 = sbr.rel (%p215) target = $region28
      $region27: #{_lambda_.2} parent=11 // pred_region
        _
      $region28: #{_lambda_.2} parent=11 // pred_fallthru
        _
      // Predicated region
      $region29: #{_lambda_.2} parent=11 // pred_check
        %p218 = pneg %p144
      $region30: #{_lambda_.2} parent=11 // pred_check_branch
        %220 = sbr.rel (%p218) target = $region32
      $region31: #{_lambda_.2} parent=11 // pred_region
        _
      $region32: #{_lambda_.2} parent=11 // pred_fallthru
        _
      // Predicated region
      $region33: #{_lambda_.2} parent=11 // pred_check
        %p221 = pneg %p165
      $region34: #{_lambda_.2} parent=11 // pred_check_branch
        %223 = sbr.rel (%p221) target = $region36
      $region35: #{_lambda_.2} parent=11 // pred_region
        _
      $region36: #{_lambda_.2} parent=11 // pred_fallthru
        _
    $region12: #{_lambda_.2} parent=5 // pred_fallthru
      _
    %p224 = scmp.lt.s32.totalorder %s13, 2
    // Predicated region
    $region37: #{_lambda_.2} parent=5 // pred_check
      %p225 = pneg %p224
    $region38: #{_lambda_.2} parent=5 // pred_check_branch
      %227 = sbr.rel (%p225) target = $region40
    $region39: #{_lambda_.2} parent=5 // pred_region
      // Predicated region
      $region41: #{_lambda_.2} parent=39 // pred_check
        %p228 = pneg %p33
      $region42: #{_lambda_.2} parent=39 // pred_check_branch
        %230 = sbr.rel (%p228) target = $region44
      $region43: #{_lambda_.2} parent=39 // pred_region
        %p231 = scmp.lt.s32.totalorder %s13, 1
        %s232 = scalar_select %p231, %s13, 1
        %s233 = smul.addr %s232, 2
        %s234 = smul.addr %s233, 4
        %s235 = scalar_lea.vmem %s0, %s234
      $region44: #{_lambda_.2} parent=39 // pred_fallthru
        _
    $region40: #{_lambda_.2} parent=5 // pred_fallthru
      _
    %p236 = scmp.le.s32.totalorder 1, %s13
    %p237 = scmp.lt.s32.totalorder %s13, 3
    %p238 = pnand %p236, %p237
    %p239 = pneg %p238
    // Predicated region
    $region45: #{_lambda_.2} parent=5 // pred_check
      _
    $region46: #{_lambda_.2} parent=5 // pred_check_branch
      %241 = sbr.rel (%p238) target = $region48
    $region47: #{_lambda_.2} parent=5 // pred_region
      %s242 = ssub.s32 %s13, 1
      %p243 = scmp.lt.s32.totalorder %s18, 1
      %s244 = scalar_select %p243, %s18, 1
      %s245 = smul.addr %s244, 2
      %s246 = smul.addr %s245, 4
      %s247 = scalar_lea.vmem %s0, %s246
      %p248 = pneg %p39
      %p249 = pneg %p36
      %p250 = pneg %p60
      %p251 = pneg %p57
      %p252 = pneg %p81
      %p253 = pneg %p78
      %p254 = pneg %p102
      %p255 = pneg %p99
      %p256 = pneg %p123
      %p257 = pneg %p120
      %p258 = pneg %p144
      %p259 = pneg %p141
      %p260 = pneg %p165
      %p261 = pneg %p162
      %p262 = pneg %p191
      %p263 = pneg %p188
      %p264 = scmp.lt.s32.totalorder %s18, 1
      %s265 = scalar_select %p264, %s18, 1
      %s266 = smul.addr %s265, 2
      %s267 = smul.addr %s266, 4
      %s268 = scalar_lea.vmem %s7, %s267
      %p269 = scmp.lt.s32.totalorder %s18, 1
      %s270 = scalar_select %p269, %s18, 1
      %s271 = smul.addr %s270, 2
      %s272 = smul.addr %s271, 4
      %s273 = scalar_lea.vmem %s0, %s272
      %p274 = scmp.lt.s32.totalorder %s18, 1
      %s275 = scalar_select %p274, %s18, 1
      %s276 = smul.addr %s275, 2
      %s277 = smul.addr %s276, 4
      %s278 = scalar_lea.vmem %s7, %s277
      %v280 = vld [vmem:[%s273] sm:$0xff]
      %v281 = vld [vmem:[%s5] sm:$0xff]
      %v282 = vld [vmem:[%s6] sm:$0xf]
      %v284 = vcombine.high %v280, %v280
      %vm286 = vcmask 1043456
      %v287 = vsel %vm286, %v280, 0.0
      %v288 = vrot.slane %v287, 4
      %v289 = vadd.f32 %v287, %v288
      %v290 = vrot.slane %v289, 2
      %v291 = vadd.f32 %v289, %v290
      %v292 = vrot.slane %v291, 1
      %v293 = vadd.f32 %v291, %v292
      %v294 = vsel %vm286, %v284, 0.0
      %v295 = vrot.slane %v294, 4
      %v296 = vadd.f32 %v294, %v295
      %v297 = vrot.slane %v296, 2
      %v298 = vadd.f32 %v296, %v297
      %v299 = vrot.slane %v298, 1
      %v300 = vadd.f32 %v298, %v299
      %v301 = vrcp.pop 4.0
      %v302 = vmul.f32 %v293, %v301
      %v303 = vmul.f32 %v300, %v301
      %v306 = vcombine.low %v302, %v303
      %v308 = vsub.f32 %v280, %v306
      %v309 = vmul.f32 %v308, %v308
      %v311 = vcombine.high %v309, %v309
      %v313 = vsel %vm286, %v309, 0.0
      %v314 = vrot.slane %v313, 4
      %v315 = vadd.f32 %v313, %v314
      %v316 = vrot.slane %v315, 2
      %v317 = vadd.f32 %v315, %v316
      %v318 = vrot.slane %v317, 1
      %v319 = vadd.f32 %v317, %v318
      %v320 = vsel %vm286, %v311, 0.0
      %v321 = vrot.slane %v320, 4
      %v322 = vadd.f32 %v320, %v321
      %v323 = vrot.slane %v322, 2
      %v324 = vadd.f32 %v322, %v323
      %v325 = vrot.slane %v324, 1
      %v326 = vadd.f32 %v324, %v325
      %v327 = vmul.f32 %v319, %v301
      %v328 = vmul.f32 %v326, %v301
      %v329 = vadd.f32 %v327, 1e-05
      %v330 = vadd.f32 %v328, 1e-05
      %v331 = vrsqrt.pop %v329
      %v332 = vrsqrt.pop %v330
      %v335 = vcombine.low %v331, %v332
      %v337 = vmul.f32 %v308, %v335
      %339 = vset.pattern.permute.xlu0 0
      %340 = vperm.xlu0 %339, %v282
      %v341 = vpop.permute.xlu0 %340
      %v343 = vunpack.c.l.s4 839922192
      %v344 = vunpack.c.0.s8 %v343
      %v345 = vlaneseq
      %v346 = vshrl.u32 %v345, 7
      %v347 = vsub.s32 %v344, %v346
      %v348 = vrot.slane %v341, %v347
      %v350 = vmul.f32 %v337, %v348
      %351 = vset.pattern.permute.xlu0 1
      %352 = vperm.xlu0 %351, %v282
      %v353 = vpop.permute.xlu0 %352
      %v355 = vunpack.c.l.s4 839922192
      %v356 = vunpack.c.0.s8 %v355
      %v357 = vlaneseq
      %v358 = vshrl.u32 %v357, 7
      %v359 = vsub.s32 %v356, %v358
      %v360 = vrot.slane %v353, %v359
      %v362 = vadd.f32 %v350, %v360
      %v363 = vld [vmem:[%s1] sm:$0xff]
      %v364 = vld [vmem:[%s1 + $0x8] sm:$0xff]
      %v365 = vpack.c.bf16 %v364, %v363
      %v367 = vcombine.high %v362, %v362
      %v369 = vpack.c.bf16 %v362, %v362
      %v370 = vpack.c.bf16 %v367, %v367
      %vm371 = vcmask 31744
      %v373 = vsel %vm371, %v365, 0
      %vm375 = vcmask 1041408
      %v377 = vsel %vm375, %v369, 0
      %v380 = vsel %vm375, %v370, 0
      %382 = vmatprep.subr.bf16.mxu0 %v380
      %383 = vmatpush1.bf16.msra.mxu0 %v377
      %384 = vmatprep.subr.bf16.mxu0 0
      %385 = vmatpush1.bf16.msra.mxu0 0
      %386 = vmatprep.subr.bf16.mxu0 0
      %387 = vmatpush1.bf16.msra.mxu0 0
      %388 = vmatprep.subr.bf16.mxu0 0
      %389 = vmatpush1.bf16.msra.mxu0 0
      %390 = vmatprep.subr.bf16.mxu0 0
      %391 = vmatpush1.bf16.msra.mxu0 0
      %392 = vmatprep.subr.bf16.mxu0 0
      %393 = vmatpush1.bf16.msra.mxu0 0
      %394 = vmatprep.subr.bf16.mxu0 0
      %395 = vmatpush1.bf16.msra.mxu0 0
      %396 = vmatprep.subr.bf16.mxu0 0
      %397 = vmatpush1.bf16.msra.mxu0 0
      %398 = vmatprep.subr.bf16.mxu0 0
      %399 = vmatpush1.bf16.msra.mxu0 0
      %400 = vmatprep.subr.bf16.mxu0 0
      %401 = vmatpush1.bf16.msra.mxu0 0
      %402 = vmatprep.subr.bf16.mxu0 0
      %403 = vmatpush1.bf16.msra.mxu0 0
      %404 = vmatprep.subr.bf16.mxu0 0
      %405 = vmatpush1.bf16.msra.mxu0 0
      %406 = vmatprep.subr.bf16.mxu0 0
      %407 = vmatpush1.bf16.msra.mxu0 0
      %408 = vmatprep.subr.bf16.mxu0 0
      %409 = vmatpush1.bf16.msra.mxu0 0
      %410 = vmatprep.subr.bf16.mxu0 0
      %411 = vmatpush1.bf16.msra.mxu0 0
      %412 = vmatprep.subr.bf16.mxu0 0
      %413 = vmatpush1.bf16.msra.mxu0 0
      %414 = vmatprep.mubr.bf16.mxu0 0
      %415 = vmatmul.mubr.bf16.gmra.mrb[0].mxu0 %v373
      %v416 = vpop.f32.mrb[0].mxu0
      %v417 = vadd.f32 0.0, %v416
      %v418 = vpop.f32.mrb[0].mxu0
      %v419 = vadd.f32 0.0, %v418
      %v420 = vpop.f32.mrb[0].mxu0
      %v421 = vadd.f32 0.0, %v420
      %v422 = vpop.f32.mrb[0].mxu0
      %v423 = vadd.f32 0.0, %v422
      %424 = vdwg.mxu0
      %426 = vset.pattern.permute.xlu0 0
      %427 = vperm.xlu0 %426, %v281
      %v428 = vpop.permute.xlu0 %427
      %v430 = vadd.f32 %v417, %v428
      %v431 = vadd.f32 %v419, %v428
      %432 = vset.pattern.permute.xlu0 1
      %433 = vperm.xlu0 %432, %v281
      %v434 = vpop.permute.xlu0 %433
      %v436 = vadd.f32 %v421, %v434
      %v437 = vadd.f32 %v423, %v434
      %v438 = vxor.u32 %v436, 2147483648
      %v439 = vxor.u32 %v437, 2147483648
      %v440 = vmul.f32 %v438, 1.442695
      %v441 = vpow.pop %v440
      %v442 = vmul.f32 %v439, 1.442695
      %v443 = vpow.pop %v442
      %v444 = vadd.f32 %v441, 1.0
      %v445 = vadd.f32 %v443, 1.0
      %v446 = vrcp.pop %v444
      %v447 = vmul.f32 1.0, %v446
      %v448 = vrcp.pop %v445
      %v449 = vmul.f32 1.0, %v448
      %v450 = vmul.f32 %v436, %v447
      %v451 = vmul.f32 %v437, %v449
      %v452 = vld [vmem:[%s2] sm:$0xff]
      %v453 = vld [vmem:[%s2 + $0x8] sm:$0xff]
      %v454 = vld [vmem:[%s2 + $0x10] sm:$0xff]
      %v455 = vpack.c.bf16 %v454, %v454
      %v456 = vpack.c.bf16 %v430, %v430
      %v457 = vpack.c.bf16 %v431, %v431
      %458 = vset.pattern.permute.xlu0 5
      %459 = vperm.xlu0 %458, %v281
      %v460 = vpop.permute.xlu0 %459
      %vm462 = vcmask 64512
      %v464 = vsel %vm462, %v455, 0
      %v467 = vsel %vm286, %v456, 0
      %v470 = vsel %vm286, %v457, 0
      %472 = vmatprep.subr.bf16.mxu0 %v470
      %473 = vmatpush1.bf16.msra.mxu0 %v467
      %474 = vmatprep.subr.bf16.mxu0 0
      %475 = vmatpush1.bf16.msra.mxu0 0
      %476 = vmatprep.subr.bf16.mxu0 0
      %477 = vmatpush1.bf16.msra.mxu0 0
      %478 = vmatprep.subr.bf16.mxu0 0
      %479 = vmatpush1.bf16.msra.mxu0 0
      %480 = vmatprep.subr.bf16.mxu0 0
      %481 = vmatpush1.bf16.msra.mxu0 0
      %482 = vmatprep.subr.bf16.mxu0 0
      %483 = vmatpush1.bf16.msra.mxu0 0
      %484 = vmatprep.subr.bf16.mxu0 0
      %485 = vmatpush1.bf16.msra.mxu0 0
      %486 = vmatprep.subr.bf16.mxu0 0
      %487 = vmatpush1.bf16.msra.mxu0 0
      %488 = vmatprep.subr.bf16.mxu0 0
      %489 = vmatpush1.bf16.msra.mxu0 0
      %490 = vmatprep.subr.bf16.mxu0 0
      %491 = vmatpush1.bf16.msra.mxu0 0
      %492 = vmatprep.subr.bf16.mxu0 0
      %493 = vmatpush1.bf16.msra.mxu0 0
      %494 = vmatprep.subr.bf16.mxu0 0
      %495 = vmatpush1.bf16.msra.mxu0 0
      %496 = vmatprep.subr.bf16.mxu0 0
      %497 = vmatpush1.bf16.msra.mxu0 0
      %498 = vmatprep.subr.bf16.mxu0 0
      %499 = vmatpush1.bf16.msra.mxu0 0
      %500 = vmatprep.subr.bf16.mxu0 0
      %501 = vmatpush1.bf16.msra.mxu0 0
      %502 = vmatprep.subr.bf16.mxu0 0
      %503 = vmatpush1.bf16.msra.mxu0 0
      %504 = vmatprep.mubr.bf16.mxu0 0
      %505 = vmatmul.mubr.bf16.gmra.mrb[0].mxu0 %v464
      %v506 = vpop.f32.mrb[0].mxu0
      %v507 = vadd.f32 %v460, %v506
      %v508 = vpop.f32.mrb[0].mxu0
      %v509 = vadd.f32 %v460, %v508
      %v510 = vpop.f32.mrb[0].mxu0
      %v511 = vpop.f32.mrb[0].mxu0
      %512 = vdwg.mxu0
      %v513 = vld [vmem:[%s3] sm:$0xf]
      %v514 = vpack.c.bf16 %v513, %v513
      %v515 = vld [vmem:[%s4] sm:$0xf]
      %v516 = vpack.c.bf16 %v515, %v515
      %v517 = vlaneseq
      %v518 = vand.u32 %v517, 127
      %v519 = vadd.s32 %v518, 128
      %v520 = vlaneseq
      %v521 = vshrl.u32 %v520, 7
      %v522 = vadd.s32 %v521, 8
      %v523 = vadd.s32 %v521, 16
      %v524 = vadd.s32 %v521, 24
      %v525 = vadd.s32 %v521, 32
      %v526 = vadd.s32 %v521, 40
      %v527 = vadd.s32 %v521, 48
      %v528 = vadd.s32 %v521, 56
      %v529 = vadd.s32 %v521, 64
      %v530 = vadd.s32 %v521, 72
      %v531 = vadd.s32 %v521, 80
      %v532 = vadd.s32 %v521, 88
      %v533 = vadd.s32 %v521, 96
      %v534 = vadd.s32 %v521, 104
      %v535 = vadd.s32 %v521, 112
      %v536 = vadd.s32 %v521, 120
      %v537 = vadd.s32 %v521, 128
      %v538 = vadd.s32 %v521, 136
      %v539 = vadd.s32 %v521, 144
      %v540 = vadd.s32 %v521, 152
      %v541 = vadd.s32 %v521, 160
      %v542 = vadd.s32 %v521, 168
      %v543 = vadd.s32 %v521, 176
      %v544 = vadd.s32 %v521, 184
      %v545 = vadd.s32 %v521, 192
      %v546 = vadd.s32 %v521, 200
      %v547 = vadd.s32 %v521, 208
      %v548 = vadd.s32 %v521, 216
      %v549 = vadd.s32 %v521, 224
      %v550 = vadd.s32 %v521, 232
      %v551 = vadd.s32 %v521, 240
      %v552 = vadd.s32 %v521, 248
      %553 = vset.pattern.permute.xlu0 2
      %554 = vperm.xlu0 %553, %v281
      %v555 = vpop.permute.xlu0 %554
      %v557 = vadd.f32 %v555, 0.0
      %vm558 = vcmp.ge.s32.totalorder %v518, 3
      %vm559 = vcmp.ge.s32.totalorder %v519, 3
      %560 = vrot.lane.b32.xlu0 %v430, 3
      %v561 = vpop.permute.xlu0 %560
      %562 = vrot.lane.b32.xlu0 %v431, 3
      %v563 = vpop.permute.xlu0 %562
      %vm564 = vcmp.lt.s32.totalorder %v518, 3
      %v565 = vsel %vm564, %v561, %v563
      %v566 = vsel %vm564, %v563, %v561
      %v567 = vsel %vm558, 1, 0
      %v568 = vsel %vm559, 1, 0
      %vm569 = vcmp.eq.s32.totalorder %v567, 1
      %vm570 = vcmp.eq.s32.totalorder %v568, 1
      %v571 = vsel %vm569, %v566, 0.0
      %v572 = vsel %vm570, %v565, 0.0
      %573 = vset.pattern.permute.xlu0 9
      %574 = vperm.xlu0 %573, %v281
      %v575 = vpop.permute.xlu0 %574
      %v577 = vmul.f32 %v571, %v575
      %v578 = vmul.f32 %v572, %v575
      %v579 = vadd.f32 %v557, %v577
      %v580 = vadd.f32 %v557, %v578
      %vm581 = vcmp.ge.s32.totalorder %v518, 2
      %vm582 = vcmp.ge.s32.totalorder %v519, 2
      %583 = vrot.lane.b32.xlu0 %v430, 2
      %v584 = vpop.permute.xlu0 %583
      %585 = vrot.lane.b32.xlu0 %v431, 2
      %v586 = vpop.permute.xlu0 %585
      %vm587 = vcmp.lt.s32.totalorder %v518, 2
      %v588 = vsel %vm587, %v584, %v586
      %v589 = vsel %vm587, %v586, %v584
      %v590 = vsel %vm581, 1, 0
      %v591 = vsel %vm582, 1, 0
      %vm592 = vcmp.eq.s32.totalorder %v590, 1
      %vm593 = vcmp.eq.s32.totalorder %v591, 1
      %v594 = vsel %vm592, %v589, 0.0
      %v595 = vsel %vm593, %v588, 0.0
      %596 = vset.pattern.permute.xlu0 10
      %597 = vperm.xlu0 %596, %v281
      %v598 = vpop.permute.xlu0 %597
      %v600 = vmul.f32 %v594, %v598
      %v601 = vmul.f32 %v595, %v598
      %v602 = vadd.f32 %v579, %v600
      %v603 = vadd.f32 %v580, %v601
      %vm604 = vcmp.ge.s32.totalorder %v518, 1
      %vm605 = vcmp.ge.s32.totalorder %v519, 1
      %606 = vrot.lane.b32.xlu0 %v430, 1
      %v607 = vpop.permute.xlu0 %606
      %608 = vrot.lane.b32.xlu0 %v431, 1
      %v609 = vpop.permute.xlu0 %608
      %vm610 = vcmp.lt.s32.totalorder %v518, 1
      %v611 = vsel %vm610, %v607, %v609
      %v612 = vsel %vm610, %v609, %v607
      %v613 = vsel %vm604, 1, 0
      %v614 = vsel %vm605, 1, 0
      %vm615 = vcmp.eq.s32.totalorder %v613, 1
      %vm616 = vcmp.eq.s32.totalorder %v614, 1
      %v617 = vsel %vm615, %v612, 0.0
      %v618 = vsel %vm616, %v611, 0.0
      %619 = vset.pattern.permute.xlu0 11
      %620 = vperm.xlu0 %619, %v281
      %v621 = vpop.permute.xlu0 %620
      %v623 = vmul.f32 %v617, %v621
      %v624 = vmul.f32 %v618, %v621
      %v625 = vadd.f32 %v602, %v623
      %v626 = vadd.f32 %v603, %v624
      %627 = vset.pattern.permute.xlu0 12
      %628 = vperm.xlu0 %627, %v281
      %v629 = vpop.permute.xlu0 %628
      %v631 = vmul.f32 %v430, %v629
      %v632 = vmul.f32 %v431, %v629
      %v633 = vadd.f32 %v625, %v631
      %v634 = vadd.f32 %v626, %v632
      %v635 = vxor.u32 %v633, 2147483648
      %v636 = vxor.u32 %v634, 2147483648
      %v637 = vmul.f32 %v635, 1.442695
      %v638 = vpow.pop %v637
      %v639 = vmul.f32 %v636, 1.442695
      %v640 = vpow.pop %v639
      %v641 = vadd.f32 %v638, 1.0
      %v642 = vadd.f32 %v640, 1.0
      %v643 = vrcp.pop %v641
      %v644 = vmul.f32 1.0, %v643
      %v645 = vrcp.pop %v642
      %v646 = vmul.f32 1.0, %v645
      %v647 = vmul.f32 %v633, %v644
      %v648 = vmul.f32 %v634, %v646
      %v649 = vpack.c.bf16 %v647, %v647
      %v650 = vpack.c.bf16 %v648, %v648
      %v651 = vpack.c.bf16 %v452, %v452
      %652 = vset.pattern.permute.xlu0 3
      %653 = vperm.xlu0 %652, %v281
      %v654 = vpop.permute.xlu0 %653
      %v657 = vsel %vm462, %v651, 0
      %v660 = vsel %vm286, %v649, 0
      %v663 = vsel %vm286, %v650, 0
      %665 = vmatprep.subr.bf16.mxu0 %v663
      %666 = vmatpush1.bf16.msra.mxu0 %v660
      %667 = vmatprep.subr.bf16.mxu0 0
      %668 = vmatpush1.bf16.msra.mxu0 0
      %669 = vmatprep.subr.bf16.mxu0 0
      %670 = vmatpush1.bf16.msra.mxu0 0
      %671 = vmatprep.subr.bf16.mxu0 0
      %672 = vmatpush1.bf16.msra.mxu0 0
      %673 = vmatprep.subr.bf16.mxu0 0
      %674 = vmatpush1.bf16.msra.mxu0 0
      %675 = vmatprep.subr.bf16.mxu0 0
      %676 = vmatpush1.bf16.msra.mxu0 0
      %677 = vmatprep.subr.bf16.mxu0 0
      %678 = vmatpush1.bf16.msra.mxu0 0
      %679 = vmatprep.subr.bf16.mxu0 0
      %680 = vmatpush1.bf16.msra.mxu0 0
      %681 = vmatprep.subr.bf16.mxu0 0
      %682 = vmatpush1.bf16.msra.mxu0 0
      %683 = vmatprep.subr.bf16.mxu0 0
      %684 = vmatpush1.bf16.msra.mxu0 0
      %685 = vmatprep.subr.bf16.mxu0 0
      %686 = vmatpush1.bf16.msra.mxu0 0
      %687 = vmatprep.subr.bf16.mxu0 0
      %688 = vmatpush1.bf16.msra.mxu0 0
      %689 = vmatprep.subr.bf16.mxu0 0
      %690 = vmatpush1.bf16.msra.mxu0 0
      %691 = vmatprep.subr.bf16.mxu0 0
      %692 = vmatpush1.bf16.msra.mxu0 0
      %693 = vmatprep.subr.bf16.mxu0 0
      %694 = vmatpush1.bf16.msra.mxu0 0
      %695 = vmatprep.subr.bf16.mxu0 0
      %696 = vmatpush1.bf16.msra.mxu0 0
      %697 = vmatprep.mubr.bf16.mxu0 0
      %698 = vmatmul.mubr.bf16.gmra.mrb[0].mxu0 %v657
      %v699 = vpop.f32.mrb[0].mxu0
      %v700 = vadd.f32 %v654, %v699
      %v701 = vpop.f32.mrb[0].mxu0
      %v702 = vadd.f32 %v654, %v701
      %v703 = vpop.f32.mrb[0].mxu0
      %v704 = vpop.f32.mrb[0].mxu0
      %705 = vdwg.mxu0
      %v706 = vpack.c.bf16 %v453, %v453
      %707 = vset.pattern.permute.xlu0 4
      %708 = vperm.xlu0 %707, %v281
      %v709 = vpop.permute.xlu0 %708
      %v712 = vsel %vm462, %v706, 0
      %714 = vmatprep.subr.bf16.mxu0 %v663
      %715 = vmatpush1.bf16.msra.mxu0 %v660
      %716 = vmatprep.subr.bf16.mxu0 0
      %717 = vmatpush1.bf16.msra.mxu0 0
      %718 = vmatprep.subr.bf16.mxu0 0
      %719 = vmatpush1.bf16.msra.mxu0 0
      %720 = vmatprep.subr.bf16.mxu0 0
      %721 = vmatpush1.bf16.msra.mxu0 0
      %722 = vmatprep.subr.bf16.mxu0 0
      %723 = vmatpush1.bf16.msra.mxu0 0
      %724 = vmatprep.subr.bf16.mxu0 0
      %725 = vmatpush1.bf16.msra.mxu0 0
      %726 = vmatprep.subr.bf16.mxu0 0
      %727 = vmatpush1.bf16.msra.mxu0 0
      %728 = vmatprep.subr.bf16.mxu0 0
      %729 = vmatpush1.bf16.msra.mxu0 0
      %730 = vmatprep.subr.bf16.mxu0 0
      %731 = vmatpush1.bf16.msra.mxu0 0
      %732 = vmatprep.subr.bf16.mxu0 0
      %733 = vmatpush1.bf16.msra.mxu0 0
      %734 = vmatprep.subr.bf16.mxu0 0
      %735 = vmatpush1.bf16.msra.mxu0 0
      %736 = vmatprep.subr.bf16.mxu0 0
      %737 = vmatpush1.bf16.msra.mxu0 0
      %738 = vmatprep.subr.bf16.mxu0 0
      %739 = vmatpush1.bf16.msra.mxu0 0
      %740 = vmatprep.subr.bf16.mxu0 0
      %741 = vmatpush1.bf16.msra.mxu0 0
      %742 = vmatprep.subr.bf16.mxu0 0
      %743 = vmatpush1.bf16.msra.mxu0 0
      %744 = vmatprep.subr.bf16.mxu0 0
      %745 = vmatpush1.bf16.msra.mxu0 0
      %746 = vmatprep.mubr.bf16.mxu0 0
      %747 = vmatmul.mubr.bf16.gmra.mrb[0].mxu0 %v712
      %v748 = vpop.f32.mrb[0].mxu0
      %v749 = vadd.f32 %v709, %v748
      %v750 = vpop.f32.mrb[0].mxu0
      %v751 = vadd.f32 %v709, %v750
      %v752 = vpop.f32.mrb[0].mxu0
      %v753 = vpop.f32.mrb[0].mxu0
      %754 = vdwg.mxu0
      %v755 = vpack.c.bf16 %v749, %v700
      %v756 = vpack.c.bf16 %v751, %v702
      %v757 = vpack.c.bf16 %v507, %v507
      %v758 = vpack.c.bf16 %v509, %v509
      %760 = vset.pattern.permute.xlu0 24
      %761 = vperm.xlu0 %760, %v513
      %v762 = vpop.permute.xlu0 %761
      %vm764 = vcmask 195584
      %v766 = vsel %vm764, %v514, 0
      %v769 = vsel %vm286, %v757, 0
      %v772 = vsel %vm286, %v758, 0
      %774 = vmatprep.subr.bf16.mxu0 %v756
      %775 = vmatpush1.bf16.msra.mxu0 %v755
      %776 = vmatprep.subr.bf16.mxu0 %v772
      %777 = vmatpush1.bf16.msra.mxu0 %v769
      %778 = vmatprep.subr.bf16.mxu0 0
      %779 = vmatpush1.bf16.msra.mxu0 0
      %780 = vmatprep.subr.bf16.mxu0 0
      %781 = vmatpush1.bf16.msra.mxu0 0
      %782 = vmatprep.subr.bf16.mxu0 0
      %783 = vmatpush1.bf16.msra.mxu0 0
      %784 = vmatprep.subr.bf16.mxu0 0
      %785 = vmatpush1.bf16.msra.mxu0 0
      %786 = vmatprep.subr.bf16.mxu0 0
      %787 = vmatpush1.bf16.msra.mxu0 0
      %788 = vmatprep.subr.bf16.mxu0 0
      %789 = vmatpush1.bf16.msra.mxu0 0
      %790 = vmatprep.subr.bf16.mxu0 0
      %791 = vmatpush1.bf16.msra.mxu0 0
      %792 = vmatprep.subr.bf16.mxu0 0
      %793 = vmatpush1.bf16.msra.mxu0 0
      %794 = vmatprep.subr.bf16.mxu0 0
      %795 = vmatpush1.bf16.msra.mxu0 0
      %796 = vmatprep.subr.bf16.mxu0 0
      %797 = vmatpush1.bf16.msra.mxu0 0
      %798 = vmatprep.subr.bf16.mxu0 0
      %799 = vmatpush1.bf16.msra.mxu0 0
      %800 = vmatprep.subr.bf16.mxu0 0
      %801 = vmatpush1.bf16.msra.mxu0 0
      %802 = vmatprep.subr.bf16.mxu0 0
      %803 = vmatpush1.bf16.msra.mxu0 0
      %804 = vmatprep.subr.bf16.mxu0 0
      %805 = vmatpush1.bf16.msra.mxu0 0
      %806 = vmatprep.mubr.bf16.mxu0 0
      %807 = vmatmul.mubr.bf16.gmra.mrb[0].mxu0 %v766
      %v808 = vpop.f32.mrb[0].mxu0
      %v809 = vadd.f32 %v762, %v808
      %v810 = vpop.f32.mrb[0].mxu0
      %v811 = vadd.f32 %v762, %v810
      %v812 = vpop.f32.mrb[0].mxu0
      %v813 = vpop.f32.mrb[0].mxu0
      %814 = vdwg.mxu0
      %v815 = vmin.f32 %v809, 0.0
      %v816 = vmin.f32 %v811, 0.0
      %v817 = vand.u32 2147483647, %v809
      %v818 = vand.u32 2147483647, %v811
      %v819 = vsub.f32 0.0, %v817
      %v820 = vsub.f32 0.0, %v818
      %v821 = vmul.f32 %v819, 1.442695
      %v822 = vpow.pop %v821
      %v823 = vmul.f32 %v820, 1.442695
      %v824 = vpow.pop %v823
      %v825 = vadd.f32 %v822, 1.0
      %v826 = vadd.f32 %v824, 1.0
      %v827 = vlog2.pop %v825
      %v828 = vmul.f32 %v827, 0.6931472
      %v829 = vlog2.pop %v826
      %v830 = vmul.f32 %v829, 0.6931472
      %v831 = vsub.f32 %v815, %v828
      %v832 = vsub.f32 %v816, %v830
      %v835 = vrot.slane %v831, 2
      %v836 = vrot.slane %v832, 2
      %839 = vrot.lane.b32.xlu0 %v835, 1
      %v840 = vpop.permute.xlu0 %839
      %841 = vrot.lane.b32.xlu0 %v836, 1
      %v842 = vpop.permute.xlu0 %841
      %v843 = vsel %vm610, %v840, %v842
      %v844 = vsel %vm610, %v842, %v840
      %v845 = vsel %vm615, %v844, 0.0
      %v846 = vsel %vm616, %v843, 0.0
      %v849 = vrot.slane %v845, 6
      %v850 = vrot.slane %v846, 6
      %v853 = vadd.f32 %v831, %v849
      %v854 = vadd.f32 %v832, %v850
      %v857 = vrot.slane %v853, 2
      %v858 = vrot.slane %v854, 2
      %861 = vrot.lane.b32.xlu0 %v857, 2
      %v862 = vpop.permute.xlu0 %861
      %863 = vrot.lane.b32.xlu0 %v858, 2
      %v864 = vpop.permute.xlu0 %863
      %v865 = vsel %vm587, %v862, %v864
      %v866 = vsel %vm587, %v864, %v862
      %v867 = vsel %vm592, %v866, 0.0
      %v868 = vsel %vm593, %v865, 0.0
      %v871 = vrot.slane %v867, 6
      %v872 = vrot.slane %v868, 6
      %v875 = vadd.f32 %v853, %v871
      %v876 = vadd.f32 %v854, %v872
      %v879 = vrot.slane %v875, 2
      %v880 = vrot.slane %v876, 2
      %883 = vrot.lane.b32.xlu0 %v879, 4
      %v884 = vpop.permute.xlu0 %883
      %885 = vrot.lane.b32.xlu0 %v880, 4
      %v886 = vpop.permute.xlu0 %885
      %vm887 = vcmp.lt.s32.totalorder %v518, 4
      %v888 = vsel %vm887, %v884, %v886
      %v889 = vsel %vm887, %v886, %v884
      %vm890 = vcmp.ge.s32.totalorder %v518, 4
      %vm891 = vcmp.ge.s32.totalorder %v519, 4
      %v892 = vsel %vm890, 1, 0
      %v893 = vsel %vm891, 1, 0
      %vm894 = vcmp.eq.s32.totalorder %v892, 1
      %vm895 = vcmp.eq.s32.totalorder %v893, 1
      %v896 = vsel %vm894, %v889, 0.0
      %v897 = vsel %vm895, %v888, 0.0
      %v900 = vrot.slane %v896, 6
      %v901 = vrot.slane %v897, 6
      %v904 = vadd.f32 %v875, %v900
      %v905 = vadd.f32 %v876, %v901
      %v908 = vrot.slane %v904, 2
      %v909 = vrot.slane %v905, 2
      %912 = vrot.lane.b32.xlu0 %v908, 8
      %v913 = vpop.permute.xlu0 %912
      %914 = vrot.lane.b32.xlu0 %v909, 8
      %v915 = vpop.permute.xlu0 %914
      %vm916 = vcmp.lt.s32.totalorder %v518, 8
      %v917 = vsel %vm916, %v913, %v915
      %v918 = vsel %vm916, %v915, %v913
      %vm919 = vcmp.ge.s32.totalorder %v518, 8
      %vm920 = vcmp.ge.s32.totalorder %v519, 8
      %v921 = vsel %vm919, 1, 0
      %v922 = vsel %vm920, 1, 0
      %vm923 = vcmp.eq.s32.totalorder %v921, 1
      %vm924 = vcmp.eq.s32.totalorder %v922, 1
      %v925 = vsel %vm923, %v918, 0.0
      %v926 = vsel %vm924, %v917, 0.0
      %v929 = vrot.slane %v925, 6
      %v930 = vrot.slane %v926, 6
      %v933 = vadd.f32 %v904, %v929
      %v934 = vadd.f32 %v905, %v930
      %v937 = vrot.slane %v933, 2
      %v938 = vrot.slane %v934, 2
      %941 = vrot.lane.b32.xlu0 %v937, 16
      %v942 = vpop.permute.xlu0 %941
      %943 = vrot.lane.b32.xlu0 %v938, 16
      %v944 = vpop.permute.xlu0 %943
      %vm945 = vcmp.lt.s32.totalorder %v518, 16
      %v946 = vsel %vm945, %v942, %v944
      %v947 = vsel %vm945, %v944, %v942
      %vm948 = vcmp.ge.s32.totalorder %v518, 16
      %vm949 = vcmp.ge.s32.totalorder %v519, 16
      %v950 = vsel %vm948, 1, 0
      %v951 = vsel %vm949, 1, 0
      %vm952 = vcmp.eq.s32.totalorder %v950, 1
      %vm953 = vcmp.eq.s32.totalorder %v951, 1
      %v954 = vsel %vm952, %v947, 0.0
      %v955 = vsel %vm953, %v946, 0.0
      %v958 = vrot.slane %v954, 6
      %v959 = vrot.slane %v955, 6
      %v962 = vadd.f32 %v933, %v958
      %v963 = vadd.f32 %v934, %v959
      %v966 = vrot.slane %v962, 2
      %v967 = vrot.slane %v963, 2
      %970 = vrot.lane.b32.xlu0 %v966, 32
      %v971 = vpop.permute.xlu0 %970
      %972 = vrot.lane.b32.xlu0 %v967, 32
      %v973 = vpop.permute.xlu0 %972
      %vm974 = vcmp.lt.s32.totalorder %v518, 32
      %v975 = vsel %vm974, %v971, %v973
      %v976 = vsel %vm974, %v973, %v971
      %vm977 = vcmp.ge.s32.totalorder %v518, 32
      %vm978 = vcmp.ge.s32.totalorder %v519, 32
      %v979 = vsel %vm977, 1, 0
      %v980 = vsel %vm978, 1, 0
      %vm981 = vcmp.eq.s32.totalorder %v979, 1
      %vm982 = vcmp.eq.s32.totalorder %v980, 1
      %v983 = vsel %vm981, %v976, 0.0
      %v984 = vsel %vm982, %v975, 0.0
      %v987 = vrot.slane %v983, 6
      %v988 = vrot.slane %v984, 6
      %v991 = vadd.f32 %v962, %v987
      %v992 = vadd.f32 %v963, %v988
      %v995 = vrot.slane %v991, 2
      %v996 = vrot.slane %v992, 2
      %999 = vrot.lane.b32.xlu0 %v995, 64
      %v1000 = vpop.permute.xlu0 %999
      %1001 = vrot.lane.b32.xlu0 %v996, 64
      %v1002 = vpop.permute.xlu0 %1001
      %vm1003 = vcmp.lt.s32.totalorder %v518, 64
      %v1004 = vsel %vm1003, %v1000, %v1002
      %v1005 = vsel %vm1003, %v1002, %v1000
      %vm1006 = vcmp.ge.s32.totalorder %v518, 64
      %vm1007 = vcmp.ge.s32.totalorder %v519, 64
      %v1008 = vsel %vm1006, 1, 0
      %v1009 = vsel %vm1007, 1, 0
      %vm1010 = vcmp.eq.s32.totalorder %v1008, 1
      %vm1011 = vcmp.eq.s32.totalorder %v1009, 1
      %v1012 = vsel %vm1010, %v1005, 0.0
      %v1013 = vsel %vm1011, %v1004, 0.0
      %v1016 = vrot.slane %v1012, 6
      %v1017 = vrot.slane %v1013, 6
      %v1020 = vadd.f32 %v991, %v1016
      %v1021 = vadd.f32 %v992, %v1017
      %v1024 = vrot.slane %v1020, 2
      %v1025 = vrot.slane %v1021, 2
      %vm1028 = vcmp.ge.s32.totalorder %v518, 128
      %vm1029 = vcmp.ge.s32.totalorder %v519, 128
      %v1030 = vsel %vm1028, 1, 0
      %v1031 = vsel %vm1029, 1, 0
      %vm1032 = vcmp.eq.s32.totalorder %v1030, 1
      %vm1033 = vcmp.eq.s32.totalorder %v1031, 1
      %v1034 = vsel %vm1032, %v1025, 0.0
      %v1035 = vsel %vm1033, %v1024, 0.0
      %v1038 = vrot.slane %v1034, 6
      %v1039 = vrot.slane %v1035, 6
      %v1042 = vadd.f32 %v1020, %v1038
      %v1043 = vadd.f32 %v1021, %v1039
      %v1046 = vrot.slane %v1042, 2
      %v1047 = vrot.slane %v1043, 2
      %v1050 = vsub.f32 %v809, %v1046
      %v1051 = vsub.f32 %v811, %v1047
      %1052 = vrot.lane.b32.xlu0 %v1050, 1
      %v1053 = vpop.permute.xlu0 %1052
      %1054 = vrot.lane.b32.xlu0 %v1051, 1
      %v1055 = vpop.permute.xlu0 %1054
      %v1056 = vsel %vm610, %v1053, %v1055
      %v1057 = vsel %vm610, %v1055, %v1053
      %v1058 = vsel %vm615, %v1057, -1e+30
      %v1059 = vsel %vm616, %v1056, -1e+30
      %v1060 = vmax.f32 %v1050, %v1058
      %v1061 = vmax.f32 %v1051, %v1059
      %1062 = vrot.lane.b32.xlu0 %v1060, 2
      %v1063 = vpop.permute.xlu0 %1062
      %1064 = vrot.lane.b32.xlu0 %v1061, 2
      %v1065 = vpop.permute.xlu0 %1064
      %v1066 = vsel %vm587, %v1063, %v1065
      %v1067 = vsel %vm587, %v1065, %v1063
      %v1068 = vsel %vm592, %v1067, -1e+30
      %v1069 = vsel %vm593, %v1066, -1e+30
      %v1070 = vmax.f32 %v1060, %v1068
      %v1071 = vmax.f32 %v1061, %v1069
      %1072 = vrot.lane.b32.xlu0 %v1070, 4
      %v1073 = vpop.permute.xlu0 %1072
      %1074 = vrot.lane.b32.xlu0 %v1071, 4
      %v1075 = vpop.permute.xlu0 %1074
      %v1076 = vsel %vm887, %v1073, %v1075
      %v1077 = vsel %vm887, %v1075, %v1073
      %v1078 = vsel %vm894, %v1077, -1e+30
      %v1079 = vsel %vm895, %v1076, -1e+30
      %v1080 = vmax.f32 %v1070, %v1078
      %v1081 = vmax.f32 %v1071, %v1079
      %1082 = vrot.lane.b32.xlu0 %v1080, 8
      %v1083 = vpop.permute.xlu0 %1082
      %1084 = vrot.lane.b32.xlu0 %v1081, 8
      %v1085 = vpop.permute.xlu0 %1084
      %v1086 = vsel %vm916, %v1083, %v1085
      %v1087 = vsel %vm916, %v1085, %v1083
      %v1088 = vsel %vm923, %v1087, -1e+30
      %v1089 = vsel %vm924, %v1086, -1e+30
      %v1090 = vmax.f32 %v1080, %v1088
      %v1091 = vmax.f32 %v1081, %v1089
      %1092 = vrot.lane.b32.xlu0 %v1090, 16
      %v1093 = vpop.permute.xlu0 %1092
      %1094 = vrot.lane.b32.xlu0 %v1091, 16
      %v1095 = vpop.permute.xlu0 %1094
      %v1096 = vsel %vm945, %v1093, %v1095
      %v1097 = vsel %vm945, %v1095, %v1093
      %v1098 = vsel %vm952, %v1097, -1e+30
      %v1099 = vsel %vm953, %v1096, -1e+30
      %v1100 = vmax.f32 %v1090, %v1098
      %v1101 = vmax.f32 %v1091, %v1099
      %1102 = vrot.lane.b32.xlu0 %v1100, 32
      %v1103 = vpop.permute.xlu0 %1102
      %1104 = vrot.lane.b32.xlu0 %v1101, 32
      %v1105 = vpop.permute.xlu0 %1104
      %v1106 = vsel %vm974, %v1103, %v1105
      %v1107 = vsel %vm974, %v1105, %v1103
      %v1108 = vsel %vm981, %v1107, -1e+30
      %v1109 = vsel %vm982, %v1106, -1e+30
      %v1110 = vmax.f32 %v1100, %v1108
      %v1111 = vmax.f32 %v1101, %v1109
      %1112 = vrot.lane.b32.xlu0 %v1110, 64
      %v1113 = vpop.permute.xlu0 %1112
      %1114 = vrot.lane.b32.xlu0 %v1111, 64
      %v1115 = vpop.permute.xlu0 %1114
      %v1116 = vsel %vm1003, %v1113, %v1115
      %v1117 = vsel %vm1003, %v1115, %v1113
      %v1118 = vsel %vm1010, %v1117, -1e+30
      %v1119 = vsel %vm1011, %v1116, -1e+30
      %v1120 = vmax.f32 %v1110, %v1118
      %v1121 = vmax.f32 %v1111, %v1119
      %v1122 = vsel %vm1032, %v1121, -1e+30
      %v1123 = vsel %vm1033, %v1120, -1e+30
      %v1124 = vmax.f32 %v1120, %v1122
      %v1125 = vmax.f32 %v1121, %v1123
      %v1128 = vrot.slane %v1124, 6
      %v1129 = vrot.slane %v1125, 6
      %v1132 = vsel %vm375, %v1046, %v1128
      %v1133 = vsel %vm375, %v1047, %v1129
      %1134 = vxpose.xlu0.b32.start [1/16] %v1132, 128
      %1135 = vxpose.xlu0.b32.cont [2/16] 0.0, 128
      %1136 = vxpose.xlu0.b32.cont [3/16] 0.0, 128
      %1137 = vxpose.xlu0.b32.cont [4/16] 0.0, 128
      %1138 = vxpose.xlu0.b32.cont [5/16] 0.0, 128
      %1139 = vxpose.xlu0.b32.cont [6/16] 0.0, 128
      %1140 = vxpose.xlu0.b32.cont [7/16] 0.0, 128
      %1141 = vxpose.xlu0.b32.cont [8/16] 0.0, 128
      %1142 = vxpose.xlu0.b32.cont [9/16] 0.0, 128
      %1143 = vxpose.xlu0.b32.cont [10/16] 0.0, 128
      %1144 = vxpose.xlu0.b32.cont [11/16] 0.0, 128
      %1145 = vxpose.xlu0.b32.cont [12/16] 0.0, 128
      %1146 = vxpose.xlu0.b32.cont [13/16] 0.0, 128
      %1147 = vxpose.xlu0.b32.cont [14/16] 0.0, 128
      %1148 = vxpose.xlu0.b32.cont [15/16] 0.0, 128
      %1149 = vxpose.xlu0.b32.end [16/16] 0.0, 128
      %v1150 = vpop.trf.xlu0
      %v1151 = vpop.trf.xlu0
      %v1152 = vpop.trf.xlu0
      %v1153 = vpop.trf.xlu0
      %v1154 = vpop.trf.xlu0
      %v1155 = vpop.trf.xlu0
      %v1156 = vpop.trf.xlu0
      %v1157 = vpop.trf.xlu0
      %v1158 = vpop.trf.xlu0
      %v1159 = vpop.trf.xlu0
      %v1160 = vpop.trf.xlu0
      %v1161 = vpop.trf.xlu0
      %v1162 = vpop.trf.xlu0
      %v1163 = vpop.trf.xlu0
      %v1164 = vpop.trf.xlu0
      %v1165 = vpop.trf.xlu0
      %1166 = vxpose.xlu0.b32.start [1/16] %v1133, 128
      %1167 = vxpose.xlu0.b32.cont [2/16] 0.0, 128
      %1168 = vxpose.xlu0.b32.cont [3/16] 0.0, 128
      %1169 = vxpose.xlu0.b32.cont [4/16] 0.0, 128
      %1170 = vxpose.xlu0.b32.cont [5/16] 0.0, 128
      %1171 = vxpose.xlu0.b32.cont [6/16] 0.0, 128
      %1172 = vxpose.xlu0.b32.cont [7/16] 0.0, 128
      %1173 = vxpose.xlu0.b32.cont [8/16] 0.0, 128
      %1174 = vxpose.xlu0.b32.cont [9/16] 0.0, 128
      %1175 = vxpose.xlu0.b32.cont [10/16] 0.0, 128
      %1176 = vxpose.xlu0.b32.cont [11/16] 0.0, 128
      %1177 = vxpose.xlu0.b32.cont [12/16] 0.0, 128
      %1178 = vxpose.xlu0.b32.cont [13/16] 0.0, 128
      %1179 = vxpose.xlu0.b32.cont [14/16] 0.0, 128
      %1180 = vxpose.xlu0.b32.cont [15/16] 0.0, 128
      %1181 = vxpose.xlu0.b32.end [16/16] 0.0, 128
      %v1182 = vpop.trf.xlu0
      %v1183 = vpop.trf.xlu0
      %v1184 = vpop.trf.xlu0
      %v1185 = vpop.trf.xlu0
      %v1186 = vpop.trf.xlu0
      %v1187 = vpop.trf.xlu0
      %v1188 = vpop.trf.xlu0
      %v1189 = vpop.trf.xlu0
      %v1190 = vpop.trf.xlu0
      %v1191 = vpop.trf.xlu0
      %v1192 = vpop.trf.xlu0
      %v1193 = vpop.trf.xlu0
      %v1194 = vpop.trf.xlu0
      %v1195 = vpop.trf.xlu0
      %v1196 = vpop.trf.xlu0
      %v1197 = vpop.trf.xlu0
      %1198 = vrot.lane.b32.xlu0 %v513, 103
      %v1199 = vpop.permute.xlu0 %1198
      %v1201 = vsel %vm371, %v1150, 0
      %v1204 = vsel %vm371, %v1151, 0
      %v1207 = vsel %vm371, %v1152, 0
      %v1210 = vsel %vm371, %v1153, 0
      %v1213 = vsel %vm371, %v1154, 0
      %v1216 = vsel %vm371, %v1155, 0
      %v1219 = vsel %vm371, %v1156, 0
      %v1222 = vsel %vm371, %v1157, 0
      %v1225 = vsel %vm371, %v1158, 0
      %v1228 = vsel %vm371, %v1159, 0
      %v1231 = vsel %vm371, %v1160, 0
      %v1234 = vsel %vm371, %v1161, 0
      %v1237 = vsel %vm371, %v1162, 0
      %v1240 = vsel %vm371, %v1163, 0
      %v1243 = vsel %vm371, %v1164, 0
      %v1246 = vsel %vm371, %v1165, 0
      %v1249 = vsel %vm371, %v1182, 0
      %v1252 = vsel %vm371, %v1183, 0
      %v1255 = vsel %vm371, %v1184, 0
      %v1258 = vsel %vm371, %v1185, 0
      %v1261 = vsel %vm371, %v1186, 0
      %v1264 = vsel %vm371, %v1187, 0
      %v1267 = vsel %vm371, %v1188, 0
      %v1270 = vsel %vm371, %v1189, 0
      %v1273 = vsel %vm371, %v1190, 0
      %v1276 = vsel %vm371, %v1191, 0
      %v1279 = vsel %vm371, %v1192, 0
      %v1282 = vsel %vm371, %v1193, 0
      %v1285 = vsel %vm371, %v1194, 0
      %v1288 = vsel %vm371, %v1195, 0
      %v1291 = vsel %vm371, %v1196, 0
      %v1294 = vsel %vm371, %v1197, 0
      %v1296 = vsel %vm286, %v1199, 0
      %1298 = vmatprep.subr.mxu0 0.0
      %1299 = vmatpush1.msra.mxu0 %v1296
      %1300 = vmatprep.subr.mxu0 0.0
      %1301 = vmatpush1.msra.mxu0 0.0
      %1302 = vmatprep.subr.mxu0 0.0
      %1303 = vmatpush1.msra.mxu0 0.0
      %1304 = vmatprep.subr.mxu0 0.0
      %1305 = vmatpush1.msra.mxu0 0.0
      %1306 = vmatprep.subr.mxu0 0.0
      %1307 = vmatpush1.msra.mxu0 0.0
      %1308 = vmatprep.subr.mxu0 0.0
      %1309 = vmatpush1.msra.mxu0 0.0
      %1310 = vmatprep.subr.mxu0 0.0
      %1311 = vmatpush1.msra.mxu0 0.0
      %1312 = vmatprep.subr.mxu0 0.0
      %1313 = vmatpush1.msra.mxu0 0.0
      %1314 = vmatprep.subr.mxu0 0.0
      %1315 = vmatpush1.msra.mxu0 0.0
      %1316 = vmatprep.subr.mxu0 0.0
      %1317 = vmatpush1.msra.mxu0 0.0
      %1318 = vmatprep.subr.mxu0 0.0
      %1319 = vmatpush1.msra.mxu0 0.0
      %1320 = vmatprep.subr.mxu0 0.0
      %1321 = vmatpush1.msra.mxu0 0.0
      %1322 = vmatprep.subr.mxu0 0.0
      %1323 = vmatpush1.msra.mxu0 0.0
      %1324 = vmatprep.subr.mxu0 0.0
      %1325 = vmatpush1.msra.mxu0 0.0
      %1326 = vmatprep.subr.mxu0 0.0
      %1327 = vmatpush1.msra.mxu0 0.0
      %1328 = vmatprep.subr.mxu0 0.0
      %1329 = vmatpush1.msra.mxu0 0.0
      %1330 = vmatprep.subr.mxu0 0.0
      %1331 = vmatpush1.msra.mxu0 0.0
      %1332 = vmatprep.subr.mxu0 0.0
      %1333 = vmatpush1.msra.mxu0 0.0
      %1334 = vmatprep.subr.mxu0 0.0
      %1335 = vmatpush1.msra.mxu0 0.0
      %1336 = vmatprep.subr.mxu0 0.0
      %1337 = vmatpush1.msra.mxu0 0.0
      %1338 = vmatprep.subr.mxu0 0.0
      %1339 = vmatpush1.msra.mxu0 0.0
      %1340 = vmatprep.subr.mxu0 0.0
      %1341 = vmatpush1.msra.mxu0 0.0
      %1342 = vmatprep.subr.mxu0 0.0
      %1343 = vmatpush1.msra.mxu0 0.0
      %1344 = vmatprep.subr.mxu0 0.0
      %1345 = vmatpush1.msra.mxu0 0.0
      %1346 = vmatprep.subr.mxu0 0.0
      %1347 = vmatpush1.msra.mxu0 0.0
      %1348 = vmatprep.subr.mxu0 0.0
      %1349 = vmatpush1.msra.mxu0 0.0
      %1350 = vmatprep.subr.mxu0 0.0
      %1351 = vmatpush1.msra.mxu0 0.0
      %1352 = vmatprep.subr.mxu0 0.0
      %1353 = vmatpush1.msra.mxu0 0.0
      %1354 = vmatprep.subr.mxu0 0.0
      %1355 = vmatpush1.msra.mxu0 0.0
      %1356 = vmatprep.subr.mxu0 0.0
      %1357 = vmatpush1.msra.mxu0 0.0
      %1358 = vmatprep.subr.mxu0 0.0
      %1359 = vmatpush1.msra.mxu0 0.0
      %1360 = vmatprep.subr.mxu0 0.0
      %1361 = vmatpush1.msra.mxu0 0.0
      %1362 = vmatprep.mubr.f32.mxu0 0.0
      %1363 = vmatmul.mubr.f32.gmra.mrb[0].mxu0 %v1201
      %v1364 = vpop.f32.mrb[0].mxu0
      %v1365 = vadd.f32 0.0, %v1364
      %v1366 = vpop.f32.mrb[0].mxu0
      %1367 = vmatprep.mubr.f32.mxu0 0.0
      %1368 = vmatmul.mubr.f32.gmra.mrb[0].mxu0 %v1204
      %v1369 = vpop.f32.mrb[0].mxu0
      %v1370 = vadd.f32 0.0, %v1369
      %v1371 = vpop.f32.mrb[0].mxu0
      %1372 = vmatprep.mubr.f32.mxu0 0.0
      %1373 = vmatmul.mubr.f32.gmra.mrb[0].mxu0 %v1207
      %v1374 = vpop.f32.mrb[0].mxu0
      %v1375 = vadd.f32 0.0, %v1374
      %v1376 = vpop.f32.mrb[0].mxu0
      %1377 = vmatprep.mubr.f32.mxu0 0.0
      %1378 = vmatmul.mubr.f32.gmra.mrb[0].mxu0 %v1210
      %v1379 = vpop.f32.mrb[0].mxu0
      %v1380 = vadd.f32 0.0, %v1379
      %v1381 = vpop.f32.mrb[0].mxu0
      %1382 = vmatprep.mubr.f32.mxu0 0.0
      %1383 = vmatmul.mubr.f32.gmra.mrb[0].mxu0 %v1213
      %v1384 = vpop.f32.mrb[0].mxu0
      %v1385 = vadd.f32 0.0, %v1384
      %v1386 = vpop.f32.mrb[0].mxu0
      %1387 = vmatprep.mubr.f32.mxu0 0.0
      %1388 = vmatmul.mubr.f32.gmra.mrb[0].mxu0 %v1216
      %v1389 = vpop.f32.mrb[0].mxu0
      %v1390 = vadd.f32 0.0, %v1389
      %v1391 = vpop.f32.mrb[0].mxu0
      %1392 = vmatprep.mubr.f32.mxu0 0.0
      %1393 = vmatmul.mubr.f32.gmra.mrb[0].mxu0 %v1219
      %v1394 = vpop.f32.mrb[0].mxu0
      %v1395 = vadd.f32 0.0, %v1394
      %v1396 = vpop.f32.mrb[0].mxu0
      %1397 = vmatprep.mubr.f32.mxu0 0.0
      %1398 = vmatmul.mubr.f32.gmra.mrb[0].mxu0 %v1222
      %v1399 = vpop.f32.mrb[0].mxu0
      %v1400 = vadd.f32 0.0, %v1399
      %v1401 = vpop.f32.mrb[0].mxu0
      %1402 = vmatprep.mubr.f32.mxu0 0.0
      %1403 = vmatmul.mubr.f32.gmra.mrb[0].mxu0 %v1225
      %v1404 = vpop.f32.mrb[0].mxu0
      %v1405 = vadd.f32 0.0, %v1404
      %v1406 = vpop.f32.mrb[0].mxu0
      %1407 = vmatprep.mubr.f32.mxu0 0.0
      %1408 = vmatmul.mubr.f32.gmra.mrb[0].mxu0 %v1228
      %v1409 = vpop.f32.mrb[0].mxu0
      %v1410 = vadd.f32 0.0, %v1409
      %v1411 = vpop.f32.mrb[0].mxu0
      %1412 = vmatprep.mubr.f32.mxu0 0.0
      %1413 = vmatmul.mubr.f32.gmra.mrb[0].mxu0 %v1231
      %v1414 = vpop.f32.mrb[0].mxu0
      %v1415 = vadd.f32 0.0, %v1414
      %v1416 = vpop.f32.mrb[0].mxu0
      %1417 = vmatprep.mubr.f32.mxu0 0.0
      %1418 = vmatmul.mubr.f32.gmra.mrb[0].mxu0 %v1234
      %v1419 = vpop.f32.mrb[0].mxu0
      %v1420 = vadd.f32 0.0, %v1419
      %v1421 = vpop.f32.mrb[0].mxu0
      %1422 = vmatprep.mubr.f32.mxu0 0.0
      %1423 = vmatmul.mubr.f32.gmra.mrb[0].mxu0 %v1237
      %v1424 = vpop.f32.mrb[0].mxu0
      %v1425 = vadd.f32 0.0, %v1424
      %v1426 = vpop.f32.mrb[0].mxu0
      %1427 = vmatprep.mubr.f32.mxu0 0.0
      %1428 = vmatmul.mubr.f32.gmra.mrb[0].mxu0 %v1240
      %v1429 = vpop.f32.mrb[0].mxu0
      %v1430 = vadd.f32 0.0, %v1429
      %v1431 = vpop.f32.mrb[0].mxu0
      %1432 = vmatprep.mubr.f32.mxu0 0.0
      %1433 = vmatmul.mubr.f32.gmra.mrb[0].mxu0 %v1243
      %v1434 = vpop.f32.mrb[0].mxu0
      %v1435 = vadd.f32 0.0, %v1434
      %v1436 = vpop.f32.mrb[0].mxu0
      %1437 = vmatprep.mubr.f32.mxu0 0.0
      %1438 = vmatmul.mubr.f32.gmra.mrb[0].mxu0 %v1246
      %v1439 = vpop.f32.mrb[0].mxu0
      %v1440 = vadd.f32 0.0, %v1439
      %v1441 = vpop.f32.mrb[0].mxu0
      %1442 = vmatprep.mubr.f32.mxu0 0.0
      %1443 = vmatmul.mubr.f32.gmra.mrb[0].mxu0 %v1249
      %v1444 = vpop.f32.mrb[0].mxu0
      %v1445 = vadd.f32 0.0, %v1444
      %v1446 = vpop.f32.mrb[0].mxu0
      %1447 = vmatprep.mubr.f32.mxu0 0.0
      %1448 = vmatmul.mubr.f32.gmra.mrb[0].mxu0 %v1252
      %v1449 = vpop.f32.mrb[0].mxu0
      %v1450 = vadd.f32 0.0, %v1449
      %v1451 = vpop.f32.mrb[0].mxu0
      %1452 = vmatprep.mubr.f32.mxu0 0.0
      %1453 = vmatmul.mubr.f32.gmra.mrb[0].mxu0 %v1255
      %v1454 = vpop.f32.mrb[0].mxu0
      %v1455 = vadd.f32 0.0, %v1454
      %v1456 = vpop.f32.mrb[0].mxu0
      %1457 = vmatprep.mubr.f32.mxu0 0.0
      %1458 = vmatmul.mubr.f32.gmra.mrb[0].mxu0 %v1258
      %v1459 = vpop.f32.mrb[0].mxu0
      %v1460 = vadd.f32 0.0, %v1459
      %v1461 = vpop.f32.mrb[0].mxu0
      %1462 = vmatprep.mubr.f32.mxu0 0.0
      %1463 = vmatmul.mubr.f32.gmra.mrb[0].mxu0 %v1261
      %v1464 = vpop.f32.mrb[0].mxu0
      %v1465 = vadd.f32 0.0, %v1464
      %v1466 = vpop.f32.mrb[0].mxu0
      %1467 = vmatprep.mubr.f32.mxu0 0.0
      %1468 = vmatmul.mubr.f32.gmra.mrb[0].mxu0 %v1264
      %v1469 = vpop.f32.mrb[0].mxu0
      %v1470 = vadd.f32 0.0, %v1469
      %v1471 = vpop.f32.mrb[0].mxu0
      %1472 = vmatprep.mubr.f32.mxu0 0.0
      %1473 = vmatmul.mubr.f32.gmra.mrb[0].mxu0 %v1267
      %v1474 = vpop.f32.mrb[0].mxu0
      %v1475 = vadd.f32 0.0, %v1474
      %v1476 = vpop.f32.mrb[0].mxu0
      %1477 = vmatprep.mubr.f32.mxu0 0.0
      %1478 = vmatmul.mubr.f32.gmra.mrb[0].mxu0 %v1270
      %v1479 = vpop.f32.mrb[0].mxu0
      %v1480 = vadd.f32 0.0, %v1479
      %v1481 = vpop.f32.mrb[0].mxu0
      %1482 = vmatprep.mubr.f32.mxu0 0.0
      %1483 = vmatmul.mubr.f32.gmra.mrb[0].mxu0 %v1273
      %v1484 = vpop.f32.mrb[0].mxu0
      %v1485 = vadd.f32 0.0, %v1484
      %v1486 = vpop.f32.mrb[0].mxu0
      %1487 = vmatprep.mubr.f32.mxu0 0.0
      %1488 = vmatmul.mubr.f32.gmra.mrb[0].mxu0 %v1276
      %v1489 = vpop.f32.mrb[0].mxu0
      %v1490 = vadd.f32 0.0, %v1489
      %v1491 = vpop.f32.mrb[0].mxu0
      %1492 = vmatprep.mubr.f32.mxu0 0.0
      %1493 = vmatmul.mubr.f32.gmra.mrb[0].mxu0 %v1279
      %v1494 = vpop.f32.mrb[0].mxu0
      %v1495 = vadd.f32 0.0, %v1494
      %v1496 = vpop.f32.mrb[0].mxu0
      %1497 = vmatprep.mubr.f32.mxu0 0.0
      %1498 = vmatmul.mubr.f32.gmra.mrb[0].mxu0 %v1282
      %v1499 = vpop.f32.mrb[0].mxu0
      %v1500 = vadd.f32 0.0, %v1499
      %v1501 = vpop.f32.mrb[0].mxu0
      %1502 = vmatprep.mubr.f32.mxu0 0.0
      %1503 = vmatmul.mubr.f32.gmra.mrb[0].mxu0 %v1285
      %v1504 = vpop.f32.mrb[0].mxu0
      %v1505 = vadd.f32 0.0, %v1504
      %v1506 = vpop.f32.mrb[0].mxu0
      %1507 = vmatprep.mubr.f32.mxu0 0.0
      %1508 = vmatmul.mubr.f32.gmra.mrb[0].mxu0 %v1288
      %v1509 = vpop.f32.mrb[0].mxu0
      %v1510 = vadd.f32 0.0, %v1509
      %v1511 = vpop.f32.mrb[0].mxu0
      %1512 = vmatprep.mubr.f32.mxu0 0.0
      %1513 = vmatmul.mubr.f32.gmra.mrb[0].mxu0 %v1291
      %v1514 = vpop.f32.mrb[0].mxu0
      %v1515 = vadd.f32 0.0, %v1514
      %v1516 = vpop.f32.mrb[0].mxu0
      %1517 = vmatprep.mubr.f32.mxu0 0.0
      %1518 = vmatmul.mubr.f32.gmra.mrb[0].mxu0 %v1294
      %v1519 = vpop.f32.mrb[0].mxu0
      %v1520 = vadd.f32 0.0, %v1519
      %v1521 = vpop.f32.mrb[0].mxu0
      %1522 = vdwg.mxu0
      %vm1523 = vcmp.le.s32.totalorder %v518, %v521
      %vm1524 = vcmp.le.s32.totalorder %v519, %v521
      %vm1525 = vcmp.le.s32.totalorder %v518, %v522
      %vm1526 = vcmp.le.s32.totalorder %v519, %v522
      %vm1527 = vcmp.le.s32.totalorder %v518, %v523
      %vm1528 = vcmp.le.s32.totalorder %v519, %v523
      %vm1529 = vcmp.le.s32.totalorder %v518, %v524
      %vm1530 = vcmp.le.s32.totalorder %v519, %v524
      %vm1531 = vcmp.le.s32.totalorder %v518, %v525
      %vm1532 = vcmp.le.s32.totalorder %v519, %v525
      %vm1533 = vcmp.le.s32.totalorder %v518, %v526
      %vm1534 = vcmp.le.s32.totalorder %v519, %v526
      %vm1535 = vcmp.le.s32.totalorder %v518, %v527
      %vm1536 = vcmp.le.s32.totalorder %v519, %v527
      %vm1537 = vcmp.le.s32.totalorder %v518, %v528
      %vm1538 = vcmp.le.s32.totalorder %v519, %v528
      %vm1539 = vcmp.le.s32.totalorder %v518, %v529
      %vm1540 = vcmp.le.s32.totalorder %v519, %v529
      %vm1541 = vcmp.le.s32.totalorder %v518, %v530
      %vm1542 = vcmp.le.s32.totalorder %v519, %v530
      %vm1543 = vcmp.le.s32.totalorder %v518, %v531
      %vm1544 = vcmp.le.s32.totalorder %v519, %v531
      %vm1545 = vcmp.le.s32.totalorder %v518, %v532
      %vm1546 = vcmp.le.s32.totalorder %v519, %v532
      %vm1547 = vcmp.le.s32.totalorder %v518, %v533
      %vm1548 = vcmp.le.s32.totalorder %v519, %v533
      %vm1549 = vcmp.le.s32.totalorder %v518, %v534
      %vm1550 = vcmp.le.s32.totalorder %v519, %v534
      %vm1551 = vcmp.le.s32.totalorder %v518, %v535
      %vm1552 = vcmp.le.s32.totalorder %v519, %v535
      %vm1553 = vcmp.le.s32.totalorder %v518, %v536
      %vm1554 = vcmp.le.s32.totalorder %v519, %v536
      %vm1555 = vcmp.le.s32.totalorder %v518, %v537
      %vm1556 = vcmp.le.s32.totalorder %v519, %v537
      %vm1557 = vcmp.le.s32.totalorder %v518, %v538
      %vm1558 = vcmp.le.s32.totalorder %v519, %v538
      %vm1559 = vcmp.le.s32.totalorder %v518, %v539
      %vm1560 = vcmp.le.s32.totalorder %v519, %v539
      %vm1561 = vcmp.le.s32.totalorder %v518, %v540
      %vm1562 = vcmp.le.s32.totalorder %v519, %v540
      %vm1563 = vcmp.le.s32.totalorder %v518, %v541
      %vm1564 = vcmp.le.s32.totalorder %v519, %v541
      %vm1565 = vcmp.le.s32.totalorder %v518, %v542
      %vm1566 = vcmp.le.s32.totalorder %v519, %v542
      %vm1567 = vcmp.le.s32.totalorder %v518, %v543
      %vm1568 = vcmp.le.s32.totalorder %v519, %v543
      %vm1569 = vcmp.le.s32.totalorder %v518, %v544
      %vm1570 = vcmp.le.s32.totalorder %v519, %v544
      %vm1571 = vcmp.le.s32.totalorder %v518, %v545
      %vm1572 = vcmp.le.s32.totalorder %v519, %v545
      %vm1573 = vcmp.le.s32.totalorder %v518, %v546
      %vm1574 = vcmp.le.s32.totalorder %v519, %v546
      %vm1575 = vcmp.le.s32.totalorder %v518, %v547
      %vm1576 = vcmp.le.s32.totalorder %v519, %v547
      %vm1577 = vcmp.le.s32.totalorder %v518, %v548
      %vm1578 = vcmp.le.s32.totalorder %v519, %v548
      %vm1579 = vcmp.le.s32.totalorder %v518, %v549
      %vm1580 = vcmp.le.s32.totalorder %v519, %v549
      %vm1581 = vcmp.le.s32.totalorder %v518, %v550
      %vm1582 = vcmp.le.s32.totalorder %v519, %v550
      %vm1583 = vcmp.le.s32.totalorder %v518, %v551
      %vm1584 = vcmp.le.s32.totalorder %v519, %v551
      %vm1585 = vcmp.le.s32.totalorder %v518, %v552
      %vm1586 = vcmp.le.s32.totalorder %v519, %v552
      %v1587 = vlaneseq
      %v1588 = vshrl.u32 %v1587, 7
      %v1589 = vsub.s32 0, %v1588
      %v1590 = vrot.slane %v1050, %v1589
      %v1591 = vlaneseq
      %v1592 = vshrl.u32 %v1591, 7
      %v1593 = vsub.s32 0, %v1592
      %v1594 = vrot.slane %v1051, %v1593
      %1596 = vset.pattern.permute.xlu0 2
      %1597 = vperm.xlu0 %1596, %v1365
      %v1598 = vpop.permute.xlu0 %1597
      %1601 = vset.pattern.permute.xlu0 2
      %1602 = vperm.xlu0 %1601, %v1370
      %v1603 = vpop.permute.xlu0 %1602
      %1606 = vset.pattern.permute.xlu0 2
      %1607 = vperm.xlu0 %1606, %v1375
      %v1608 = vpop.permute.xlu0 %1607
      %1611 = vset.pattern.permute.xlu0 2
      %1612 = vperm.xlu0 %1611, %v1380
      %v1613 = vpop.permute.xlu0 %1612
      %1616 = vset.pattern.permute.xlu0 2
      %1617 = vperm.xlu0 %1616, %v1385
      %v1618 = vpop.permute.xlu0 %1617
      %1621 = vset.pattern.permute.xlu0 2
      %1622 = vperm.xlu0 %1621, %v1390
      %v1623 = vpop.permute.xlu0 %1622
      %1626 = vset.pattern.permute.xlu0 2
      %1627 = vperm.xlu0 %1626, %v1395
      %v1628 = vpop.permute.xlu0 %1627
      %1631 = vset.pattern.permute.xlu0 2
      %1632 = vperm.xlu0 %1631, %v1400
      %v1633 = vpop.permute.xlu0 %1632
      %1636 = vset.pattern.permute.xlu0 2
      %1637 = vperm.xlu0 %1636, %v1405
      %v1638 = vpop.permute.xlu0 %1637
      %1641 = vset.pattern.permute.xlu0 2
      %1642 = vperm.xlu0 %1641, %v1410
      %v1643 = vpop.permute.xlu0 %1642
      %1646 = vset.pattern.permute.xlu0 2
      %1647 = vperm.xlu0 %1646, %v1415
      %v1648 = vpop.permute.xlu0 %1647
      %1651 = vset.pattern.permute.xlu0 2
      %1652 = vperm.xlu0 %1651, %v1420
      %v1653 = vpop.permute.xlu0 %1652
      %1656 = vset.pattern.permute.xlu0 2
      %1657 = vperm.xlu0 %1656, %v1425
      %v1658 = vpop.permute.xlu0 %1657
      %1661 = vset.pattern.permute.xlu0 2
      %1662 = vperm.xlu0 %1661, %v1430
      %v1663 = vpop.permute.xlu0 %1662
      %1666 = vset.pattern.permute.xlu0 2
      %1667 = vperm.xlu0 %1666, %v1435
      %v1668 = vpop.permute.xlu0 %1667
      %1671 = vset.pattern.permute.xlu0 2
      %1672 = vperm.xlu0 %1671, %v1440
      %v1673 = vpop.permute.xlu0 %1672
      %1676 = vset.pattern.permute.xlu0 2
      %1677 = vperm.xlu0 %1676, %v1445
      %v1678 = vpop.permute.xlu0 %1677
      %1681 = vset.pattern.permute.xlu0 2
      %1682 = vperm.xlu0 %1681, %v1450
      %v1683 = vpop.permute.xlu0 %1682
      %1686 = vset.pattern.permute.xlu0 2
      %1687 = vperm.xlu0 %1686, %v1455
      %v1688 = vpop.permute.xlu0 %1687
      %1691 = vset.pattern.permute.xlu0 2
      %1692 = vperm.xlu0 %1691, %v1460
      %v1693 = vpop.permute.xlu0 %1692
      %1696 = vset.pattern.permute.xlu0 2
      %1697 = vperm.xlu0 %1696, %v1465
      %v1698 = vpop.permute.xlu0 %1697
      %1701 = vset.pattern.permute.xlu0 2
      %1702 = vperm.xlu0 %1701, %v1470
      %v1703 = vpop.permute.xlu0 %1702
      %1706 = vset.pattern.permute.xlu0 2
      %1707 = vperm.xlu0 %1706, %v1475
      %v1708 = vpop.permute.xlu0 %1707
      %1711 = vset.pattern.permute.xlu0 2
      %1712 = vperm.xlu0 %1711, %v1480
      %v1713 = vpop.permute.xlu0 %1712
      %1716 = vset.pattern.permute.xlu0 2
      %1717 = vperm.xlu0 %1716, %v1485
      %v1718 = vpop.permute.xlu0 %1717
      %1721 = vset.pattern.permute.xlu0 2
      %1722 = vperm.xlu0 %1721, %v1490
      %v1723 = vpop.permute.xlu0 %1722
      %1726 = vset.pattern.permute.xlu0 2
      %1727 = vperm.xlu0 %1726, %v1495
      %v1728 = vpop.permute.xlu0 %1727
      %1731 = vset.pattern.permute.xlu0 2
      %1732 = vperm.xlu0 %1731, %v1500
      %v1733 = vpop.permute.xlu0 %1732
      %1736 = vset.pattern.permute.xlu0 2
      %1737 = vperm.xlu0 %1736, %v1505
      %v1738 = vpop.permute.xlu0 %1737
      %1741 = vset.pattern.permute.xlu0 2
      %1742 = vperm.xlu0 %1741, %v1510
      %v1743 = vpop.permute.xlu0 %1742
      %1746 = vset.pattern.permute.xlu0 2
      %1747 = vperm.xlu0 %1746, %v1515
      %v1748 = vpop.permute.xlu0 %1747
      %1751 = vset.pattern.permute.xlu0 2
      %1752 = vperm.xlu0 %1751, %v1520
      %v1753 = vpop.permute.xlu0 %1752
      %v1755 = vsub.f32 %v1590, %v1598
      %v1756 = vsub.f32 %v1594, %v1598
      %v1757 = vsub.f32 %v1590, %v1603
      %v1758 = vsub.f32 %v1594, %v1603
      %v1759 = vsub.f32 %v1590, %v1608
      %v1760 = vsub.f32 %v1594, %v1608
      %v1761 = vsub.f32 %v1590, %v1613
      %v1762 = vsub.f32 %v1594, %v1613
      %v1763 = vsub.f32 %v1590, %v1618
      %v1764 = vsub.f32 %v1594, %v1618
      %v1765 = vsub.f32 %v1590, %v1623
      %v1766 = vsub.f32 %v1594, %v1623
      %v1767 = vsub.f32 %v1590, %v1628
      %v1768 = vsub.f32 %v1594, %v1628
      %v1769 = vsub.f32 %v1590, %v1633
      %v1770 = vsub.f32 %v1594, %v1633
      %v1771 = vsub.f32 %v1590, %v1638
      %v1772 = vsub.f32 %v1594, %v1638
      %v1773 = vsub.f32 %v1590, %v1643
      %v1774 = vsub.f32 %v1594, %v1643
      %v1775 = vsub.f32 %v1590, %v1648
      %v1776 = vsub.f32 %v1594, %v1648
      %v1777 = vsub.f32 %v1590, %v1653
      %v1778 = vsub.f32 %v1594, %v1653
      %v1779 = vsub.f32 %v1590, %v1658
      %v1780 = vsub.f32 %v1594, %v1658
      %v1781 = vsub.f32 %v1590, %v1663
      %v1782 = vsub.f32 %v1594, %v1663
      %v1783 = vsub.f32 %v1590, %v1668
      %v1784 = vsub.f32 %v1594, %v1668
      %v1785 = vsub.f32 %v1590, %v1673
      %v1786 = vsub.f32 %v1594, %v1673
      %v1787 = vsub.f32 %v1590, %v1678
      %v1788 = vsub.f32 %v1594, %v1678
      %v1789 = vsub.f32 %v1590, %v1683
      %v1790 = vsub.f32 %v1594, %v1683
      %v1791 = vsub.f32 %v1590, %v1688
      %v1792 = vsub.f32 %v1594, %v1688
      %v1793 = vsub.f32 %v1590, %v1693
      %v1794 = vsub.f32 %v1594, %v1693
      %v1795 = vsub.f32 %v1590, %v1698
      %v1796 = vsub.f32 %v1594, %v1698
      %v1797 = vsub.f32 %v1590, %v1703
      %v1798 = vsub.f32 %v1594, %v1703
      %v1799 = vsub.f32 %v1590, %v1708
      %v1800 = vsub.f32 %v1594, %v1708
      %v1801 = vsub.f32 %v1590, %v1713
      %v1802 = vsub.f32 %v1594, %v1713
      %v1803 = vsub.f32 %v1590, %v1718
      %v1804 = vsub.f32 %v1594, %v1718
      %v1805 = vsub.f32 %v1590, %v1723
      %v1806 = vsub.f32 %v1594, %v1723
      %v1807 = vsub.f32 %v1590, %v1728
      %v1808 = vsub.f32 %v1594, %v1728
      %v1809 = vsub.f32 %v1590, %v1733
      %v1810 = vsub.f32 %v1594, %v1733
      %v1811 = vsub.f32 %v1590, %v1738
      %v1812 = vsub.f32 %v1594, %v1738
      %v1813 = vsub.f32 %v1590, %v1743
      %v1814 = vsub.f32 %v1594, %v1743
      %v1815 = vsub.f32 %v1590, %v1748
      %v1816 = vsub.f32 %v1594, %v1748
      %v1817 = vsub.f32 %v1590, %v1753
      %v1818 = vsub.f32 %v1594, %v1753
      %v1819 = vmin.f32 %v1755, 0.0
      %v1820 = vmin.f32 %v1756, 0.0
      %v1821 = vmin.f32 %v1757, 0.0
      %v1822 = vmin.f32 %v1758, 0.0
      %v1823 = vmin.f32 %v1759, 0.0
      %v1824 = vmin.f32 %v1760, 0.0
      %v1825 = vmin.f32 %v1761, 0.0
      %v1826 = vmin.f32 %v1762, 0.0
      %v1827 = vmin.f32 %v1763, 0.0
      %v1828 = vmin.f32 %v1764, 0.0
      %v1829 = vmin.f32 %v1765, 0.0
      %v1830 = vmin.f32 %v1766, 0.0
      %v1831 = vmin.f32 %v1767, 0.0
      %v1832 = vmin.f32 %v1768, 0.0
      %v1833 = vmin.f32 %v1769, 0.0
      %v1834 = vmin.f32 %v1770, 0.0
      %v1835 = vmin.f32 %v1771, 0.0
      %v1836 = vmin.f32 %v1772, 0.0
      %v1837 = vmin.f32 %v1773, 0.0
      %v1838 = vmin.f32 %v1774, 0.0
      %v1839 = vmin.f32 %v1775, 0.0
      %v1840 = vmin.f32 %v1776, 0.0
      %v1841 = vmin.f32 %v1777, 0.0
      %v1842 = vmin.f32 %v1778, 0.0
      %v1843 = vmin.f32 %v1779, 0.0
      %v1844 = vmin.f32 %v1780, 0.0
      %v1845 = vmin.f32 %v1781, 0.0
      %v1846 = vmin.f32 %v1782, 0.0
      %v1847 = vmin.f32 %v1783, 0.0
      %v1848 = vmin.f32 %v1784, 0.0
      %v1849 = vmin.f32 %v1785, 0.0
      %v1850 = vmin.f32 %v1786, 0.0
      %v1851 = vmin.f32 %v1787, 0.0
      %v1852 = vmin.f32 %v1788, 0.0
      %v1853 = vmin.f32 %v1789, 0.0
      %v1854 = vmin.f32 %v1790, 0.0
      %v1855 = vmin.f32 %v1791, 0.0
      %v1856 = vmin.f32 %v1792, 0.0
      %v1857 = vmin.f32 %v1793, 0.0
      %v1858 = vmin.f32 %v1794, 0.0
      %v1859 = vmin.f32 %v1795, 0.0
      %v1860 = vmin.f32 %v1796, 0.0
      %v1861 = vmin.f32 %v1797, 0.0
      %v1862 = vmin.f32 %v1798, 0.0
      %v1863 = vmin.f32 %v1799, 0.0
      %v1864 = vmin.f32 %v1800, 0.0
      %v1865 = vmin.f32 %v1801, 0.0
      %v1866 = vmin.f32 %v1802, 0.0
      %v1867 = vmin.f32 %v1803, 0.0
      %v1868 = vmin.f32 %v1804, 0.0
      %v1869 = vmin.f32 %v1805, 0.0
      %v1870 = vmin.f32 %v1806, 0.0
      %v1871 = vmin.f32 %v1807, 0.0
      %v1872 = vmin.f32 %v1808, 0.0
      %v1873 = vmin.f32 %v1809, 0.0
      %v1874 = vmin.f32 %v1810, 0.0
      %v1875 = vmin.f32 %v1811, 0.0
      %v1876 = vmin.f32 %v1812, 0.0
      %v1877 = vmin.f32 %v1813, 0.0
      %v1878 = vmin.f32 %v1814, 0.0
      %v1879 = vmin.f32 %v1815, 0.0
      %v1880 = vmin.f32 %v1816, 0.0
      %v1881 = vmin.f32 %v1817, 0.0
      %v1882 = vmin.f32 %v1818, 0.0
      %v1883 = vmul.f32 %v1819, 1.442695
      %v1884 = vpow.pop %v1883
      %v1885 = vmul.f32 %v1820, 1.442695
      %v1886 = vpow.pop %v1885
      %v1887 = vmul.f32 %v1821, 1.442695
      %v1888 = vpow.pop %v1887
      %v1889 = vmul.f32 %v1822, 1.442695
      %v1890 = vpow.pop %v1889
      %v1891 = vmul.f32 %v1823, 1.442695
      %v1892 = vpow.pop %v1891
      %v1893 = vmul.f32 %v1824, 1.442695
      %v1894 = vpow.pop %v1893
      %v1895 = vmul.f32 %v1825, 1.442695
      %v1896 = vpow.pop %v1895
      %v1897 = vmul.f32 %v1826, 1.442695
      %v1898 = vpow.pop %v1897
      %v1899 = vmul.f32 %v1827, 1.442695
      %v1900 = vpow.pop %v1899
      %v1901 = vmul.f32 %v1828, 1.442695
      %v1902 = vpow.pop %v1901
      %v1903 = vmul.f32 %v1829, 1.442695
      %v1904 = vpow.pop %v1903
      %v1905 = vmul.f32 %v1830, 1.442695
      %v1906 = vpow.pop %v1905
      %v1907 = vmul.f32 %v1831, 1.442695
      %v1908 = vpow.pop %v1907
      %v1909 = vmul.f32 %v1832, 1.442695
      %v1910 = vpow.pop %v1909
      %v1911 = vmul.f32 %v1833, 1.442695
      %v1912 = vpow.pop %v1911
      %v1913 = vmul.f32 %v1834, 1.442695
      %v1914 = vpow.pop %v1913
      %v1915 = vmul.f32 %v1835, 1.442695
      %v1916 = vpow.pop %v1915
      %v1917 = vmul.f32 %v1836, 1.442695
      %v1918 = vpow.pop %v1917
      %v1919 = vmul.f32 %v1837, 1.442695
      %v1920 = vpow.pop %v1919
      %v1921 = vmul.f32 %v1838, 1.442695
      %v1922 = vpow.pop %v1921
      %v1923 = vmul.f32 %v1839, 1.442695
      %v1924 = vpow.pop %v1923
      %v1925 = vmul.f32 %v1840, 1.442695
      %v1926 = vpow.pop %v1925
      %v1927 = vmul.f32 %v1841, 1.442695
      %v1928 = vpow.pop %v1927
      %v1929 = vmul.f32 %v1842, 1.442695
      %v1930 = vpow.pop %v1929
      %v1931 = vmul.f32 %v1843, 1.442695
      %v1932 = vpow.pop %v1931
      %v1933 = vmul.f32 %v1844, 1.442695
      %v1934 = vpow.pop %v1933
      %v1935 = vmul.f32 %v1845, 1.442695
      %v1936 = vpow.pop %v1935
      %v1937 = vmul.f32 %v1846, 1.442695
      %v1938 = vpow.pop %v1937
      %v1939 = vmul.f32 %v1847, 1.442695
      %v1940 = vpow.pop %v1939
      %v1941 = vmul.f32 %v1848, 1.442695
      %v1942 = vpow.pop %v1941
      %v1943 = vmul.f32 %v1849, 1.442695
      %v1944 = vpow.pop %v1943
      %v1945 = vmul.f32 %v1850, 1.442695
      %v1946 = vpow.pop %v1945
      %v1947 = vmul.f32 %v1851, 1.442695
      %v1948 = vpow.pop %v1947
      %v1949 = vmul.f32 %v1852, 1.442695
      %v1950 = vpow.pop %v1949
      %v1951 = vmul.f32 %v1853, 1.442695
      %v1952 = vpow.pop %v1951
      %v1953 = vmul.f32 %v1854, 1.442695
      %v1954 = vpow.pop %v1953
      %v1955 = vmul.f32 %v1855, 1.442695
      %v1956 = vpow.pop %v1955
      %v1957 = vmul.f32 %v1856, 1.442695
      %v1958 = vpow.pop %v1957
      %v1959 = vmul.f32 %v1857, 1.442695
      %v1960 = vpow.pop %v1959
      %v1961 = vmul.f32 %v1858, 1.442695
      %v1962 = vpow.pop %v1961
      %v1963 = vmul.f32 %v1859, 1.442695
      %v1964 = vpow.pop %v1963
      %v1965 = vmul.f32 %v1860, 1.442695
      %v1966 = vpow.pop %v1965
      %v1967 = vmul.f32 %v1861, 1.442695
      %v1968 = vpow.pop %v1967
      %v1969 = vmul.f32 %v1862, 1.442695
      %v1970 = vpow.pop %v1969
      %v1971 = vmul.f32 %v1863, 1.442695
      %v1972 = vpow.pop %v1971
      %v1973 = vmul.f32 %v1864, 1.442695
      %v1974 = vpow.pop %v1973
      %v1975 = vmul.f32 %v1865, 1.442695
      %v1976 = vpow.pop %v1975
      %v1977 = vmul.f32 %v1866, 1.442695
      %v1978 = vpow.pop %v1977
      %v1979 = vmul.f32 %v1867, 1.442695
      %v1980 = vpow.pop %v1979
      %v1981 = vmul.f32 %v1868, 1.442695
      %v1982 = vpow.pop %v1981
      %v1983 = vmul.f32 %v1869, 1.442695
      %v1984 = vpow.pop %v1983
      %v1985 = vmul.f32 %v1870, 1.442695
      %v1986 = vpow.pop %v1985
      %v1987 = vmul.f32 %v1871, 1.442695
      %v1988 = vpow.pop %v1987
      %v1989 = vmul.f32 %v1872, 1.442695
      %v1990 = vpow.pop %v1989
      %v1991 = vmul.f32 %v1873, 1.442695
      %v1992 = vpow.pop %v1991
      %v1993 = vmul.f32 %v1874, 1.442695
      %v1994 = vpow.pop %v1993
      %v1995 = vmul.f32 %v1875, 1.442695
      %v1996 = vpow.pop %v1995
      %v1997 = vmul.f32 %v1876, 1.442695
      %v1998 = vpow.pop %v1997
      %v1999 = vmul.f32 %v1877, 1.442695
      %v2000 = vpow.pop %v1999
      %v2001 = vmul.f32 %v1878, 1.442695
      %v2002 = vpow.pop %v2001
      %v2003 = vmul.f32 %v1879, 1.442695
      %v2004 = vpow.pop %v2003
      %v2005 = vmul.f32 %v1880, 1.442695
      %v2006 = vpow.pop %v2005
      %v2007 = vmul.f32 %v1881, 1.442695
      %v2008 = vpow.pop %v2007
      %v2009 = vmul.f32 %v1882, 1.442695
      %v2010 = vpow.pop %v2009
      %v2011 = vsel %vm1523, %v1884, 0.0
      %v2012 = vsel %vm1524, %v1886, 0.0
      %v2013 = vsel %vm1525, %v1888, 0.0
      %v2014 = vsel %vm1526, %v1890, 0.0
      %v2015 = vsel %vm1527, %v1892, 0.0
      %v2016 = vsel %vm1528, %v1894, 0.0
      %v2017 = vsel %vm1529, %v1896, 0.0
      %v2018 = vsel %vm1530, %v1898, 0.0
      %v2019 = vsel %vm1531, %v1900, 0.0
      %v2020 = vsel %vm1532, %v1902, 0.0
      %v2021 = vsel %vm1533, %v1904, 0.0
      %v2022 = vsel %vm1534, %v1906, 0.0
      %v2023 = vsel %vm1535, %v1908, 0.0
      %v2024 = vsel %vm1536, %v1910, 0.0
      %v2025 = vsel %vm1537, %v1912, 0.0
      %v2026 = vsel %vm1538, %v1914, 0.0
      %v2027 = vsel %vm1539, %v1916, 0.0
      %v2028 = vsel %vm1540, %v1918, 0.0
      %v2029 = vsel %vm1541, %v1920, 0.0
      %v2030 = vsel %vm1542, %v1922, 0.0
      %v2031 = vsel %vm1543, %v1924, 0.0
      %v2032 = vsel %vm1544, %v1926, 0.0
      %v2033 = vsel %vm1545, %v1928, 0.0
      %v2034 = vsel %vm1546, %v1930, 0.0
      %v2035 = vsel %vm1547, %v1932, 0.0
      %v2036 = vsel %vm1548, %v1934, 0.0
      %v2037 = vsel %vm1549, %v1936, 0.0
      %v2038 = vsel %vm1550, %v1938, 0.0
      %v2039 = vsel %vm1551, %v1940, 0.0
      %v2040 = vsel %vm1552, %v1942, 0.0
      %v2041 = vsel %vm1553, %v1944, 0.0
      %v2042 = vsel %vm1554, %v1946, 0.0
      %v2043 = vsel %vm1555, %v1948, 0.0
      %v2044 = vsel %vm1556, %v1950, 0.0
      %v2045 = vsel %vm1557, %v1952, 0.0
      %v2046 = vsel %vm1558, %v1954, 0.0
      %v2047 = vsel %vm1559, %v1956, 0.0
      %v2048 = vsel %vm1560, %v1958, 0.0
      %v2049 = vsel %vm1561, %v1960, 0.0
      %v2050 = vsel %vm1562, %v1962, 0.0
      %v2051 = vsel %vm1563, %v1964, 0.0
      %v2052 = vsel %vm1564, %v1966, 0.0
      %v2053 = vsel %vm1565, %v1968, 0.0
      %v2054 = vsel %vm1566, %v1970, 0.0
      %v2055 = vsel %vm1567, %v1972, 0.0
      %v2056 = vsel %vm1568, %v1974, 0.0
      %v2057 = vsel %vm1569, %v1976, 0.0
      %v2058 = vsel %vm1570, %v1978, 0.0
      %v2059 = vsel %vm1571, %v1980, 0.0
      %v2060 = vsel %vm1572, %v1982, 0.0
      %v2061 = vsel %vm1573, %v1984, 0.0
      %v2062 = vsel %vm1574, %v1986, 0.0
      %v2063 = vsel %vm1575, %v1988, 0.0
      %v2064 = vsel %vm1576, %v1990, 0.0
      %v2065 = vsel %vm1577, %v1992, 0.0
      %v2066 = vsel %vm1578, %v1994, 0.0
      %v2067 = vsel %vm1579, %v1996, 0.0
      %v2068 = vsel %vm1580, %v1998, 0.0
      %v2069 = vsel %vm1581, %v2000, 0.0
      %v2070 = vsel %vm1582, %v2002, 0.0
      %v2071 = vsel %vm1583, %v2004, 0.0
      %v2072 = vsel %vm1584, %v2006, 0.0
      %v2073 = vsel %vm1585, %v2008, 0.0
      %v2074 = vsel %vm1586, %v2010, 0.0
      %v2075 = vpack.c.bf16 %v700, %v700
      %v2076 = vpack.c.bf16 %v702, %v702
      %v2077 = vpack.c.bf16 %v749, %v749
      %v2078 = vpack.c.bf16 %v751, %v751
      %2079 = vxpose.xlu0.c.b16.start [1/8] %v2075, 128
      %2080 = vxpose.xlu0.c.b16.cont [2/8] 0, 128
      %2081 = vxpose.xlu0.c.b16.cont [3/8] 0, 128
      %2082 = vxpose.xlu0.c.b16.cont [4/8] 0, 128
      %2083 = vxpose.xlu0.c.b16.cont [5/8] 0, 128
      %2084 = vxpose.xlu0.c.b16.cont [6/8] 0, 128
      %2085 = vxpose.xlu0.c.b16.cont [7/8] 0, 128
      %2086 = vxpose.xlu0.c.b16.end [8/8] 0, 128
      %v2087 = vpop.trf.xlu0
      %v2088 = vpop.trf.xlu0
      %v2089 = vpop.trf.xlu0
      %v2090 = vpop.trf.xlu0
      %v2091 = vpop.trf.xlu0
      %v2092 = vpop.trf.xlu0
      %v2093 = vpop.trf.xlu0
      %v2094 = vpop.trf.xlu0
      %2095 = vxpose.xlu0.c.b16.start [1/8] %v2076, 128
      %2096 = vxpose.xlu0.c.b16.cont [2/8] 0, 128
      %2097 = vxpose.xlu0.c.b16.cont [3/8] 0, 128
      %2098 = vxpose.xlu0.c.b16.cont [4/8] 0, 128
      %2099 = vxpose.xlu0.c.b16.cont [5/8] 0, 128
      %2100 = vxpose.xlu0.c.b16.cont [6/8] 0, 128
      %2101 = vxpose.xlu0.c.b16.cont [7/8] 0, 128
      %2102 = vxpose.xlu0.c.b16.end [8/8] 0, 128
      %v2103 = vpop.trf.xlu0
      %v2104 = vpop.trf.xlu0
      %v2105 = vpop.trf.xlu0
      %v2106 = vpop.trf.xlu0
      %v2107 = vpop.trf.xlu0
      %v2108 = vpop.trf.xlu0
      %v2109 = vpop.trf.xlu0
      %v2110 = vpop.trf.xlu0
      %v2112 = vsel %vm371, %v2087, 0
      %v2115 = vsel %vm371, %v2088, 0
      %v2118 = vsel %vm371, %v2089, 0
      %v2121 = vsel %vm371, %v2090, 0
      %v2124 = vsel %vm371, %v2091, 0
      %v2127 = vsel %vm371, %v2092, 0
      %v2130 = vsel %vm371, %v2093, 0
      %v2133 = vsel %vm371, %v2094, 0
      %v2136 = vsel %vm371, %v2103, 0
      %v2139 = vsel %vm371, %v2104, 0
      %v2142 = vsel %vm371, %v2105, 0
      %v2145 = vsel %vm371, %v2106, 0
      %v2148 = vsel %vm371, %v2107, 0
      %v2151 = vsel %vm371, %v2108, 0
      %v2154 = vsel %vm371, %v2109, 0
      %v2157 = vsel %vm371, %v2110, 0
      %v2160 = vsel %vm375, %v2077, 0
      %v2163 = vsel %vm375, %v2078, 0
      %2165 = vmatprep.subr.bf16.mxu0 %v2163
      %2166 = vmatpush1.bf16.msra.mxu0 %v2160
      %2167 = vmatprep.subr.bf16.mxu0 0
      %2168 = vmatpush1.bf16.msra.mxu0 0
      %2169 = vmatprep.subr.bf16.mxu0 0
      %2170 = vmatpush1.bf16.msra.mxu0 0
      %2171 = vmatprep.subr.bf16.mxu0 0
      %2172 = vmatpush1.bf16.msra.mxu0 0
      %2173 = vmatprep.subr.bf16.mxu0 0
      %2174 = vmatpush1.bf16.msra.mxu0 0
      %2175 = vmatprep.subr.bf16.mxu0 0
      %2176 = vmatpush1.bf16.msra.mxu0 0
      %2177 = vmatprep.subr.bf16.mxu0 0
      %2178 = vmatpush1.bf16.msra.mxu0 0
      %2179 = vmatprep.subr.bf16.mxu0 0
      %2180 = vmatpush1.bf16.msra.mxu0 0
      %2181 = vmatprep.subr.bf16.mxu0 0
      %2182 = vmatpush1.bf16.msra.mxu0 0
      %2183 = vmatprep.subr.bf16.mxu0 0
      %2184 = vmatpush1.bf16.msra.mxu0 0
      %2185 = vmatprep.subr.bf16.mxu0 0
      %2186 = vmatpush1.bf16.msra.mxu0 0
      %2187 = vmatprep.subr.bf16.mxu0 0
      %2188 = vmatpush1.bf16.msra.mxu0 0
      %2189 = vmatprep.subr.bf16.mxu0 0
      %2190 = vmatpush1.bf16.msra.mxu0 0
      %2191 = vmatprep.subr.bf16.mxu0 0
      %2192 = vmatpush1.bf16.msra.mxu0 0
      %2193 = vmatprep.subr.bf16.mxu0 0
      %2194 = vmatpush1.bf16.msra.mxu0 0
      %2195 = vmatprep.subr.bf16.mxu0 0
      %2196 = vmatpush1.bf16.msra.mxu0 0
      %2197 = vmatprep.mubr.bf16.mxu0 0
      %2198 = vmatmul.mubr.bf16.gmra.mrb[0].mxu0 %v2112
      %v2199 = vpop.f32.mrb[0].mxu0
      %v2200 = vadd.f32 0.0, %v2199
      %v2201 = vpop.f32.mrb[0].mxu0
      %v2202 = vadd.f32 0.0, %v2201
      %v2203 = vpop.f32.mrb[0].mxu0
      %v2204 = vadd.f32 0.0, %v2203
      %v2205 = vpop.f32.mrb[0].mxu0
      %v2206 = vadd.f32 0.0, %v2205
      %2207 = vmatprep.mubr.bf16.mxu0 0
      %2208 = vmatmul.mubr.bf16.gmra.mrb[0].mxu0 %v2115
      %v2209 = vpop.f32.mrb[0].mxu0
      %v2210 = vadd.f32 0.0, %v2209
      %v2211 = vpop.f32.mrb[0].mxu0
      %v2212 = vadd.f32 0.0, %v2211
      %v2213 = vpop.f32.mrb[0].mxu0
      %v2214 = vadd.f32 0.0, %v2213
      %v2215 = vpop.f32.mrb[0].mxu0
      %v2216 = vadd.f32 0.0, %v2215
      %2217 = vmatprep.mubr.bf16.mxu0 0
      %2218 = vmatmul.mubr.bf16.gmra.mrb[0].mxu0 %v2118
      %v2219 = vpop.f32.mrb[0].mxu0
      %v2220 = vadd.f32 0.0, %v2219
      %v2221 = vpop.f32.mrb[0].mxu0
      %v2222 = vadd.f32 0.0, %v2221
      %v2223 = vpop.f32.mrb[0].mxu0
      %v2224 = vadd.f32 0.0, %v2223
      %v2225 = vpop.f32.mrb[0].mxu0
      %v2226 = vadd.f32 0.0, %v2225
      %2227 = vmatprep.mubr.bf16.mxu0 0
      %2228 = vmatmul.mubr.bf16.gmra.mrb[0].mxu0 %v2121
      %v2229 = vpop.f32.mrb[0].mxu0
      %v2230 = vadd.f32 0.0, %v2229
      %v2231 = vpop.f32.mrb[0].mxu0
      %v2232 = vadd.f32 0.0, %v2231
      %v2233 = vpop.f32.mrb[0].mxu0
      %v2234 = vadd.f32 0.0, %v2233
      %v2235 = vpop.f32.mrb[0].mxu0
      %v2236 = vadd.f32 0.0, %v2235
      %2237 = vmatprep.mubr.bf16.mxu0 0
      %2238 = vmatmul.mubr.bf16.gmra.mrb[0].mxu0 %v2124
      %v2239 = vpop.f32.mrb[0].mxu0
      %v2240 = vadd.f32 0.0, %v2239
      %v2241 = vpop.f32.mrb[0].mxu0
      %v2242 = vadd.f32 0.0, %v2241
      %v2243 = vpop.f32.mrb[0].mxu0
      %v2244 = vadd.f32 0.0, %v2243
      %v2245 = vpop.f32.mrb[0].mxu0
      %v2246 = vadd.f32 0.0, %v2245
      %2247 = vmatprep.mubr.bf16.mxu0 0
      %2248 = vmatmul.mubr.bf16.gmra.mrb[0].mxu0 %v2127
      %v2249 = vpop.f32.mrb[0].mxu0
      %v2250 = vadd.f32 0.0, %v2249
      %v2251 = vpop.f32.mrb[0].mxu0
      %v2252 = vadd.f32 0.0, %v2251
      %v2253 = vpop.f32.mrb[0].mxu0
      %v2254 = vadd.f32 0.0, %v2253
      %v2255 = vpop.f32.mrb[0].mxu0
      %v2256 = vadd.f32 0.0, %v2255
      %2257 = vmatprep.mubr.bf16.mxu0 0
      %2258 = vmatmul.mubr.bf16.gmra.mrb[0].mxu0 %v2130
      %v2259 = vpop.f32.mrb[0].mxu0
      %v2260 = vadd.f32 0.0, %v2259
      %v2261 = vpop.f32.mrb[0].mxu0
      %v2262 = vadd.f32 0.0, %v2261
      %v2263 = vpop.f32.mrb[0].mxu0
      %v2264 = vadd.f32 0.0, %v2263
      %v2265 = vpop.f32.mrb[0].mxu0
      %v2266 = vadd.f32 0.0, %v2265
      %2267 = vmatprep.mubr.bf16.mxu0 0
      %2268 = vmatmul.mubr.bf16.gmra.mrb[0].mxu0 %v2133
      %v2269 = vpop.f32.mrb[0].mxu0
      %v2270 = vadd.f32 0.0, %v2269
      %v2271 = vpop.f32.mrb[0].mxu0
      %v2272 = vadd.f32 0.0, %v2271
      %v2273 = vpop.f32.mrb[0].mxu0
      %v2274 = vadd.f32 0.0, %v2273
      %v2275 = vpop.f32.mrb[0].mxu0
      %v2276 = vadd.f32 0.0, %v2275
      %2277 = vmatprep.mubr.bf16.mxu0 0
      %2278 = vmatmul.mubr.bf16.gmra.mrb[0].mxu0 %v2136
      %v2279 = vpop.f32.mrb[0].mxu0
      %v2280 = vadd.f32 0.0, %v2279
      %v2281 = vpop.f32.mrb[0].mxu0
      %v2282 = vadd.f32 0.0, %v2281
      %v2283 = vpop.f32.mrb[0].mxu0
      %v2284 = vadd.f32 0.0, %v2283
      %v2285 = vpop.f32.mrb[0].mxu0
      %v2286 = vadd.f32 0.0, %v2285
      %2287 = vmatprep.mubr.bf16.mxu0 0
      %2288 = vmatmul.mubr.bf16.gmra.mrb[0].mxu0 %v2139
      %v2289 = vpop.f32.mrb[0].mxu0
      %v2290 = vadd.f32 0.0, %v2289
      %v2291 = vpop.f32.mrb[0].mxu0
      %v2292 = vadd.f32 0.0, %v2291
      %v2293 = vpop.f32.mrb[0].mxu0
      %v2294 = vadd.f32 0.0, %v2293
      %v2295 = vpop.f32.mrb[0].mxu0
      %v2296 = vadd.f32 0.0, %v2295
      %2297 = vmatprep.mubr.bf16.mxu0 0
      %2298 = vmatmul.mubr.bf16.gmra.mrb[0].mxu0 %v2142
      %v2299 = vpop.f32.mrb[0].mxu0
      %v2300 = vadd.f32 0.0, %v2299
      %v2301 = vpop.f32.mrb[0].mxu0
      %v2302 = vadd.f32 0.0, %v2301
      %v2303 = vpop.f32.mrb[0].mxu0
      %v2304 = vadd.f32 0.0, %v2303
      %v2305 = vpop.f32.mrb[0].mxu0
      %v2306 = vadd.f32 0.0, %v2305
      %2307 = vmatprep.mubr.bf16.mxu0 0
      %2308 = vmatmul.mubr.bf16.gmra.mrb[0].mxu0 %v2145
      %v2309 = vpop.f32.mrb[0].mxu0
      %v2310 = vadd.f32 0.0, %v2309
      %v2311 = vpop.f32.mrb[0].mxu0
      %v2312 = vadd.f32 0.0, %v2311
      %v2313 = vpop.f32.mrb[0].mxu0
      %v2314 = vadd.f32 0.0, %v2313
      %v2315 = vpop.f32.mrb[0].mxu0
      %v2316 = vadd.f32 0.0, %v2315
      %2317 = vmatprep.mubr.bf16.mxu0 0
      %2318 = vmatmul.mubr.bf16.gmra.mrb[0].mxu0 %v2148
      %v2319 = vpop.f32.mrb[0].mxu0
      %v2320 = vadd.f32 0.0, %v2319
      %v2321 = vpop.f32.mrb[0].mxu0
      %v2322 = vadd.f32 0.0, %v2321
      %v2323 = vpop.f32.mrb[0].mxu0
      %v2324 = vadd.f32 0.0, %v2323
      %v2325 = vpop.f32.mrb[0].mxu0
      %v2326 = vadd.f32 0.0, %v2325
      %2327 = vmatprep.mubr.bf16.mxu0 0
      %2328 = vmatmul.mubr.bf16.gmra.mrb[0].mxu0 %v2151
      %v2329 = vpop.f32.mrb[0].mxu0
      %v2330 = vadd.f32 0.0, %v2329
      %v2331 = vpop.f32.mrb[0].mxu0
      %v2332 = vadd.f32 0.0, %v2331
      %v2333 = vpop.f32.mrb[0].mxu0
      %v2334 = vadd.f32 0.0, %v2333
      %v2335 = vpop.f32.mrb[0].mxu0
      %v2336 = vadd.f32 0.0, %v2335
      %2337 = vmatprep.mubr.bf16.mxu0 0
      %2338 = vmatmul.mubr.bf16.gmra.mrb[0].mxu0 %v2154
      %v2339 = vpop.f32.mrb[0].mxu0
      %v2340 = vadd.f32 0.0, %v2339
      %v2341 = vpop.f32.mrb[0].mxu0
      %v2342 = vadd.f32 0.0, %v2341
      %v2343 = vpop.f32.mrb[0].mxu0
      %v2344 = vadd.f32 0.0, %v2343
      %v2345 = vpop.f32.mrb[0].mxu0
      %v2346 = vadd.f32 0.0, %v2345
      %2347 = vmatprep.mubr.bf16.mxu0 0
      %2348 = vmatmul.mubr.bf16.gmra.mrb[0].mxu0 %v2157
      %v2349 = vpop.f32.mrb[0].mxu0
      %v2350 = vadd.f32 0.0, %v2349
      %v2351 = vpop.f32.mrb[0].mxu0
      %v2352 = vadd.f32 0.0, %v2351
      %v2353 = vpop.f32.mrb[0].mxu0
      %v2354 = vadd.f32 0.0, %v2353
      %v2355 = vpop.f32.mrb[0].mxu0
      %v2356 = vadd.f32 0.0, %v2355
      %2357 = vdwg.mxu0
      %v2358 = vmul.f32 %v2200, 0.5
      %v2359 = vmul.f32 %v2202, 0.5
      %v2360 = vmul.f32 %v2204, 0.5
      %v2361 = vmul.f32 %v2206, 0.5
      %v2362 = vmul.f32 %v2210, 0.5
      %v2363 = vmul.f32 %v2212, 0.5
      %v2364 = vmul.f32 %v2214, 0.5
      %v2365 = vmul.f32 %v2216, 0.5
      %v2366 = vmul.f32 %v2220, 0.5
      %v2367 = vmul.f32 %v2222, 0.5
      %v2368 = vmul.f32 %v2224, 0.5
      %v2369 = vmul.f32 %v2226, 0.5
      %v2370 = vmul.f32 %v2230, 0.5
      %v2371 = vmul.f32 %v2232, 0.5
      %v2372 = vmul.f32 %v2234, 0.5
      %v2373 = vmul.f32 %v2236, 0.5
      %v2374 = vmul.f32 %v2240, 0.5
      %v2375 = vmul.f32 %v2242, 0.5
      %v2376 = vmul.f32 %v2244, 0.5
      %v2377 = vmul.f32 %v2246, 0.5
      %v2378 = vmul.f32 %v2250, 0.5
      %v2379 = vmul.f32 %v2252, 0.5
      %v2380 = vmul.f32 %v2254, 0.5
      %v2381 = vmul.f32 %v2256, 0.5
      %v2382 = vmul.f32 %v2260, 0.5
      %v2383 = vmul.f32 %v2262, 0.5
      %v2384 = vmul.f32 %v2264, 0.5
      %v2385 = vmul.f32 %v2266, 0.5
      %v2386 = vmul.f32 %v2270, 0.5
      %v2387 = vmul.f32 %v2272, 0.5
      %v2388 = vmul.f32 %v2274, 0.5
      %v2389 = vmul.f32 %v2276, 0.5
      %v2390 = vmul.f32 %v2280, 0.5
      %v2391 = vmul.f32 %v2282, 0.5
      %v2392 = vmul.f32 %v2284, 0.5
      %v2393 = vmul.f32 %v2286, 0.5
      %v2394 = vmul.f32 %v2290, 0.5
      %v2395 = vmul.f32 %v2292, 0.5
      %v2396 = vmul.f32 %v2294, 0.5
      %v2397 = vmul.f32 %v2296, 0.5
      %v2398 = vmul.f32 %v2300, 0.5
      %v2399 = vmul.f32 %v2302, 0.5
      %v2400 = vmul.f32 %v2304, 0.5
      %v2401 = vmul.f32 %v2306, 0.5
      %v2402 = vmul.f32 %v2310, 0.5
      %v2403 = vmul.f32 %v2312, 0.5
      %v2404 = vmul.f32 %v2314, 0.5
      %v2405 = vmul.f32 %v2316, 0.5
      %v2406 = vmul.f32 %v2320, 0.5
      %v2407 = vmul.f32 %v2322, 0.5
      %v2408 = vmul.f32 %v2324, 0.5
      %v2409 = vmul.f32 %v2326, 0.5
      %v2410 = vmul.f32 %v2330, 0.5
      %v2411 = vmul.f32 %v2332, 0.5
      %v2412 = vmul.f32 %v2334, 0.5
      %v2413 = vmul.f32 %v2336, 0.5
      %v2414 = vmul.f32 %v2340, 0.5
      %v2415 = vmul.f32 %v2342, 0.5
      %v2416 = vmul.f32 %v2344, 0.5
      %v2417 = vmul.f32 %v2346, 0.5
      %v2418 = vmul.f32 %v2350, 0.5
      %v2419 = vmul.f32 %v2352, 0.5
      %v2420 = vmul.f32 %v2354, 0.5
      %v2421 = vmul.f32 %v2356, 0.5
      %v2422 = vmul.f32 %v2358, %v2011
      %v2423 = vmul.f32 %v2359, %v2012
      %v2424 = vmul.f32 %v2360, %v2013
      %v2425 = vmul.f32 %v2361, %v2014
      %v2426 = vmul.f32 %v2362, %v2015
      %v2427 = vmul.f32 %v2363, %v2016
      %v2428 = vmul.f32 %v2364, %v2017
      %v2429 = vmul.f32 %v2365, %v2018
      %v2430 = vmul.f32 %v2366, %v2019
      %v2431 = vmul.f32 %v2367, %v2020
      %v2432 = vmul.f32 %v2368, %v2021
      %v2433 = vmul.f32 %v2369, %v2022
      %v2434 = vmul.f32 %v2370, %v2023
      %v2435 = vmul.f32 %v2371, %v2024
      %v2436 = vmul.f32 %v2372, %v2025
      %v2437 = vmul.f32 %v2373, %v2026
      %v2438 = vmul.f32 %v2374, %v2027
      %v2439 = vmul.f32 %v2375, %v2028
      %v2440 = vmul.f32 %v2376, %v2029
      %v2441 = vmul.f32 %v2377, %v2030
      %v2442 = vmul.f32 %v2378, %v2031
      %v2443 = vmul.f32 %v2379, %v2032
      %v2444 = vmul.f32 %v2380, %v2033
      %v2445 = vmul.f32 %v2381, %v2034
      %v2446 = vmul.f32 %v2382, %v2035
      %v2447 = vmul.f32 %v2383, %v2036
      %v2448 = vmul.f32 %v2384, %v2037
      %v2449 = vmul.f32 %v2385, %v2038
      %v2450 = vmul.f32 %v2386, %v2039
      %v2451 = vmul.f32 %v2387, %v2040
      %v2452 = vmul.f32 %v2388, %v2041
      %v2453 = vmul.f32 %v2389, %v2042
      %v2454 = vmul.f32 %v2390, %v2043
      %v2455 = vmul.f32 %v2391, %v2044
      %v2456 = vmul.f32 %v2392, %v2045
      %v2457 = vmul.f32 %v2393, %v2046
      %v2458 = vmul.f32 %v2394, %v2047
      %v2459 = vmul.f32 %v2395, %v2048
      %v2460 = vmul.f32 %v2396, %v2049
      %v2461 = vmul.f32 %v2397, %v2050
      %v2462 = vmul.f32 %v2398, %v2051
      %v2463 = vmul.f32 %v2399, %v2052
      %v2464 = vmul.f32 %v2400, %v2053
      %v2465 = vmul.f32 %v2401, %v2054
      %v2466 = vmul.f32 %v2402, %v2055
      %v2467 = vmul.f32 %v2403, %v2056
      %v2468 = vmul.f32 %v2404, %v2057
      %v2469 = vmul.f32 %v2405, %v2058
      %v2470 = vmul.f32 %v2406, %v2059
      %v2471 = vmul.f32 %v2407, %v2060
      %v2472 = vmul.f32 %v2408, %v2061
      %v2473 = vmul.f32 %v2409, %v2062
      %v2474 = vmul.f32 %v2410, %v2063
      %v2475 = vmul.f32 %v2411, %v2064
      %v2476 = vmul.f32 %v2412, %v2065
      %v2477 = vmul.f32 %v2413, %v2066
      %v2478 = vmul.f32 %v2414, %v2067
      %v2479 = vmul.f32 %v2415, %v2068
      %v2480 = vmul.f32 %v2416, %v2069
      %v2481 = vmul.f32 %v2417, %v2070
      %v2482 = vmul.f32 %v2418, %v2071
      %v2483 = vmul.f32 %v2419, %v2072
      %v2484 = vmul.f32 %v2420, %v2073
      %v2485 = vmul.f32 %v2421, %v2074
      %v2486 = vadd.f32 %v2422, %v2423
      %2487 = vadd.xlane.f32.xlu0 %v2486
      %v2488 = vpop.xlane.xlu0 %2487
      %v2489 = vadd.f32 %v2424, %v2425
      %2490 = vadd.xlane.f32.xlu0 %v2489
      %v2491 = vpop.xlane.xlu0 %2490
      %v2492 = vadd.f32 %v2426, %v2427
      %2493 = vadd.xlane.f32.xlu0 %v2492
      %v2494 = vpop.xlane.xlu0 %2493
      %v2495 = vadd.f32 %v2428, %v2429
      %2496 = vadd.xlane.f32.xlu0 %v2495
      %v2497 = vpop.xlane.xlu0 %2496
      %v2498 = vadd.f32 %v2430, %v2431
      %2499 = vadd.xlane.f32.xlu0 %v2498
      %v2500 = vpop.xlane.xlu0 %2499
      %v2501 = vadd.f32 %v2432, %v2433
      %2502 = vadd.xlane.f32.xlu0 %v2501
      %v2503 = vpop.xlane.xlu0 %2502
      %v2504 = vadd.f32 %v2434, %v2435
      %2505 = vadd.xlane.f32.xlu0 %v2504
      %v2506 = vpop.xlane.xlu0 %2505
      %v2507 = vadd.f32 %v2436, %v2437
      %2508 = vadd.xlane.f32.xlu0 %v2507
      %v2509 = vpop.xlane.xlu0 %2508
      %v2510 = vadd.f32 %v2438, %v2439
      %2511 = vadd.xlane.f32.xlu0 %v2510
      %v2512 = vpop.xlane.xlu0 %2511
      %v2513 = vadd.f32 %v2440, %v2441
      %2514 = vadd.xlane.f32.xlu0 %v2513
      %v2515 = vpop.xlane.xlu0 %2514
      %v2516 = vadd.f32 %v2442, %v2443
      %2517 = vadd.xlane.f32.xlu0 %v2516
      %v2518 = vpop.xlane.xlu0 %2517
      %v2519 = vadd.f32 %v2444, %v2445
      %2520 = vadd.xlane.f32.xlu0 %v2519
      %v2521 = vpop.xlane.xlu0 %2520
      %v2522 = vadd.f32 %v2446, %v2447
      %2523 = vadd.xlane.f32.xlu0 %v2522
      %v2524 = vpop.xlane.xlu0 %2523
      %v2525 = vadd.f32 %v2448, %v2449
      %2526 = vadd.xlane.f32.xlu0 %v2525
      %v2527 = vpop.xlane.xlu0 %2526
      %v2528 = vadd.f32 %v2450, %v2451
      %2529 = vadd.xlane.f32.xlu0 %v2528
      %v2530 = vpop.xlane.xlu0 %2529
      %v2531 = vadd.f32 %v2452, %v2453
      %2532 = vadd.xlane.f32.xlu0 %v2531
      %v2533 = vpop.xlane.xlu0 %2532
      %v2534 = vadd.f32 %v2454, %v2455
      %2535 = vadd.xlane.f32.xlu0 %v2534
      %v2536 = vpop.xlane.xlu0 %2535
      %v2537 = vadd.f32 %v2456, %v2457
      %2538 = vadd.xlane.f32.xlu0 %v2537
      %v2539 = vpop.xlane.xlu0 %2538
      %v2540 = vadd.f32 %v2458, %v2459
      %2541 = vadd.xlane.f32.xlu0 %v2540
      %v2542 = vpop.xlane.xlu0 %2541
      %v2543 = vadd.f32 %v2460, %v2461
      %2544 = vadd.xlane.f32.xlu0 %v2543
      %v2545 = vpop.xlane.xlu0 %2544
      %v2546 = vadd.f32 %v2462, %v2463
      %2547 = vadd.xlane.f32.xlu0 %v2546
      %v2548 = vpop.xlane.xlu0 %2547
      %v2549 = vadd.f32 %v2464, %v2465
      %2550 = vadd.xlane.f32.xlu0 %v2549
      %v2551 = vpop.xlane.xlu0 %2550
      %v2552 = vadd.f32 %v2466, %v2467
      %2553 = vadd.xlane.f32.xlu0 %v2552
      %v2554 = vpop.xlane.xlu0 %2553
      %v2555 = vadd.f32 %v2468, %v2469
      %2556 = vadd.xlane.f32.xlu0 %v2555
      %v2557 = vpop.xlane.xlu0 %2556
      %v2558 = vadd.f32 %v2470, %v2471
      %2559 = vadd.xlane.f32.xlu0 %v2558
      %v2560 = vpop.xlane.xlu0 %2559
      %v2561 = vadd.f32 %v2472, %v2473
      %2562 = vadd.xlane.f32.xlu0 %v2561
      %v2563 = vpop.xlane.xlu0 %2562
      %v2564 = vadd.f32 %v2474, %v2475
      %2565 = vadd.xlane.f32.xlu0 %v2564
      %v2566 = vpop.xlane.xlu0 %2565
      %v2567 = vadd.f32 %v2476, %v2477
      %2568 = vadd.xlane.f32.xlu0 %v2567
      %v2569 = vpop.xlane.xlu0 %2568
      %v2570 = vadd.f32 %v2478, %v2479
      %2571 = vadd.xlane.f32.xlu0 %v2570
      %v2572 = vpop.xlane.xlu0 %2571
      %v2573 = vadd.f32 %v2480, %v2481
      %2574 = vadd.xlane.f32.xlu0 %v2573
      %v2575 = vpop.xlane.xlu0 %2574
      %v2576 = vadd.f32 %v2482, %v2483
      %2577 = vadd.xlane.f32.xlu0 %v2576
      %v2578 = vpop.xlane.xlu0 %2577
      %v2579 = vadd.f32 %v2484, %v2485
      %2580 = vadd.xlane.f32.xlu0 %v2579
      %v2581 = vpop.xlane.xlu0 %2580
      %2582 = vrot.lane.b32.xlu0 %v1365, 126
      %v2583 = vpop.permute.xlu0 %2582
      %2584 = vrot.lane.b32.xlu0 %v1370, 126
      %v2585 = vpop.permute.xlu0 %2584
      %2586 = vrot.lane.b32.xlu0 %v1375, 126
      %v2587 = vpop.permute.xlu0 %2586
      %2588 = vrot.lane.b32.xlu0 %v1380, 126
      %v2589 = vpop.permute.xlu0 %2588
      %2590 = vrot.lane.b32.xlu0 %v1385, 126
      %v2591 = vpop.permute.xlu0 %2590
      %2592 = vrot.lane.b32.xlu0 %v1390, 126
      %v2593 = vpop.permute.xlu0 %2592
      %2594 = vrot.lane.b32.xlu0 %v1395, 126
      %v2595 = vpop.permute.xlu0 %2594
      %2596 = vrot.lane.b32.xlu0 %v1400, 126
      %v2597 = vpop.permute.xlu0 %2596
      %2598 = vrot.lane.b32.xlu0 %v1405, 126
      %v2599 = vpop.permute.xlu0 %2598
      %2600 = vrot.lane.b32.xlu0 %v1410, 126
      %v2601 = vpop.permute.xlu0 %2600
      %2602 = vrot.lane.b32.xlu0 %v1415, 126
      %v2603 = vpop.permute.xlu0 %2602
      %2604 = vrot.lane.b32.xlu0 %v1420, 126
      %v2605 = vpop.permute.xlu0 %2604
      %2606 = vrot.lane.b32.xlu0 %v1425, 126
      %v2607 = vpop.permute.xlu0 %2606
      %2608 = vrot.lane.b32.xlu0 %v1430, 126
      %v2609 = vpop.permute.xlu0 %2608
      %2610 = vrot.lane.b32.xlu0 %v1435, 126
      %v2611 = vpop.permute.xlu0 %2610
      %2612 = vrot.lane.b32.xlu0 %v1440, 126
      %v2613 = vpop.permute.xlu0 %2612
      %2614 = vrot.lane.b32.xlu0 %v1445, 126
      %v2615 = vpop.permute.xlu0 %2614
      %2616 = vrot.lane.b32.xlu0 %v1450, 126
      %v2617 = vpop.permute.xlu0 %2616
      %2618 = vrot.lane.b32.xlu0 %v1455, 126
      %v2619 = vpop.permute.xlu0 %2618
      %2620 = vrot.lane.b32.xlu0 %v1460, 126
      %v2621 = vpop.permute.xlu0 %2620
      %2622 = vrot.lane.b32.xlu0 %v1465, 126
      %v2623 = vpop.permute.xlu0 %2622
      %2624 = vrot.lane.b32.xlu0 %v1470, 126
      %v2625 = vpop.permute.xlu0 %2624
      %2626 = vrot.lane.b32.xlu0 %v1475, 126
      %v2627 = vpop.permute.xlu0 %2626
      %2628 = vrot.lane.b32.xlu0 %v1480, 126
      %v2629 = vpop.permute.xlu0 %2628
      %2630 = vrot.lane.b32.xlu0 %v1485, 126
      %v2631 = vpop.permute.xlu0 %2630
      %2632 = vrot.lane.b32.xlu0 %v1490, 126
      %v2633 = vpop.permute.xlu0 %2632
      %2634 = vrot.lane.b32.xlu0 %v1495, 126
      %v2635 = vpop.permute.xlu0 %2634
      %2636 = vrot.lane.b32.xlu0 %v1500, 126
      %v2637 = vpop.permute.xlu0 %2636
      %2638 = vrot.lane.b32.xlu0 %v1505, 126
      %v2639 = vpop.permute.xlu0 %2638
      %2640 = vrot.lane.b32.xlu0 %v1510, 126
      %v2641 = vpop.permute.xlu0 %2640
      %2642 = vrot.lane.b32.xlu0 %v1515, 126
      %v2643 = vpop.permute.xlu0 %2642
      %2644 = vrot.lane.b32.xlu0 %v1520, 126
      %v2645 = vpop.permute.xlu0 %2644
      %v2678 = vadd.f32 %v1365, %v2583
      %v2679 = vadd.f32 %v1370, %v2585
      %v2680 = vadd.f32 %v1375, %v2587
      %v2681 = vadd.f32 %v1380, %v2589
      %v2682 = vadd.f32 %v1385, %v2591
      %v2683 = vadd.f32 %v1390, %v2593
      %v2684 = vadd.f32 %v1395, %v2595
      %v2685 = vadd.f32 %v1400, %v2597
      %v2686 = vadd.f32 %v1405, %v2599
      %v2687 = vadd.f32 %v1410, %v2601
      %v2688 = vadd.f32 %v1415, %v2603
      %v2689 = vadd.f32 %v1420, %v2605
      %v2690 = vadd.f32 %v1425, %v2607
      %v2691 = vadd.f32 %v1430, %v2609
      %v2692 = vadd.f32 %v1435, %v2611
      %v2693 = vadd.f32 %v1440, %v2613
      %v2694 = vadd.f32 %v1445, %v2615
      %v2695 = vadd.f32 %v1450, %v2617
      %v2696 = vadd.f32 %v1455, %v2619
      %v2697 = vadd.f32 %v1460, %v2621
      %v2698 = vadd.f32 %v1465, %v2623
      %v2699 = vadd.f32 %v1470, %v2625
      %v2700 = vadd.f32 %v1475, %v2627
      %v2701 = vadd.f32 %v1480, %v2629
      %v2702 = vadd.f32 %v1485, %v2631
      %v2703 = vadd.f32 %v1490, %v2633
      %v2704 = vadd.f32 %v1495, %v2635
      %v2705 = vadd.f32 %v1500, %v2637
      %v2706 = vadd.f32 %v1505, %v2639
      %v2707 = vadd.f32 %v1510, %v2641
      %v2708 = vadd.f32 %v1515, %v2643
      %v2709 = vadd.f32 %v1520, %v2645
      %v2710 = vand.u32 2147483647, %v2488
      %v2711 = vand.u32 2147483647, %v2491
      %v2712 = vand.u32 2147483647, %v2494
      %v2713 = vand.u32 2147483647, %v2497
      %v2714 = vand.u32 2147483647, %v2500
      %v2715 = vand.u32 2147483647, %v2503
      %v2716 = vand.u32 2147483647, %v2506
      %v2717 = vand.u32 2147483647, %v2509
      %v2718 = vand.u32 2147483647, %v2512
      %v2719 = vand.u32 2147483647, %v2515
      %v2720 = vand.u32 2147483647, %v2518
      %v2721 = vand.u32 2147483647, %v2521
      %v2722 = vand.u32 2147483647, %v2524
      %v2723 = vand.u32 2147483647, %v2527
      %v2724 = vand.u32 2147483647, %v2530
      %v2725 = vand.u32 2147483647, %v2533
      %v2726 = vand.u32 2147483647, %v2536
      %v2727 = vand.u32 2147483647, %v2539
      %v2728 = vand.u32 2147483647, %v2542
      %v2729 = vand.u32 2147483647, %v2545
      %v2730 = vand.u32 2147483647, %v2548
      %v2731 = vand.u32 2147483647, %v2551
      %v2732 = vand.u32 2147483647, %v2554
      %v2733 = vand.u32 2147483647, %v2557
      %v2734 = vand.u32 2147483647, %v2560
      %v2735 = vand.u32 2147483647, %v2563
      %v2736 = vand.u32 2147483647, %v2566
      %v2737 = vand.u32 2147483647, %v2569
      %v2738 = vand.u32 2147483647, %v2572
      %v2739 = vand.u32 2147483647, %v2575
      %v2740 = vand.u32 2147483647, %v2578
      %v2741 = vand.u32 2147483647, %v2581
      %v2742 = vsub.f32 0.0, %v2678
      %v2743 = vsub.f32 0.0, %v2679
      %v2744 = vsub.f32 0.0, %v2680
      %v2745 = vsub.f32 0.0, %v2681
      %v2746 = vsub.f32 0.0, %v2682
      %v2747 = vsub.f32 0.0, %v2683
      %v2748 = vsub.f32 0.0, %v2684
      %v2749 = vsub.f32 0.0, %v2685
      %v2750 = vsub.f32 0.0, %v2686
      %v2751 = vsub.f32 0.0, %v2687
      %v2752 = vsub.f32 0.0, %v2688
      %v2753 = vsub.f32 0.0, %v2689
      %v2754 = vsub.f32 0.0, %v2690
      %v2755 = vsub.f32 0.0, %v2691
      %v2756 = vsub.f32 0.0, %v2692
      %v2757 = vsub.f32 0.0, %v2693
      %v2758 = vsub.f32 0.0, %v2694
      %v2759 = vsub.f32 0.0, %v2695
      %v2760 = vsub.f32 0.0, %v2696
      %v2761 = vsub.f32 0.0, %v2697
      %v2762 = vsub.f32 0.0, %v2698
      %v2763 = vsub.f32 0.0, %v2699
      %v2764 = vsub.f32 0.0, %v2700
      %v2765 = vsub.f32 0.0, %v2701
      %v2766 = vsub.f32 0.0, %v2702
      %v2767 = vsub.f32 0.0, %v2703
      %v2768 = vsub.f32 0.0, %v2704
      %v2769 = vsub.f32 0.0, %v2705
      %v2770 = vsub.f32 0.0, %v2706
      %v2771 = vsub.f32 0.0, %v2707
      %v2772 = vsub.f32 0.0, %v2708
      %v2773 = vsub.f32 0.0, %v2709
      %v2774 = vmin.f32 %v2742, 60.0
      %v2775 = vmin.f32 %v2743, 60.0
      %v2776 = vmin.f32 %v2744, 60.0
      %v2777 = vmin.f32 %v2745, 60.0
      %v2778 = vmin.f32 %v2746, 60.0
      %v2779 = vmin.f32 %v2747, 60.0
      %v2780 = vmin.f32 %v2748, 60.0
      %v2781 = vmin.f32 %v2749, 60.0
      %v2782 = vmin.f32 %v2750, 60.0
      %v2783 = vmin.f32 %v2751, 60.0
      %v2784 = vmin.f32 %v2752, 60.0
      %v2785 = vmin.f32 %v2753, 60.0
      %v2786 = vmin.f32 %v2754, 60.0
      %v2787 = vmin.f32 %v2755, 60.0
      %v2788 = vmin.f32 %v2756, 60.0
      %v2789 = vmin.f32 %v2757, 60.0
      %v2790 = vmin.f32 %v2758, 60.0
      %v2791 = vmin.f32 %v2759, 60.0
      %v2792 = vmin.f32 %v2760, 60.0
      %v2793 = vmin.f32 %v2761, 60.0
      %v2794 = vmin.f32 %v2762, 60.0
      %v2795 = vmin.f32 %v2763, 60.0
      %v2796 = vmin.f32 %v2764, 60.0
      %v2797 = vmin.f32 %v2765, 60.0
      %v2798 = vmin.f32 %v2766, 60.0
      %v2799 = vmin.f32 %v2767, 60.0
      %v2800 = vmin.f32 %v2768, 60.0
      %v2801 = vmin.f32 %v2769, 60.0
      %v2802 = vmin.f32 %v2770, 60.0
      %v2803 = vmin.f32 %v2771, 60.0
      %v2804 = vmin.f32 %v2772, 60.0
      %v2805 = vmin.f32 %v2773, 60.0
      %v2806 = vmul.f32 %v2774, 1.442695
      %v2807 = vpow.pop %v2806
      %v2808 = vmul.f32 %v2775, 1.442695
      %v2809 = vpow.pop %v2808
      %v2810 = vmul.f32 %v2776, 1.442695
      %v2811 = vpow.pop %v2810
      %v2812 = vmul.f32 %v2777, 1.442695
      %v2813 = vpow.pop %v2812
      %v2814 = vmul.f32 %v2778, 1.442695
      %v2815 = vpow.pop %v2814
      %v2816 = vmul.f32 %v2779, 1.442695
      %v2817 = vpow.pop %v2816
      %v2818 = vmul.f32 %v2780, 1.442695
      %v2819 = vpow.pop %v2818
      %v2820 = vmul.f32 %v2781, 1.442695
      %v2821 = vpow.pop %v2820
      %v2822 = vmul.f32 %v2782, 1.442695
      %v2823 = vpow.pop %v2822
      %v2824 = vmul.f32 %v2783, 1.442695
      %v2825 = vpow.pop %v2824
      %v2826 = vmul.f32 %v2784, 1.442695
      %v2827 = vpow.pop %v2826
      %v2828 = vmul.f32 %v2785, 1.442695
      %v2829 = vpow.pop %v2828
      %v2830 = vmul.f32 %v2786, 1.442695
      %v2831 = vpow.pop %v2830
      %v2832 = vmul.f32 %v2787, 1.442695
      %v2833 = vpow.pop %v2832
      %v2834 = vmul.f32 %v2788, 1.442695
      %v2835 = vpow.pop %v2834
      %v2836 = vmul.f32 %v2789, 1.442695
      %v2837 = vpow.pop %v2836
      %v2838 = vmul.f32 %v2790, 1.442695
      %v2839 = vpow.pop %v2838
      %v2840 = vmul.f32 %v2791, 1.442695
      %v2841 = vpow.pop %v2840
      %v2842 = vmul.f32 %v2792, 1.442695
      %v2843 = vpow.pop %v2842
      %v2844 = vmul.f32 %v2793, 1.442695
      %v2845 = vpow.pop %v2844
      %v2846 = vmul.f32 %v2794, 1.442695
      %v2847 = vpow.pop %v2846
      %v2848 = vmul.f32 %v2795, 1.442695
      %v2849 = vpow.pop %v2848
      %v2850 = vmul.f32 %v2796, 1.442695
      %v2851 = vpow.pop %v2850
      %v2852 = vmul.f32 %v2797, 1.442695
      %v2853 = vpow.pop %v2852
      %v2854 = vmul.f32 %v2798, 1.442695
      %v2855 = vpow.pop %v2854
      %v2856 = vmul.f32 %v2799, 1.442695
      %v2857 = vpow.pop %v2856
      %v2858 = vmul.f32 %v2800, 1.442695
      %v2859 = vpow.pop %v2858
      %v2860 = vmul.f32 %v2801, 1.442695
      %v2861 = vpow.pop %v2860
      %v2862 = vmul.f32 %v2802, 1.442695
      %v2863 = vpow.pop %v2862
      %v2864 = vmul.f32 %v2803, 1.442695
      %v2865 = vpow.pop %v2864
      %v2866 = vmul.f32 %v2804, 1.442695
      %v2867 = vpow.pop %v2866
      %v2868 = vmul.f32 %v2805, 1.442695
      %v2869 = vpow.pop %v2868
      %v2870 = vmax.f32 %v2710, %v2807
      %v2871 = vmax.f32 %v2711, %v2809
      %v2872 = vmax.f32 %v2712, %v2811
      %v2873 = vmax.f32 %v2713, %v2813
      %v2874 = vmax.f32 %v2714, %v2815
      %v2875 = vmax.f32 %v2715, %v2817
      %v2876 = vmax.f32 %v2716, %v2819
      %v2877 = vmax.f32 %v2717, %v2821
      %v2878 = vmax.f32 %v2718, %v2823
      %v2879 = vmax.f32 %v2719, %v2825
      %v2880 = vmax.f32 %v2720, %v2827
      %v2881 = vmax.f32 %v2721, %v2829
      %v2882 = vmax.f32 %v2722, %v2831
      %v2883 = vmax.f32 %v2723, %v2833
      %v2884 = vmax.f32 %v2724, %v2835
      %v2885 = vmax.f32 %v2725, %v2837
      %v2886 = vmax.f32 %v2726, %v2839
      %v2887 = vmax.f32 %v2727, %v2841
      %v2888 = vmax.f32 %v2728, %v2843
      %v2889 = vmax.f32 %v2729, %v2845
      %v2890 = vmax.f32 %v2730, %v2847
      %v2891 = vmax.f32 %v2731, %v2849
      %v2892 = vmax.f32 %v2732, %v2851
      %v2893 = vmax.f32 %v2733, %v2853
      %v2894 = vmax.f32 %v2734, %v2855
      %v2895 = vmax.f32 %v2735, %v2857
      %v2896 = vmax.f32 %v2736, %v2859
      %v2897 = vmax.f32 %v2737, %v2861
      %v2898 = vmax.f32 %v2738, %v2863
      %v2899 = vmax.f32 %v2739, %v2865
      %v2900 = vmax.f32 %v2740, %v2867
      %v2901 = vmax.f32 %v2741, %v2869
      %v2902 = vadd.f32 %v2870, 1e-06
      %v2903 = vadd.f32 %v2871, 1e-06
      %v2904 = vadd.f32 %v2872, 1e-06
      %v2905 = vadd.f32 %v2873, 1e-06
      %v2906 = vadd.f32 %v2874, 1e-06
      %v2907 = vadd.f32 %v2875, 1e-06
      %v2908 = vadd.f32 %v2876, 1e-06
      %v2909 = vadd.f32 %v2877, 1e-06
      %v2910 = vadd.f32 %v2878, 1e-06
      %v2911 = vadd.f32 %v2879, 1e-06
      %v2912 = vadd.f32 %v2880, 1e-06
      %v2913 = vadd.f32 %v2881, 1e-06
      %v2914 = vadd.f32 %v2882, 1e-06
      %v2915 = vadd.f32 %v2883, 1e-06
      %v2916 = vadd.f32 %v2884, 1e-06
      %v2917 = vadd.f32 %v2885, 1e-06
      %v2918 = vadd.f32 %v2886, 1e-06
      %v2919 = vadd.f32 %v2887, 1e-06
      %v2920 = vadd.f32 %v2888, 1e-06
      %v2921 = vadd.f32 %v2889, 1e-06
      %v2922 = vadd.f32 %v2890, 1e-06
      %v2923 = vadd.f32 %v2891, 1e-06
      %v2924 = vadd.f32 %v2892, 1e-06
      %v2925 = vadd.f32 %v2893, 1e-06
      %v2926 = vadd.f32 %v2894, 1e-06
      %v2927 = vadd.f32 %v2895, 1e-06
      %v2928 = vadd.f32 %v2896, 1e-06
      %v2929 = vadd.f32 %v2897, 1e-06
      %v2930 = vadd.f32 %v2898, 1e-06
      %v2931 = vadd.f32 %v2899, 1e-06
      %v2932 = vadd.f32 %v2900, 1e-06
      %v2933 = vadd.f32 %v2901, 1e-06
      %v2934 = vrcp.pop %v2902
      %v2935 = vrcp.pop %v2903
      %v2936 = vrcp.pop %v2904
      %v2937 = vrcp.pop %v2905
      %v2938 = vrcp.pop %v2906
      %v2939 = vrcp.pop %v2907
      %v2940 = vrcp.pop %v2908
      %v2941 = vrcp.pop %v2909
      %v2942 = vrcp.pop %v2910
      %v2943 = vrcp.pop %v2911
      %v2944 = vrcp.pop %v2912
      %v2945 = vrcp.pop %v2913
      %v2946 = vrcp.pop %v2914
      %v2947 = vrcp.pop %v2915
      %v2948 = vrcp.pop %v2916
      %v2949 = vrcp.pop %v2917
      %v2950 = vrcp.pop %v2918
      %v2951 = vrcp.pop %v2919
      %v2952 = vrcp.pop %v2920
      %v2953 = vrcp.pop %v2921
      %v2954 = vrcp.pop %v2922
      %v2955 = vrcp.pop %v2923
      %v2956 = vrcp.pop %v2924
      %v2957 = vrcp.pop %v2925
      %v2958 = vrcp.pop %v2926
      %v2959 = vrcp.pop %v2927
      %v2960 = vrcp.pop %v2928
      %v2961 = vrcp.pop %v2929
      %v2962 = vrcp.pop %v2930
      %v2963 = vrcp.pop %v2931
      %v2964 = vrcp.pop %v2932
      %v2965 = vrcp.pop %v2933
      %2967 = vset.pattern.permute.xlu0 0
      %2968 = vperm.xlu0 %2967, %v2934
      %v2969 = vpop.permute.xlu0 %2968
      %2972 = vset.pattern.permute.xlu0 0
      %2973 = vperm.xlu0 %2972, %v2935
      %v2974 = vpop.permute.xlu0 %2973
      %2977 = vset.pattern.permute.xlu0 0
      %2978 = vperm.xlu0 %2977, %v2936
      %v2979 = vpop.permute.xlu0 %2978
      %2982 = vset.pattern.permute.xlu0 0
      %2983 = vperm.xlu0 %2982, %v2937
      %v2984 = vpop.permute.xlu0 %2983
      %2987 = vset.pattern.permute.xlu0 0
      %2988 = vperm.xlu0 %2987, %v2938
      %v2989 = vpop.permute.xlu0 %2988
      %2992 = vset.pattern.permute.xlu0 0
      %2993 = vperm.xlu0 %2992, %v2939
      %v2994 = vpop.permute.xlu0 %2993
      %2997 = vset.pattern.permute.xlu0 0
      %2998 = vperm.xlu0 %2997, %v2940
      %v2999 = vpop.permute.xlu0 %2998
      %3002 = vset.pattern.permute.xlu0 0
      %3003 = vperm.xlu0 %3002, %v2941
      %v3004 = vpop.permute.xlu0 %3003
      %3007 = vset.pattern.permute.xlu0 0
      %3008 = vperm.xlu0 %3007, %v2942
      %v3009 = vpop.permute.xlu0 %3008
      %3012 = vset.pattern.permute.xlu0 0
      %3013 = vperm.xlu0 %3012, %v2943
      %v3014 = vpop.permute.xlu0 %3013
      %3017 = vset.pattern.permute.xlu0 0
      %3018 = vperm.xlu0 %3017, %v2944
      %v3019 = vpop.permute.xlu0 %3018
      %3022 = vset.pattern.permute.xlu0 0
      %3023 = vperm.xlu0 %3022, %v2945
      %v3024 = vpop.permute.xlu0 %3023
      %3027 = vset.pattern.permute.xlu0 0
      %3028 = vperm.xlu0 %3027, %v2946
      %v3029 = vpop.permute.xlu0 %3028
      %3032 = vset.pattern.permute.xlu0 0
      %3033 = vperm.xlu0 %3032, %v2947
      %v3034 = vpop.permute.xlu0 %3033
      %3037 = vset.pattern.permute.xlu0 0
      %3038 = vperm.xlu0 %3037, %v2948
      %v3039 = vpop.permute.xlu0 %3038
      %3042 = vset.pattern.permute.xlu0 0
      %3043 = vperm.xlu0 %3042, %v2949
      %v3044 = vpop.permute.xlu0 %3043
      %3047 = vset.pattern.permute.xlu0 0
      %3048 = vperm.xlu0 %3047, %v2950
      %v3049 = vpop.permute.xlu0 %3048
      %3052 = vset.pattern.permute.xlu0 0
      %3053 = vperm.xlu0 %3052, %v2951
      %v3054 = vpop.permute.xlu0 %3053
      %3057 = vset.pattern.permute.xlu0 0
      %3058 = vperm.xlu0 %3057, %v2952
      %v3059 = vpop.permute.xlu0 %3058
      %3062 = vset.pattern.permute.xlu0 0
      %3063 = vperm.xlu0 %3062, %v2953
      %v3064 = vpop.permute.xlu0 %3063
      %3067 = vset.pattern.permute.xlu0 0
      %3068 = vperm.xlu0 %3067, %v2954
      %v3069 = vpop.permute.xlu0 %3068
      %3072 = vset.pattern.permute.xlu0 0
      %3073 = vperm.xlu0 %3072, %v2955
      %v3074 = vpop.permute.xlu0 %3073
      %3077 = vset.pattern.permute.xlu0 0
      %3078 = vperm.xlu0 %3077, %v2956
      %v3079 = vpop.permute.xlu0 %3078
      %3082 = vset.pattern.permute.xlu0 0
      %3083 = vperm.xlu0 %3082, %v2957
      %v3084 = vpop.permute.xlu0 %3083
      %3087 = vset.pattern.permute.xlu0 0
      %3088 = vperm.xlu0 %3087, %v2958
      %v3089 = vpop.permute.xlu0 %3088
      %3092 = vset.pattern.permute.xlu0 0
      %3093 = vperm.xlu0 %3092, %v2959
      %v3094 = vpop.permute.xlu0 %3093
      %3097 = vset.pattern.permute.xlu0 0
      %3098 = vperm.xlu0 %3097, %v2960
      %v3099 = vpop.permute.xlu0 %3098
      %3102 = vset.pattern.permute.xlu0 0
      %3103 = vperm.xlu0 %3102, %v2961
      %v3104 = vpop.permute.xlu0 %3103
      %3107 = vset.pattern.permute.xlu0 0
      %3108 = vperm.xlu0 %3107, %v2962
      %v3109 = vpop.permute.xlu0 %3108
      %3112 = vset.pattern.permute.xlu0 0
      %3113 = vperm.xlu0 %3112, %v2963
      %v3114 = vpop.permute.xlu0 %3113
      %3117 = vset.pattern.permute.xlu0 0
      %3118 = vperm.xlu0 %3117, %v2964
      %v3119 = vpop.permute.xlu0 %3118
      %3122 = vset.pattern.permute.xlu0 0
      %3123 = vperm.xlu0 %3122, %v2965
      %v3124 = vpop.permute.xlu0 %3123
      %v3126 = vmul.f32 %v2422, %v2969
      %v3127 = vmul.f32 %v2423, %v2969
      %v3128 = vmul.f32 %v2424, %v2974
      %v3129 = vmul.f32 %v2425, %v2974
      %v3130 = vmul.f32 %v2426, %v2979
      %v3131 = vmul.f32 %v2427, %v2979
      %v3132 = vmul.f32 %v2428, %v2984
      %v3133 = vmul.f32 %v2429, %v2984
      %v3134 = vmul.f32 %v2430, %v2989
      %v3135 = vmul.f32 %v2431, %v2989
      %v3136 = vmul.f32 %v2432, %v2994
      %v3137 = vmul.f32 %v2433, %v2994
      %v3138 = vmul.f32 %v2434, %v2999
      %v3139 = vmul.f32 %v2435, %v2999
      %v3140 = vmul.f32 %v2436, %v3004
      %v3141 = vmul.f32 %v2437, %v3004
      %v3142 = vmul.f32 %v2438, %v3009
      %v3143 = vmul.f32 %v2439, %v3009
      %v3144 = vmul.f32 %v2440, %v3014
      %v3145 = vmul.f32 %v2441, %v3014
      %v3146 = vmul.f32 %v2442, %v3019
      %v3147 = vmul.f32 %v2443, %v3019
      %v3148 = vmul.f32 %v2444, %v3024
      %v3149 = vmul.f32 %v2445, %v3024
      %v3150 = vmul.f32 %v2446, %v3029
      %v3151 = vmul.f32 %v2447, %v3029
      %v3152 = vmul.f32 %v2448, %v3034
      %v3153 = vmul.f32 %v2449, %v3034
      %v3154 = vmul.f32 %v2450, %v3039
      %v3155 = vmul.f32 %v2451, %v3039
      %v3156 = vmul.f32 %v2452, %v3044
      %v3157 = vmul.f32 %v2453, %v3044
      %v3158 = vmul.f32 %v2454, %v3049
      %v3159 = vmul.f32 %v2455, %v3049
      %v3160 = vmul.f32 %v2456, %v3054
      %v3161 = vmul.f32 %v2457, %v3054
      %v3162 = vmul.f32 %v2458, %v3059
      %v3163 = vmul.f32 %v2459, %v3059
      %v3164 = vmul.f32 %v2460, %v3064
      %v3165 = vmul.f32 %v2461, %v3064
      %v3166 = vmul.f32 %v2462, %v3069
      %v3167 = vmul.f32 %v2463, %v3069
      %v3168 = vmul.f32 %v2464, %v3074
      %v3169 = vmul.f32 %v2465, %v3074
      %v3170 = vmul.f32 %v2466, %v3079
      %v3171 = vmul.f32 %v2467, %v3079
      %v3172 = vmul.f32 %v2468, %v3084
      %v3173 = vmul.f32 %v2469, %v3084
      %v3174 = vmul.f32 %v2470, %v3089
      %v3175 = vmul.f32 %v2471, %v3089
      %v3176 = vmul.f32 %v2472, %v3094
      %v3177 = vmul.f32 %v2473, %v3094
      %v3178 = vmul.f32 %v2474, %v3099
      %v3179 = vmul.f32 %v2475, %v3099
      %v3180 = vmul.f32 %v2476, %v3104
      %v3181 = vmul.f32 %v2477, %v3104
      %v3182 = vmul.f32 %v2478, %v3109
      %v3183 = vmul.f32 %v2479, %v3109
      %v3184 = vmul.f32 %v2480, %v3114
      %v3185 = vmul.f32 %v2481, %v3114
      %v3186 = vmul.f32 %v2482, %v3119
      %v3187 = vmul.f32 %v2483, %v3119
      %v3188 = vmul.f32 %v2484, %v3124
      %v3189 = vmul.f32 %v2485, %v3124
      %v3190 = vpack.c.bf16 %v3128, %v3126
      %v3191 = vpack.c.bf16 %v3129, %v3127
      %v3192 = vpack.c.bf16 %v3132, %v3130
      %v3193 = vpack.c.bf16 %v3133, %v3131
      %v3194 = vpack.c.bf16 %v3136, %v3134
      %v3195 = vpack.c.bf16 %v3137, %v3135
      %v3196 = vpack.c.bf16 %v3140, %v3138
      %v3197 = vpack.c.bf16 %v3141, %v3139
      %v3198 = vpack.c.bf16 %v3144, %v3142
      %v3199 = vpack.c.bf16 %v3145, %v3143
      %v3200 = vpack.c.bf16 %v3148, %v3146
      %v3201 = vpack.c.bf16 %v3149, %v3147
      %v3202 = vpack.c.bf16 %v3152, %v3150
      %v3203 = vpack.c.bf16 %v3153, %v3151
      %v3204 = vpack.c.bf16 %v3156, %v3154
      %v3205 = vpack.c.bf16 %v3157, %v3155
      %v3206 = vpack.c.bf16 %v3160, %v3158
      %v3207 = vpack.c.bf16 %v3161, %v3159
      %v3208 = vpack.c.bf16 %v3164, %v3162
      %v3209 = vpack.c.bf16 %v3165, %v3163
      %v3210 = vpack.c.bf16 %v3168, %v3166
      %v3211 = vpack.c.bf16 %v3169, %v3167
      %v3212 = vpack.c.bf16 %v3172, %v3170
      %v3213 = vpack.c.bf16 %v3173, %v3171
      %v3214 = vpack.c.bf16 %v3176, %v3174
      %v3215 = vpack.c.bf16 %v3177, %v3175
      %v3216 = vpack.c.bf16 %v3180, %v3178
      %v3217 = vpack.c.bf16 %v3181, %v3179
      %v3218 = vpack.c.bf16 %v3184, %v3182
      %v3219 = vpack.c.bf16 %v3185, %v3183
      %v3220 = vpack.c.bf16 %v3188, %v3186
      %v3221 = vpack.c.bf16 %v3189, %v3187
      %3222 = vmatprep.subr.bf16.mxu0 %v3191
      %3223 = vmatpush1.bf16.xpose.msra.mxu0 %v3190
      %3224 = vmatprep.subr.bf16.mxu0 %v3193
      %3225 = vmatpush1.bf16.xpose.msra.mxu0 %v3192
      %3226 = vmatprep.subr.bf16.mxu0 %v3195
      %3227 = vmatpush1.bf16.xpose.msra.mxu0 %v3194
      %3228 = vmatprep.subr.bf16.mxu0 %v3197
      %3229 = vmatpush1.bf16.xpose.msra.mxu0 %v3196
      %3230 = vmatprep.subr.bf16.mxu0 %v3199
      %3231 = vmatpush1.bf16.xpose.msra.mxu0 %v3198
      %3232 = vmatprep.subr.bf16.mxu0 %v3201
      %3233 = vmatpush1.bf16.xpose.msra.mxu0 %v3200
      %3234 = vmatprep.subr.bf16.mxu0 %v3203
      %3235 = vmatpush1.bf16.xpose.msra.mxu0 %v3202
      %3236 = vmatprep.subr.bf16.mxu0 %v3205
      %3237 = vmatpush1.bf16.xpose.msra.mxu0 %v3204
      %3238 = vmatprep.subr.bf16.mxu0 %v3207
      %3239 = vmatpush1.bf16.xpose.msra.mxu0 %v3206
      %3240 = vmatprep.subr.bf16.mxu0 %v3209
      %3241 = vmatpush1.bf16.xpose.msra.mxu0 %v3208
      %3242 = vmatprep.subr.bf16.mxu0 %v3211
      %3243 = vmatpush1.bf16.xpose.msra.mxu0 %v3210
      %3244 = vmatprep.subr.bf16.mxu0 %v3213
      %3245 = vmatpush1.bf16.xpose.msra.mxu0 %v3212
      %3246 = vmatprep.subr.bf16.mxu0 %v3215
      %3247 = vmatpush1.bf16.xpose.msra.mxu0 %v3214
      %3248 = vmatprep.subr.bf16.mxu0 %v3217
      %3249 = vmatpush1.bf16.xpose.msra.mxu0 %v3216
      %3250 = vmatprep.subr.bf16.mxu0 %v3219
      %3251 = vmatpush1.bf16.xpose.msra.mxu0 %v3218
      %3252 = vmatprep.subr.bf16.mxu0 %v3221
      %3253 = vmatpush1.bf16.xpose.msra.mxu0 %v3220
      %3254 = vmatprep.mubr.bf16.mxu0 %v758
      %3255 = vmatmul.mubr.bf16.gmra.mrb[0].mxu0 %v757
      %v3256 = vpop.f32.mrb[0].mxu0
      %v3257 = vadd.f32 0.0, %v3256
      %v3258 = vpop.f32.mrb[0].mxu0
      %v3259 = vadd.f32 0.0, %v3258
      %v3260 = vpop.f32.mrb[0].mxu0
      %v3261 = vpop.f32.mrb[0].mxu0
      %3262 = vdwg.mxu0
      %v3263 = vsel %vm286, %v3257, 0.0
      %v3264 = vrot.slane %v3263, 4
      %v3265 = vadd.f32 %v3263, %v3264
      %v3266 = vrot.slane %v3265, 2
      %v3267 = vadd.f32 %v3265, %v3266
      %v3268 = vrot.slane %v3267, 1
      %v3269 = vadd.f32 %v3267, %v3268
      %v3270 = vsel %vm286, %v3259, 0.0
      %v3271 = vrot.slane %v3270, 4
      %v3272 = vadd.f32 %v3270, %v3271
      %v3273 = vrot.slane %v3272, 2
      %v3274 = vadd.f32 %v3272, %v3273
      %v3275 = vrot.slane %v3274, 1
      %v3276 = vadd.f32 %v3274, %v3275
      %v3277 = vmul.f32 %v3269, %v301
      %v3278 = vmul.f32 %v3276, %v301
      %v3279 = vsub.f32 %v3257, %v3277
      %v3280 = vsub.f32 %v3259, %v3278
      %v3281 = vmul.f32 %v3279, %v3279
      %v3282 = vmul.f32 %v3280, %v3280
      %v3283 = vsel %vm286, %v3281, 0.0
      %v3284 = vrot.slane %v3283, 4
      %v3285 = vadd.f32 %v3283, %v3284
      %v3286 = vrot.slane %v3285, 2
      %v3287 = vadd.f32 %v3285, %v3286
      %v3288 = vrot.slane %v3287, 1
      %v3289 = vadd.f32 %v3287, %v3288
      %v3290 = vsel %vm286, %v3282, 0.0
      %v3291 = vrot.slane %v3290, 4
      %v3292 = vadd.f32 %v3290, %v3291
      %v3293 = vrot.slane %v3292, 2
      %v3294 = vadd.f32 %v3292, %v3293
      %v3295 = vrot.slane %v3294, 1
      %v3296 = vadd.f32 %v3294, %v3295
      %v3297 = vmul.f32 %v3289, %v301
      %v3298 = vmul.f32 %v3296, %v301
      %v3299 = vadd.f32 %v3297, 1e-05
      %v3300 = vadd.f32 %v3298, 1e-05
      %v3301 = vrsqrt.pop %v3299
      %v3302 = vrsqrt.pop %v3300
      %v3303 = vmul.f32 %v3279, %v3301
      %v3304 = vmul.f32 %v3280, %v3302
      %v3305 = vlaneseq
      %v3306 = vshrl.u32 %v3305, 7
      %v3307 = vsub.s32 1, %v3306
      %v3308 = vrot.slane %v1050, %v3307
      %v3309 = vlaneseq
      %v3310 = vshrl.u32 %v3309, 7
      %v3311 = vsub.s32 1, %v3310
      %v3312 = vrot.slane %v1051, %v3311
      %3313 = vset.pattern.permute.xlu0 3
      %3314 = vperm.xlu0 %3313, %v1365
      %v3315 = vpop.permute.xlu0 %3314
      %3317 = vset.pattern.permute.xlu0 3
      %3318 = vperm.xlu0 %3317, %v1370
      %v3319 = vpop.permute.xlu0 %3318
      %3321 = vset.pattern.permute.xlu0 3
      %3322 = vperm.xlu0 %3321, %v1375
      %v3323 = vpop.permute.xlu0 %3322
      %3325 = vset.pattern.permute.xlu0 3
      %3326 = vperm.xlu0 %3325, %v1380
      %v3327 = vpop.permute.xlu0 %3326
      %3329 = vset.pattern.permute.xlu0 3
      %3330 = vperm.xlu0 %3329, %v1385
      %v3331 = vpop.permute.xlu0 %3330
      %3333 = vset.pattern.permute.xlu0 3
      %3334 = vperm.xlu0 %3333, %v1390
      %v3335 = vpop.permute.xlu0 %3334
      %3337 = vset.pattern.permute.xlu0 3
      %3338 = vperm.xlu0 %3337, %v1395
      %v3339 = vpop.permute.xlu0 %3338
      %3341 = vset.pattern.permute.xlu0 3
      %3342 = vperm.xlu0 %3341, %v1400
      %v3343 = vpop.permute.xlu0 %3342
      %3345 = vset.pattern.permute.xlu0 3
      %3346 = vperm.xlu0 %3345, %v1405
      %v3347 = vpop.permute.xlu0 %3346
      %3349 = vset.pattern.permute.xlu0 3
      %3350 = vperm.xlu0 %3349, %v1410
      %v3351 = vpop.permute.xlu0 %3350
      %3353 = vset.pattern.permute.xlu0 3
      %3354 = vperm.xlu0 %3353, %v1415
      %v3355 = vpop.permute.xlu0 %3354
      %3357 = vset.pattern.permute.xlu0 3
      %3358 = vperm.xlu0 %3357, %v1420
      %v3359 = vpop.permute.xlu0 %3358
      %3361 = vset.pattern.permute.xlu0 3
      %3362 = vperm.xlu0 %3361, %v1425
      %v3363 = vpop.permute.xlu0 %3362
      %3365 = vset.pattern.permute.xlu0 3
      %3366 = vperm.xlu0 %3365, %v1430
      %v3367 = vpop.permute.xlu0 %3366
      %3369 = vset.pattern.permute.xlu0 3
      %3370 = vperm.xlu0 %3369, %v1435
      %v3371 = vpop.permute.xlu0 %3370
      %3373 = vset.pattern.permute.xlu0 3
      %3374 = vperm.xlu0 %3373, %v1440
      %v3375 = vpop.permute.xlu0 %3374
      %3377 = vset.pattern.permute.xlu0 3
      %3378 = vperm.xlu0 %3377, %v1445
      %v3379 = vpop.permute.xlu0 %3378
      %3381 = vset.pattern.permute.xlu0 3
      %3382 = vperm.xlu0 %3381, %v1450
      %v3383 = vpop.permute.xlu0 %3382
      %3385 = vset.pattern.permute.xlu0 3
      %3386 = vperm.xlu0 %3385, %v1455
      %v3387 = vpop.permute.xlu0 %3386
      %3389 = vset.pattern.permute.xlu0 3
      %3390 = vperm.xlu0 %3389, %v1460
      %v3391 = vpop.permute.xlu0 %3390
      %3393 = vset.pattern.permute.xlu0 3
      %3394 = vperm.xlu0 %3393, %v1465
      %v3395 = vpop.permute.xlu0 %3394
      %3397 = vset.pattern.permute.xlu0 3
      %3398 = vperm.xlu0 %3397, %v1470
      %v3399 = vpop.permute.xlu0 %3398
      %3401 = vset.pattern.permute.xlu0 3
      %3402 = vperm.xlu0 %3401, %v1475
      %v3403 = vpop.permute.xlu0 %3402
      %3405 = vset.pattern.permute.xlu0 3
      %3406 = vperm.xlu0 %3405, %v1480
      %v3407 = vpop.permute.xlu0 %3406
      %3409 = vset.pattern.permute.xlu0 3
      %3410 = vperm.xlu0 %3409, %v1485
      %v3411 = vpop.permute.xlu0 %3410
      %3413 = vset.pattern.permute.xlu0 3
      %3414 = vperm.xlu0 %3413, %v1490
      %v3415 = vpop.permute.xlu0 %3414
      %3417 = vset.pattern.permute.xlu0 3
      %3418 = vperm.xlu0 %3417, %v1495
      %v3419 = vpop.permute.xlu0 %3418
      %3421 = vset.pattern.permute.xlu0 3
      %3422 = vperm.xlu0 %3421, %v1500
      %v3423 = vpop.permute.xlu0 %3422
      %3425 = vset.pattern.permute.xlu0 3
      %3426 = vperm.xlu0 %3425, %v1505
      %v3427 = vpop.permute.xlu0 %3426
      %3429 = vset.pattern.permute.xlu0 3
      %3430 = vperm.xlu0 %3429, %v1510
      %v3431 = vpop.permute.xlu0 %3430
      %3433 = vset.pattern.permute.xlu0 3
      %3434 = vperm.xlu0 %3433, %v1515
      %v3435 = vpop.permute.xlu0 %3434
      %3437 = vset.pattern.permute.xlu0 3
      %3438 = vperm.xlu0 %3437, %v1520
      %v3439 = vpop.permute.xlu0 %3438
      %v3441 = vsub.f32 %v3308, %v3315
      %v3442 = vsub.f32 %v3312, %v3315
      %v3443 = vsub.f32 %v3308, %v3319
      %v3444 = vsub.f32 %v3312, %v3319
      %v3445 = vsub.f32 %v3308, %v3323
      %v3446 = vsub.f32 %v3312, %v3323
      %v3447 = vsub.f32 %v3308, %v3327
      %v3448 = vsub.f32 %v3312, %v3327
      %v3449 = vsub.f32 %v3308, %v3331
      %v3450 = vsub.f32 %v3312, %v3331
      %v3451 = vsub.f32 %v3308, %v3335
      %v3452 = vsub.f32 %v3312, %v3335
      %v3453 = vsub.f32 %v3308, %v3339
      %v3454 = vsub.f32 %v3312, %v3339
      %v3455 = vsub.f32 %v3308, %v3343
      %v3456 = vsub.f32 %v3312, %v3343
      %v3457 = vsub.f32 %v3308, %v3347
      %v3458 = vsub.f32 %v3312, %v3347
      %v3459 = vsub.f32 %v3308, %v3351
      %v3460 = vsub.f32 %v3312, %v3351
      %v3461 = vsub.f32 %v3308, %v3355
      %v3462 = vsub.f32 %v3312, %v3355
      %v3463 = vsub.f32 %v3308, %v3359
      %v3464 = vsub.f32 %v3312, %v3359
      %v3465 = vsub.f32 %v3308, %v3363
      %v3466 = vsub.f32 %v3312, %v3363
      %v3467 = vsub.f32 %v3308, %v3367
      %v3468 = vsub.f32 %v3312, %v3367
      %v3469 = vsub.f32 %v3308, %v3371
      %v3470 = vsub.f32 %v3312, %v3371
      %v3471 = vsub.f32 %v3308, %v3375
      %v3472 = vsub.f32 %v3312, %v3375
      %v3473 = vsub.f32 %v3308, %v3379
      %v3474 = vsub.f32 %v3312, %v3379
      %v3475 = vsub.f32 %v3308, %v3383
      %v3476 = vsub.f32 %v3312, %v3383
      %v3477 = vsub.f32 %v3308, %v3387
      %v3478 = vsub.f32 %v3312, %v3387
      %v3479 = vsub.f32 %v3308, %v3391
      %v3480 = vsub.f32 %v3312, %v3391
      %v3481 = vsub.f32 %v3308, %v3395
      %v3482 = vsub.f32 %v3312, %v3395
      %v3483 = vsub.f32 %v3308, %v3399
      %v3484 = vsub.f32 %v3312, %v3399
      %v3485 = vsub.f32 %v3308, %v3403
      %v3486 = vsub.f32 %v3312, %v3403
      %v3487 = vsub.f32 %v3308, %v3407
      %v3488 = vsub.f32 %v3312, %v3407
      %v3489 = vsub.f32 %v3308, %v3411
      %v3490 = vsub.f32 %v3312, %v3411
      %v3491 = vsub.f32 %v3308, %v3415
      %v3492 = vsub.f32 %v3312, %v3415
      %v3493 = vsub.f32 %v3308, %v3419
      %v3494 = vsub.f32 %v3312, %v3419
      %v3495 = vsub.f32 %v3308, %v3423
      %v3496 = vsub.f32 %v3312, %v3423
      %v3497 = vsub.f32 %v3308, %v3427
      %v3498 = vsub.f32 %v3312, %v3427
      %v3499 = vsub.f32 %v3308, %v3431
      %v3500 = vsub.f32 %v3312, %v3431
      %v3501 = vsub.f32 %v3308, %v3435
      %v3502 = vsub.f32 %v3312, %v3435
      %v3503 = vsub.f32 %v3308, %v3439
      %v3504 = vsub.f32 %v3312, %v3439
      %v3505 = vmin.f32 %v3441, 0.0
      %v3506 = vmin.f32 %v3442, 0.0
      %v3507 = vmin.f32 %v3443, 0.0
      %v3508 = vmin.f32 %v3444, 0.0
      %v3509 = vmin.f32 %v3445, 0.0
      %v3510 = vmin.f32 %v3446, 0.0
      %v3511 = vmin.f32 %v3447, 0.0
      %v3512 = vmin.f32 %v3448, 0.0
      %v3513 = vmin.f32 %v3449, 0.0
      %v3514 = vmin.f32 %v3450, 0.0
      %v3515 = vmin.f32 %v3451, 0.0
      %v3516 = vmin.f32 %v3452, 0.0
      %v3517 = vmin.f32 %v3453, 0.0
      %v3518 = vmin.f32 %v3454, 0.0
      %v3519 = vmin.f32 %v3455, 0.0
      %v3520 = vmin.f32 %v3456, 0.0
      %v3521 = vmin.f32 %v3457, 0.0
      %v3522 = vmin.f32 %v3458, 0.0
      %v3523 = vmin.f32 %v3459, 0.0
      %v3524 = vmin.f32 %v3460, 0.0
      %v3525 = vmin.f32 %v3461, 0.0
      %v3526 = vmin.f32 %v3462, 0.0
      %v3527 = vmin.f32 %v3463, 0.0
      %v3528 = vmin.f32 %v3464, 0.0
      %v3529 = vmin.f32 %v3465, 0.0
      %v3530 = vmin.f32 %v3466, 0.0
      %v3531 = vmin.f32 %v3467, 0.0
      %v3532 = vmin.f32 %v3468, 0.0
      %v3533 = vmin.f32 %v3469, 0.0
      %v3534 = vmin.f32 %v3470, 0.0
      %v3535 = vmin.f32 %v3471, 0.0
      %v3536 = vmin.f32 %v3472, 0.0
      %v3537 = vmin.f32 %v3473, 0.0
      %v3538 = vmin.f32 %v3474, 0.0
      %v3539 = vmin.f32 %v3475, 0.0
      %v3540 = vmin.f32 %v3476, 0.0
      %v3541 = vmin.f32 %v3477, 0.0
      %v3542 = vmin.f32 %v3478, 0.0
      %v3543 = vmin.f32 %v3479, 0.0
      %v3544 = vmin.f32 %v3480, 0.0
      %v3545 = vmin.f32 %v3481, 0.0
      %v3546 = vmin.f32 %v3482, 0.0
      %v3547 = vmin.f32 %v3483, 0.0
      %v3548 = vmin.f32 %v3484, 0.0
      %v3549 = vmin.f32 %v3485, 0.0
      %v3550 = vmin.f32 %v3486, 0.0
      %v3551 = vmin.f32 %v3487, 0.0
      %v3552 = vmin.f32 %v3488, 0.0
      %v3553 = vmin.f32 %v3489, 0.0
      %v3554 = vmin.f32 %v3490, 0.0
      %v3555 = vmin.f32 %v3491, 0.0
      %v3556 = vmin.f32 %v3492, 0.0
      %v3557 = vmin.f32 %v3493, 0.0
      %v3558 = vmin.f32 %v3494, 0.0
      %v3559 = vmin.f32 %v3495, 0.0
      %v3560 = vmin.f32 %v3496, 0.0
      %v3561 = vmin.f32 %v3497, 0.0
      %v3562 = vmin.f32 %v3498, 0.0
      %v3563 = vmin.f32 %v3499, 0.0
      %v3564 = vmin.f32 %v3500, 0.0
      %v3565 = vmin.f32 %v3501, 0.0
      %v3566 = vmin.f32 %v3502, 0.0
      %v3567 = vmin.f32 %v3503, 0.0
      %v3568 = vmin.f32 %v3504, 0.0
      %v3569 = vmul.f32 %v3505, 1.442695
      %v3570 = vpow.pop %v3569
      %v3571 = vmul.f32 %v3506, 1.442695
      %v3572 = vpow.pop %v3571
      %v3573 = vmul.f32 %v3507, 1.442695
      %v3574 = vpow.pop %v3573
      %v3575 = vmul.f32 %v3508, 1.442695
      %v3576 = vpow.pop %v3575
      %v3577 = vmul.f32 %v3509, 1.442695
      %v3578 = vpow.pop %v3577
      %v3579 = vmul.f32 %v3510, 1.442695
      %v3580 = vpow.pop %v3579
      %v3581 = vmul.f32 %v3511, 1.442695
      %v3582 = vpow.pop %v3581
      %v3583 = vmul.f32 %v3512, 1.442695
      %v3584 = vpow.pop %v3583
      %v3585 = vmul.f32 %v3513, 1.442695
      %v3586 = vpow.pop %v3585
      %v3587 = vmul.f32 %v3514, 1.442695
      %v3588 = vpow.pop %v3587
      %v3589 = vmul.f32 %v3515, 1.442695
      %v3590 = vpow.pop %v3589
      %v3591 = vmul.f32 %v3516, 1.442695
      %v3592 = vpow.pop %v3591
      %v3593 = vmul.f32 %v3517, 1.442695
      %v3594 = vpow.pop %v3593
      %v3595 = vmul.f32 %v3518, 1.442695
      %v3596 = vpow.pop %v3595
      %v3597 = vmul.f32 %v3519, 1.442695
      %v3598 = vpow.pop %v3597
      %v3599 = vmul.f32 %v3520, 1.442695
      %v3600 = vpow.pop %v3599
      %v3601 = vmul.f32 %v3521, 1.442695
      %v3602 = vpow.pop %v3601
      %v3603 = vmul.f32 %v3522, 1.442695
      %v3604 = vpow.pop %v3603
      %v3605 = vmul.f32 %v3523, 1.442695
      %v3606 = vpow.pop %v3605
      %v3607 = vmul.f32 %v3524, 1.442695
      %v3608 = vpow.pop %v3607
      %v3609 = vmul.f32 %v3525, 1.442695
      %v3610 = vpow.pop %v3609
      %v3611 = vmul.f32 %v3526, 1.442695
      %v3612 = vpow.pop %v3611
      %v3613 = vmul.f32 %v3527, 1.442695
      %v3614 = vpow.pop %v3613
      %v3615 = vmul.f32 %v3528, 1.442695
      %v3616 = vpow.pop %v3615
      %v3617 = vmul.f32 %v3529, 1.442695
      %v3618 = vpow.pop %v3617
      %v3619 = vmul.f32 %v3530, 1.442695
      %v3620 = vpow.pop %v3619
      %v3621 = vmul.f32 %v3531, 1.442695
      %v3622 = vpow.pop %v3621
      %v3623 = vmul.f32 %v3532, 1.442695
      %v3624 = vpow.pop %v3623
      %v3625 = vmul.f32 %v3533, 1.442695
      %v3626 = vpow.pop %v3625
      %v3627 = vmul.f32 %v3534, 1.442695
      %v3628 = vpow.pop %v3627
      %v3629 = vmul.f32 %v3535, 1.442695
      %v3630 = vpow.pop %v3629
      %v3631 = vmul.f32 %v3536, 1.442695
      %v3632 = vpow.pop %v3631
      %v3633 = vmul.f32 %v3537, 1.442695
      %v3634 = vpow.pop %v3633
      %v3635 = vmul.f32 %v3538, 1.442695
      %v3636 = vpow.pop %v3635
      %v3637 = vmul.f32 %v3539, 1.442695
      %v3638 = vpow.pop %v3637
      %v3639 = vmul.f32 %v3540, 1.442695
      %v3640 = vpow.pop %v3639
      %v3641 = vmul.f32 %v3541, 1.442695
      %v3642 = vpow.pop %v3641
      %v3643 = vmul.f32 %v3542, 1.442695
      %v3644 = vpow.pop %v3643
      %v3645 = vmul.f32 %v3543, 1.442695
      %v3646 = vpow.pop %v3645
      %v3647 = vmul.f32 %v3544, 1.442695
      %v3648 = vpow.pop %v3647
      %v3649 = vmul.f32 %v3545, 1.442695
      %v3650 = vpow.pop %v3649
      %v3651 = vmul.f32 %v3546, 1.442695
      %v3652 = vpow.pop %v3651
      %v3653 = vmul.f32 %v3547, 1.442695
      %v3654 = vpow.pop %v3653
      %v3655 = vmul.f32 %v3548, 1.442695
      %v3656 = vpow.pop %v3655
      %v3657 = vmul.f32 %v3549, 1.442695
      %v3658 = vpow.pop %v3657
      %v3659 = vmul.f32 %v3550, 1.442695
      %v3660 = vpow.pop %v3659
      %v3661 = vmul.f32 %v3551, 1.442695
      %v3662 = vpow.pop %v3661
      %v3663 = vmul.f32 %v3552, 1.442695
      %v3664 = vpow.pop %v3663
      %v3665 = vmul.f32 %v3553, 1.442695
      %v3666 = vpow.pop %v3665
      %v3667 = vmul.f32 %v3554, 1.442695
      %v3668 = vpow.pop %v3667
      %v3669 = vmul.f32 %v3555, 1.442695
      %v3670 = vpow.pop %v3669
      %v3671 = vmul.f32 %v3556, 1.442695
      %v3672 = vpow.pop %v3671
      %v3673 = vmul.f32 %v3557, 1.442695
      %v3674 = vpow.pop %v3673
      %v3675 = vmul.f32 %v3558, 1.442695
      %v3676 = vpow.pop %v3675
      %v3677 = vmul.f32 %v3559, 1.442695
      %v3678 = vpow.pop %v3677
      %v3679 = vmul.f32 %v3560, 1.442695
      %v3680 = vpow.pop %v3679
      %v3681 = vmul.f32 %v3561, 1.442695
      %v3682 = vpow.pop %v3681
      %v3683 = vmul.f32 %v3562, 1.442695
      %v3684 = vpow.pop %v3683
      %v3685 = vmul.f32 %v3563, 1.442695
      %v3686 = vpow.pop %v3685
      %v3687 = vmul.f32 %v3564, 1.442695
      %v3688 = vpow.pop %v3687
      %v3689 = vmul.f32 %v3565, 1.442695
      %v3690 = vpow.pop %v3689
      %v3691 = vmul.f32 %v3566, 1.442695
      %v3692 = vpow.pop %v3691
      %v3693 = vmul.f32 %v3567, 1.442695
      %v3694 = vpow.pop %v3693
      %v3695 = vmul.f32 %v3568, 1.442695
      %v3696 = vpow.pop %v3695
      %v3697 = vsel %vm1523, %v3570, 0.0
      %v3698 = vsel %vm1524, %v3572, 0.0
      %v3699 = vsel %vm1525, %v3574, 0.0
      %v3700 = vsel %vm1526, %v3576, 0.0
      %v3701 = vsel %vm1527, %v3578, 0.0
      %v3702 = vsel %vm1528, %v3580, 0.0
      %v3703 = vsel %vm1529, %v3582, 0.0
      %v3704 = vsel %vm1530, %v3584, 0.0
      %v3705 = vsel %vm1531, %v3586, 0.0
      %v3706 = vsel %vm1532, %v3588, 0.0
      %v3707 = vsel %vm1533, %v3590, 0.0
      %v3708 = vsel %vm1534, %v3592, 0.0
      %v3709 = vsel %vm1535, %v3594, 0.0
      %v3710 = vsel %vm1536, %v3596, 0.0
      %v3711 = vsel %vm1537, %v3598, 0.0
      %v3712 = vsel %vm1538, %v3600, 0.0
      %v3713 = vsel %vm1539, %v3602, 0.0
      %v3714 = vsel %vm1540, %v3604, 0.0
      %v3715 = vsel %vm1541, %v3606, 0.0
      %v3716 = vsel %vm1542, %v3608, 0.0
      %v3717 = vsel %vm1543, %v3610, 0.0
      %v3718 = vsel %vm1544, %v3612, 0.0
      %v3719 = vsel %vm1545, %v3614, 0.0
      %v3720 = vsel %vm1546, %v3616, 0.0
      %v3721 = vsel %vm1547, %v3618, 0.0
      %v3722 = vsel %vm1548, %v3620, 0.0
      %v3723 = vsel %vm1549, %v3622, 0.0
      %v3724 = vsel %vm1550, %v3624, 0.0
      %v3725 = vsel %vm1551, %v3626, 0.0
      %v3726 = vsel %vm1552, %v3628, 0.0
      %v3727 = vsel %vm1553, %v3630, 0.0
      %v3728 = vsel %vm1554, %v3632, 0.0
      %v3729 = vsel %vm1555, %v3634, 0.0
      %v3730 = vsel %vm1556, %v3636, 0.0
      %v3731 = vsel %vm1557, %v3638, 0.0
      %v3732 = vsel %vm1558, %v3640, 0.0
      %v3733 = vsel %vm1559, %v3642, 0.0
      %v3734 = vsel %vm1560, %v3644, 0.0
      %v3735 = vsel %vm1561, %v3646, 0.0
      %v3736 = vsel %vm1562, %v3648, 0.0
      %v3737 = vsel %vm1563, %v3650, 0.0
      %v3738 = vsel %vm1564, %v3652, 0.0
      %v3739 = vsel %vm1565, %v3654, 0.0
      %v3740 = vsel %vm1566, %v3656, 0.0
      %v3741 = vsel %vm1567, %v3658, 0.0
      %v3742 = vsel %vm1568, %v3660, 0.0
      %v3743 = vsel %vm1569, %v3662, 0.0
      %v3744 = vsel %vm1570, %v3664, 0.0
      %v3745 = vsel %vm1571, %v3666, 0.0
      %v3746 = vsel %vm1572, %v3668, 0.0
      %v3747 = vsel %vm1573, %v3670, 0.0
      %v3748 = vsel %vm1574, %v3672, 0.0
      %v3749 = vsel %vm1575, %v3674, 0.0
      %v3750 = vsel %vm1576, %v3676, 0.0
      %v3751 = vsel %vm1577, %v3678, 0.0
      %v3752 = vsel %vm1578, %v3680, 0.0
      %v3753 = vsel %vm1579, %v3682, 0.0
      %v3754 = vsel %vm1580, %v3684, 0.0
      %v3755 = vsel %vm1581, %v3686, 0.0
      %v3756 = vsel %vm1582, %v3688, 0.0
      %v3757 = vsel %vm1583, %v3690, 0.0
      %v3758 = vsel %vm1584, %v3692, 0.0
      %v3759 = vsel %vm1585, %v3694, 0.0
      %v3760 = vsel %vm1586, %v3696, 0.0
      %v3763 = vrot.slane %v2075, 2
      %v3764 = vrot.slane %v2076, 2
      %3767 = vxpose.xlu0.c.b16.start [1/8] %v3763, 128
      %3768 = vxpose.xlu0.c.b16.cont [2/8] 0, 128
      %3769 = vxpose.xlu0.c.b16.cont [3/8] 0, 128
      %3770 = vxpose.xlu0.c.b16.cont [4/8] 0, 128
      %3771 = vxpose.xlu0.c.b16.cont [5/8] 0, 128
      %3772 = vxpose.xlu0.c.b16.cont [6/8] 0, 128
      %3773 = vxpose.xlu0.c.b16.cont [7/8] 0, 128
      %3774 = vxpose.xlu0.c.b16.end [8/8] 0, 128
      %v3775 = vpop.trf.xlu0
      %v3776 = vpop.trf.xlu0
      %v3777 = vpop.trf.xlu0
      %v3778 = vpop.trf.xlu0
      %v3779 = vpop.trf.xlu0
      %v3780 = vpop.trf.xlu0
      %v3781 = vpop.trf.xlu0
      %v3782 = vpop.trf.xlu0
      %3783 = vxpose.xlu0.c.b16.start [1/8] %v3764, 128
      %3784 = vxpose.xlu0.c.b16.cont [2/8] 0, 128
      %3785 = vxpose.xlu0.c.b16.cont [3/8] 0, 128
      %3786 = vxpose.xlu0.c.b16.cont [4/8] 0, 128
      %3787 = vxpose.xlu0.c.b16.cont [5/8] 0, 128
      %3788 = vxpose.xlu0.c.b16.cont [6/8] 0, 128
      %3789 = vxpose.xlu0.c.b16.cont [7/8] 0, 128
      %3790 = vxpose.xlu0.c.b16.end [8/8] 0, 128
      %v3791 = vpop.trf.xlu0
      %v3792 = vpop.trf.xlu0
      %v3793 = vpop.trf.xlu0
      %v3794 = vpop.trf.xlu0
      %v3795 = vpop.trf.xlu0
      %v3796 = vpop.trf.xlu0
      %v3797 = vpop.trf.xlu0
      %v3798 = vpop.trf.xlu0
      %v3801 = vrot.slane %v2077, 2
      %v3802 = vrot.slane %v2078, 2
      %v3804 = vsel %vm371, %v3775, 0
      %v3807 = vsel %vm371, %v3776, 0
      %v3810 = vsel %vm371, %v3777, 0
      %v3813 = vsel %vm371, %v3778, 0
      %v3816 = vsel %vm371, %v3779, 0
      %v3819 = vsel %vm371, %v3780, 0
      %v3822 = vsel %vm371, %v3781, 0
      %v3825 = vsel %vm371, %v3782, 0
      %v3828 = vsel %vm371, %v3791, 0
      %v3831 = vsel %vm371, %v3792, 0
      %v3834 = vsel %vm371, %v3793, 0
      %v3837 = vsel %vm371, %v3794, 0
      %v3840 = vsel %vm371, %v3795, 0
      %v3843 = vsel %vm371, %v3796, 0
      %v3846 = vsel %vm371, %v3797, 0
      %v3849 = vsel %vm371, %v3798, 0
      %v3852 = vsel %vm375, %v3801, 0
      %v3855 = vsel %vm375, %v3802, 0
      %3857 = vmatprep.subr.bf16.mxu0 %v3855
      %3858 = vmatpush1.bf16.msra.mxu0 %v3852
      %3859 = vmatprep.subr.bf16.mxu0 0
      %3860 = vmatpush1.bf16.msra.mxu0 0
      %3861 = vmatprep.subr.bf16.mxu0 0
      %3862 = vmatpush1.bf16.msra.mxu0 0
      %3863 = vmatprep.subr.bf16.mxu0 0
      %3864 = vmatpush1.bf16.msra.mxu0 0
      %3865 = vmatprep.subr.bf16.mxu0 0
      %3866 = vmatpush1.bf16.msra.mxu0 0
      %3867 = vmatprep.subr.bf16.mxu0 0
      %3868 = vmatpush1.bf16.msra.mxu0 0
      %3869 = vmatprep.subr.bf16.mxu0 0
      %3870 = vmatpush1.bf16.msra.mxu0 0
      %3871 = vmatprep.subr.bf16.mxu0 0
      %3872 = vmatpush1.bf16.msra.mxu0 0
      %3873 = vmatprep.subr.bf16.mxu0 0
      %3874 = vmatpush1.bf16.msra.mxu0 0
      %3875 = vmatprep.subr.bf16.mxu0 0
      %3876 = vmatpush1.bf16.msra.mxu0 0
      %3877 = vmatprep.subr.bf16.mxu0 0
      %3878 = vmatpush1.bf16.msra.mxu0 0
      %3879 = vmatprep.subr.bf16.mxu0 0
      %3880 = vmatpush1.bf16.msra.mxu0 0
      %3881 = vmatprep.subr.bf16.mxu0 0
      %3882 = vmatpush1.bf16.msra.mxu0 0
      %3883 = vmatprep.subr.bf16.mxu0 0
      %3884 = vmatpush1.bf16.msra.mxu0 0
      %3885 = vmatprep.subr.bf16.mxu0 0
      %3886 = vmatpush1.bf16.msra.mxu0 0
      %3887 = vmatprep.subr.bf16.mxu0 0
      %3888 = vmatpush1.bf16.msra.mxu0 0
      %3889 = vmatprep.mubr.bf16.mxu0 0
      %3890 = vmatmul.mubr.bf16.gmra.mrb[0].mxu0 %v3804
      %v3891 = vpop.f32.mrb[0].mxu0
      %v3892 = vadd.f32 0.0, %v3891
      %v3893 = vpop.f32.mrb[0].mxu0
      %v3894 = vadd.f32 0.0, %v3893
      %v3895 = vpop.f32.mrb[0].mxu0
      %v3896 = vadd.f32 0.0, %v3895
      %v3897 = vpop.f32.mrb[0].mxu0
      %v3898 = vadd.f32 0.0, %v3897
      %3899 = vmatprep.mubr.bf16.mxu0 0
      %3900 = vmatmul.mubr.bf16.gmra.mrb[0].mxu0 %v3807
      %v3901 = vpop.f32.mrb[0].mxu0
      %v3902 = vadd.f32 0.0, %v3901
      %v3903 = vpop.f32.mrb[0].mxu0
      %v3904 = vadd.f32 0.0, %v3903
      %v3905 = vpop.f32.mrb[0].mxu0
      %v3906 = vadd.f32 0.0, %v3905
      %v3907 = vpop.f32.mrb[0].mxu0
      %v3908 = vadd.f32 0.0, %v3907
      %3909 = vmatprep.mubr.bf16.mxu0 0
      %3910 = vmatmul.mubr.bf16.gmra.mrb[0].mxu0 %v3810
      %v3911 = vpop.f32.mrb[0].mxu0
      %v3912 = vadd.f32 0.0, %v3911
      %v3913 = vpop.f32.mrb[0].mxu0
      %v3914 = vadd.f32 0.0, %v3913
      %v3915 = vpop.f32.mrb[0].mxu0
      %v3916 = vadd.f32 0.0, %v3915
      %v3917 = vpop.f32.mrb[0].mxu0
      %v3918 = vadd.f32 0.0, %v3917
      %3919 = vmatprep.mubr.bf16.mxu0 0
      %3920 = vmatmul.mubr.bf16.gmra.mrb[0].mxu0 %v3813
      %v3921 = vpop.f32.mrb[0].mxu0
      %v3922 = vadd.f32 0.0, %v3921
      %v3923 = vpop.f32.mrb[0].mxu0
      %v3924 = vadd.f32 0.0, %v3923
      %v3925 = vpop.f32.mrb[0].mxu0
      %v3926 = vadd.f32 0.0, %v3925
      %v3927 = vpop.f32.mrb[0].mxu0
      %v3928 = vadd.f32 0.0, %v3927
      %3929 = vmatprep.mubr.bf16.mxu0 0
      %3930 = vmatmul.mubr.bf16.gmra.mrb[0].mxu0 %v3816
      %v3931 = vpop.f32.mrb[0].mxu0
      %v3932 = vadd.f32 0.0, %v3931
      %v3933 = vpop.f32.mrb[0].mxu0
      %v3934 = vadd.f32 0.0, %v3933
      %v3935 = vpop.f32.mrb[0].mxu0
      %v3936 = vadd.f32 0.0, %v3935
      %v3937 = vpop.f32.mrb[0].mxu0
      %v3938 = vadd.f32 0.0, %v3937
      %3939 = vmatprep.mubr.bf16.mxu0 0
      %3940 = vmatmul.mubr.bf16.gmra.mrb[0].mxu0 %v3819
      %v3941 = vpop.f32.mrb[0].mxu0
      %v3942 = vadd.f32 0.0, %v3941
      %v3943 = vpop.f32.mrb[0].mxu0
      %v3944 = vadd.f32 0.0, %v3943
      %v3945 = vpop.f32.mrb[0].mxu0
      %v3946 = vadd.f32 0.0, %v3945
      %v3947 = vpop.f32.mrb[0].mxu0
      %v3948 = vadd.f32 0.0, %v3947
      %3949 = vmatprep.mubr.bf16.mxu0 0
      %3950 = vmatmul.mubr.bf16.gmra.mrb[0].mxu0 %v3822
      %v3951 = vpop.f32.mrb[0].mxu0
      %v3952 = vadd.f32 0.0, %v3951
      %v3953 = vpop.f32.mrb[0].mxu0
      %v3954 = vadd.f32 0.0, %v3953
      %v3955 = vpop.f32.mrb[0].mxu0
      %v3956 = vadd.f32 0.0, %v3955
      %v3957 = vpop.f32.mrb[0].mxu0
      %v3958 = vadd.f32 0.0, %v3957
      %3959 = vmatprep.mubr.bf16.mxu0 0
      %3960 = vmatmul.mubr.bf16.gmra.mrb[0].mxu0 %v3825
      %v3961 = vpop.f32.mrb[0].mxu0
      %v3962 = vadd.f32 0.0, %v3961
      %v3963 = vpop.f32.mrb[0].mxu0
      %v3964 = vadd.f32 0.0, %v3963
      %v3965 = vpop.f32.mrb[0].mxu0
      %v3966 = vadd.f32 0.0, %v3965
      %v3967 = vpop.f32.mrb[0].mxu0
      %v3968 = vadd.f32 0.0, %v3967
      %3969 = vmatprep.mubr.bf16.mxu0 0
      %3970 = vmatmul.mubr.bf16.gmra.mrb[0].mxu0 %v3828
      %v3971 = vpop.f32.mrb[0].mxu0
      %v3972 = vadd.f32 0.0, %v3971
      %v3973 = vpop.f32.mrb[0].mxu0
      %v3974 = vadd.f32 0.0, %v3973
      %v3975 = vpop.f32.mrb[0].mxu0
      %v3976 = vadd.f32 0.0, %v3975
      %v3977 = vpop.f32.mrb[0].mxu0
      %v3978 = vadd.f32 0.0, %v3977
      %3979 = vmatprep.mubr.bf16.mxu0 0
      %3980 = vmatmul.mubr.bf16.gmra.mrb[0].mxu0 %v3831
      %v3981 = vpop.f32.mrb[0].mxu0
      %v3982 = vadd.f32 0.0, %v3981
      %v3983 = vpop.f32.mrb[0].mxu0
      %v3984 = vadd.f32 0.0, %v3983
      %v3985 = vpop.f32.mrb[0].mxu0
      %v3986 = vadd.f32 0.0, %v3985
      %v3987 = vpop.f32.mrb[0].mxu0
      %v3988 = vadd.f32 0.0, %v3987
      %3989 = vmatprep.mubr.bf16.mxu0 0
      %3990 = vmatmul.mubr.bf16.gmra.mrb[0].mxu0 %v3834
      %v3991 = vpop.f32.mrb[0].mxu0
      %v3992 = vadd.f32 0.0, %v3991
      %v3993 = vpop.f32.mrb[0].mxu0
      %v3994 = vadd.f32 0.0, %v3993
      %v3995 = vpop.f32.mrb[0].mxu0
      %v3996 = vadd.f32 0.0, %v3995
      %v3997 = vpop.f32.mrb[0].mxu0
      %v3998 = vadd.f32 0.0, %v3997
      %3999 = vmatprep.mubr.bf16.mxu0 0
      %4000 = vmatmul.mubr.bf16.gmra.mrb[0].mxu0 %v3837
      %v4001 = vpop.f32.mrb[0].mxu0
      %v4002 = vadd.f32 0.0, %v4001
      %v4003 = vpop.f32.mrb[0].mxu0
      %v4004 = vadd.f32 0.0, %v4003
      %v4005 = vpop.f32.mrb[0].mxu0
      %v4006 = vadd.f32 0.0, %v4005
      %v4007 = vpop.f32.mrb[0].mxu0
      %v4008 = vadd.f32 0.0, %v4007
      %4009 = vmatprep.mubr.bf16.mxu0 0
      %4010 = vmatmul.mubr.bf16.gmra.mrb[0].mxu0 %v3840
      %v4011 = vpop.f32.mrb[0].mxu0
      %v4012 = vadd.f32 0.0, %v4011
      %v4013 = vpop.f32.mrb[0].mxu0
      %v4014 = vadd.f32 0.0, %v4013
      %v4015 = vpop.f32.mrb[0].mxu0
      %v4016 = vadd.f32 0.0, %v4015
      %v4017 = vpop.f32.mrb[0].mxu0
      %v4018 = vadd.f32 0.0, %v4017
      %4019 = vmatprep.mubr.bf16.mxu0 0
      %4020 = vmatmul.mubr.bf16.gmra.mrb[0].mxu0 %v3843
      %v4021 = vpop.f32.mrb[0].mxu0
      %v4022 = vadd.f32 0.0, %v4021
      %v4023 = vpop.f32.mrb[0].mxu0
      %v4024 = vadd.f32 0.0, %v4023
      %v4025 = vpop.f32.mrb[0].mxu0
      %v4026 = vadd.f32 0.0, %v4025
      %v4027 = vpop.f32.mrb[0].mxu0
      %v4028 = vadd.f32 0.0, %v4027
      %4029 = vmatprep.mubr.bf16.mxu0 0
      %4030 = vmatmul.mubr.bf16.gmra.mrb[0].mxu0 %v3846
      %v4031 = vpop.f32.mrb[0].mxu0
      %v4032 = vadd.f32 0.0, %v4031
      %v4033 = vpop.f32.mrb[0].mxu0
      %v4034 = vadd.f32 0.0, %v4033
      %v4035 = vpop.f32.mrb[0].mxu0
      %v4036 = vadd.f32 0.0, %v4035
      %v4037 = vpop.f32.mrb[0].mxu0
      %v4038 = vadd.f32 0.0, %v4037
      %4039 = vmatprep.mubr.bf16.mxu0 0
      %4040 = vmatmul.mubr.bf16.gmra.mrb[0].mxu0 %v3849
      %v4041 = vpop.f32.mrb[0].mxu0
      %v4042 = vadd.f32 0.0, %v4041
      %v4043 = vpop.f32.mrb[0].mxu0
      %v4044 = vadd.f32 0.0, %v4043
      %v4045 = vpop.f32.mrb[0].mxu0
      %v4046 = vadd.f32 0.0, %v4045
      %v4047 = vpop.f32.mrb[0].mxu0
      %v4048 = vadd.f32 0.0, %v4047
      %4049 = vdwg.mxu0
      %v4050 = vmul.f32 %v3892, 0.5
      %v4051 = vmul.f32 %v3894, 0.5
      %v4052 = vmul.f32 %v3896, 0.5
      %v4053 = vmul.f32 %v3898, 0.5
      %v4054 = vmul.f32 %v3902, 0.5
      %v4055 = vmul.f32 %v3904, 0.5
      %v4056 = vmul.f32 %v3906, 0.5
      %v4057 = vmul.f32 %v3908, 0.5
      %v4058 = vmul.f32 %v3912, 0.5
      %v4059 = vmul.f32 %v3914, 0.5
      %v4060 = vmul.f32 %v3916, 0.5
      %v4061 = vmul.f32 %v3918, 0.5
      %v4062 = vmul.f32 %v3922, 0.5
      %v4063 = vmul.f32 %v3924, 0.5
      %v4064 = vmul.f32 %v3926, 0.5
      %v4065 = vmul.f32 %v3928, 0.5
      %v4066 = vmul.f32 %v3932, 0.5
      %v4067 = vmul.f32 %v3934, 0.5
      %v4068 = vmul.f32 %v3936, 0.5
      %v4069 = vmul.f32 %v3938, 0.5
      %v4070 = vmul.f32 %v3942, 0.5
      %v4071 = vmul.f32 %v3944, 0.5
      %v4072 = vmul.f32 %v3946, 0.5
      %v4073 = vmul.f32 %v3948, 0.5
      %v4074 = vmul.f32 %v3952, 0.5
      %v4075 = vmul.f32 %v3954, 0.5
      %v4076 = vmul.f32 %v3956, 0.5
      %v4077 = vmul.f32 %v3958, 0.5
      %v4078 = vmul.f32 %v3962, 0.5
      %v4079 = vmul.f32 %v3964, 0.5
      %v4080 = vmul.f32 %v3966, 0.5
      %v4081 = vmul.f32 %v3968, 0.5
      %v4082 = vmul.f32 %v3972, 0.5
      %v4083 = vmul.f32 %v3974, 0.5
      %v4084 = vmul.f32 %v3976, 0.5
      %v4085 = vmul.f32 %v3978, 0.5
      %v4086 = vmul.f32 %v3982, 0.5
      %v4087 = vmul.f32 %v3984, 0.5
      %v4088 = vmul.f32 %v3986, 0.5
      %v4089 = vmul.f32 %v3988, 0.5
      %v4090 = vmul.f32 %v3992, 0.5
      %v4091 = vmul.f32 %v3994, 0.5
      %v4092 = vmul.f32 %v3996, 0.5
      %v4093 = vmul.f32 %v3998, 0.5
      %v4094 = vmul.f32 %v4002, 0.5
      %v4095 = vmul.f32 %v4004, 0.5
      %v4096 = vmul.f32 %v4006, 0.5
      %v4097 = vmul.f32 %v4008, 0.5
      %v4098 = vmul.f32 %v4012, 0.5
      %v4099 = vmul.f32 %v4014, 0.5
      %v4100 = vmul.f32 %v4016, 0.5
      %v4101 = vmul.f32 %v4018, 0.5
      %v4102 = vmul.f32 %v4022, 0.5
      %v4103 = vmul.f32 %v4024, 0.5
      %v4104 = vmul.f32 %v4026, 0.5
      %v4105 = vmul.f32 %v4028, 0.5
      %v4106 = vmul.f32 %v4032, 0.5
      %v4107 = vmul.f32 %v4034, 0.5
      %v4108 = vmul.f32 %v4036, 0.5
      %v4109 = vmul.f32 %v4038, 0.5
      %v4110 = vmul.f32 %v4042, 0.5
      %v4111 = vmul.f32 %v4044, 0.5
      %v4112 = vmul.f32 %v4046, 0.5
      %v4113 = vmul.f32 %v4048, 0.5
      %v4114 = vmul.f32 %v4050, %v3697
      %v4115 = vmul.f32 %v4051, %v3698
      %v4116 = vmul.f32 %v4052, %v3699
      %v4117 = vmul.f32 %v4053, %v3700
      %v4118 = vmul.f32 %v4054, %v3701
      %v4119 = vmul.f32 %v4055, %v3702
      %v4120 = vmul.f32 %v4056, %v3703
      %v4121 = vmul.f32 %v4057, %v3704
      %v4122 = vmul.f32 %v4058, %v3705
      %v4123 = vmul.f32 %v4059, %v3706
      %v4124 = vmul.f32 %v4060, %v3707
      %v4125 = vmul.f32 %v4061, %v3708
      %v4126 = vmul.f32 %v4062, %v3709
      %v4127 = vmul.f32 %v4063, %v3710
      %v4128 = vmul.f32 %v4064, %v3711
      %v4129 = vmul.f32 %v4065, %v3712
      %v4130 = vmul.f32 %v4066, %v3713
      %v4131 = vmul.f32 %v4067, %v3714
      %v4132 = vmul.f32 %v4068, %v3715
      %v4133 = vmul.f32 %v4069, %v3716
      %v4134 = vmul.f32 %v4070, %v3717
      %v4135 = vmul.f32 %v4071, %v3718
      %v4136 = vmul.f32 %v4072, %v3719
      %v4137 = vmul.f32 %v4073, %v3720
      %v4138 = vmul.f32 %v4074, %v3721
      %v4139 = vmul.f32 %v4075, %v3722
      %v4140 = vmul.f32 %v4076, %v3723
      %v4141 = vmul.f32 %v4077, %v3724
      %v4142 = vmul.f32 %v4078, %v3725
      %v4143 = vmul.f32 %v4079, %v3726
      %v4144 = vmul.f32 %v4080, %v3727
      %v4145 = vmul.f32 %v4081, %v3728
      %v4146 = vmul.f32 %v4082, %v3729
      %v4147 = vmul.f32 %v4083, %v3730
      %v4148 = vmul.f32 %v4084, %v3731
      %v4149 = vmul.f32 %v4085, %v3732
      %v4150 = vmul.f32 %v4086, %v3733
      %v4151 = vmul.f32 %v4087, %v3734
      %v4152 = vmul.f32 %v4088, %v3735
      %v4153 = vmul.f32 %v4089, %v3736
      %v4154 = vmul.f32 %v4090, %v3737
      %v4155 = vmul.f32 %v4091, %v3738
      %v4156 = vmul.f32 %v4092, %v3739
      %v4157 = vmul.f32 %v4093, %v3740
      %v4158 = vmul.f32 %v4094, %v3741
      %v4159 = vmul.f32 %v4095, %v3742
      %v4160 = vmul.f32 %v4096, %v3743
      %v4161 = vmul.f32 %v4097, %v3744
      %v4162 = vmul.f32 %v4098, %v3745
      %v4163 = vmul.f32 %v4099, %v3746
      %v4164 = vmul.f32 %v4100, %v3747
      %v4165 = vmul.f32 %v4101, %v3748
      %v4166 = vmul.f32 %v4102, %v3749
      %v4167 = vmul.f32 %v4103, %v3750
      %v4168 = vmul.f32 %v4104, %v3751
      %v4169 = vmul.f32 %v4105, %v3752
      %v4170 = vmul.f32 %v4106, %v3753
      %v4171 = vmul.f32 %v4107, %v3754
      %v4172 = vmul.f32 %v4108, %v3755
      %v4173 = vmul.f32 %v4109, %v3756
      %v4174 = vmul.f32 %v4110, %v3757
      %v4175 = vmul.f32 %v4111, %v3758
      %v4176 = vmul.f32 %v4112, %v3759
      %v4177 = vmul.f32 %v4113, %v3760
      %v4178 = vadd.f32 %v4114, %v4115
      %4179 = vadd.xlane.f32.xlu0 %v4178
      %v4180 = vpop.xlane.xlu0 %4179
      %v4181 = vadd.f32 %v4116, %v4117
      %4182 = vadd.xlane.f32.xlu0 %v4181
      %v4183 = vpop.xlane.xlu0 %4182
      %v4184 = vadd.f32 %v4118, %v4119
      %4185 = vadd.xlane.f32.xlu0 %v4184
      %v4186 = vpop.xlane.xlu0 %4185
      %v4187 = vadd.f32 %v4120, %v4121
      %4188 = vadd.xlane.f32.xlu0 %v4187
      %v4189 = vpop.xlane.xlu0 %4188
      %v4190 = vadd.f32 %v4122, %v4123
      %4191 = vadd.xlane.f32.xlu0 %v4190
      %v4192 = vpop.xlane.xlu0 %4191
      %v4193 = vadd.f32 %v4124, %v4125
      %4194 = vadd.xlane.f32.xlu0 %v4193
      %v4195 = vpop.xlane.xlu0 %4194
      %v4196 = vadd.f32 %v4126, %v4127
      %4197 = vadd.xlane.f32.xlu0 %v4196
      %v4198 = vpop.xlane.xlu0 %4197
      %v4199 = vadd.f32 %v4128, %v4129
      %4200 = vadd.xlane.f32.xlu0 %v4199
      %v4201 = vpop.xlane.xlu0 %4200
      %v4202 = vadd.f32 %v4130, %v4131
      %4203 = vadd.xlane.f32.xlu0 %v4202
      %v4204 = vpop.xlane.xlu0 %4203
      %v4205 = vadd.f32 %v4132, %v4133
      %4206 = vadd.xlane.f32.xlu0 %v4205
      %v4207 = vpop.xlane.xlu0 %4206
      %v4208 = vadd.f32 %v4134, %v4135
      %4209 = vadd.xlane.f32.xlu0 %v4208
      %v4210 = vpop.xlane.xlu0 %4209
      %v4211 = vadd.f32 %v4136, %v4137
      %4212 = vadd.xlane.f32.xlu0 %v4211
      %v4213 = vpop.xlane.xlu0 %4212
      %v4214 = vadd.f32 %v4138, %v4139
      %4215 = vadd.xlane.f32.xlu0 %v4214
      %v4216 = vpop.xlane.xlu0 %4215
      %v4217 = vadd.f32 %v4140, %v4141
      %4218 = vadd.xlane.f32.xlu0 %v4217
      %v4219 = vpop.xlane.xlu0 %4218
      %v4220 = vadd.f32 %v4142, %v4143
      %4221 = vadd.xlane.f32.xlu0 %v4220
      %v4222 = vpop.xlane.xlu0 %4221
      %v4223 = vadd.f32 %v4144, %v4145
      %4224 = vadd.xlane.f32.xlu0 %v4223
      %v4225 = vpop.xlane.xlu0 %4224
      %v4226 = vadd.f32 %v4146, %v4147
      %4227 = vadd.xlane.f32.xlu0 %v4226
      %v4228 = vpop.xlane.xlu0 %4227
      %v4229 = vadd.f32 %v4148, %v4149
      %4230 = vadd.xlane.f32.xlu0 %v4229
      %v4231 = vpop.xlane.xlu0 %4230
      %v4232 = vadd.f32 %v4150, %v4151
      %4233 = vadd.xlane.f32.xlu0 %v4232
      %v4234 = vpop.xlane.xlu0 %4233
      %v4235 = vadd.f32 %v4152, %v4153
      %4236 = vadd.xlane.f32.xlu0 %v4235
      %v4237 = vpop.xlane.xlu0 %4236
      %v4238 = vadd.f32 %v4154, %v4155
      %4239 = vadd.xlane.f32.xlu0 %v4238
      %v4240 = vpop.xlane.xlu0 %4239
      %v4241 = vadd.f32 %v4156, %v4157
      %4242 = vadd.xlane.f32.xlu0 %v4241
      %v4243 = vpop.xlane.xlu0 %4242
      %v4244 = vadd.f32 %v4158, %v4159
      %4245 = vadd.xlane.f32.xlu0 %v4244
      %v4246 = vpop.xlane.xlu0 %4245
      %v4247 = vadd.f32 %v4160, %v4161
      %4248 = vadd.xlane.f32.xlu0 %v4247
      %v4249 = vpop.xlane.xlu0 %4248
      %v4250 = vadd.f32 %v4162, %v4163
      %4251 = vadd.xlane.f32.xlu0 %v4250
      %v4252 = vpop.xlane.xlu0 %4251
      %v4253 = vadd.f32 %v4164, %v4165
      %4254 = vadd.xlane.f32.xlu0 %v4253
      %v4255 = vpop.xlane.xlu0 %4254
      %v4256 = vadd.f32 %v4166, %v4167
      %4257 = vadd.xlane.f32.xlu0 %v4256
      %v4258 = vpop.xlane.xlu0 %4257
      %v4259 = vadd.f32 %v4168, %v4169
      %4260 = vadd.xlane.f32.xlu0 %v4259
      %v4261 = vpop.xlane.xlu0 %4260
      %v4262 = vadd.f32 %v4170, %v4171
      %4263 = vadd.xlane.f32.xlu0 %v4262
      %v4264 = vpop.xlane.xlu0 %4263
      %v4265 = vadd.f32 %v4172, %v4173
      %4266 = vadd.xlane.f32.xlu0 %v4265
      %v4267 = vpop.xlane.xlu0 %4266
      %v4268 = vadd.f32 %v4174, %v4175
      %4269 = vadd.xlane.f32.xlu0 %v4268
      %v4270 = vpop.xlane.xlu0 %4269
      %v4271 = vadd.f32 %v4176, %v4177
      %4272 = vadd.xlane.f32.xlu0 %v4271
      %v4273 = vpop.xlane.xlu0 %4272
      %v4274 = vand.u32 2147483647, %v4180
      %v4275 = vand.u32 2147483647, %v4183
      %v4276 = vand.u32 2147483647, %v4186
      %v4277 = vand.u32 2147483647, %v4189
      %v4278 = vand.u32 2147483647, %v4192
      %v4279 = vand.u32 2147483647, %v4195
      %v4280 = vand.u32 2147483647, %v4198
      %v4281 = vand.u32 2147483647, %v4201
      %v4282 = vand.u32 2147483647, %v4204
      %v4283 = vand.u32 2147483647, %v4207
      %v4284 = vand.u32 2147483647, %v4210
      %v4285 = vand.u32 2147483647, %v4213
      %v4286 = vand.u32 2147483647, %v4216
      %v4287 = vand.u32 2147483647, %v4219
      %v4288 = vand.u32 2147483647, %v4222
      %v4289 = vand.u32 2147483647, %v4225
      %v4290 = vand.u32 2147483647, %v4228
      %v4291 = vand.u32 2147483647, %v4231
      %v4292 = vand.u32 2147483647, %v4234
      %v4293 = vand.u32 2147483647, %v4237
      %v4294 = vand.u32 2147483647, %v4240
      %v4295 = vand.u32 2147483647, %v4243
      %v4296 = vand.u32 2147483647, %v4246
      %v4297 = vand.u32 2147483647, %v4249
      %v4298 = vand.u32 2147483647, %v4252
      %v4299 = vand.u32 2147483647, %v4255
      %v4300 = vand.u32 2147483647, %v4258
      %v4301 = vand.u32 2147483647, %v4261
      %v4302 = vand.u32 2147483647, %v4264
      %v4303 = vand.u32 2147483647, %v4267
      %v4304 = vand.u32 2147483647, %v4270
      %v4305 = vand.u32 2147483647, %v4273
      %v4306 = vmax.f32 %v4274, %v2807
      %v4307 = vmax.f32 %v4275, %v2809
      %v4308 = vmax.f32 %v4276, %v2811
      %v4309 = vmax.f32 %v4277, %v2813
      %v4310 = vmax.f32 %v4278, %v2815
      %v4311 = vmax.f32 %v4279, %v2817
      %v4312 = vmax.f32 %v4280, %v2819
      %v4313 = vmax.f32 %v4281, %v2821
      %v4314 = vmax.f32 %v4282, %v2823
      %v4315 = vmax.f32 %v4283, %v2825
      %v4316 = vmax.f32 %v4284, %v2827
      %v4317 = vmax.f32 %v4285, %v2829
      %v4318 = vmax.f32 %v4286, %v2831
      %v4319 = vmax.f32 %v4287, %v2833
      %v4320 = vmax.f32 %v4288, %v2835
      %v4321 = vmax.f32 %v4289, %v2837
      %v4322 = vmax.f32 %v4290, %v2839
      %v4323 = vmax.f32 %v4291, %v2841
      %v4324 = vmax.f32 %v4292, %v2843
      %v4325 = vmax.f32 %v4293, %v2845
      %v4326 = vmax.f32 %v4294, %v2847
      %v4327 = vmax.f32 %v4295, %v2849
      %v4328 = vmax.f32 %v4296, %v2851
      %v4329 = vmax.f32 %v4297, %v2853
      %v4330 = vmax.f32 %v4298, %v2855
      %v4331 = vmax.f32 %v4299, %v2857
      %v4332 = vmax.f32 %v4300, %v2859
      %v4333 = vmax.f32 %v4301, %v2861
      %v4334 = vmax.f32 %v4302, %v2863
      %v4335 = vmax.f32 %v4303, %v2865
      %v4336 = vmax.f32 %v4304, %v2867
      %v4337 = vmax.f32 %v4305, %v2869
      %v4338 = vadd.f32 %v4306, 1e-06
      %v4339 = vadd.f32 %v4307, 1e-06
      %v4340 = vadd.f32 %v4308, 1e-06
      %v4341 = vadd.f32 %v4309, 1e-06
      %v4342 = vadd.f32 %v4310, 1e-06
      %v4343 = vadd.f32 %v4311, 1e-06
      %v4344 = vadd.f32 %v4312, 1e-06
      %v4345 = vadd.f32 %v4313, 1e-06
      %v4346 = vadd.f32 %v4314, 1e-06
      %v4347 = vadd.f32 %v4315, 1e-06
      %v4348 = vadd.f32 %v4316, 1e-06
      %v4349 = vadd.f32 %v4317, 1e-06
      %v4350 = vadd.f32 %v4318, 1e-06
      %v4351 = vadd.f32 %v4319, 1e-06
      %v4352 = vadd.f32 %v4320, 1e-06
      %v4353 = vadd.f32 %v4321, 1e-06
      %v4354 = vadd.f32 %v4322, 1e-06
      %v4355 = vadd.f32 %v4323, 1e-06
      %v4356 = vadd.f32 %v4324, 1e-06
      %v4357 = vadd.f32 %v4325, 1e-06
      %v4358 = vadd.f32 %v4326, 1e-06
      %v4359 = vadd.f32 %v4327, 1e-06
      %v4360 = vadd.f32 %v4328, 1e-06
      %v4361 = vadd.f32 %v4329, 1e-06
      %v4362 = vadd.f32 %v4330, 1e-06
      %v4363 = vadd.f32 %v4331, 1e-06
      %v4364 = vadd.f32 %v4332, 1e-06
      %v4365 = vadd.f32 %v4333, 1e-06
      %v4366 = vadd.f32 %v4334, 1e-06
      %v4367 = vadd.f32 %v4335, 1e-06
      %v4368 = vadd.f32 %v4336, 1e-06
      %v4369 = vadd.f32 %v4337, 1e-06
      %v4370 = vrcp.pop %v4338
      %v4371 = vrcp.pop %v4339
      %v4372 = vrcp.pop %v4340
      %v4373 = vrcp.pop %v4341
      %v4374 = vrcp.pop %v4342
      %v4375 = vrcp.pop %v4343
      %v4376 = vrcp.pop %v4344
      %v4377 = vrcp.pop %v4345
      %v4378 = vrcp.pop %v4346
      %v4379 = vrcp.pop %v4347
      %v4380 = vrcp.pop %v4348
      %v4381 = vrcp.pop %v4349
      %v4382 = vrcp.pop %v4350
      %v4383 = vrcp.pop %v4351
      %v4384 = vrcp.pop %v4352
      %v4385 = vrcp.pop %v4353
      %v4386 = vrcp.pop %v4354
      %v4387 = vrcp.pop %v4355
      %v4388 = vrcp.pop %v4356
      %v4389 = vrcp.pop %v4357
      %v4390 = vrcp.pop %v4358
      %v4391 = vrcp.pop %v4359
      %v4392 = vrcp.pop %v4360
      %v4393 = vrcp.pop %v4361
      %v4394 = vrcp.pop %v4362
      %v4395 = vrcp.pop %v4363
      %v4396 = vrcp.pop %v4364
      %v4397 = vrcp.pop %v4365
      %v4398 = vrcp.pop %v4366
      %v4399 = vrcp.pop %v4367
      %v4400 = vrcp.pop %v4368
      %v4401 = vrcp.pop %v4369
      %4403 = vset.pattern.permute.xlu0 1
      %4404 = vperm.xlu0 %4403, %v4370
      %v4405 = vpop.permute.xlu0 %4404
      %4408 = vset.pattern.permute.xlu0 1
      %4409 = vperm.xlu0 %4408, %v4371
      %v4410 = vpop.permute.xlu0 %4409
      %4413 = vset.pattern.permute.xlu0 1
      %4414 = vperm.xlu0 %4413, %v4372
      %v4415 = vpop.permute.xlu0 %4414
      %4418 = vset.pattern.permute.xlu0 1
      %4419 = vperm.xlu0 %4418, %v4373
      %v4420 = vpop.permute.xlu0 %4419
      %4423 = vset.pattern.permute.xlu0 1
      %4424 = vperm.xlu0 %4423, %v4374
      %v4425 = vpop.permute.xlu0 %4424
      %4428 = vset.pattern.permute.xlu0 1
      %4429 = vperm.xlu0 %4428, %v4375
      %v4430 = vpop.permute.xlu0 %4429
      %4433 = vset.pattern.permute.xlu0 1
      %4434 = vperm.xlu0 %4433, %v4376
      %v4435 = vpop.permute.xlu0 %4434
      %4438 = vset.pattern.permute.xlu0 1
      %4439 = vperm.xlu0 %4438, %v4377
      %v4440 = vpop.permute.xlu0 %4439
      %4443 = vset.pattern.permute.xlu0 1
      %4444 = vperm.xlu0 %4443, %v4378
      %v4445 = vpop.permute.xlu0 %4444
      %4448 = vset.pattern.permute.xlu0 1
      %4449 = vperm.xlu0 %4448, %v4379
      %v4450 = vpop.permute.xlu0 %4449
      %4453 = vset.pattern.permute.xlu0 1
      %4454 = vperm.xlu0 %4453, %v4380
      %v4455 = vpop.permute.xlu0 %4454
      %4458 = vset.pattern.permute.xlu0 1
      %4459 = vperm.xlu0 %4458, %v4381
      %v4460 = vpop.permute.xlu0 %4459
      %4463 = vset.pattern.permute.xlu0 1
      %4464 = vperm.xlu0 %4463, %v4382
      %v4465 = vpop.permute.xlu0 %4464
      %4468 = vset.pattern.permute.xlu0 1
      %4469 = vperm.xlu0 %4468, %v4383
      %v4470 = vpop.permute.xlu0 %4469
      %4473 = vset.pattern.permute.xlu0 1
      %4474 = vperm.xlu0 %4473, %v4384
      %v4475 = vpop.permute.xlu0 %4474
      %4478 = vset.pattern.permute.xlu0 1
      %4479 = vperm.xlu0 %4478, %v4385
      %v4480 = vpop.permute.xlu0 %4479
      %4483 = vset.pattern.permute.xlu0 1
      %4484 = vperm.xlu0 %4483, %v4386
      %v4485 = vpop.permute.xlu0 %4484
      %4488 = vset.pattern.permute.xlu0 1
      %4489 = vperm.xlu0 %4488, %v4387
      %v4490 = vpop.permute.xlu0 %4489
      %4493 = vset.pattern.permute.xlu0 1
      %4494 = vperm.xlu0 %4493, %v4388
      %v4495 = vpop.permute.xlu0 %4494
      %4498 = vset.pattern.permute.xlu0 1
      %4499 = vperm.xlu0 %4498, %v4389
      %v4500 = vpop.permute.xlu0 %4499
      %4503 = vset.pattern.permute.xlu0 1
      %4504 = vperm.xlu0 %4503, %v4390
      %v4505 = vpop.permute.xlu0 %4504
      %4508 = vset.pattern.permute.xlu0 1
      %4509 = vperm.xlu0 %4508, %v4391
      %v4510 = vpop.permute.xlu0 %4509
      %4513 = vset.pattern.permute.xlu0 1
      %4514 = vperm.xlu0 %4513, %v4392
      %v4515 = vpop.permute.xlu0 %4514
      %4518 = vset.pattern.permute.xlu0 1
      %4519 = vperm.xlu0 %4518, %v4393
      %v4520 = vpop.permute.xlu0 %4519
      %4523 = vset.pattern.permute.xlu0 1
      %4524 = vperm.xlu0 %4523, %v4394
      %v4525 = vpop.permute.xlu0 %4524
      %4528 = vset.pattern.permute.xlu0 1
      %4529 = vperm.xlu0 %4528, %v4395
      %v4530 = vpop.permute.xlu0 %4529
      %4533 = vset.pattern.permute.xlu0 1
      %4534 = vperm.xlu0 %4533, %v4396
      %v4535 = vpop.permute.xlu0 %4534
      %4538 = vset.pattern.permute.xlu0 1
      %4539 = vperm.xlu0 %4538, %v4397
      %v4540 = vpop.permute.xlu0 %4539
      %4543 = vset.pattern.permute.xlu0 1
      %4544 = vperm.xlu0 %4543, %v4398
      %v4545 = vpop.permute.xlu0 %4544
      %4548 = vset.pattern.permute.xlu0 1
      %4549 = vperm.xlu0 %4548, %v4399
      %v4550 = vpop.permute.xlu0 %4549
      %4553 = vset.pattern.permute.xlu0 1
      %4554 = vperm.xlu0 %4553, %v4400
      %v4555 = vpop.permute.xlu0 %4554
      %4558 = vset.pattern.permute.xlu0 1
      %4559 = vperm.xlu0 %4558, %v4401
      %v4560 = vpop.permute.xlu0 %4559
      %v4562 = vmul.f32 %v4114, %v4405
      %v4563 = vmul.f32 %v4115, %v4405
      %v4564 = vmul.f32 %v4116, %v4410
      %v4565 = vmul.f32 %v4117, %v4410
      %v4566 = vmul.f32 %v4118, %v4415
      %v4567 = vmul.f32 %v4119, %v4415
      %v4568 = vmul.f32 %v4120, %v4420
      %v4569 = vmul.f32 %v4121, %v4420
      %v4570 = vmul.f32 %v4122, %v4425
      %v4571 = vmul.f32 %v4123, %v4425
      %v4572 = vmul.f32 %v4124, %v4430
      %v4573 = vmul.f32 %v4125, %v4430
      %v4574 = vmul.f32 %v4126, %v4435
      %v4575 = vmul.f32 %v4127, %v4435
      %v4576 = vmul.f32 %v4128, %v4440
      %v4577 = vmul.f32 %v4129, %v4440
      %v4578 = vmul.f32 %v4130, %v4445
      %v4579 = vmul.f32 %v4131, %v4445
      %v4580 = vmul.f32 %v4132, %v4450
      %v4581 = vmul.f32 %v4133, %v4450
      %v4582 = vmul.f32 %v4134, %v4455
      %v4583 = vmul.f32 %v4135, %v4455
      %v4584 = vmul.f32 %v4136, %v4460
      %v4585 = vmul.f32 %v4137, %v4460
      %v4586 = vmul.f32 %v4138, %v4465
      %v4587 = vmul.f32 %v4139, %v4465
      %v4588 = vmul.f32 %v4140, %v4470
      %v4589 = vmul.f32 %v4141, %v4470
      %v4590 = vmul.f32 %v4142, %v4475
      %v4591 = vmul.f32 %v4143, %v4475
      %v4592 = vmul.f32 %v4144, %v4480
      %v4593 = vmul.f32 %v4145, %v4480
      %v4594 = vmul.f32 %v4146, %v4485
      %v4595 = vmul.f32 %v4147, %v4485
      %v4596 = vmul.f32 %v4148, %v4490
      %v4597 = vmul.f32 %v4149, %v4490
      %v4598 = vmul.f32 %v4150, %v4495
      %v4599 = vmul.f32 %v4151, %v4495
      %v4600 = vmul.f32 %v4152, %v4500
      %v4601 = vmul.f32 %v4153, %v4500
      %v4602 = vmul.f32 %v4154, %v4505
      %v4603 = vmul.f32 %v4155, %v4505
      %v4604 = vmul.f32 %v4156, %v4510
      %v4605 = vmul.f32 %v4157, %v4510
      %v4606 = vmul.f32 %v4158, %v4515
      %v4607 = vmul.f32 %v4159, %v4515
      %v4608 = vmul.f32 %v4160, %v4520
      %v4609 = vmul.f32 %v4161, %v4520
      %v4610 = vmul.f32 %v4162, %v4525
      %v4611 = vmul.f32 %v4163, %v4525
      %v4612 = vmul.f32 %v4164, %v4530
      %v4613 = vmul.f32 %v4165, %v4530
      %v4614 = vmul.f32 %v4166, %v4535
      %v4615 = vmul.f32 %v4167, %v4535
      %v4616 = vmul.f32 %v4168, %v4540
      %v4617 = vmul.f32 %v4169, %v4540
      %v4618 = vmul.f32 %v4170, %v4545
      %v4619 = vmul.f32 %v4171, %v4545
      %v4620 = vmul.f32 %v4172, %v4550
      %v4621 = vmul.f32 %v4173, %v4550
      %v4622 = vmul.f32 %v4174, %v4555
      %v4623 = vmul.f32 %v4175, %v4555
      %v4624 = vmul.f32 %v4176, %v4560
      %v4625 = vmul.f32 %v4177, %v4560
      %v4626 = vpack.c.bf16 %v4564, %v4562
      %v4627 = vpack.c.bf16 %v4565, %v4563
      %v4628 = vpack.c.bf16 %v4568, %v4566
      %v4629 = vpack.c.bf16 %v4569, %v4567
      %v4630 = vpack.c.bf16 %v4572, %v4570
      %v4631 = vpack.c.bf16 %v4573, %v4571
      %v4632 = vpack.c.bf16 %v4576, %v4574
      %v4633 = vpack.c.bf16 %v4577, %v4575
      %v4634 = vpack.c.bf16 %v4580, %v4578
      %v4635 = vpack.c.bf16 %v4581, %v4579
      %v4636 = vpack.c.bf16 %v4584, %v4582
      %v4637 = vpack.c.bf16 %v4585, %v4583
      %v4638 = vpack.c.bf16 %v4588, %v4586
      %v4639 = vpack.c.bf16 %v4589, %v4587
      %v4640 = vpack.c.bf16 %v4592, %v4590
      %v4641 = vpack.c.bf16 %v4593, %v4591
      %v4642 = vpack.c.bf16 %v4596, %v4594
      %v4643 = vpack.c.bf16 %v4597, %v4595
      %v4644 = vpack.c.bf16 %v4600, %v4598
      %v4645 = vpack.c.bf16 %v4601, %v4599
      %v4646 = vpack.c.bf16 %v4604, %v4602
      %v4647 = vpack.c.bf16 %v4605, %v4603
      %v4648 = vpack.c.bf16 %v4608, %v4606
      %v4649 = vpack.c.bf16 %v4609, %v4607
      %v4650 = vpack.c.bf16 %v4612, %v4610
      %v4651 = vpack.c.bf16 %v4613, %v4611
      %v4652 = vpack.c.bf16 %v4616, %v4614
      %v4653 = vpack.c.bf16 %v4617, %v4615
      %v4654 = vpack.c.bf16 %v4620, %v4618
      %v4655 = vpack.c.bf16 %v4621, %v4619
      %v4656 = vpack.c.bf16 %v4624, %v4622
      %v4657 = vpack.c.bf16 %v4625, %v4623
      %v4660 = vrot.slane %v757, 2
      %v4661 = vrot.slane %v758, 2
      %4664 = vmatprep.subr.bf16.mxu0 %v4627
      %4665 = vmatpush1.bf16.xpose.msra.mxu0 %v4626
      %4666 = vmatprep.subr.bf16.mxu0 %v4629
      %4667 = vmatpush1.bf16.xpose.msra.mxu0 %v4628
      %4668 = vmatprep.subr.bf16.mxu0 %v4631
      %4669 = vmatpush1.bf16.xpose.msra.mxu0 %v4630
      %4670 = vmatprep.subr.bf16.mxu0 %v4633
      %4671 = vmatpush1.bf16.xpose.msra.mxu0 %v4632
      %4672 = vmatprep.subr.bf16.mxu0 %v4635
      %4673 = vmatpush1.bf16.xpose.msra.mxu0 %v4634
      %4674 = vmatprep.subr.bf16.mxu0 %v4637
      %4675 = vmatpush1.bf16.xpose.msra.mxu0 %v4636
      %4676 = vmatprep.subr.bf16.mxu0 %v4639
      %4677 = vmatpush1.bf16.xpose.msra.mxu0 %v4638
      %4678 = vmatprep.subr.bf16.mxu0 %v4641
      %4679 = vmatpush1.bf16.xpose.msra.mxu0 %v4640
      %4680 = vmatprep.subr.bf16.mxu0 %v4643
      %4681 = vmatpush1.bf16.xpose.msra.mxu0 %v4642
      %4682 = vmatprep.subr.bf16.mxu0 %v4645
      %4683 = vmatpush1.bf16.xpose.msra.mxu0 %v4644
      %4684 = vmatprep.subr.bf16.mxu0 %v4647
      %4685 = vmatpush1.bf16.xpose.msra.mxu0 %v4646
      %4686 = vmatprep.subr.bf16.mxu0 %v4649
      %4687 = vmatpush1.bf16.xpose.msra.mxu0 %v4648
      %4688 = vmatprep.subr.bf16.mxu0 %v4651
      %4689 = vmatpush1.bf16.xpose.msra.mxu0 %v4650
      %4690 = vmatprep.subr.bf16.mxu0 %v4653
      %4691 = vmatpush1.bf16.xpose.msra.mxu0 %v4652
      %4692 = vmatprep.subr.bf16.mxu0 %v4655
      %4693 = vmatpush1.bf16.xpose.msra.mxu0 %v4654
      %4694 = vmatprep.subr.bf16.mxu0 %v4657
      %4695 = vmatpush1.bf16.xpose.msra.mxu0 %v4656
      %4696 = vmatprep.mubr.bf16.mxu0 %v4661
      %4697 = vmatmul.mubr.bf16.gmra.mrb[0].mxu0 %v4660
      %v4698 = vpop.f32.mrb[0].mxu0
      %v4699 = vadd.f32 0.0, %v4698
      %v4700 = vpop.f32.mrb[0].mxu0
      %v4701 = vadd.f32 0.0, %v4700
      %v4702 = vpop.f32.mrb[0].mxu0
      %v4703 = vpop.f32.mrb[0].mxu0
      %4704 = vdwg.mxu0
      %v4705 = vsel %vm286, %v4699, 0.0
      %v4706 = vrot.slane %v4705, 4
      %v4707 = vadd.f32 %v4705, %v4706
      %v4708 = vrot.slane %v4707, 2
      %v4709 = vadd.f32 %v4707, %v4708
      %v4710 = vrot.slane %v4709, 1
      %v4711 = vadd.f32 %v4709, %v4710
      %v4712 = vsel %vm286, %v4701, 0.0
      %v4713 = vrot.slane %v4712, 4
      %v4714 = vadd.f32 %v4712, %v4713
      %v4715 = vrot.slane %v4714, 2
      %v4716 = vadd.f32 %v4714, %v4715
      %v4717 = vrot.slane %v4716, 1
      %v4718 = vadd.f32 %v4716, %v4717
      %v4719 = vmul.f32 %v4711, %v301
      %v4720 = vmul.f32 %v4718, %v301
      %v4721 = vsub.f32 %v4699, %v4719
      %v4722 = vsub.f32 %v4701, %v4720
      %v4723 = vmul.f32 %v4721, %v4721
      %v4724 = vmul.f32 %v4722, %v4722
      %v4725 = vsel %vm286, %v4723, 0.0
      %v4726 = vrot.slane %v4725, 4
      %v4727 = vadd.f32 %v4725, %v4726
      %v4728 = vrot.slane %v4727, 2
      %v4729 = vadd.f32 %v4727, %v4728
      %v4730 = vrot.slane %v4729, 1
      %v4731 = vadd.f32 %v4729, %v4730
      %v4732 = vsel %vm286, %v4724, 0.0
      %v4733 = vrot.slane %v4732, 4
      %v4734 = vadd.f32 %v4732, %v4733
      %v4735 = vrot.slane %v4734, 2
      %v4736 = vadd.f32 %v4734, %v4735
      %v4737 = vrot.slane %v4736, 1
      %v4738 = vadd.f32 %v4736, %v4737
      %v4739 = vmul.f32 %v4731, %v301
      %v4740 = vmul.f32 %v4738, %v301
      %v4741 = vadd.f32 %v4739, 1e-05
      %v4742 = vadd.f32 %v4740, 1e-05
      %v4743 = vrsqrt.pop %v4741
      %v4744 = vrsqrt.pop %v4742
      %v4745 = vmul.f32 %v4721, %v4743
      %v4746 = vmul.f32 %v4722, %v4744
      %v4749 = vrot.slane %v4745, 4
      %v4750 = vrot.slane %v4746, 4
      %v4753 = vsel %vm286, %v3303, %v4749
      %v4754 = vsel %vm286, %v3304, %v4750
      %4755 = vset.pattern.permute.xlu0 7
      %4756 = vperm.xlu0 %4755, %v281
      %v4757 = vpop.permute.xlu0 %4756
      %v4759 = vmul.f32 %v4753, %v4757
      %v4760 = vmul.f32 %v4754, %v4757
      %4761 = vset.pattern.permute.xlu0 8
      %4762 = vperm.xlu0 %4761, %v281
      %v4763 = vpop.permute.xlu0 %4762
      %v4765 = vadd.f32 %v4759, %v4763
      %v4766 = vadd.f32 %v4760, %v4763
      %4767 = vset.pattern.permute.xlu0 6
      %4768 = vperm.xlu0 %4767, %v281
      %v4769 = vpop.permute.xlu0 %4768
      %v4771 = vmul.f32 %v4769, %v647
      %v4772 = vmul.f32 %v4769, %v648
      %v4773 = vadd.f32 %v4765, %v4771
      %v4774 = vadd.f32 %v4766, %v4772
      %v4775 = vmul.f32 %v4773, %v450
      %v4776 = vmul.f32 %v4774, %v451
      %v4777 = vadd.f32 %v4775, 0.0
      %v4778 = vadd.f32 %v4776, 0.0
      %vm4779 = vcmp.lt.s32.totalorder %v518, 253
      %vm4780 = vcmp.lt.s32.totalorder %v519, 253
      %4781 = vrot.lane.b32.xlu0 %v430, 125
      %v4782 = vpop.permute.xlu0 %4781
      %4783 = vrot.lane.b32.xlu0 %v431, 125
      %v4784 = vpop.permute.xlu0 %4783
      %vm4785 = vcmp.lt.s32.totalorder %v518, 125
      %v4786 = vsel %vm4785, %v4782, %v4784
      %v4787 = vsel %vm4785, %v4784, %v4782
      %v4788 = vsel %vm4779, 1, 0
      %v4789 = vsel %vm4780, 1, 0
      %vm4790 = vcmp.eq.s32.totalorder %v4788, 1
      %vm4791 = vcmp.eq.s32.totalorder %v4789, 1
      %v4792 = vsel %vm4790, %v4786, 0.0
      %v4793 = vsel %vm4791, %v4787, 0.0
      %v4794 = vmul.f32 %v4792, %v575
      %v4795 = vmul.f32 %v4793, %v575
      %v4796 = vadd.f32 %v557, %v4794
      %v4797 = vadd.f32 %v557, %v4795
      %vm4798 = vcmp.lt.s32.totalorder %v518, 254
      %vm4799 = vcmp.lt.s32.totalorder %v519, 254
      %4800 = vrot.lane.b32.xlu0 %v430, 126
      %v4801 = vpop.permute.xlu0 %4800
      %4802 = vrot.lane.b32.xlu0 %v431, 126
      %v4803 = vpop.permute.xlu0 %4802
      %vm4804 = vcmp.lt.s32.totalorder %v518, 126
      %v4805 = vsel %vm4804, %v4801, %v4803
      %v4806 = vsel %vm4804, %v4803, %v4801
      %v4807 = vsel %vm4798, 1, 0
      %v4808 = vsel %vm4799, 1, 0
      %vm4809 = vcmp.eq.s32.totalorder %v4807, 1
      %vm4810 = vcmp.eq.s32.totalorder %v4808, 1
      %v4811 = vsel %vm4809, %v4805, 0.0
      %v4812 = vsel %vm4810, %v4806, 0.0
      %v4813 = vmul.f32 %v4811, %v598
      %v4814 = vmul.f32 %v4812, %v598
      %v4815 = vadd.f32 %v4796, %v4813
      %v4816 = vadd.f32 %v4797, %v4814
      %vm4817 = vcmp.lt.s32.totalorder %v518, 255
      %vm4818 = vcmp.lt.s32.totalorder %v519, 255
      %4819 = vrot.lane.b32.xlu0 %v430, 127
      %v4820 = vpop.permute.xlu0 %4819
      %4821 = vrot.lane.b32.xlu0 %v431, 127
      %v4822 = vpop.permute.xlu0 %4821
      %vm4823 = vcmp.lt.s32.totalorder %v518, 127
      %v4824 = vsel %vm4823, %v4820, %v4822
      %v4825 = vsel %vm4823, %v4822, %v4820
      %v4826 = vsel %vm4817, 1, 0
      %v4827 = vsel %vm4818, 1, 0
      %vm4828 = vcmp.eq.s32.totalorder %v4826, 1
      %vm4829 = vcmp.eq.s32.totalorder %v4827, 1
      %v4830 = vsel %vm4828, %v4824, 0.0
      %v4831 = vsel %vm4829, %v4825, 0.0
      %v4832 = vmul.f32 %v4830, %v621
      %v4833 = vmul.f32 %v4831, %v621
      %v4834 = vadd.f32 %v4815, %v4832
      %v4835 = vadd.f32 %v4816, %v4833
      %v4836 = vadd.f32 %v4834, %v631
      %v4837 = vadd.f32 %v4835, %v632
      %v4838 = vxor.u32 %v4836, 2147483648
      %v4839 = vxor.u32 %v4837, 2147483648
      %v4840 = vmul.f32 %v4838, 1.442695
      %v4841 = vpow.pop %v4840
      %v4842 = vmul.f32 %v4839, 1.442695
      %v4843 = vpow.pop %v4842
      %v4844 = vadd.f32 %v4841, 1.0
      %v4845 = vadd.f32 %v4843, 1.0
      %v4846 = vrcp.pop %v4844
      %v4847 = vmul.f32 1.0, %v4846
      %v4848 = vrcp.pop %v4845
      %v4849 = vmul.f32 1.0, %v4848
      %v4850 = vmul.f32 %v4836, %v4847
      %v4851 = vmul.f32 %v4837, %v4849
      %v4852 = vpack.c.bf16 %v4850, %v4850
      %v4853 = vpack.c.bf16 %v4851, %v4851
      %v4855 = vsel %vm286, %v4852, 0
      %v4858 = vsel %vm286, %v4853, 0
      %4860 = vmatprep.subr.bf16.mxu0 %v4858
      %4861 = vmatpush1.bf16.msra.mxu0 %v4855
      %4862 = vmatprep.subr.bf16.mxu0 0
      %4863 = vmatpush1.bf16.msra.mxu0 0
      %4864 = vmatprep.subr.bf16.mxu0 0
      %4865 = vmatpush1.bf16.msra.mxu0 0
      %4866 = vmatprep.subr.bf16.mxu0 0
      %4867 = vmatpush1.bf16.msra.mxu0 0
      %4868 = vmatprep.subr.bf16.mxu0 0
      %4869 = vmatpush1.bf16.msra.mxu0 0
      %4870 = vmatprep.subr.bf16.mxu0 0
      %4871 = vmatpush1.bf16.msra.mxu0 0
      %4872 = vmatprep.subr.bf16.mxu0 0
      %4873 = vmatpush1.bf16.msra.mxu0 0
      %4874 = vmatprep.subr.bf16.mxu0 0
      %4875 = vmatpush1.bf16.msra.mxu0 0
      %4876 = vmatprep.subr.bf16.mxu0 0
      %4877 = vmatpush1.bf16.msra.mxu0 0
      %4878 = vmatprep.subr.bf16.mxu0 0
      %4879 = vmatpush1.bf16.msra.mxu0 0
      %4880 = vmatprep.subr.bf16.mxu0 0
      %4881 = vmatpush1.bf16.msra.mxu0 0
      %4882 = vmatprep.subr.bf16.mxu0 0
      %4883 = vmatpush1.bf16.msra.mxu0 0
      %4884 = vmatprep.subr.bf16.mxu0 0
      %4885 = vmatpush1.bf16.msra.mxu0 0
      %4886 = vmatprep.subr.bf16.mxu0 0
      %4887 = vmatpush1.bf16.msra.mxu0 0
      %4888 = vmatprep.subr.bf16.mxu0 0
      %4889 = vmatpush1.bf16.msra.mxu0 0
      %4890 = vmatprep.subr.bf16.mxu0 0
      %4891 = vmatpush1.bf16.msra.mxu0 0
      %4892 = vmatprep.mubr.bf16.mxu0 0
      %4893 = vmatmul.mubr.bf16.gmra.mrb[0].mxu0 %v657
      %v4894 = vpop.f32.mrb[0].mxu0
      %v4895 = vadd.f32 %v654, %v4894
      %v4896 = vpop.f32.mrb[0].mxu0
      %v4897 = vadd.f32 %v654, %v4896
      %v4898 = vpop.f32.mrb[0].mxu0
      %v4899 = vpop.f32.mrb[0].mxu0
      %4900 = vdwg.mxu0
      %4901 = vmatprep.subr.bf16.mxu0 %v4858
      %4902 = vmatpush1.bf16.msra.mxu0 %v4855
      %4903 = vmatprep.subr.bf16.mxu0 0
      %4904 = vmatpush1.bf16.msra.mxu0 0
      %4905 = vmatprep.subr.bf16.mxu0 0
      %4906 = vmatpush1.bf16.msra.mxu0 0
      %4907 = vmatprep.subr.bf16.mxu0 0
      %4908 = vmatpush1.bf16.msra.mxu0 0
      %4909 = vmatprep.subr.bf16.mxu0 0
      %4910 = vmatpush1.bf16.msra.mxu0 0
      %4911 = vmatprep.subr.bf16.mxu0 0
      %4912 = vmatpush1.bf16.msra.mxu0 0
      %4913 = vmatprep.subr.bf16.mxu0 0
      %4914 = vmatpush1.bf16.msra.mxu0 0
      %4915 = vmatprep.subr.bf16.mxu0 0
      %4916 = vmatpush1.bf16.msra.mxu0 0
      %4917 = vmatprep.subr.bf16.mxu0 0
      %4918 = vmatpush1.bf16.msra.mxu0 0
      %4919 = vmatprep.subr.bf16.mxu0 0
      %4920 = vmatpush1.bf16.msra.mxu0 0
      %4921 = vmatprep.subr.bf16.mxu0 0
      %4922 = vmatpush1.bf16.msra.mxu0 0
      %4923 = vmatprep.subr.bf16.mxu0 0
      %4924 = vmatpush1.bf16.msra.mxu0 0
      %4925 = vmatprep.subr.bf16.mxu0 0
      %4926 = vmatpush1.bf16.msra.mxu0 0
      %4927 = vmatprep.subr.bf16.mxu0 0
      %4928 = vmatpush1.bf16.msra.mxu0 0
      %4929 = vmatprep.subr.bf16.mxu0 0
      %4930 = vmatpush1.bf16.msra.mxu0 0
      %4931 = vmatprep.subr.bf16.mxu0 0
      %4932 = vmatpush1.bf16.msra.mxu0 0
      %4933 = vmatprep.mubr.bf16.mxu0 0
      %4934 = vmatmul.mubr.bf16.gmra.mrb[0].mxu0 %v712
      %v4935 = vpop.f32.mrb[0].mxu0
      %v4936 = vadd.f32 %v709, %v4935
      %v4937 = vpop.f32.mrb[0].mxu0
      %v4938 = vadd.f32 %v709, %v4937
      %v4939 = vpop.f32.mrb[0].mxu0
      %v4940 = vpop.f32.mrb[0].mxu0
      %4941 = vdwg.mxu0
      %v4942 = vpack.c.bf16 %v4936, %v4895
      %v4943 = vpack.c.bf16 %v4938, %v4897
      %4944 = vmatprep.subr.bf16.mxu0 %v4943
      %4945 = vmatpush1.bf16.msra.mxu0 %v4942
      %4946 = vmatprep.subr.bf16.mxu0 %v772
      %4947 = vmatpush1.bf16.msra.mxu0 %v769
      %4948 = vmatprep.subr.bf16.mxu0 0
      %4949 = vmatpush1.bf16.msra.mxu0 0
      %4950 = vmatprep.subr.bf16.mxu0 0
      %4951 = vmatpush1.bf16.msra.mxu0 0
      %4952 = vmatprep.subr.bf16.mxu0 0
      %4953 = vmatpush1.bf16.msra.mxu0 0
      %4954 = vmatprep.subr.bf16.mxu0 0
      %4955 = vmatpush1.bf16.msra.mxu0 0
      %4956 = vmatprep.subr.bf16.mxu0 0
      %4957 = vmatpush1.bf16.msra.mxu0 0
      %4958 = vmatprep.subr.bf16.mxu0 0
      %4959 = vmatpush1.bf16.msra.mxu0 0
      %4960 = vmatprep.subr.bf16.mxu0 0
      %4961 = vmatpush1.bf16.msra.mxu0 0
      %4962 = vmatprep.subr.bf16.mxu0 0
      %4963 = vmatpush1.bf16.msra.mxu0 0
      %4964 = vmatprep.subr.bf16.mxu0 0
      %4965 = vmatpush1.bf16.msra.mxu0 0
      %4966 = vmatprep.subr.bf16.mxu0 0
      %4967 = vmatpush1.bf16.msra.mxu0 0
      %4968 = vmatprep.subr.bf16.mxu0 0
      %4969 = vmatpush1.bf16.msra.mxu0 0
      %4970 = vmatprep.subr.bf16.mxu0 0
      %4971 = vmatpush1.bf16.msra.mxu0 0
      %4972 = vmatprep.subr.bf16.mxu0 0
      %4973 = vmatpush1.bf16.msra.mxu0 0
      %4974 = vmatprep.subr.bf16.mxu0 0
      %4975 = vmatpush1.bf16.msra.mxu0 0
      %4976 = vmatprep.mubr.bf16.mxu0 0
      %4977 = vmatmul.mubr.bf16.gmra.mrb[0].mxu0 %v766
      %v4978 = vpop.f32.mrb[0].mxu0
      %v4979 = vadd.f32 %v762, %v4978
      %v4980 = vpop.f32.mrb[0].mxu0
      %v4981 = vadd.f32 %v762, %v4980
      %v4982 = vpop.f32.mrb[0].mxu0
      %v4983 = vpop.f32.mrb[0].mxu0
      %4984 = vdwg.mxu0
      %v4985 = vmin.f32 %v4979, 0.0
      %v4986 = vmin.f32 %v4981, 0.0
      %v4987 = vand.u32 2147483647, %v4979
      %v4988 = vand.u32 2147483647, %v4981
      %v4989 = vsub.f32 0.0, %v4987
      %v4990 = vsub.f32 0.0, %v4988
      %v4991 = vmul.f32 %v4989, 1.442695
      %v4992 = vpow.pop %v4991
      %v4993 = vmul.f32 %v4990, 1.442695
      %v4994 = vpow.pop %v4993
      %v4995 = vadd.f32 %v4992, 1.0
      %v4996 = vadd.f32 %v4994, 1.0
      %v4997 = vlog2.pop %v4995
      %v4998 = vmul.f32 %v4997, 0.6931472
      %v4999 = vlog2.pop %v4996
      %v5000 = vmul.f32 %v4999, 0.6931472
      %v5001 = vsub.f32 %v4985, %v4998
      %v5002 = vsub.f32 %v4986, %v5000
      %v5005 = vrot.slane %v5001, 2
      %v5006 = vrot.slane %v5002, 2
      %5009 = vrot.lane.b32.xlu0 %v5005, 127
      %v5010 = vpop.permute.xlu0 %5009
      %5011 = vrot.lane.b32.xlu0 %v5006, 127
      %v5012 = vpop.permute.xlu0 %5011
      %v5013 = vsel %vm4823, %v5010, %v5012
      %v5014 = vsel %vm4823, %v5012, %v5010
      %v5015 = vsel %vm4828, %v5013, 0.0
      %v5016 = vsel %vm4829, %v5014, 0.0
      %v5019 = vrot.slane %v5015, 6
      %v5020 = vrot.slane %v5016, 6
      %v5023 = vadd.f32 %v5001, %v5019
      %v5024 = vadd.f32 %v5002, %v5020
      %v5027 = vrot.slane %v5023, 2
      %v5028 = vrot.slane %v5024, 2
      %5031 = vrot.lane.b32.xlu0 %v5027, 126
      %v5032 = vpop.permute.xlu0 %5031
      %5033 = vrot.lane.b32.xlu0 %v5028, 126
      %v5034 = vpop.permute.xlu0 %5033
      %v5035 = vsel %vm4804, %v5032, %v5034
      %v5036 = vsel %vm4804, %v5034, %v5032
      %v5037 = vsel %vm4809, %v5035, 0.0
      %v5038 = vsel %vm4810, %v5036, 0.0
      %v5041 = vrot.slane %v5037, 6
      %v5042 = vrot.slane %v5038, 6
      %v5045 = vadd.f32 %v5023, %v5041
      %v5046 = vadd.f32 %v5024, %v5042
      %v5049 = vrot.slane %v5045, 2
      %v5050 = vrot.slane %v5046, 2
      %5053 = vrot.lane.b32.xlu0 %v5049, 124
      %v5054 = vpop.permute.xlu0 %5053
      %5055 = vrot.lane.b32.xlu0 %v5050, 124
      %v5056 = vpop.permute.xlu0 %5055
      %vm5057 = vcmp.lt.s32.totalorder %v518, 124
      %v5058 = vsel %vm5057, %v5054, %v5056
      %v5059 = vsel %vm5057, %v5056, %v5054
      %vm5060 = vcmp.lt.s32.totalorder %v518, 252
      %vm5061 = vcmp.lt.s32.totalorder %v519, 252
      %v5062 = vsel %vm5060, 1, 0
      %v5063 = vsel %vm5061, 1, 0
      %vm5064 = vcmp.eq.s32.totalorder %v5062, 1
      %vm5065 = vcmp.eq.s32.totalorder %v5063, 1
      %v5066 = vsel %vm5064, %v5058, 0.0
      %v5067 = vsel %vm5065, %v5059, 0.0
      %v5070 = vrot.slane %v5066, 6
      %v5071 = vrot.slane %v5067, 6
      %v5074 = vadd.f32 %v5045, %v5070
      %v5075 = vadd.f32 %v5046, %v5071
      %v5078 = vrot.slane %v5074, 2
      %v5079 = vrot.slane %v5075, 2
      %5082 = vrot.lane.b32.xlu0 %v5078, 120
      %v5083 = vpop.permute.xlu0 %5082
      %5084 = vrot.lane.b32.xlu0 %v5079, 120
      %v5085 = vpop.permute.xlu0 %5084
      %vm5086 = vcmp.lt.s32.totalorder %v518, 120
      %v5087 = vsel %vm5086, %v5083, %v5085
      %v5088 = vsel %vm5086, %v5085, %v5083
      %vm5089 = vcmp.lt.s32.totalorder %v518, 248
      %vm5090 = vcmp.lt.s32.totalorder %v519, 248
      %v5091 = vsel %vm5089, 1, 0
      %v5092 = vsel %vm5090, 1, 0
      %vm5093 = vcmp.eq.s32.totalorder %v5091, 1
      %vm5094 = vcmp.eq.s32.totalorder %v5092, 1
      %v5095 = vsel %vm5093, %v5087, 0.0
      %v5096 = vsel %vm5094, %v5088, 0.0
      %v5099 = vrot.slane %v5095, 6
      %v5100 = vrot.slane %v5096, 6
      %v5103 = vadd.f32 %v5074, %v5099
      %v5104 = vadd.f32 %v5075, %v5100
      %v5107 = vrot.slane %v5103, 2
      %v5108 = vrot.slane %v5104, 2
      %5111 = vrot.lane.b32.xlu0 %v5107, 112
      %v5112 = vpop.permute.xlu0 %5111
      %5113 = vrot.lane.b32.xlu0 %v5108, 112
      %v5114 = vpop.permute.xlu0 %5113
      %vm5115 = vcmp.lt.s32.totalorder %v518, 112
      %v5116 = vsel %vm5115, %v5112, %v5114
      %v5117 = vsel %vm5115, %v5114, %v5112
      %vm5118 = vcmp.lt.s32.totalorder %v518, 240
      %vm5119 = vcmp.lt.s32.totalorder %v519, 240
      %v5120 = vsel %vm5118, 1, 0
      %v5121 = vsel %vm5119, 1, 0
      %vm5122 = vcmp.eq.s32.totalorder %v5120, 1
      %vm5123 = vcmp.eq.s32.totalorder %v5121, 1
      %v5124 = vsel %vm5122, %v5116, 0.0
      %v5125 = vsel %vm5123, %v5117, 0.0
      %v5128 = vrot.slane %v5124, 6
      %v5129 = vrot.slane %v5125, 6
      %v5132 = vadd.f32 %v5103, %v5128
      %v5133 = vadd.f32 %v5104, %v5129
      %v5136 = vrot.slane %v5132, 2
      %v5137 = vrot.slane %v5133, 2
      %5140 = vrot.lane.b32.xlu0 %v5136, 96
      %v5141 = vpop.permute.xlu0 %5140
      %5142 = vrot.lane.b32.xlu0 %v5137, 96
      %v5143 = vpop.permute.xlu0 %5142
      %vm5144 = vcmp.lt.s32.totalorder %v518, 96
      %v5145 = vsel %vm5144, %v5141, %v5143
      %v5146 = vsel %vm5144, %v5143, %v5141
      %vm5147 = vcmp.lt.s32.totalorder %v518, 224
      %vm5148 = vcmp.lt.s32.totalorder %v519, 224
      %v5149 = vsel %vm5147, 1, 0
      %v5150 = vsel %vm5148, 1, 0
      %vm5151 = vcmp.eq.s32.totalorder %v5149, 1
      %vm5152 = vcmp.eq.s32.totalorder %v5150, 1
      %v5153 = vsel %vm5151, %v5145, 0.0
      %v5154 = vsel %vm5152, %v5146, 0.0
      %v5157 = vrot.slane %v5153, 6
      %v5158 = vrot.slane %v5154, 6
      %v5161 = vadd.f32 %v5132, %v5157
      %v5162 = vadd.f32 %v5133, %v5158
      %v5165 = vrot.slane %v5161, 2
      %v5166 = vrot.slane %v5162, 2
      %5169 = vrot.lane.b32.xlu0 %v5165, 64
      %v5170 = vpop.permute.xlu0 %5169
      %5171 = vrot.lane.b32.xlu0 %v5166, 64
      %v5172 = vpop.permute.xlu0 %5171
      %v5173 = vsel %vm1003, %v5170, %v5172
      %v5174 = vsel %vm1003, %v5172, %v5170
      %vm5175 = vcmp.lt.s32.totalorder %v518, 192
      %vm5176 = vcmp.lt.s32.totalorder %v519, 192
      %v5177 = vsel %vm5175, 1, 0
      %v5178 = vsel %vm5176, 1, 0
      %vm5179 = vcmp.eq.s32.totalorder %v5177, 1
      %vm5180 = vcmp.eq.s32.totalorder %v5178, 1
      %v5181 = vsel %vm5179, %v5173, 0.0
      %v5182 = vsel %vm5180, %v5174, 0.0
      %v5185 = vrot.slane %v5181, 6
      %v5186 = vrot.slane %v5182, 6
      %v5189 = vadd.f32 %v5161, %v5185
      %v5190 = vadd.f32 %v5162, %v5186
      %v5193 = vrot.slane %v5189, 2
      %v5194 = vrot.slane %v5190, 2
      %vm5197 = vcmp.lt.s32.totalorder %v518, 128
      %vm5198 = vcmp.lt.s32.totalorder %v519, 128
      %v5199 = vsel %vm5197, 1, 0
      %v5200 = vsel %vm5198, 1, 0
      %vm5201 = vcmp.eq.s32.totalorder %v5199, 1
      %vm5202 = vcmp.eq.s32.totalorder %v5200, 1
      %v5203 = vsel %vm5201, %v5194, 0.0
      %v5204 = vsel %vm5202, %v5193, 0.0
      %v5207 = vrot.slane %v5203, 6
      %v5208 = vrot.slane %v5204, 6
      %v5211 = vadd.f32 %v5189, %v5207
      %v5212 = vadd.f32 %v5190, %v5208
      %v5215 = vrot.slane %v5211, 2
      %v5216 = vrot.slane %v5212, 2
      %v5219 = vsub.f32 %v4979, %v5215
      %v5220 = vsub.f32 %v4981, %v5216
      %5221 = vrot.lane.b32.xlu0 %v5219, 127
      %v5222 = vpop.permute.xlu0 %5221
      %5223 = vrot.lane.b32.xlu0 %v5220, 127
      %v5224 = vpop.permute.xlu0 %5223
      %v5225 = vsel %vm4823, %v5222, %v5224
      %v5226 = vsel %vm4823, %v5224, %v5222
      %v5227 = vsel %vm4828, %v5225, -1e+30
      %v5228 = vsel %vm4829, %v5226, -1e+30
      %v5229 = vmax.f32 %v5219, %v5227
      %v5230 = vmax.f32 %v5220, %v5228
      %5231 = vrot.lane.b32.xlu0 %v5229, 126
      %v5232 = vpop.permute.xlu0 %5231
      %5233 = vrot.lane.b32.xlu0 %v5230, 126
      %v5234 = vpop.permute.xlu0 %5233
      %v5235 = vsel %vm4804, %v5232, %v5234
      %v5236 = vsel %vm4804, %v5234, %v5232
      %v5237 = vsel %vm4809, %v5235, -1e+30
      %v5238 = vsel %vm4810, %v5236, -1e+30
      %v5239 = vmax.f32 %v5229, %v5237
      %v5240 = vmax.f32 %v5230, %v5238
      %5241 = vrot.lane.b32.xlu0 %v5239, 124
      %v5242 = vpop.permute.xlu0 %5241
      %5243 = vrot.lane.b32.xlu0 %v5240, 124
      %v5244 = vpop.permute.xlu0 %5243
      %v5245 = vsel %vm5057, %v5242, %v5244
      %v5246 = vsel %vm5057, %v5244, %v5242
      %v5247 = vsel %vm5064, %v5245, -1e+30
      %v5248 = vsel %vm5065, %v5246, -1e+30
      %v5249 = vmax.f32 %v5239, %v5247
      %v5250 = vmax.f32 %v5240, %v5248
      %5251 = vrot.lane.b32.xlu0 %v5249, 120
      %v5252 = vpop.permute.xlu0 %5251
      %5253 = vrot.lane.b32.xlu0 %v5250, 120
      %v5254 = vpop.permute.xlu0 %5253
      %v5255 = vsel %vm5086, %v5252, %v5254
      %v5256 = vsel %vm5086, %v5254, %v5252
      %v5257 = vsel %vm5093, %v5255, -1e+30
      %v5258 = vsel %vm5094, %v5256, -1e+30
      %v5259 = vmax.f32 %v5249, %v5257
      %v5260 = vmax.f32 %v5250, %v5258
      %5261 = vrot.lane.b32.xlu0 %v5259, 112
      %v5262 = vpop.permute.xlu0 %5261
      %5263 = vrot.lane.b32.xlu0 %v5260, 112
      %v5264 = vpop.permute.xlu0 %5263
      %v5265 = vsel %vm5115, %v5262, %v5264
      %v5266 = vsel %vm5115, %v5264, %v5262
      %v5267 = vsel %vm5122, %v5265, -1e+30
      %v5268 = vsel %vm5123, %v5266, -1e+30
      %v5269 = vmax.f32 %v5259, %v5267
      %v5270 = vmax.f32 %v5260, %v5268
      %5271 = vrot.lane.b32.xlu0 %v5269, 96
      %v5272 = vpop.permute.xlu0 %5271
      %5273 = vrot.lane.b32.xlu0 %v5270, 96
      %v5274 = vpop.permute.xlu0 %5273
      %v5275 = vsel %vm5144, %v5272, %v5274
      %v5276 = vsel %vm5144, %v5274, %v5272
      %v5277 = vsel %vm5151, %v5275, -1e+30
      %v5278 = vsel %vm5152, %v5276, -1e+30
      %v5279 = vmax.f32 %v5269, %v5277
      %v5280 = vmax.f32 %v5270, %v5278
      %5281 = vrot.lane.b32.xlu0 %v5279, 64
      %v5282 = vpop.permute.xlu0 %5281
      %5283 = vrot.lane.b32.xlu0 %v5280, 64
      %v5284 = vpop.permute.xlu0 %5283
      %v5285 = vsel %vm1003, %v5282, %v5284
      %v5286 = vsel %vm1003, %v5284, %v5282
      %v5287 = vsel %vm5179, %v5285, -1e+30
      %v5288 = vsel %vm5180, %v5286, -1e+30
      %v5289 = vmax.f32 %v5279, %v5287
      %v5290 = vmax.f32 %v5280, %v5288
      %v5291 = vsel %vm5201, %v5290, -1e+30
      %v5292 = vsel %vm5202, %v5289, -1e+30
      %v5293 = vmax.f32 %v5289, %v5291
      %v5294 = vmax.f32 %v5290, %v5292
      %v5297 = vrot.slane %v5293, 6
      %v5298 = vrot.slane %v5294, 6
      %v5301 = vsel %vm375, %v5215, %v5297
      %v5302 = vsel %vm375, %v5216, %v5298
      %5303 = vxpose.xlu0.b32.start [1/16] %v5301, 128
      %5304 = vxpose.xlu0.b32.cont [2/16] 0.0, 128
      %5305 = vxpose.xlu0.b32.cont [3/16] 0.0, 128
      %5306 = vxpose.xlu0.b32.cont [4/16] 0.0, 128
      %5307 = vxpose.xlu0.b32.cont [5/16] 0.0, 128
      %5308 = vxpose.xlu0.b32.cont [6/16] 0.0, 128
      %5309 = vxpose.xlu0.b32.cont [7/16] 0.0, 128
      %5310 = vxpose.xlu0.b32.cont [8/16] 0.0, 128
      %5311 = vxpose.xlu0.b32.cont [9/16] 0.0, 128
      %5312 = vxpose.xlu0.b32.cont [10/16] 0.0, 128
      %5313 = vxpose.xlu0.b32.cont [11/16] 0.0, 128
      %5314 = vxpose.xlu0.b32.cont [12/16] 0.0, 128
      %5315 = vxpose.xlu0.b32.cont [13/16] 0.0, 128
      %5316 = vxpose.xlu0.b32.cont [14/16] 0.0, 128
      %5317 = vxpose.xlu0.b32.cont [15/16] 0.0, 128
      %5318 = vxpose.xlu0.b32.end [16/16] 0.0, 128
      %v5319 = vpop.trf.xlu0
      %v5320 = vpop.trf.xlu0
      %v5321 = vpop.trf.xlu0
      %v5322 = vpop.trf.xlu0
      %v5323 = vpop.trf.xlu0
      %v5324 = vpop.trf.xlu0
      %v5325 = vpop.trf.xlu0
      %v5326 = vpop.trf.xlu0
      %v5327 = vpop.trf.xlu0
      %v5328 = vpop.trf.xlu0
      %v5329 = vpop.trf.xlu0
      %v5330 = vpop.trf.xlu0
      %v5331 = vpop.trf.xlu0
      %v5332 = vpop.trf.xlu0
      %v5333 = vpop.trf.xlu0
      %v5334 = vpop.trf.xlu0
      %5335 = vxpose.xlu0.b32.start [1/16] %v5302, 128
      %5336 = vxpose.xlu0.b32.cont [2/16] 0.0, 128
      %5337 = vxpose.xlu0.b32.cont [3/16] 0.0, 128
      %5338 = vxpose.xlu0.b32.cont [4/16] 0.0, 128
      %5339 = vxpose.xlu0.b32.cont [5/16] 0.0, 128
      %5340 = vxpose.xlu0.b32.cont [6/16] 0.0, 128
      %5341 = vxpose.xlu0.b32.cont [7/16] 0.0, 128
      %5342 = vxpose.xlu0.b32.cont [8/16] 0.0, 128
      %5343 = vxpose.xlu0.b32.cont [9/16] 0.0, 128
      %5344 = vxpose.xlu0.b32.cont [10/16] 0.0, 128
      %5345 = vxpose.xlu0.b32.cont [11/16] 0.0, 128
      %5346 = vxpose.xlu0.b32.cont [12/16] 0.0, 128
      %5347 = vxpose.xlu0.b32.cont [13/16] 0.0, 128
      %5348 = vxpose.xlu0.b32.cont [14/16] 0.0, 128
      %5349 = vxpose.xlu0.b32.cont [15/16] 0.0, 128
      %5350 = vxpose.xlu0.b32.end [16/16] 0.0, 128
      %v5351 = vpop.trf.xlu0
      %v5352 = vpop.trf.xlu0
      %v5353 = vpop.trf.xlu0
      %v5354 = vpop.trf.xlu0
      %v5355 = vpop.trf.xlu0
      %v5356 = vpop.trf.xlu0
      %v5357 = vpop.trf.xlu0
      %v5358 = vpop.trf.xlu0
      %v5359 = vpop.trf.xlu0
      %v5360 = vpop.trf.xlu0
      %v5361 = vpop.trf.xlu0
      %v5362 = vpop.trf.xlu0
      %v5363 = vpop.trf.xlu0
      %v5364 = vpop.trf.xlu0
      %v5365 = vpop.trf.xlu0
      %v5366 = vpop.trf.xlu0
      %v5368 = vsel %vm371, %v5319, 0
      %v5371 = vsel %vm371, %v5320, 0
      %v5374 = vsel %vm371, %v5321, 0
      %v5377 = vsel %vm371, %v5322, 0
      %v5380 = vsel %vm371, %v5323, 0
      %v5383 = vsel %vm371, %v5324, 0
      %v5386 = vsel %vm371, %v5325, 0
      %v5389 = vsel %vm371, %v5326, 0
      %v5392 = vsel %vm371, %v5327, 0
      %v5395 = vsel %vm371, %v5328, 0
      %v5398 = vsel %vm371, %v5329, 0
      %v5401 = vsel %vm371, %v5330, 0
      %v5404 = vsel %vm371, %v5331, 0
      %v5407 = vsel %vm371, %v5332, 0
      %v5410 = vsel %vm371, %v5333, 0
      %v5413 = vsel %vm371, %v5334, 0
      %v5416 = vsel %vm371, %v5351, 0
      %v5419 = vsel %vm371, %v5352, 0
      %v5422 = vsel %vm371, %v5353, 0
      %v5425 = vsel %vm371, %v5354, 0
      %v5428 = vsel %vm371, %v5355, 0
      %v5431 = vsel %vm371, %v5356, 0
      %v5434 = vsel %vm371, %v5357, 0
      %v5437 = vsel %vm371, %v5358, 0
      %v5440 = vsel %vm371, %v5359, 0
      %v5443 = vsel %vm371, %v5360, 0
      %v5446 = vsel %vm371, %v5361, 0
      %v5449 = vsel %vm371, %v5362, 0
      %v5452 = vsel %vm371, %v5363, 0
      %v5455 = vsel %vm371, %v5364, 0
      %v5458 = vsel %vm371, %v5365, 0
      %v5461 = vsel %vm371, %v5366, 0
      %5463 = vmatprep.subr.mxu0 0.0
      %5464 = vmatpush1.msra.mxu0 %v1296
      %5465 = vmatprep.subr.mxu0 0.0
      %5466 = vmatpush1.msra.mxu0 0.0
      %5467 = vmatprep.subr.mxu0 0.0
      %5468 = vmatpush1.msra.mxu0 0.0
      %5469 = vmatprep.subr.mxu0 0.0
      %5470 = vmatpush1.msra.mxu0 0.0
      %5471 = vmatprep.subr.mxu0 0.0
      %5472 = vmatpush1.msra.mxu0 0.0
      %5473 = vmatprep.subr.mxu0 0.0
      %5474 = vmatpush1.msra.mxu0 0.0
      %5475 = vmatprep.subr.mxu0 0.0
      %5476 = vmatpush1.msra.mxu0 0.0
      %5477 = vmatprep.subr.mxu0 0.0
      %5478 = vmatpush1.msra.mxu0 0.0
      %5479 = vmatprep.subr.mxu0 0.0
      %5480 = vmatpush1.msra.mxu0 0.0
      %5481 = vmatprep.subr.mxu0 0.0
      %5482 = vmatpush1.msra.mxu0 0.0
      %5483 = vmatprep.subr.mxu0 0.0
      %5484 = vmatpush1.msra.mxu0 0.0
      %5485 = vmatprep.subr.mxu0 0.0
      %5486 = vmatpush1.msra.mxu0 0.0
      %5487 = vmatprep.subr.mxu0 0.0
      %5488 = vmatpush1.msra.mxu0 0.0
      %5489 = vmatprep.subr.mxu0 0.0
      %5490 = vmatpush1.msra.mxu0 0.0
      %5491 = vmatprep.subr.mxu0 0.0
      %5492 = vmatpush1.msra.mxu0 0.0
      %5493 = vmatprep.subr.mxu0 0.0
      %5494 = vmatpush1.msra.mxu0 0.0
      %5495 = vmatprep.subr.mxu0 0.0
      %5496 = vmatpush1.msra.mxu0 0.0
      %5497 = vmatprep.subr.mxu0 0.0
      %5498 = vmatpush1.msra.mxu0 0.0
      %5499 = vmatprep.subr.mxu0 0.0
      %5500 = vmatpush1.msra.mxu0 0.0
      %5501 = vmatprep.subr.mxu0 0.0
      %5502 = vmatpush1.msra.mxu0 0.0
      %5503 = vmatprep.subr.mxu0 0.0
      %5504 = vmatpush1.msra.mxu0 0.0
      %5505 = vmatprep.subr.mxu0 0.0
      %5506 = vmatpush1.msra.mxu0 0.0
      %5507 = vmatprep.subr.mxu0 0.0
      %5508 = vmatpush1.msra.mxu0 0.0
      %5509 = vmatprep.subr.mxu0 0.0
      %5510 = vmatpush1.msra.mxu0 0.0
      %5511 = vmatprep.subr.mxu0 0.0
      %5512 = vmatpush1.msra.mxu0 0.0
      %5513 = vmatprep.subr.mxu0 0.0
      %5514 = vmatpush1.msra.mxu0 0.0
      %5515 = vmatprep.subr.mxu0 0.0
      %5516 = vmatpush1.msra.mxu0 0.0
      %5517 = vmatprep.subr.mxu0 0.0
      %5518 = vmatpush1.msra.mxu0 0.0
      %5519 = vmatprep.subr.mxu0 0.0
      %5520 = vmatpush1.msra.mxu0 0.0
      %5521 = vmatprep.subr.mxu0 0.0
      %5522 = vmatpush1.msra.mxu0 0.0
      %5523 = vmatprep.subr.mxu0 0.0
      %5524 = vmatpush1.msra.mxu0 0.0
      %5525 = vmatprep.subr.mxu0 0.0
      %5526 = vmatpush1.msra.mxu0 0.0
      %5527 = vmatprep.mubr.f32.mxu0 0.0
      %5528 = vmatmul.mubr.f32.gmra.mrb[0].mxu0 %v5368
      %v5529 = vpop.f32.mrb[0].mxu0
      %v5530 = vadd.f32 0.0, %v5529
      %v5531 = vpop.f32.mrb[0].mxu0
      %5532 = vmatprep.mubr.f32.mxu0 0.0
      %5533 = vmatmul.mubr.f32.gmra.mrb[0].mxu0 %v5371
      %v5534 = vpop.f32.mrb[0].mxu0
      %v5535 = vadd.f32 0.0, %v5534
      %v5536 = vpop.f32.mrb[0].mxu0
      %5537 = vmatprep.mubr.f32.mxu0 0.0
      %5538 = vmatmul.mubr.f32.gmra.mrb[0].mxu0 %v5374
      %v5539 = vpop.f32.mrb[0].mxu0
      %v5540 = vadd.f32 0.0, %v5539
      %v5541 = vpop.f32.mrb[0].mxu0
      %5542 = vmatprep.mubr.f32.mxu0 0.0
      %5543 = vmatmul.mubr.f32.gmra.mrb[0].mxu0 %v5377
      %v5544 = vpop.f32.mrb[0].mxu0
      %v5545 = vadd.f32 0.0, %v5544
      %v5546 = vpop.f32.mrb[0].mxu0
      %5547 = vmatprep.mubr.f32.mxu0 0.0
      %5548 = vmatmul.mubr.f32.gmra.mrb[0].mxu0 %v5380
      %v5549 = vpop.f32.mrb[0].mxu0
      %v5550 = vadd.f32 0.0, %v5549
      %v5551 = vpop.f32.mrb[0].mxu0
      %5552 = vmatprep.mubr.f32.mxu0 0.0
      %5553 = vmatmul.mubr.f32.gmra.mrb[0].mxu0 %v5383
      %v5554 = vpop.f32.mrb[0].mxu0
      %v5555 = vadd.f32 0.0, %v5554
      %v5556 = vpop.f32.mrb[0].mxu0
      %5557 = vmatprep.mubr.f32.mxu0 0.0
      %5558 = vmatmul.mubr.f32.gmra.mrb[0].mxu0 %v5386
      %v5559 = vpop.f32.mrb[0].mxu0
      %v5560 = vadd.f32 0.0, %v5559
      %v5561 = vpop.f32.mrb[0].mxu0
      %5562 = vmatprep.mubr.f32.mxu0 0.0
      %5563 = vmatmul.mubr.f32.gmra.mrb[0].mxu0 %v5389
      %v5564 = vpop.f32.mrb[0].mxu0
      %v5565 = vadd.f32 0.0, %v5564
      %v5566 = vpop.f32.mrb[0].mxu0
      %5567 = vmatprep.mubr.f32.mxu0 0.0
      %5568 = vmatmul.mubr.f32.gmra.mrb[0].mxu0 %v5392
      %v5569 = vpop.f32.mrb[0].mxu0
      %v5570 = vadd.f32 0.0, %v5569
      %v5571 = vpop.f32.mrb[0].mxu0
      %5572 = vmatprep.mubr.f32.mxu0 0.0
      %5573 = vmatmul.mubr.f32.gmra.mrb[0].mxu0 %v5395
      %v5574 = vpop.f32.mrb[0].mxu0
      %v5575 = vadd.f32 0.0, %v5574
      %v5576 = vpop.f32.mrb[0].mxu0
      %5577 = vmatprep.mubr.f32.mxu0 0.0
      %5578 = vmatmul.mubr.f32.gmra.mrb[0].mxu0 %v5398
      %v5579 = vpop.f32.mrb[0].mxu0
      %v5580 = vadd.f32 0.0, %v5579
      %v5581 = vpop.f32.mrb[0].mxu0
      %5582 = vmatprep.mubr.f32.mxu0 0.0
      %5583 = vmatmul.mubr.f32.gmra.mrb[0].mxu0 %v5401
      %v5584 = vpop.f32.mrb[0].mxu0
      %v5585 = vadd.f32 0.0, %v5584
      %v5586 = vpop.f32.mrb[0].mxu0
      %5587 = vmatprep.mubr.f32.mxu0 0.0
      %5588 = vmatmul.mubr.f32.gmra.mrb[0].mxu0 %v5404
      %v5589 = vpop.f32.mrb[0].mxu0
      %v5590 = vadd.f32 0.0, %v5589
      %v5591 = vpop.f32.mrb[0].mxu0
      %5592 = vmatprep.mubr.f32.mxu0 0.0
      %5593 = vmatmul.mubr.f32.gmra.mrb[0].mxu0 %v5407
      %v5594 = vpop.f32.mrb[0].mxu0
      %v5595 = vadd.f32 0.0, %v5594
      %v5596 = vpop.f32.mrb[0].mxu0
      %5597 = vmatprep.mubr.f32.mxu0 0.0
      %5598 = vmatmul.mubr.f32.gmra.mrb[0].mxu0 %v5410
      %v5599 = vpop.f32.mrb[0].mxu0
      %v5600 = vadd.f32 0.0, %v5599
      %v5601 = vpop.f32.mrb[0].mxu0
      %5602 = vmatprep.mubr.f32.mxu0 0.0
      %5603 = vmatmul.mubr.f32.gmra.mrb[0].mxu0 %v5413
      %v5604 = vpop.f32.mrb[0].mxu0
      %v5605 = vadd.f32 0.0, %v5604
      %v5606 = vpop.f32.mrb[0].mxu0
      %5607 = vmatprep.mubr.f32.mxu0 0.0
      %5608 = vmatmul.mubr.f32.gmra.mrb[0].mxu0 %v5416
      %v5609 = vpop.f32.mrb[0].mxu0
      %v5610 = vadd.f32 0.0, %v5609
      %v5611 = vpop.f32.mrb[0].mxu0
      %5612 = vmatprep.mubr.f32.mxu0 0.0
      %5613 = vmatmul.mubr.f32.gmra.mrb[0].mxu0 %v5419
      %v5614 = vpop.f32.mrb[0].mxu0
      %v5615 = vadd.f32 0.0, %v5614
      %v5616 = vpop.f32.mrb[0].mxu0
      %5617 = vmatprep.mubr.f32.mxu0 0.0
      %5618 = vmatmul.mubr.f32.gmra.mrb[0].mxu0 %v5422
      %v5619 = vpop.f32.mrb[0].mxu0
      %v5620 = vadd.f32 0.0, %v5619
      %v5621 = vpop.f32.mrb[0].mxu0
      %5622 = vmatprep.mubr.f32.mxu0 0.0
      %5623 = vmatmul.mubr.f32.gmra.mrb[0].mxu0 %v5425
      %v5624 = vpop.f32.mrb[0].mxu0
      %v5625 = vadd.f32 0.0, %v5624
      %v5626 = vpop.f32.mrb[0].mxu0
      %5627 = vmatprep.mubr.f32.mxu0 0.0
      %5628 = vmatmul.mubr.f32.gmra.mrb[0].mxu0 %v5428
      %v5629 = vpop.f32.mrb[0].mxu0
      %v5630 = vadd.f32 0.0, %v5629
      %v5631 = vpop.f32.mrb[0].mxu0
      %5632 = vmatprep.mubr.f32.mxu0 0.0
      %5633 = vmatmul.mubr.f32.gmra.mrb[0].mxu0 %v5431
      %v5634 = vpop.f32.mrb[0].mxu0
      %v5635 = vadd.f32 0.0, %v5634
      %v5636 = vpop.f32.mrb[0].mxu0
      %5637 = vmatprep.mubr.f32.mxu0 0.0
      %5638 = vmatmul.mubr.f32.gmra.mrb[0].mxu0 %v5434
      %v5639 = vpop.f32.mrb[0].mxu0
      %v5640 = vadd.f32 0.0, %v5639
      %v5641 = vpop.f32.mrb[0].mxu0
      %5642 = vmatprep.mubr.f32.mxu0 0.0
      %5643 = vmatmul.mubr.f32.gmra.mrb[0].mxu0 %v5437
      %v5644 = vpop.f32.mrb[0].mxu0
      %v5645 = vadd.f32 0.0, %v5644
      %v5646 = vpop.f32.mrb[0].mxu0
      %5647 = vmatprep.mubr.f32.mxu0 0.0
      %5648 = vmatmul.mubr.f32.gmra.mrb[0].mxu0 %v5440
      %v5649 = vpop.f32.mrb[0].mxu0
      %v5650 = vadd.f32 0.0, %v5649
      %v5651 = vpop.f32.mrb[0].mxu0
      %5652 = vmatprep.mubr.f32.mxu0 0.0
      %5653 = vmatmul.mubr.f32.gmra.mrb[0].mxu0 %v5443
      %v5654 = vpop.f32.mrb[0].mxu0
      %v5655 = vadd.f32 0.0, %v5654
      %v5656 = vpop.f32.mrb[0].mxu0
      %5657 = vmatprep.mubr.f32.mxu0 0.0
      %5658 = vmatmul.mubr.f32.gmra.mrb[0].mxu0 %v5446
      %v5659 = vpop.f32.mrb[0].mxu0
      %v5660 = vadd.f32 0.0, %v5659
      %v5661 = vpop.f32.mrb[0].mxu0
      %5662 = vmatprep.mubr.f32.mxu0 0.0
      %5663 = vmatmul.mubr.f32.gmra.mrb[0].mxu0 %v5449
      %v5664 = vpop.f32.mrb[0].mxu0
      %v5665 = vadd.f32 0.0, %v5664
      %v5666 = vpop.f32.mrb[0].mxu0
      %5667 = vmatprep.mubr.f32.mxu0 0.0
      %5668 = vmatmul.mubr.f32.gmra.mrb[0].mxu0 %v5452
      %v5669 = vpop.f32.mrb[0].mxu0
      %v5670 = vadd.f32 0.0, %v5669
      %v5671 = vpop.f32.mrb[0].mxu0
      %5672 = vmatprep.mubr.f32.mxu0 0.0
      %5673 = vmatmul.mubr.f32.gmra.mrb[0].mxu0 %v5455
      %v5674 = vpop.f32.mrb[0].mxu0
      %v5675 = vadd.f32 0.0, %v5674
      %v5676 = vpop.f32.mrb[0].mxu0
      %5677 = vmatprep.mubr.f32.mxu0 0.0
      %5678 = vmatmul.mubr.f32.gmra.mrb[0].mxu0 %v5458
      %v5679 = vpop.f32.mrb[0].mxu0
      %v5680 = vadd.f32 0.0, %v5679
      %v5681 = vpop.f32.mrb[0].mxu0
      %5682 = vmatprep.mubr.f32.mxu0 0.0
      %5683 = vmatmul.mubr.f32.gmra.mrb[0].mxu0 %v5461
      %v5684 = vpop.f32.mrb[0].mxu0
      %v5685 = vadd.f32 0.0, %v5684
      %v5686 = vpop.f32.mrb[0].mxu0
      %5687 = vdwg.mxu0
      %vm5688 = vcmp.ge.s32.totalorder %v518, %v521
      %vm5689 = vcmp.ge.s32.totalorder %v519, %v521
      %vm5690 = vcmp.ge.s32.totalorder %v518, %v522
      %vm5691 = vcmp.ge.s32.totalorder %v519, %v522
      %vm5692 = vcmp.ge.s32.totalorder %v518, %v523
      %vm5693 = vcmp.ge.s32.totalorder %v519, %v523
      %vm5694 = vcmp.ge.s32.totalorder %v518, %v524
      %vm5695 = vcmp.ge.s32.totalorder %v519, %v524
      %vm5696 = vcmp.ge.s32.totalorder %v518, %v525
      %vm5697 = vcmp.ge.s32.totalorder %v519, %v525
      %vm5698 = vcmp.ge.s32.totalorder %v518, %v526
      %vm5699 = vcmp.ge.s32.totalorder %v519, %v526
      %vm5700 = vcmp.ge.s32.totalorder %v518, %v527
      %vm5701 = vcmp.ge.s32.totalorder %v519, %v527
      %vm5702 = vcmp.ge.s32.totalorder %v518, %v528
      %vm5703 = vcmp.ge.s32.totalorder %v519, %v528
      %vm5704 = vcmp.ge.s32.totalorder %v518, %v529
      %vm5705 = vcmp.ge.s32.totalorder %v519, %v529
      %vm5706 = vcmp.ge.s32.totalorder %v518, %v530
      %vm5707 = vcmp.ge.s32.totalorder %v519, %v530
      %vm5708 = vcmp.ge.s32.totalorder %v518, %v531
      %vm5709 = vcmp.ge.s32.totalorder %v519, %v531
      %vm5710 = vcmp.ge.s32.totalorder %v518, %v532
      %vm5711 = vcmp.ge.s32.totalorder %v519, %v532
      %vm5712 = vcmp.ge.s32.totalorder %v518, %v533
      %vm5713 = vcmp.ge.s32.totalorder %v519, %v533
      %vm5714 = vcmp.ge.s32.totalorder %v518, %v534
      %vm5715 = vcmp.ge.s32.totalorder %v519, %v534
      %vm5716 = vcmp.ge.s32.totalorder %v518, %v535
      %vm5717 = vcmp.ge.s32.totalorder %v519, %v535
      %vm5718 = vcmp.ge.s32.totalorder %v518, %v536
      %vm5719 = vcmp.ge.s32.totalorder %v519, %v536
      %vm5720 = vcmp.ge.s32.totalorder %v518, %v537
      %vm5721 = vcmp.ge.s32.totalorder %v519, %v537
      %vm5722 = vcmp.ge.s32.totalorder %v518, %v538
      %vm5723 = vcmp.ge.s32.totalorder %v519, %v538
      %vm5724 = vcmp.ge.s32.totalorder %v518, %v539
      %vm5725 = vcmp.ge.s32.totalorder %v519, %v539
      %vm5726 = vcmp.ge.s32.totalorder %v518, %v540
      %vm5727 = vcmp.ge.s32.totalorder %v519, %v540
      %vm5728 = vcmp.ge.s32.totalorder %v518, %v541
      %vm5729 = vcmp.ge.s32.totalorder %v519, %v541
      %vm5730 = vcmp.ge.s32.totalorder %v518, %v542
      %vm5731 = vcmp.ge.s32.totalorder %v519, %v542
      %vm5732 = vcmp.ge.s32.totalorder %v518, %v543
      %vm5733 = vcmp.ge.s32.totalorder %v519, %v543
      %vm5734 = vcmp.ge.s32.totalorder %v518, %v544
      %vm5735 = vcmp.ge.s32.totalorder %v519, %v544
      %vm5736 = vcmp.ge.s32.totalorder %v518, %v545
      %vm5737 = vcmp.ge.s32.totalorder %v519, %v545
      %vm5738 = vcmp.ge.s32.totalorder %v518, %v546
      %vm5739 = vcmp.ge.s32.totalorder %v519, %v546
      %vm5740 = vcmp.ge.s32.totalorder %v518, %v547
      %vm5741 = vcmp.ge.s32.totalorder %v519, %v547
      %vm5742 = vcmp.ge.s32.totalorder %v518, %v548
      %vm5743 = vcmp.ge.s32.totalorder %v519, %v548
      %vm5744 = vcmp.ge.s32.totalorder %v518, %v549
      %vm5745 = vcmp.ge.s32.totalorder %v519, %v549
      %vm5746 = vcmp.ge.s32.totalorder %v518, %v550
      %vm5747 = vcmp.ge.s32.totalorder %v519, %v550
      %vm5748 = vcmp.ge.s32.totalorder %v518, %v551
      %vm5749 = vcmp.ge.s32.totalorder %v519, %v551
      %vm5750 = vcmp.ge.s32.totalorder %v518, %v552
      %vm5751 = vcmp.ge.s32.totalorder %v519, %v552
      %v5752 = vlaneseq
      %v5753 = vshrl.u32 %v5752, 7
      %v5754 = vsub.s32 0, %v5753
      %v5755 = vrot.slane %v5219, %v5754
      %v5756 = vlaneseq
      %v5757 = vshrl.u32 %v5756, 7
      %v5758 = vsub.s32 0, %v5757
      %v5759 = vrot.slane %v5220, %v5758
      %5761 = vset.pattern.permute.xlu0 2
      %5762 = vperm.xlu0 %5761, %v5530
      %v5763 = vpop.permute.xlu0 %5762
      %5766 = vset.pattern.permute.xlu0 2
      %5767 = vperm.xlu0 %5766, %v5535
      %v5768 = vpop.permute.xlu0 %5767
      %5771 = vset.pattern.permute.xlu0 2
      %5772 = vperm.xlu0 %5771, %v5540
      %v5773 = vpop.permute.xlu0 %5772
      %5776 = vset.pattern.permute.xlu0 2
      %5777 = vperm.xlu0 %5776, %v5545
      %v5778 = vpop.permute.xlu0 %5777
      %5781 = vset.pattern.permute.xlu0 2
      %5782 = vperm.xlu0 %5781, %v5550
      %v5783 = vpop.permute.xlu0 %5782
      %5786 = vset.pattern.permute.xlu0 2
      %5787 = vperm.xlu0 %5786, %v5555
      %v5788 = vpop.permute.xlu0 %5787
      %5791 = vset.pattern.permute.xlu0 2
      %5792 = vperm.xlu0 %5791, %v5560
      %v5793 = vpop.permute.xlu0 %5792
      %5796 = vset.pattern.permute.xlu0 2
      %5797 = vperm.xlu0 %5796, %v5565
      %v5798 = vpop.permute.xlu0 %5797
      %5801 = vset.pattern.permute.xlu0 2
      %5802 = vperm.xlu0 %5801, %v5570
      %v5803 = vpop.permute.xlu0 %5802
      %5806 = vset.pattern.permute.xlu0 2
      %5807 = vperm.xlu0 %5806, %v5575
      %v5808 = vpop.permute.xlu0 %5807
      %5811 = vset.pattern.permute.xlu0 2
      %5812 = vperm.xlu0 %5811, %v5580
      %v5813 = vpop.permute.xlu0 %5812
      %5816 = vset.pattern.permute.xlu0 2
      %5817 = vperm.xlu0 %5816, %v5585
      %v5818 = vpop.permute.xlu0 %5817
      %5821 = vset.pattern.permute.xlu0 2
      %5822 = vperm.xlu0 %5821, %v5590
      %v5823 = vpop.permute.xlu0 %5822
      %5826 = vset.pattern.permute.xlu0 2
      %5827 = vperm.xlu0 %5826, %v5595
      %v5828 = vpop.permute.xlu0 %5827
      %5831 = vset.pattern.permute.xlu0 2
      %5832 = vperm.xlu0 %5831, %v5600
      %v5833 = vpop.permute.xlu0 %5832
      %5836 = vset.pattern.permute.xlu0 2
      %5837 = vperm.xlu0 %5836, %v5605
      %v5838 = vpop.permute.xlu0 %5837
      %5841 = vset.pattern.permute.xlu0 2
      %5842 = vperm.xlu0 %5841, %v5610
      %v5843 = vpop.permute.xlu0 %5842
      %5846 = vset.pattern.permute.xlu0 2
      %5847 = vperm.xlu0 %5846, %v5615
      %v5848 = vpop.permute.xlu0 %5847
      %5851 = vset.pattern.permute.xlu0 2
      %5852 = vperm.xlu0 %5851, %v5620
      %v5853 = vpop.permute.xlu0 %5852
      %5856 = vset.pattern.permute.xlu0 2
      %5857 = vperm.xlu0 %5856, %v5625
      %v5858 = vpop.permute.xlu0 %5857
      %5861 = vset.pattern.permute.xlu0 2
      %5862 = vperm.xlu0 %5861, %v5630
      %v5863 = vpop.permute.xlu0 %5862
      %5866 = vset.pattern.permute.xlu0 2
      %5867 = vperm.xlu0 %5866, %v5635
      %v5868 = vpop.permute.xlu0 %5867
      %5871 = vset.pattern.permute.xlu0 2
      %5872 = vperm.xlu0 %5871, %v5640
      %v5873 = vpop.permute.xlu0 %5872
      %5876 = vset.pattern.permute.xlu0 2
      %5877 = vperm.xlu0 %5876, %v5645
      %v5878 = vpop.permute.xlu0 %5877
      %5881 = vset.pattern.permute.xlu0 2
      %5882 = vperm.xlu0 %5881, %v5650
      %v5883 = vpop.permute.xlu0 %5882
      %5886 = vset.pattern.permute.xlu0 2
      %5887 = vperm.xlu0 %5886, %v5655
      %v5888 = vpop.permute.xlu0 %5887
      %5891 = vset.pattern.permute.xlu0 2
      %5892 = vperm.xlu0 %5891, %v5660
      %v5893 = vpop.permute.xlu0 %5892
      %5896 = vset.pattern.permute.xlu0 2
      %5897 = vperm.xlu0 %5896, %v5665
      %v5898 = vpop.permute.xlu0 %5897
      %5901 = vset.pattern.permute.xlu0 2
      %5902 = vperm.xlu0 %5901, %v5670
      %v5903 = vpop.permute.xlu0 %5902
      %5906 = vset.pattern.permute.xlu0 2
      %5907 = vperm.xlu0 %5906, %v5675
      %v5908 = vpop.permute.xlu0 %5907
      %5911 = vset.pattern.permute.xlu0 2
      %5912 = vperm.xlu0 %5911, %v5680
      %v5913 = vpop.permute.xlu0 %5912
      %5916 = vset.pattern.permute.xlu0 2
      %5917 = vperm.xlu0 %5916, %v5685
      %v5918 = vpop.permute.xlu0 %5917
      %v5920 = vsub.f32 %v5755, %v5763
      %v5921 = vsub.f32 %v5759, %v5763
      %v5922 = vsub.f32 %v5755, %v5768
      %v5923 = vsub.f32 %v5759, %v5768
      %v5924 = vsub.f32 %v5755, %v5773
      %v5925 = vsub.f32 %v5759, %v5773
      %v5926 = vsub.f32 %v5755, %v5778
      %v5927 = vsub.f32 %v5759, %v5778
      %v5928 = vsub.f32 %v5755, %v5783
      %v5929 = vsub.f32 %v5759, %v5783
      %v5930 = vsub.f32 %v5755, %v5788
      %v5931 = vsub.f32 %v5759, %v5788
      %v5932 = vsub.f32 %v5755, %v5793
      %v5933 = vsub.f32 %v5759, %v5793
      %v5934 = vsub.f32 %v5755, %v5798
      %v5935 = vsub.f32 %v5759, %v5798
      %v5936 = vsub.f32 %v5755, %v5803
      %v5937 = vsub.f32 %v5759, %v5803
      %v5938 = vsub.f32 %v5755, %v5808
      %v5939 = vsub.f32 %v5759, %v5808
      %v5940 = vsub.f32 %v5755, %v5813
      %v5941 = vsub.f32 %v5759, %v5813
      %v5942 = vsub.f32 %v5755, %v5818
      %v5943 = vsub.f32 %v5759, %v5818
      %v5944 = vsub.f32 %v5755, %v5823
      %v5945 = vsub.f32 %v5759, %v5823
      %v5946 = vsub.f32 %v5755, %v5828
      %v5947 = vsub.f32 %v5759, %v5828
      %v5948 = vsub.f32 %v5755, %v5833
      %v5949 = vsub.f32 %v5759, %v5833
      %v5950 = vsub.f32 %v5755, %v5838
      %v5951 = vsub.f32 %v5759, %v5838
      %v5952 = vsub.f32 %v5755, %v5843
      %v5953 = vsub.f32 %v5759, %v5843
      %v5954 = vsub.f32 %v5755, %v5848
      %v5955 = vsub.f32 %v5759, %v5848
      %v5956 = vsub.f32 %v5755, %v5853
      %v5957 = vsub.f32 %v5759, %v5853
      %v5958 = vsub.f32 %v5755, %v5858
      %v5959 = vsub.f32 %v5759, %v5858
      %v5960 = vsub.f32 %v5755, %v5863
      %v5961 = vsub.f32 %v5759, %v5863
      %v5962 = vsub.f32 %v5755, %v5868
      %v5963 = vsub.f32 %v5759, %v5868
      %v5964 = vsub.f32 %v5755, %v5873
      %v5965 = vsub.f32 %v5759, %v5873
      %v5966 = vsub.f32 %v5755, %v5878
      %v5967 = vsub.f32 %v5759, %v5878
      %v5968 = vsub.f32 %v5755, %v5883
      %v5969 = vsub.f32 %v5759, %v5883
      %v5970 = vsub.f32 %v5755, %v5888
      %v5971 = vsub.f32 %v5759, %v5888
      %v5972 = vsub.f32 %v5755, %v5893
      %v5973 = vsub.f32 %v5759, %v5893
      %v5974 = vsub.f32 %v5755, %v5898
      %v5975 = vsub.f32 %v5759, %v5898
      %v5976 = vsub.f32 %v5755, %v5903
      %v5977 = vsub.f32 %v5759, %v5903
      %v5978 = vsub.f32 %v5755, %v5908
      %v5979 = vsub.f32 %v5759, %v5908
      %v5980 = vsub.f32 %v5755, %v5913
      %v5981 = vsub.f32 %v5759, %v5913
      %v5982 = vsub.f32 %v5755, %v5918
      %v5983 = vsub.f32 %v5759, %v5918
      %v5984 = vmin.f32 %v5920, 0.0
      %v5985 = vmin.f32 %v5921, 0.0
      %v5986 = vmin.f32 %v5922, 0.0
      %v5987 = vmin.f32 %v5923, 0.0
      %v5988 = vmin.f32 %v5924, 0.0
      %v5989 = vmin.f32 %v5925, 0.0
      %v5990 = vmin.f32 %v5926, 0.0
      %v5991 = vmin.f32 %v5927, 0.0
      %v5992 = vmin.f32 %v5928, 0.0
      %v5993 = vmin.f32 %v5929, 0.0
      %v5994 = vmin.f32 %v5930, 0.0
      %v5995 = vmin.f32 %v5931, 0.0
      %v5996 = vmin.f32 %v5932, 0.0
      %v5997 = vmin.f32 %v5933, 0.0
      %v5998 = vmin.f32 %v5934, 0.0
      %v5999 = vmin.f32 %v5935, 0.0
      %v6000 = vmin.f32 %v5936, 0.0
      %v6001 = vmin.f32 %v5937, 0.0
      %v6002 = vmin.f32 %v5938, 0.0
      %v6003 = vmin.f32 %v5939, 0.0
      %v6004 = vmin.f32 %v5940, 0.0
      %v6005 = vmin.f32 %v5941, 0.0
      %v6006 = vmin.f32 %v5942, 0.0
      %v6007 = vmin.f32 %v5943, 0.0
      %v6008 = vmin.f32 %v5944, 0.0
      %v6009 = vmin.f32 %v5945, 0.0
      %v6010 = vmin.f32 %v5946, 0.0
      %v6011 = vmin.f32 %v5947, 0.0
      %v6012 = vmin.f32 %v5948, 0.0
      %v6013 = vmin.f32 %v5949, 0.0
      %v6014 = vmin.f32 %v5950, 0.0
      %v6015 = vmin.f32 %v5951, 0.0
      %v6016 = vmin.f32 %v5952, 0.0
      %v6017 = vmin.f32 %v5953, 0.0
      %v6018 = vmin.f32 %v5954, 0.0
      %v6019 = vmin.f32 %v5955, 0.0
      %v6020 = vmin.f32 %v5956, 0.0
      %v6021 = vmin.f32 %v5957, 0.0
      %v6022 = vmin.f32 %v5958, 0.0
      %v6023 = vmin.f32 %v5959, 0.0
      %v6024 = vmin.f32 %v5960, 0.0
      %v6025 = vmin.f32 %v5961, 0.0
      %v6026 = vmin.f32 %v5962, 0.0
      %v6027 = vmin.f32 %v5963, 0.0
      %v6028 = vmin.f32 %v5964, 0.0
      %v6029 = vmin.f32 %v5965, 0.0
      %v6030 = vmin.f32 %v5966, 0.0
      %v6031 = vmin.f32 %v5967, 0.0
      %v6032 = vmin.f32 %v5968, 0.0
      %v6033 = vmin.f32 %v5969, 0.0
      %v6034 = vmin.f32 %v5970, 0.0
      %v6035 = vmin.f32 %v5971, 0.0
      %v6036 = vmin.f32 %v5972, 0.0
      %v6037 = vmin.f32 %v5973, 0.0
      %v6038 = vmin.f32 %v5974, 0.0
      %v6039 = vmin.f32 %v5975, 0.0
      %v6040 = vmin.f32 %v5976, 0.0
      %v6041 = vmin.f32 %v5977, 0.0
      %v6042 = vmin.f32 %v5978, 0.0
      %v6043 = vmin.f32 %v5979, 0.0
      %v6044 = vmin.f32 %v5980, 0.0
      %v6045 = vmin.f32 %v5981, 0.0
      %v6046 = vmin.f32 %v5982, 0.0
      %v6047 = vmin.f32 %v5983, 0.0
      %v6048 = vmul.f32 %v5984, 1.442695
      %v6049 = vpow.pop %v6048
      %v6050 = vmul.f32 %v5985, 1.442695
      %v6051 = vpow.pop %v6050
      %v6052 = vmul.f32 %v5986, 1.442695
      %v6053 = vpow.pop %v6052
      %v6054 = vmul.f32 %v5987, 1.442695
      %v6055 = vpow.pop %v6054
      %v6056 = vmul.f32 %v5988, 1.442695
      %v6057 = vpow.pop %v6056
      %v6058 = vmul.f32 %v5989, 1.442695
      %v6059 = vpow.pop %v6058
      %v6060 = vmul.f32 %v5990, 1.442695
      %v6061 = vpow.pop %v6060
      %v6062 = vmul.f32 %v5991, 1.442695
      %v6063 = vpow.pop %v6062
      %v6064 = vmul.f32 %v5992, 1.442695
      %v6065 = vpow.pop %v6064
      %v6066 = vmul.f32 %v5993, 1.442695
      %v6067 = vpow.pop %v6066
      %v6068 = vmul.f32 %v5994, 1.442695
      %v6069 = vpow.pop %v6068
      %v6070 = vmul.f32 %v5995, 1.442695
      %v6071 = vpow.pop %v6070
      %v6072 = vmul.f32 %v5996, 1.442695
      %v6073 = vpow.pop %v6072
      %v6074 = vmul.f32 %v5997, 1.442695
      %v6075 = vpow.pop %v6074
      %v6076 = vmul.f32 %v5998, 1.442695
      %v6077 = vpow.pop %v6076
      %v6078 = vmul.f32 %v5999, 1.442695
      %v6079 = vpow.pop %v6078
      %v6080 = vmul.f32 %v6000, 1.442695
      %v6081 = vpow.pop %v6080
      %v6082 = vmul.f32 %v6001, 1.442695
      %v6083 = vpow.pop %v6082
      %v6084 = vmul.f32 %v6002, 1.442695
      %v6085 = vpow.pop %v6084
      %v6086 = vmul.f32 %v6003, 1.442695
      %v6087 = vpow.pop %v6086
      %v6088 = vmul.f32 %v6004, 1.442695
      %v6089 = vpow.pop %v6088
      %v6090 = vmul.f32 %v6005, 1.442695
      %v6091 = vpow.pop %v6090
      %v6092 = vmul.f32 %v6006, 1.442695
      %v6093 = vpow.pop %v6092
      %v6094 = vmul.f32 %v6007, 1.442695
      %v6095 = vpow.pop %v6094
      %v6096 = vmul.f32 %v6008, 1.442695
      %v6097 = vpow.pop %v6096
      %v6098 = vmul.f32 %v6009, 1.442695
      %v6099 = vpow.pop %v6098
      %v6100 = vmul.f32 %v6010, 1.442695
      %v6101 = vpow.pop %v6100
      %v6102 = vmul.f32 %v6011, 1.442695
      %v6103 = vpow.pop %v6102
      %v6104 = vmul.f32 %v6012, 1.442695
      %v6105 = vpow.pop %v6104
      %v6106 = vmul.f32 %v6013, 1.442695
      %v6107 = vpow.pop %v6106
      %v6108 = vmul.f32 %v6014, 1.442695
      %v6109 = vpow.pop %v6108
      %v6110 = vmul.f32 %v6015, 1.442695
      %v6111 = vpow.pop %v6110
      %v6112 = vmul.f32 %v6016, 1.442695
      %v6113 = vpow.pop %v6112
      %v6114 = vmul.f32 %v6017, 1.442695
      %v6115 = vpow.pop %v6114
      %v6116 = vmul.f32 %v6018, 1.442695
      %v6117 = vpow.pop %v6116
      %v6118 = vmul.f32 %v6019, 1.442695
      %v6119 = vpow.pop %v6118
      %v6120 = vmul.f32 %v6020, 1.442695
      %v6121 = vpow.pop %v6120
      %v6122 = vmul.f32 %v6021, 1.442695
      %v6123 = vpow.pop %v6122
      %v6124 = vmul.f32 %v6022, 1.442695
      %v6125 = vpow.pop %v6124
      %v6126 = vmul.f32 %v6023, 1.442695
      %v6127 = vpow.pop %v6126
      %v6128 = vmul.f32 %v6024, 1.442695
      %v6129 = vpow.pop %v6128
      %v6130 = vmul.f32 %v6025, 1.442695
      %v6131 = vpow.pop %v6130
      %v6132 = vmul.f32 %v6026, 1.442695
      %v6133 = vpow.pop %v6132
      %v6134 = vmul.f32 %v6027, 1.442695
      %v6135 = vpow.pop %v6134
      %v6136 = vmul.f32 %v6028, 1.442695
      %v6137 = vpow.pop %v6136
      %v6138 = vmul.f32 %v6029, 1.442695
      %v6139 = vpow.pop %v6138
      %v6140 = vmul.f32 %v6030, 1.442695
      %v6141 = vpow.pop %v6140
      %v6142 = vmul.f32 %v6031, 1.442695
      %v6143 = vpow.pop %v6142
      %v6144 = vmul.f32 %v6032, 1.442695
      %v6145 = vpow.pop %v6144
      %v6146 = vmul.f32 %v6033, 1.442695
      %v6147 = vpow.pop %v6146
      %v6148 = vmul.f32 %v6034, 1.442695
      %v6149 = vpow.pop %v6148
      %v6150 = vmul.f32 %v6035, 1.442695
      %v6151 = vpow.pop %v6150
      %v6152 = vmul.f32 %v6036, 1.442695
      %v6153 = vpow.pop %v6152
      %v6154 = vmul.f32 %v6037, 1.442695
      %v6155 = vpow.pop %v6154
      %v6156 = vmul.f32 %v6038, 1.442695
      %v6157 = vpow.pop %v6156
      %v6158 = vmul.f32 %v6039, 1.442695
      %v6159 = vpow.pop %v6158
      %v6160 = vmul.f32 %v6040, 1.442695
      %v6161 = vpow.pop %v6160
      %v6162 = vmul.f32 %v6041, 1.442695
      %v6163 = vpow.pop %v6162
      %v6164 = vmul.f32 %v6042, 1.442695
      %v6165 = vpow.pop %v6164
      %v6166 = vmul.f32 %v6043, 1.442695
      %v6167 = vpow.pop %v6166
      %v6168 = vmul.f32 %v6044, 1.442695
      %v6169 = vpow.pop %v6168
      %v6170 = vmul.f32 %v6045, 1.442695
      %v6171 = vpow.pop %v6170
      %v6172 = vmul.f32 %v6046, 1.442695
      %v6173 = vpow.pop %v6172
      %v6174 = vmul.f32 %v6047, 1.442695
      %v6175 = vpow.pop %v6174
      %v6176 = vsel %vm5688, %v6049, 0.0
      %v6177 = vsel %vm5689, %v6051, 0.0
      %v6178 = vsel %vm5690, %v6053, 0.0
      %v6179 = vsel %vm5691, %v6055, 0.0
      %v6180 = vsel %vm5692, %v6057, 0.0
      %v6181 = vsel %vm5693, %v6059, 0.0
      %v6182 = vsel %vm5694, %v6061, 0.0
      %v6183 = vsel %vm5695, %v6063, 0.0
      %v6184 = vsel %vm5696, %v6065, 0.0
      %v6185 = vsel %vm5697, %v6067, 0.0
      %v6186 = vsel %vm5698, %v6069, 0.0
      %v6187 = vsel %vm5699, %v6071, 0.0
      %v6188 = vsel %vm5700, %v6073, 0.0
      %v6189 = vsel %vm5701, %v6075, 0.0
      %v6190 = vsel %vm5702, %v6077, 0.0
      %v6191 = vsel %vm5703, %v6079, 0.0
      %v6192 = vsel %vm5704, %v6081, 0.0
      %v6193 = vsel %vm5705, %v6083, 0.0
      %v6194 = vsel %vm5706, %v6085, 0.0
      %v6195 = vsel %vm5707, %v6087, 0.0
      %v6196 = vsel %vm5708, %v6089, 0.0
      %v6197 = vsel %vm5709, %v6091, 0.0
      %v6198 = vsel %vm5710, %v6093, 0.0
      %v6199 = vsel %vm5711, %v6095, 0.0
      %v6200 = vsel %vm5712, %v6097, 0.0
      %v6201 = vsel %vm5713, %v6099, 0.0
      %v6202 = vsel %vm5714, %v6101, 0.0
      %v6203 = vsel %vm5715, %v6103, 0.0
      %v6204 = vsel %vm5716, %v6105, 0.0
      %v6205 = vsel %vm5717, %v6107, 0.0
      %v6206 = vsel %vm5718, %v6109, 0.0
      %v6207 = vsel %vm5719, %v6111, 0.0
      %v6208 = vsel %vm5720, %v6113, 0.0
      %v6209 = vsel %vm5721, %v6115, 0.0
      %v6210 = vsel %vm5722, %v6117, 0.0
      %v6211 = vsel %vm5723, %v6119, 0.0
      %v6212 = vsel %vm5724, %v6121, 0.0
      %v6213 = vsel %vm5725, %v6123, 0.0
      %v6214 = vsel %vm5726, %v6125, 0.0
      %v6215 = vsel %vm5727, %v6127, 0.0
      %v6216 = vsel %vm5728, %v6129, 0.0
      %v6217 = vsel %vm5729, %v6131, 0.0
      %v6218 = vsel %vm5730, %v6133, 0.0
      %v6219 = vsel %vm5731, %v6135, 0.0
      %v6220 = vsel %vm5732, %v6137, 0.0
      %v6221 = vsel %vm5733, %v6139, 0.0
      %v6222 = vsel %vm5734, %v6141, 0.0
      %v6223 = vsel %vm5735, %v6143, 0.0
      %v6224 = vsel %vm5736, %v6145, 0.0
      %v6225 = vsel %vm5737, %v6147, 0.0
      %v6226 = vsel %vm5738, %v6149, 0.0
      %v6227 = vsel %vm5739, %v6151, 0.0
      %v6228 = vsel %vm5740, %v6153, 0.0
      %v6229 = vsel %vm5741, %v6155, 0.0
      %v6230 = vsel %vm5742, %v6157, 0.0
      %v6231 = vsel %vm5743, %v6159, 0.0
      %v6232 = vsel %vm5744, %v6161, 0.0
      %v6233 = vsel %vm5745, %v6163, 0.0
      %v6234 = vsel %vm5746, %v6165, 0.0
      %v6235 = vsel %vm5747, %v6167, 0.0
      %v6236 = vsel %vm5748, %v6169, 0.0
      %v6237 = vsel %vm5749, %v6171, 0.0
      %v6238 = vsel %vm5750, %v6173, 0.0
      %v6239 = vsel %vm5751, %v6175, 0.0
      %v6240 = vpack.c.bf16 %v4895, %v4895
      %v6241 = vpack.c.bf16 %v4897, %v4897
      %v6242 = vpack.c.bf16 %v4936, %v4936
      %v6243 = vpack.c.bf16 %v4938, %v4938
      %6244 = vxpose.xlu0.c.b16.start [1/8] %v6240, 128
      %6245 = vxpose.xlu0.c.b16.cont [2/8] 0, 128
      %6246 = vxpose.xlu0.c.b16.cont [3/8] 0, 128
      %6247 = vxpose.xlu0.c.b16.cont [4/8] 0, 128
      %6248 = vxpose.xlu0.c.b16.cont [5/8] 0, 128
      %6249 = vxpose.xlu0.c.b16.cont [6/8] 0, 128
      %6250 = vxpose.xlu0.c.b16.cont [7/8] 0, 128
      %6251 = vxpose.xlu0.c.b16.end [8/8] 0, 128
      %v6252 = vpop.trf.xlu0
      %v6253 = vpop.trf.xlu0
      %v6254 = vpop.trf.xlu0
      %v6255 = vpop.trf.xlu0
      %v6256 = vpop.trf.xlu0
      %v6257 = vpop.trf.xlu0
      %v6258 = vpop.trf.xlu0
      %v6259 = vpop.trf.xlu0
      %6260 = vxpose.xlu0.c.b16.start [1/8] %v6241, 128
      %6261 = vxpose.xlu0.c.b16.cont [2/8] 0, 128
      %6262 = vxpose.xlu0.c.b16.cont [3/8] 0, 128
      %6263 = vxpose.xlu0.c.b16.cont [4/8] 0, 128
      %6264 = vxpose.xlu0.c.b16.cont [5/8] 0, 128
      %6265 = vxpose.xlu0.c.b16.cont [6/8] 0, 128
      %6266 = vxpose.xlu0.c.b16.cont [7/8] 0, 128
      %6267 = vxpose.xlu0.c.b16.end [8/8] 0, 128
      %v6268 = vpop.trf.xlu0
      %v6269 = vpop.trf.xlu0
      %v6270 = vpop.trf.xlu0
      %v6271 = vpop.trf.xlu0
      %v6272 = vpop.trf.xlu0
      %v6273 = vpop.trf.xlu0
      %v6274 = vpop.trf.xlu0
      %v6275 = vpop.trf.xlu0
      %v6277 = vsel %vm371, %v6252, 0
      %v6280 = vsel %vm371, %v6253, 0
      %v6283 = vsel %vm371, %v6254, 0
      %v6286 = vsel %vm371, %v6255, 0
      %v6289 = vsel %vm371, %v6256, 0
      %v6292 = vsel %vm371, %v6257, 0
      %v6295 = vsel %vm371, %v6258, 0
      %v6298 = vsel %vm371, %v6259, 0
      %v6301 = vsel %vm371, %v6268, 0
      %v6304 = vsel %vm371, %v6269, 0
      %v6307 = vsel %vm371, %v6270, 0
      %v6310 = vsel %vm371, %v6271, 0
      %v6313 = vsel %vm371, %v6272, 0
      %v6316 = vsel %vm371, %v6273, 0
      %v6319 = vsel %vm371, %v6274, 0
      %v6322 = vsel %vm371, %v6275, 0
      %v6325 = vsel %vm375, %v6242, 0
      %v6328 = vsel %vm375, %v6243, 0
      %6330 = vmatprep.subr.bf16.mxu0 %v6328
      %6331 = vmatpush1.bf16.msra.mxu0 %v6325
      %6332 = vmatprep.subr.bf16.mxu0 0
      %6333 = vmatpush1.bf16.msra.mxu0 0
      %6334 = vmatprep.subr.bf16.mxu0 0
      %6335 = vmatpush1.bf16.msra.mxu0 0
      %6336 = vmatprep.subr.bf16.mxu0 0
      %6337 = vmatpush1.bf16.msra.mxu0 0
      %6338 = vmatprep.subr.bf16.mxu0 0
      %6339 = vmatpush1.bf16.msra.mxu0 0
      %6340 = vmatprep.subr.bf16.mxu0 0
      %6341 = vmatpush1.bf16.msra.mxu0 0
      %6342 = vmatprep.subr.bf16.mxu0 0
      %6343 = vmatpush1.bf16.msra.mxu0 0
      %6344 = vmatprep.subr.bf16.mxu0 0
      %6345 = vmatpush1.bf16.msra.mxu0 0
      %6346 = vmatprep.subr.bf16.mxu0 0
      %6347 = vmatpush1.bf16.msra.mxu0 0
      %6348 = vmatprep.subr.bf16.mxu0 0
      %6349 = vmatpush1.bf16.msra.mxu0 0
      %6350 = vmatprep.subr.bf16.mxu0 0
      %6351 = vmatpush1.bf16.msra.mxu0 0
      %6352 = vmatprep.subr.bf16.mxu0 0
      %6353 = vmatpush1.bf16.msra.mxu0 0
      %6354 = vmatprep.subr.bf16.mxu0 0
      %6355 = vmatpush1.bf16.msra.mxu0 0
      %6356 = vmatprep.subr.bf16.mxu0 0
      %6357 = vmatpush1.bf16.msra.mxu0 0
      %6358 = vmatprep.subr.bf16.mxu0 0
      %6359 = vmatpush1.bf16.msra.mxu0 0
      %6360 = vmatprep.subr.bf16.mxu0 0
      %6361 = vmatpush1.bf16.msra.mxu0 0
      %6362 = vmatprep.mubr.bf16.mxu0 0
      %6363 = vmatmul.mubr.bf16.gmra.mrb[0].mxu0 %v6277
      %v6364 = vpop.f32.mrb[0].mxu0
      %v6365 = vadd.f32 0.0, %v6364
      %v6366 = vpop.f32.mrb[0].mxu0
      %v6367 = vadd.f32 0.0, %v6366
      %v6368 = vpop.f32.mrb[0].mxu0
      %v6369 = vadd.f32 0.0, %v6368
      %v6370 = vpop.f32.mrb[0].mxu0
      %v6371 = vadd.f32 0.0, %v6370
      %6372 = vmatprep.mubr.bf16.mxu0 0
      %6373 = vmatmul.mubr.bf16.gmra.mrb[0].mxu0 %v6280
      %v6374 = vpop.f32.mrb[0].mxu0
      %v6375 = vadd.f32 0.0, %v6374
      %v6376 = vpop.f32.mrb[0].mxu0
      %v6377 = vadd.f32 0.0, %v6376
      %v6378 = vpop.f32.mrb[0].mxu0
      %v6379 = vadd.f32 0.0, %v6378
      %v6380 = vpop.f32.mrb[0].mxu0
      %v6381 = vadd.f32 0.0, %v6380
      %6382 = vmatprep.mubr.bf16.mxu0 0
      %6383 = vmatmul.mubr.bf16.gmra.mrb[0].mxu0 %v6283
      %v6384 = vpop.f32.mrb[0].mxu0
      %v6385 = vadd.f32 0.0, %v6384
      %v6386 = vpop.f32.mrb[0].mxu0
      %v6387 = vadd.f32 0.0, %v6386
      %v6388 = vpop.f32.mrb[0].mxu0
      %v6389 = vadd.f32 0.0, %v6388
      %v6390 = vpop.f32.mrb[0].mxu0
      %v6391 = vadd.f32 0.0, %v6390
      %6392 = vmatprep.mubr.bf16.mxu0 0
      %6393 = vmatmul.mubr.bf16.gmra.mrb[0].mxu0 %v6286
      %v6394 = vpop.f32.mrb[0].mxu0
      %v6395 = vadd.f32 0.0, %v6394
      %v6396 = vpop.f32.mrb[0].mxu0
      %v6397 = vadd.f32 0.0, %v6396
      %v6398 = vpop.f32.mrb[0].mxu0
      %v6399 = vadd.f32 0.0, %v6398
      %v6400 = vpop.f32.mrb[0].mxu0
      %v6401 = vadd.f32 0.0, %v6400
      %6402 = vmatprep.mubr.bf16.mxu0 0
      %6403 = vmatmul.mubr.bf16.gmra.mrb[0].mxu0 %v6289
      %v6404 = vpop.f32.mrb[0].mxu0
      %v6405 = vadd.f32 0.0, %v6404
      %v6406 = vpop.f32.mrb[0].mxu0
      %v6407 = vadd.f32 0.0, %v6406
      %v6408 = vpop.f32.mrb[0].mxu0
      %v6409 = vadd.f32 0.0, %v6408
      %v6410 = vpop.f32.mrb[0].mxu0
      %v6411 = vadd.f32 0.0, %v6410
      %6412 = vmatprep.mubr.bf16.mxu0 0
      %6413 = vmatmul.mubr.bf16.gmra.mrb[0].mxu0 %v6292
      %v6414 = vpop.f32.mrb[0].mxu0
      %v6415 = vadd.f32 0.0, %v6414
      %v6416 = vpop.f32.mrb[0].mxu0
      %v6417 = vadd.f32 0.0, %v6416
      %v6418 = vpop.f32.mrb[0].mxu0
      %v6419 = vadd.f32 0.0, %v6418
      %v6420 = vpop.f32.mrb[0].mxu0
      %v6421 = vadd.f32 0.0, %v6420
      %6422 = vmatprep.mubr.bf16.mxu0 0
      %6423 = vmatmul.mubr.bf16.gmra.mrb[0].mxu0 %v6295
      %v6424 = vpop.f32.mrb[0].mxu0
      %v6425 = vadd.f32 0.0, %v6424
      %v6426 = vpop.f32.mrb[0].mxu0
      %v6427 = vadd.f32 0.0, %v6426
      %v6428 = vpop.f32.mrb[0].mxu0
      %v6429 = vadd.f32 0.0, %v6428
      %v6430 = vpop.f32.mrb[0].mxu0
      %v6431 = vadd.f32 0.0, %v6430
      %6432 = vmatprep.mubr.bf16.mxu0 0
      %6433 = vmatmul.mubr.bf16.gmra.mrb[0].mxu0 %v6298
      %v6434 = vpop.f32.mrb[0].mxu0
      %v6435 = vadd.f32 0.0, %v6434
      %v6436 = vpop.f32.mrb[0].mxu0
      %v6437 = vadd.f32 0.0, %v6436
      %v6438 = vpop.f32.mrb[0].mxu0
      %v6439 = vadd.f32 0.0, %v6438
      %v6440 = vpop.f32.mrb[0].mxu0
      %v6441 = vadd.f32 0.0, %v6440
      %6442 = vmatprep.mubr.bf16.mxu0 0
      %6443 = vmatmul.mubr.bf16.gmra.mrb[0].mxu0 %v6301
      %v6444 = vpop.f32.mrb[0].mxu0
      %v6445 = vadd.f32 0.0, %v6444
      %v6446 = vpop.f32.mrb[0].mxu0
      %v6447 = vadd.f32 0.0, %v6446
      %v6448 = vpop.f32.mrb[0].mxu0
      %v6449 = vadd.f32 0.0, %v6448
      %v6450 = vpop.f32.mrb[0].mxu0
      %v6451 = vadd.f32 0.0, %v6450
      %6452 = vmatprep.mubr.bf16.mxu0 0
      %6453 = vmatmul.mubr.bf16.gmra.mrb[0].mxu0 %v6304
      %v6454 = vpop.f32.mrb[0].mxu0
      %v6455 = vadd.f32 0.0, %v6454
      %v6456 = vpop.f32.mrb[0].mxu0
      %v6457 = vadd.f32 0.0, %v6456
      %v6458 = vpop.f32.mrb[0].mxu0
      %v6459 = vadd.f32 0.0, %v6458
      %v6460 = vpop.f32.mrb[0].mxu0
      %v6461 = vadd.f32 0.0, %v6460
      %6462 = vmatprep.mubr.bf16.mxu0 0
      %6463 = vmatmul.mubr.bf16.gmra.mrb[0].mxu0 %v6307
      %v6464 = vpop.f32.mrb[0].mxu0
      %v6465 = vadd.f32 0.0, %v6464
      %v6466 = vpop.f32.mrb[0].mxu0
      %v6467 = vadd.f32 0.0, %v6466
      %v6468 = vpop.f32.mrb[0].mxu0
      %v6469 = vadd.f32 0.0, %v6468
      %v6470 = vpop.f32.mrb[0].mxu0
      %v6471 = vadd.f32 0.0, %v6470
      %6472 = vmatprep.mubr.bf16.mxu0 0
      %6473 = vmatmul.mubr.bf16.gmra.mrb[0].mxu0 %v6310
      %v6474 = vpop.f32.mrb[0].mxu0
      %v6475 = vadd.f32 0.0, %v6474
      %v6476 = vpop.f32.mrb[0].mxu0
      %v6477 = vadd.f32 0.0, %v6476
      %v6478 = vpop.f32.mrb[0].mxu0
      %v6479 = vadd.f32 0.0, %v6478
      %v6480 = vpop.f32.mrb[0].mxu0
      %v6481 = vadd.f32 0.0, %v6480
      %6482 = vmatprep.mubr.bf16.mxu0 0
      %6483 = vmatmul.mubr.bf16.gmra.mrb[0].mxu0 %v6313
      %v6484 = vpop.f32.mrb[0].mxu0
      %v6485 = vadd.f32 0.0, %v6484
      %v6486 = vpop.f32.mrb[0].mxu0
      %v6487 = vadd.f32 0.0, %v6486
      %v6488 = vpop.f32.mrb[0].mxu0
      %v6489 = vadd.f32 0.0, %v6488
      %v6490 = vpop.f32.mrb[0].mxu0
      %v6491 = vadd.f32 0.0, %v6490
      %6492 = vmatprep.mubr.bf16.mxu0 0
      %6493 = vmatmul.mubr.bf16.gmra.mrb[0].mxu0 %v6316
      %v6494 = vpop.f32.mrb[0].mxu0
      %v6495 = vadd.f32 0.0, %v6494
      %v6496 = vpop.f32.mrb[0].mxu0
      %v6497 = vadd.f32 0.0, %v6496
      %v6498 = vpop.f32.mrb[0].mxu0
      %v6499 = vadd.f32 0.0, %v6498
      %v6500 = vpop.f32.mrb[0].mxu0
      %v6501 = vadd.f32 0.0, %v6500
      %6502 = vmatprep.mubr.bf16.mxu0 0
      %6503 = vmatmul.mubr.bf16.gmra.mrb[0].mxu0 %v6319
      %v6504 = vpop.f32.mrb[0].mxu0
      %v6505 = vadd.f32 0.0, %v6504
      %v6506 = vpop.f32.mrb[0].mxu0
      %v6507 = vadd.f32 0.0, %v6506
      %v6508 = vpop.f32.mrb[0].mxu0
      %v6509 = vadd.f32 0.0, %v6508
      %v6510 = vpop.f32.mrb[0].mxu0
      %v6511 = vadd.f32 0.0, %v6510
      %6512 = vmatprep.mubr.bf16.mxu0 0
      %6513 = vmatmul.mubr.bf16.gmra.mrb[0].mxu0 %v6322
      %v6514 = vpop.f32.mrb[0].mxu0
      %v6515 = vadd.f32 0.0, %v6514
      %v6516 = vpop.f32.mrb[0].mxu0
      %v6517 = vadd.f32 0.0, %v6516
      %v6518 = vpop.f32.mrb[0].mxu0
      %v6519 = vadd.f32 0.0, %v6518
      %v6520 = vpop.f32.mrb[0].mxu0
      %v6521 = vadd.f32 0.0, %v6520
      %6522 = vdwg.mxu0
      %v6523 = vmul.f32 %v6365, 0.5
      %v6524 = vmul.f32 %v6367, 0.5
      %v6525 = vmul.f32 %v6369, 0.5
      %v6526 = vmul.f32 %v6371, 0.5
      %v6527 = vmul.f32 %v6375, 0.5
      %v6528 = vmul.f32 %v6377, 0.5
      %v6529 = vmul.f32 %v6379, 0.5
      %v6530 = vmul.f32 %v6381, 0.5
      %v6531 = vmul.f32 %v6385, 0.5
      %v6532 = vmul.f32 %v6387, 0.5
      %v6533 = vmul.f32 %v6389, 0.5
      %v6534 = vmul.f32 %v6391, 0.5
      %v6535 = vmul.f32 %v6395, 0.5
      %v6536 = vmul.f32 %v6397, 0.5
      %v6537 = vmul.f32 %v6399, 0.5
      %v6538 = vmul.f32 %v6401, 0.5
      %v6539 = vmul.f32 %v6405, 0.5
      %v6540 = vmul.f32 %v6407, 0.5
      %v6541 = vmul.f32 %v6409, 0.5
      %v6542 = vmul.f32 %v6411, 0.5
      %v6543 = vmul.f32 %v6415, 0.5
      %v6544 = vmul.f32 %v6417, 0.5
      %v6545 = vmul.f32 %v6419, 0.5
      %v6546 = vmul.f32 %v6421, 0.5
      %v6547 = vmul.f32 %v6425, 0.5
      %v6548 = vmul.f32 %v6427, 0.5
      %v6549 = vmul.f32 %v6429, 0.5
      %v6550 = vmul.f32 %v6431, 0.5
      %v6551 = vmul.f32 %v6435, 0.5
      %v6552 = vmul.f32 %v6437, 0.5
      %v6553 = vmul.f32 %v6439, 0.5
      %v6554 = vmul.f32 %v6441, 0.5
      %v6555 = vmul.f32 %v6445, 0.5
      %v6556 = vmul.f32 %v6447, 0.5
      %v6557 = vmul.f32 %v6449, 0.5
      %v6558 = vmul.f32 %v6451, 0.5
      %v6559 = vmul.f32 %v6455, 0.5
      %v6560 = vmul.f32 %v6457, 0.5
      %v6561 = vmul.f32 %v6459, 0.5
      %v6562 = vmul.f32 %v6461, 0.5
      %v6563 = vmul.f32 %v6465, 0.5
      %v6564 = vmul.f32 %v6467, 0.5
      %v6565 = vmul.f32 %v6469, 0.5
      %v6566 = vmul.f32 %v6471, 0.5
      %v6567 = vmul.f32 %v6475, 0.5
      %v6568 = vmul.f32 %v6477, 0.5
      %v6569 = vmul.f32 %v6479, 0.5
      %v6570 = vmul.f32 %v6481, 0.5
      %v6571 = vmul.f32 %v6485, 0.5
      %v6572 = vmul.f32 %v6487, 0.5
      %v6573 = vmul.f32 %v6489, 0.5
      %v6574 = vmul.f32 %v6491, 0.5
      %v6575 = vmul.f32 %v6495, 0.5
      %v6576 = vmul.f32 %v6497, 0.5
      %v6577 = vmul.f32 %v6499, 0.5
      %v6578 = vmul.f32 %v6501, 0.5
      %v6579 = vmul.f32 %v6505, 0.5
      %v6580 = vmul.f32 %v6507, 0.5
      %v6581 = vmul.f32 %v6509, 0.5
      %v6582 = vmul.f32 %v6511, 0.5
      %v6583 = vmul.f32 %v6515, 0.5
      %v6584 = vmul.f32 %v6517, 0.5
      %v6585 = vmul.f32 %v6519, 0.5
      %v6586 = vmul.f32 %v6521, 0.5
      %v6587 = vmul.f32 %v6523, %v6176
      %v6588 = vmul.f32 %v6524, %v6177
      %v6589 = vmul.f32 %v6525, %v6178
      %v6590 = vmul.f32 %v6526, %v6179
      %v6591 = vmul.f32 %v6527, %v6180
      %v6592 = vmul.f32 %v6528, %v6181
      %v6593 = vmul.f32 %v6529, %v6182
      %v6594 = vmul.f32 %v6530, %v6183
      %v6595 = vmul.f32 %v6531, %v6184
      %v6596 = vmul.f32 %v6532, %v6185
      %v6597 = vmul.f32 %v6533, %v6186
      %v6598 = vmul.f32 %v6534, %v6187
      %v6599 = vmul.f32 %v6535, %v6188
      %v6600 = vmul.f32 %v6536, %v6189
      %v6601 = vmul.f32 %v6537, %v6190
      %v6602 = vmul.f32 %v6538, %v6191
      %v6603 = vmul.f32 %v6539, %v6192
      %v6604 = vmul.f32 %v6540, %v6193
      %v6605 = vmul.f32 %v6541, %v6194
      %v6606 = vmul.f32 %v6542, %v6195
      %v6607 = vmul.f32 %v6543, %v6196
      %v6608 = vmul.f32 %v6544, %v6197
      %v6609 = vmul.f32 %v6545, %v6198
      %v6610 = vmul.f32 %v6546, %v6199
      %v6611 = vmul.f32 %v6547, %v6200
      %v6612 = vmul.f32 %v6548, %v6201
      %v6613 = vmul.f32 %v6549, %v6202
      %v6614 = vmul.f32 %v6550, %v6203
      %v6615 = vmul.f32 %v6551, %v6204
      %v6616 = vmul.f32 %v6552, %v6205
      %v6617 = vmul.f32 %v6553, %v6206
      %v6618 = vmul.f32 %v6554, %v6207
      %v6619 = vmul.f32 %v6555, %v6208
      %v6620 = vmul.f32 %v6556, %v6209
      %v6621 = vmul.f32 %v6557, %v6210
      %v6622 = vmul.f32 %v6558, %v6211
      %v6623 = vmul.f32 %v6559, %v6212
      %v6624 = vmul.f32 %v6560, %v6213
      %v6625 = vmul.f32 %v6561, %v6214
      %v6626 = vmul.f32 %v6562, %v6215
      %v6627 = vmul.f32 %v6563, %v6216
      %v6628 = vmul.f32 %v6564, %v6217
      %v6629 = vmul.f32 %v6565, %v6218
      %v6630 = vmul.f32 %v6566, %v6219
      %v6631 = vmul.f32 %v6567, %v6220
      %v6632 = vmul.f32 %v6568, %v6221
      %v6633 = vmul.f32 %v6569, %v6222
      %v6634 = vmul.f32 %v6570, %v6223
      %v6635 = vmul.f32 %v6571, %v6224
      %v6636 = vmul.f32 %v6572, %v6225
      %v6637 = vmul.f32 %v6573, %v6226
      %v6638 = vmul.f32 %v6574, %v6227
      %v6639 = vmul.f32 %v6575, %v6228
      %v6640 = vmul.f32 %v6576, %v6229
      %v6641 = vmul.f32 %v6577, %v6230
      %v6642 = vmul.f32 %v6578, %v6231
      %v6643 = vmul.f32 %v6579, %v6232
      %v6644 = vmul.f32 %v6580, %v6233
      %v6645 = vmul.f32 %v6581, %v6234
      %v6646 = vmul.f32 %v6582, %v6235
      %v6647 = vmul.f32 %v6583, %v6236
      %v6648 = vmul.f32 %v6584, %v6237
      %v6649 = vmul.f32 %v6585, %v6238
      %v6650 = vmul.f32 %v6586, %v6239
      %v6651 = vadd.f32 %v6587, %v6588
      %6652 = vadd.xlane.f32.xlu0 %v6651
      %v6653 = vpop.xlane.xlu0 %6652
      %v6654 = vadd.f32 %v6589, %v6590
      %6655 = vadd.xlane.f32.xlu0 %v6654
      %v6656 = vpop.xlane.xlu0 %6655
      %v6657 = vadd.f32 %v6591, %v6592
      %6658 = vadd.xlane.f32.xlu0 %v6657
      %v6659 = vpop.xlane.xlu0 %6658
      %v6660 = vadd.f32 %v6593, %v6594
      %6661 = vadd.xlane.f32.xlu0 %v6660
      %v6662 = vpop.xlane.xlu0 %6661
      %v6663 = vadd.f32 %v6595, %v6596
      %6664 = vadd.xlane.f32.xlu0 %v6663
      %v6665 = vpop.xlane.xlu0 %6664
      %v6666 = vadd.f32 %v6597, %v6598
      %6667 = vadd.xlane.f32.xlu0 %v6666
      %v6668 = vpop.xlane.xlu0 %6667
      %v6669 = vadd.f32 %v6599, %v6600
      %6670 = vadd.xlane.f32.xlu0 %v6669
      %v6671 = vpop.xlane.xlu0 %6670
      %v6672 = vadd.f32 %v6601, %v6602
      %6673 = vadd.xlane.f32.xlu0 %v6672
      %v6674 = vpop.xlane.xlu0 %6673
      %v6675 = vadd.f32 %v6603, %v6604
      %6676 = vadd.xlane.f32.xlu0 %v6675
      %v6677 = vpop.xlane.xlu0 %6676
      %v6678 = vadd.f32 %v6605, %v6606
      %6679 = vadd.xlane.f32.xlu0 %v6678
      %v6680 = vpop.xlane.xlu0 %6679
      %v6681 = vadd.f32 %v6607, %v6608
      %6682 = vadd.xlane.f32.xlu0 %v6681
      %v6683 = vpop.xlane.xlu0 %6682
      %v6684 = vadd.f32 %v6609, %v6610
      %6685 = vadd.xlane.f32.xlu0 %v6684
      %v6686 = vpop.xlane.xlu0 %6685
      %v6687 = vadd.f32 %v6611, %v6612
      %6688 = vadd.xlane.f32.xlu0 %v6687
      %v6689 = vpop.xlane.xlu0 %6688
      %v6690 = vadd.f32 %v6613, %v6614
      %6691 = vadd.xlane.f32.xlu0 %v6690
      %v6692 = vpop.xlane.xlu0 %6691
      %v6693 = vadd.f32 %v6615, %v6616
      %6694 = vadd.xlane.f32.xlu0 %v6693
      %v6695 = vpop.xlane.xlu0 %6694
      %v6696 = vadd.f32 %v6617, %v6618
      %6697 = vadd.xlane.f32.xlu0 %v6696
      %v6698 = vpop.xlane.xlu0 %6697
      %v6699 = vadd.f32 %v6619, %v6620
      %6700 = vadd.xlane.f32.xlu0 %v6699
      %v6701 = vpop.xlane.xlu0 %6700
      %v6702 = vadd.f32 %v6621, %v6622
      %6703 = vadd.xlane.f32.xlu0 %v6702
      %v6704 = vpop.xlane.xlu0 %6703
      %v6705 = vadd.f32 %v6623, %v6624
      %6706 = vadd.xlane.f32.xlu0 %v6705
      %v6707 = vpop.xlane.xlu0 %6706
      %v6708 = vadd.f32 %v6625, %v6626
      %6709 = vadd.xlane.f32.xlu0 %v6708
      %v6710 = vpop.xlane.xlu0 %6709
      %v6711 = vadd.f32 %v6627, %v6628
      %6712 = vadd.xlane.f32.xlu0 %v6711
      %v6713 = vpop.xlane.xlu0 %6712
      %v6714 = vadd.f32 %v6629, %v6630
      %6715 = vadd.xlane.f32.xlu0 %v6714
      %v6716 = vpop.xlane.xlu0 %6715
      %v6717 = vadd.f32 %v6631, %v6632
      %6718 = vadd.xlane.f32.xlu0 %v6717
      %v6719 = vpop.xlane.xlu0 %6718
      %v6720 = vadd.f32 %v6633, %v6634
      %6721 = vadd.xlane.f32.xlu0 %v6720
      %v6722 = vpop.xlane.xlu0 %6721
      %v6723 = vadd.f32 %v6635, %v6636
      %6724 = vadd.xlane.f32.xlu0 %v6723
      %v6725 = vpop.xlane.xlu0 %6724
      %v6726 = vadd.f32 %v6637, %v6638
      %6727 = vadd.xlane.f32.xlu0 %v6726
      %v6728 = vpop.xlane.xlu0 %6727
      %v6729 = vadd.f32 %v6639, %v6640
      %6730 = vadd.xlane.f32.xlu0 %v6729
      %v6731 = vpop.xlane.xlu0 %6730
      %v6732 = vadd.f32 %v6641, %v6642
      %6733 = vadd.xlane.f32.xlu0 %v6732
      %v6734 = vpop.xlane.xlu0 %6733
      %v6735 = vadd.f32 %v6643, %v6644
      %6736 = vadd.xlane.f32.xlu0 %v6735
      %v6737 = vpop.xlane.xlu0 %6736
      %v6738 = vadd.f32 %v6645, %v6646
      %6739 = vadd.xlane.f32.xlu0 %v6738
      %v6740 = vpop.xlane.xlu0 %6739
      %v6741 = vadd.f32 %v6647, %v6648
      %6742 = vadd.xlane.f32.xlu0 %v6741
      %v6743 = vpop.xlane.xlu0 %6742
      %v6744 = vadd.f32 %v6649, %v6650
      %6745 = vadd.xlane.f32.xlu0 %v6744
      %v6746 = vpop.xlane.xlu0 %6745
      %6747 = vrot.lane.b32.xlu0 %v5530, 126
      %v6748 = vpop.permute.xlu0 %6747
      %6749 = vrot.lane.b32.xlu0 %v5535, 126
      %v6750 = vpop.permute.xlu0 %6749
      %6751 = vrot.lane.b32.xlu0 %v5540, 126
      %v6752 = vpop.permute.xlu0 %6751
      %6753 = vrot.lane.b32.xlu0 %v5545, 126
      %v6754 = vpop.permute.xlu0 %6753
      %6755 = vrot.lane.b32.xlu0 %v5550, 126
      %v6756 = vpop.permute.xlu0 %6755
      %6757 = vrot.lane.b32.xlu0 %v5555, 126
      %v6758 = vpop.permute.xlu0 %6757
      %6759 = vrot.lane.b32.xlu0 %v5560, 126
      %v6760 = vpop.permute.xlu0 %6759
      %6761 = vrot.lane.b32.xlu0 %v5565, 126
      %v6762 = vpop.permute.xlu0 %6761
      %6763 = vrot.lane.b32.xlu0 %v5570, 126
      %v6764 = vpop.permute.xlu0 %6763
      %6765 = vrot.lane.b32.xlu0 %v5575, 126
      %v6766 = vpop.permute.xlu0 %6765
      %6767 = vrot.lane.b32.xlu0 %v5580, 126
      %v6768 = vpop.permute.xlu0 %6767
      %6769 = vrot.lane.b32.xlu0 %v5585, 126
      %v6770 = vpop.permute.xlu0 %6769
      %6771 = vrot.lane.b32.xlu0 %v5590, 126
      %v6772 = vpop.permute.xlu0 %6771
      %6773 = vrot.lane.b32.xlu0 %v5595, 126
      %v6774 = vpop.permute.xlu0 %6773
      %6775 = vrot.lane.b32.xlu0 %v5600, 126
      %v6776 = vpop.permute.xlu0 %6775
      %6777 = vrot.lane.b32.xlu0 %v5605, 126
      %v6778 = vpop.permute.xlu0 %6777
      %6779 = vrot.lane.b32.xlu0 %v5610, 126
      %v6780 = vpop.permute.xlu0 %6779
      %6781 = vrot.lane.b32.xlu0 %v5615, 126
      %v6782 = vpop.permute.xlu0 %6781
      %6783 = vrot.lane.b32.xlu0 %v5620, 126
      %v6784 = vpop.permute.xlu0 %6783
      %6785 = vrot.lane.b32.xlu0 %v5625, 126
      %v6786 = vpop.permute.xlu0 %6785
      %6787 = vrot.lane.b32.xlu0 %v5630, 126
      %v6788 = vpop.permute.xlu0 %6787
      %6789 = vrot.lane.b32.xlu0 %v5635, 126
      %v6790 = vpop.permute.xlu0 %6789
      %6791 = vrot.lane.b32.xlu0 %v5640, 126
      %v6792 = vpop.permute.xlu0 %6791
      %6793 = vrot.lane.b32.xlu0 %v5645, 126
      %v6794 = vpop.permute.xlu0 %6793
      %6795 = vrot.lane.b32.xlu0 %v5650, 126
      %v6796 = vpop.permute.xlu0 %6795
      %6797 = vrot.lane.b32.xlu0 %v5655, 126
      %v6798 = vpop.permute.xlu0 %6797
      %6799 = vrot.lane.b32.xlu0 %v5660, 126
      %v6800 = vpop.permute.xlu0 %6799
      %6801 = vrot.lane.b32.xlu0 %v5665, 126
      %v6802 = vpop.permute.xlu0 %6801
      %6803 = vrot.lane.b32.xlu0 %v5670, 126
      %v6804 = vpop.permute.xlu0 %6803
      %6805 = vrot.lane.b32.xlu0 %v5675, 126
      %v6806 = vpop.permute.xlu0 %6805
      %6807 = vrot.lane.b32.xlu0 %v5680, 126
      %v6808 = vpop.permute.xlu0 %6807
      %6809 = vrot.lane.b32.xlu0 %v5685, 126
      %v6810 = vpop.permute.xlu0 %6809
      %v6843 = vadd.f32 %v5530, %v6748
      %v6844 = vadd.f32 %v5535, %v6750
      %v6845 = vadd.f32 %v5540, %v6752
      %v6846 = vadd.f32 %v5545, %v6754
      %v6847 = vadd.f32 %v5550, %v6756
      %v6848 = vadd.f32 %v5555, %v6758
      %v6849 = vadd.f32 %v5560, %v6760
      %v6850 = vadd.f32 %v5565, %v6762
      %v6851 = vadd.f32 %v5570, %v6764
      %v6852 = vadd.f32 %v5575, %v6766
      %v6853 = vadd.f32 %v5580, %v6768
      %v6854 = vadd.f32 %v5585, %v6770
      %v6855 = vadd.f32 %v5590, %v6772
      %v6856 = vadd.f32 %v5595, %v6774
      %v6857 = vadd.f32 %v5600, %v6776
      %v6858 = vadd.f32 %v5605, %v6778
      %v6859 = vadd.f32 %v5610, %v6780
      %v6860 = vadd.f32 %v5615, %v6782
      %v6861 = vadd.f32 %v5620, %v6784
      %v6862 = vadd.f32 %v5625, %v6786
      %v6863 = vadd.f32 %v5630, %v6788
      %v6864 = vadd.f32 %v5635, %v6790
      %v6865 = vadd.f32 %v5640, %v6792
      %v6866 = vadd.f32 %v5645, %v6794
      %v6867 = vadd.f32 %v5650, %v6796
      %v6868 = vadd.f32 %v5655, %v6798
      %v6869 = vadd.f32 %v5660, %v6800
      %v6870 = vadd.f32 %v5665, %v6802
      %v6871 = vadd.f32 %v5670, %v6804
      %v6872 = vadd.f32 %v5675, %v6806
      %v6873 = vadd.f32 %v5680, %v6808
      %v6874 = vadd.f32 %v5685, %v6810
      %v6875 = vand.u32 2147483647, %v6653
      %v6876 = vand.u32 2147483647, %v6656
      %v6877 = vand.u32 2147483647, %v6659
      %v6878 = vand.u32 2147483647, %v6662
      %v6879 = vand.u32 2147483647, %v6665
      %v6880 = vand.u32 2147483647, %v6668
      %v6881 = vand.u32 2147483647, %v6671
      %v6882 = vand.u32 2147483647, %v6674
      %v6883 = vand.u32 2147483647, %v6677
      %v6884 = vand.u32 2147483647, %v6680
      %v6885 = vand.u32 2147483647, %v6683
      %v6886 = vand.u32 2147483647, %v6686
      %v6887 = vand.u32 2147483647, %v6689
      %v6888 = vand.u32 2147483647, %v6692
      %v6889 = vand.u32 2147483647, %v6695
      %v6890 = vand.u32 2147483647, %v6698
      %v6891 = vand.u32 2147483647, %v6701
      %v6892 = vand.u32 2147483647, %v6704
      %v6893 = vand.u32 2147483647, %v6707
      %v6894 = vand.u32 2147483647, %v6710
      %v6895 = vand.u32 2147483647, %v6713
      %v6896 = vand.u32 2147483647, %v6716
      %v6897 = vand.u32 2147483647, %v6719
      %v6898 = vand.u32 2147483647, %v6722
      %v6899 = vand.u32 2147483647, %v6725
      %v6900 = vand.u32 2147483647, %v6728
      %v6901 = vand.u32 2147483647, %v6731
      %v6902 = vand.u32 2147483647, %v6734
      %v6903 = vand.u32 2147483647, %v6737
      %v6904 = vand.u32 2147483647, %v6740
      %v6905 = vand.u32 2147483647, %v6743
      %v6906 = vand.u32 2147483647, %v6746
      %v6907 = vsub.f32 0.0, %v6843
      %v6908 = vsub.f32 0.0, %v6844
      %v6909 = vsub.f32 0.0, %v6845
      %v6910 = vsub.f32 0.0, %v6846
      %v6911 = vsub.f32 0.0, %v6847
      %v6912 = vsub.f32 0.0, %v6848
      %v6913 = vsub.f32 0.0, %v6849
      %v6914 = vsub.f32 0.0, %v6850
      %v6915 = vsub.f32 0.0, %v6851
      %v6916 = vsub.f32 0.0, %v6852
      %v6917 = vsub.f32 0.0, %v6853
      %v6918 = vsub.f32 0.0, %v6854
      %v6919 = vsub.f32 0.0, %v6855
      %v6920 = vsub.f32 0.0, %v6856
      %v6921 = vsub.f32 0.0, %v6857
      %v6922 = vsub.f32 0.0, %v6858
      %v6923 = vsub.f32 0.0, %v6859
      %v6924 = vsub.f32 0.0, %v6860
      %v6925 = vsub.f32 0.0, %v6861
      %v6926 = vsub.f32 0.0, %v6862
      %v6927 = vsub.f32 0.0, %v6863
      %v6928 = vsub.f32 0.0, %v6864
      %v6929 = vsub.f32 0.0, %v6865
      %v6930 = vsub.f32 0.0, %v6866
      %v6931 = vsub.f32 0.0, %v6867
      %v6932 = vsub.f32 0.0, %v6868
      %v6933 = vsub.f32 0.0, %v6869
      %v6934 = vsub.f32 0.0, %v6870
      %v6935 = vsub.f32 0.0, %v6871
      %v6936 = vsub.f32 0.0, %v6872
      %v6937 = vsub.f32 0.0, %v6873
      %v6938 = vsub.f32 0.0, %v6874
      %v6939 = vmin.f32 %v6907, 60.0
      %v6940 = vmin.f32 %v6908, 60.0
      %v6941 = vmin.f32 %v6909, 60.0
      %v6942 = vmin.f32 %v6910, 60.0
      %v6943 = vmin.f32 %v6911, 60.0
      %v6944 = vmin.f32 %v6912, 60.0
      %v6945 = vmin.f32 %v6913, 60.0
      %v6946 = vmin.f32 %v6914, 60.0
      %v6947 = vmin.f32 %v6915, 60.0
      %v6948 = vmin.f32 %v6916, 60.0
      %v6949 = vmin.f32 %v6917, 60.0
      %v6950 = vmin.f32 %v6918, 60.0
      %v6951 = vmin.f32 %v6919, 60.0
      %v6952 = vmin.f32 %v6920, 60.0
      %v6953 = vmin.f32 %v6921, 60.0
      %v6954 = vmin.f32 %v6922, 60.0
      %v6955 = vmin.f32 %v6923, 60.0
      %v6956 = vmin.f32 %v6924, 60.0
      %v6957 = vmin.f32 %v6925, 60.0
      %v6958 = vmin.f32 %v6926, 60.0
      %v6959 = vmin.f32 %v6927, 60.0
      %v6960 = vmin.f32 %v6928, 60.0
      %v6961 = vmin.f32 %v6929, 60.0
      %v6962 = vmin.f32 %v6930, 60.0
      %v6963 = vmin.f32 %v6931, 60.0
      %v6964 = vmin.f32 %v6932, 60.0
      %v6965 = vmin.f32 %v6933, 60.0
      %v6966 = vmin.f32 %v6934, 60.0
      %v6967 = vmin.f32 %v6935, 60.0
      %v6968 = vmin.f32 %v6936, 60.0
      %v6969 = vmin.f32 %v6937, 60.0
      %v6970 = vmin.f32 %v6938, 60.0
      %v6971 = vmul.f32 %v6939, 1.442695
      %v6972 = vpow.pop %v6971
      %v6973 = vmul.f32 %v6940, 1.442695
      %v6974 = vpow.pop %v6973
      %v6975 = vmul.f32 %v6941, 1.442695
      %v6976 = vpow.pop %v6975
      %v6977 = vmul.f32 %v6942, 1.442695
      %v6978 = vpow.pop %v6977
      %v6979 = vmul.f32 %v6943, 1.442695
      %v6980 = vpow.pop %v6979
      %v6981 = vmul.f32 %v6944, 1.442695
      %v6982 = vpow.pop %v6981
      %v6983 = vmul.f32 %v6945, 1.442695
      %v6984 = vpow.pop %v6983
      %v6985 = vmul.f32 %v6946, 1.442695
      %v6986 = vpow.pop %v6985
      %v6987 = vmul.f32 %v6947, 1.442695
      %v6988 = vpow.pop %v6987
      %v6989 = vmul.f32 %v6948, 1.442695
      %v6990 = vpow.pop %v6989
      %v6991 = vmul.f32 %v6949, 1.442695
      %v6992 = vpow.pop %v6991
      %v6993 = vmul.f32 %v6950, 1.442695
      %v6994 = vpow.pop %v6993
      %v6995 = vmul.f32 %v6951, 1.442695
      %v6996 = vpow.pop %v6995
      %v6997 = vmul.f32 %v6952, 1.442695
      %v6998 = vpow.pop %v6997
      %v6999 = vmul.f32 %v6953, 1.442695
      %v7000 = vpow.pop %v6999
      %v7001 = vmul.f32 %v6954, 1.442695
      %v7002 = vpow.pop %v7001
      %v7003 = vmul.f32 %v6955, 1.442695
      %v7004 = vpow.pop %v7003
      %v7005 = vmul.f32 %v6956, 1.442695
      %v7006 = vpow.pop %v7005
      %v7007 = vmul.f32 %v6957, 1.442695
      %v7008 = vpow.pop %v7007
      %v7009 = vmul.f32 %v6958, 1.442695
      %v7010 = vpow.pop %v7009
      %v7011 = vmul.f32 %v6959, 1.442695
      %v7012 = vpow.pop %v7011
      %v7013 = vmul.f32 %v6960, 1.442695
      %v7014 = vpow.pop %v7013
      %v7015 = vmul.f32 %v6961, 1.442695
      %v7016 = vpow.pop %v7015
      %v7017 = vmul.f32 %v6962, 1.442695
      %v7018 = vpow.pop %v7017
      %v7019 = vmul.f32 %v6963, 1.442695
      %v7020 = vpow.pop %v7019
      %v7021 = vmul.f32 %v6964, 1.442695
      %v7022 = vpow.pop %v7021
      %v7023 = vmul.f32 %v6965, 1.442695
      %v7024 = vpow.pop %v7023
      %v7025 = vmul.f32 %v6966, 1.442695
      %v7026 = vpow.pop %v7025
      %v7027 = vmul.f32 %v6967, 1.442695
      %v7028 = vpow.pop %v7027
      %v7029 = vmul.f32 %v6968, 1.442695
      %v7030 = vpow.pop %v7029
      %v7031 = vmul.f32 %v6969, 1.442695
      %v7032 = vpow.pop %v7031
      %v7033 = vmul.f32 %v6970, 1.442695
      %v7034 = vpow.pop %v7033
      %v7035 = vmax.f32 %v6875, %v6972
      %v7036 = vmax.f32 %v6876, %v6974
      %v7037 = vmax.f32 %v6877, %v6976
      %v7038 = vmax.f32 %v6878, %v6978
      %v7039 = vmax.f32 %v6879, %v6980
      %v7040 = vmax.f32 %v6880, %v6982
      %v7041 = vmax.f32 %v6881, %v6984
      %v7042 = vmax.f32 %v6882, %v6986
      %v7043 = vmax.f32 %v6883, %v6988
      %v7044 = vmax.f32 %v6884, %v6990
      %v7045 = vmax.f32 %v6885, %v6992
      %v7046 = vmax.f32 %v6886, %v6994
      %v7047 = vmax.f32 %v6887, %v6996
      %v7048 = vmax.f32 %v6888, %v6998
      %v7049 = vmax.f32 %v6889, %v7000
      %v7050 = vmax.f32 %v6890, %v7002
      %v7051 = vmax.f32 %v6891, %v7004
      %v7052 = vmax.f32 %v6892, %v7006
      %v7053 = vmax.f32 %v6893, %v7008
      %v7054 = vmax.f32 %v6894, %v7010
      %v7055 = vmax.f32 %v6895, %v7012
      %v7056 = vmax.f32 %v6896, %v7014
      %v7057 = vmax.f32 %v6897, %v7016
      %v7058 = vmax.f32 %v6898, %v7018
      %v7059 = vmax.f32 %v6899, %v7020
      %v7060 = vmax.f32 %v6900, %v7022
      %v7061 = vmax.f32 %v6901, %v7024
      %v7062 = vmax.f32 %v6902, %v7026
      %v7063 = vmax.f32 %v6903, %v7028
      %v7064 = vmax.f32 %v6904, %v7030
      %v7065 = vmax.f32 %v6905, %v7032
      %v7066 = vmax.f32 %v6906, %v7034
      %v7067 = vadd.f32 %v7035, 1e-06
      %v7068 = vadd.f32 %v7036, 1e-06
      %v7069 = vadd.f32 %v7037, 1e-06
      %v7070 = vadd.f32 %v7038, 1e-06
      %v7071 = vadd.f32 %v7039, 1e-06
      %v7072 = vadd.f32 %v7040, 1e-06
      %v7073 = vadd.f32 %v7041, 1e-06
      %v7074 = vadd.f32 %v7042, 1e-06
      %v7075 = vadd.f32 %v7043, 1e-06
      %v7076 = vadd.f32 %v7044, 1e-06
      %v7077 = vadd.f32 %v7045, 1e-06
      %v7078 = vadd.f32 %v7046, 1e-06
      %v7079 = vadd.f32 %v7047, 1e-06
      %v7080 = vadd.f32 %v7048, 1e-06
      %v7081 = vadd.f32 %v7049, 1e-06
      %v7082 = vadd.f32 %v7050, 1e-06
      %v7083 = vadd.f32 %v7051, 1e-06
      %v7084 = vadd.f32 %v7052, 1e-06
      %v7085 = vadd.f32 %v7053, 1e-06
      %v7086 = vadd.f32 %v7054, 1e-06
      %v7087 = vadd.f32 %v7055, 1e-06
      %v7088 = vadd.f32 %v7056, 1e-06
      %v7089 = vadd.f32 %v7057, 1e-06
      %v7090 = vadd.f32 %v7058, 1e-06
      %v7091 = vadd.f32 %v7059, 1e-06
      %v7092 = vadd.f32 %v7060, 1e-06
      %v7093 = vadd.f32 %v7061, 1e-06
      %v7094 = vadd.f32 %v7062, 1e-06
      %v7095 = vadd.f32 %v7063, 1e-06
      %v7096 = vadd.f32 %v7064, 1e-06
      %v7097 = vadd.f32 %v7065, 1e-06
      %v7098 = vadd.f32 %v7066, 1e-06
      %v7099 = vrcp.pop %v7067
      %v7100 = vrcp.pop %v7068
      %v7101 = vrcp.pop %v7069
      %v7102 = vrcp.pop %v7070
      %v7103 = vrcp.pop %v7071
      %v7104 = vrcp.pop %v7072
      %v7105 = vrcp.pop %v7073
      %v7106 = vrcp.pop %v7074
      %v7107 = vrcp.pop %v7075
      %v7108 = vrcp.pop %v7076
      %v7109 = vrcp.pop %v7077
      %v7110 = vrcp.pop %v7078
      %v7111 = vrcp.pop %v7079
      %v7112 = vrcp.pop %v7080
      %v7113 = vrcp.pop %v7081
      %v7114 = vrcp.pop %v7082
      %v7115 = vrcp.pop %v7083
      %v7116 = vrcp.pop %v7084
      %v7117 = vrcp.pop %v7085
      %v7118 = vrcp.pop %v7086
      %v7119 = vrcp.pop %v7087
      %v7120 = vrcp.pop %v7088
      %v7121 = vrcp.pop %v7089
      %v7122 = vrcp.pop %v7090
      %v7123 = vrcp.pop %v7091
      %v7124 = vrcp.pop %v7092
      %v7125 = vrcp.pop %v7093
      %v7126 = vrcp.pop %v7094
      %v7127 = vrcp.pop %v7095
      %v7128 = vrcp.pop %v7096
      %v7129 = vrcp.pop %v7097
      %v7130 = vrcp.pop %v7098
      %7132 = vset.pattern.permute.xlu0 0
      %7133 = vperm.xlu0 %7132, %v7099
      %v7134 = vpop.permute.xlu0 %7133
      %7137 = vset.pattern.permute.xlu0 0
      %7138 = vperm.xlu0 %7137, %v7100
      %v7139 = vpop.permute.xlu0 %7138
      %7142 = vset.pattern.permute.xlu0 0
      %7143 = vperm.xlu0 %7142, %v7101
      %v7144 = vpop.permute.xlu0 %7143
      %7147 = vset.pattern.permute.xlu0 0
      %7148 = vperm.xlu0 %7147, %v7102
      %v7149 = vpop.permute.xlu0 %7148
      %7152 = vset.pattern.permute.xlu0 0
      %7153 = vperm.xlu0 %7152, %v7103
      %v7154 = vpop.permute.xlu0 %7153
      %7157 = vset.pattern.permute.xlu0 0
      %7158 = vperm.xlu0 %7157, %v7104
      %v7159 = vpop.permute.xlu0 %7158
      %7162 = vset.pattern.permute.xlu0 0
      %7163 = vperm.xlu0 %7162, %v7105
      %v7164 = vpop.permute.xlu0 %7163
      %7167 = vset.pattern.permute.xlu0 0
      %7168 = vperm.xlu0 %7167, %v7106
      %v7169 = vpop.permute.xlu0 %7168
      %7172 = vset.pattern.permute.xlu0 0
      %7173 = vperm.xlu0 %7172, %v7107
      %v7174 = vpop.permute.xlu0 %7173
      %7177 = vset.pattern.permute.xlu0 0
      %7178 = vperm.xlu0 %7177, %v7108
      %v7179 = vpop.permute.xlu0 %7178
      %7182 = vset.pattern.permute.xlu0 0
      %7183 = vperm.xlu0 %7182, %v7109
      %v7184 = vpop.permute.xlu0 %7183
      %7187 = vset.pattern.permute.xlu0 0
      %7188 = vperm.xlu0 %7187, %v7110
      %v7189 = vpop.permute.xlu0 %7188
      %7192 = vset.pattern.permute.xlu0 0
      %7193 = vperm.xlu0 %7192, %v7111
      %v7194 = vpop.permute.xlu0 %7193
      %7197 = vset.pattern.permute.xlu0 0
      %7198 = vperm.xlu0 %7197, %v7112
      %v7199 = vpop.permute.xlu0 %7198
      %7202 = vset.pattern.permute.xlu0 0
      %7203 = vperm.xlu0 %7202, %v7113
      %v7204 = vpop.permute.xlu0 %7203
      %7207 = vset.pattern.permute.xlu0 0
      %7208 = vperm.xlu0 %7207, %v7114
      %v7209 = vpop.permute.xlu0 %7208
      %7212 = vset.pattern.permute.xlu0 0
      %7213 = vperm.xlu0 %7212, %v7115
      %v7214 = vpop.permute.xlu0 %7213
      %7217 = vset.pattern.permute.xlu0 0
      %7218 = vperm.xlu0 %7217, %v7116
      %v7219 = vpop.permute.xlu0 %7218
      %7222 = vset.pattern.permute.xlu0 0
      %7223 = vperm.xlu0 %7222, %v7117
      %v7224 = vpop.permute.xlu0 %7223
      %7227 = vset.pattern.permute.xlu0 0
      %7228 = vperm.xlu0 %7227, %v7118
      %v7229 = vpop.permute.xlu0 %7228
      %7232 = vset.pattern.permute.xlu0 0
      %7233 = vperm.xlu0 %7232, %v7119
      %v7234 = vpop.permute.xlu0 %7233
      %7237 = vset.pattern.permute.xlu0 0
      %7238 = vperm.xlu0 %7237, %v7120
      %v7239 = vpop.permute.xlu0 %7238
      %7242 = vset.pattern.permute.xlu0 0
      %7243 = vperm.xlu0 %7242, %v7121
      %v7244 = vpop.permute.xlu0 %7243
      %7247 = vset.pattern.permute.xlu0 0
      %7248 = vperm.xlu0 %7247, %v7122
      %v7249 = vpop.permute.xlu0 %7248
      %7252 = vset.pattern.permute.xlu0 0
      %7253 = vperm.xlu0 %7252, %v7123
      %v7254 = vpop.permute.xlu0 %7253
      %7257 = vset.pattern.permute.xlu0 0
      %7258 = vperm.xlu0 %7257, %v7124
      %v7259 = vpop.permute.xlu0 %7258
      %7262 = vset.pattern.permute.xlu0 0
      %7263 = vperm.xlu0 %7262, %v7125
      %v7264 = vpop.permute.xlu0 %7263
      %7267 = vset.pattern.permute.xlu0 0
      %7268 = vperm.xlu0 %7267, %v7126
      %v7269 = vpop.permute.xlu0 %7268
      %7272 = vset.pattern.permute.xlu0 0
      %7273 = vperm.xlu0 %7272, %v7127
      %v7274 = vpop.permute.xlu0 %7273
      %7277 = vset.pattern.permute.xlu0 0
      %7278 = vperm.xlu0 %7277, %v7128
      %v7279 = vpop.permute.xlu0 %7278
      %7282 = vset.pattern.permute.xlu0 0
      %7283 = vperm.xlu0 %7282, %v7129
      %v7284 = vpop.permute.xlu0 %7283
      %7287 = vset.pattern.permute.xlu0 0
      %7288 = vperm.xlu0 %7287, %v7130
      %v7289 = vpop.permute.xlu0 %7288
      %v7291 = vmul.f32 %v6587, %v7134
      %v7292 = vmul.f32 %v6588, %v7134
      %v7293 = vmul.f32 %v6589, %v7139
      %v7294 = vmul.f32 %v6590, %v7139
      %v7295 = vmul.f32 %v6591, %v7144
      %v7296 = vmul.f32 %v6592, %v7144
      %v7297 = vmul.f32 %v6593, %v7149
      %v7298 = vmul.f32 %v6594, %v7149
      %v7299 = vmul.f32 %v6595, %v7154
      %v7300 = vmul.f32 %v6596, %v7154
      %v7301 = vmul.f32 %v6597, %v7159
      %v7302 = vmul.f32 %v6598, %v7159
      %v7303 = vmul.f32 %v6599, %v7164
      %v7304 = vmul.f32 %v6600, %v7164
      %v7305 = vmul.f32 %v6601, %v7169
      %v7306 = vmul.f32 %v6602, %v7169
      %v7307 = vmul.f32 %v6603, %v7174
      %v7308 = vmul.f32 %v6604, %v7174
      %v7309 = vmul.f32 %v6605, %v7179
      %v7310 = vmul.f32 %v6606, %v7179
      %v7311 = vmul.f32 %v6607, %v7184
      %v7312 = vmul.f32 %v6608, %v7184
      %v7313 = vmul.f32 %v6609, %v7189
      %v7314 = vmul.f32 %v6610, %v7189
      %v7315 = vmul.f32 %v6611, %v7194
      %v7316 = vmul.f32 %v6612, %v7194
      %v7317 = vmul.f32 %v6613, %v7199
      %v7318 = vmul.f32 %v6614, %v7199
      %v7319 = vmul.f32 %v6615, %v7204
      %v7320 = vmul.f32 %v6616, %v7204
      %v7321 = vmul.f32 %v6617, %v7209
      %v7322 = vmul.f32 %v6618, %v7209
      %v7323 = vmul.f32 %v6619, %v7214
      %v7324 = vmul.f32 %v6620, %v7214
      %v7325 = vmul.f32 %v6621, %v7219
      %v7326 = vmul.f32 %v6622, %v7219
      %v7327 = vmul.f32 %v6623, %v7224
      %v7328 = vmul.f32 %v6624, %v7224
      %v7329 = vmul.f32 %v6625, %v7229
      %v7330 = vmul.f32 %v6626, %v7229
      %v7331 = vmul.f32 %v6627, %v7234
      %v7332 = vmul.f32 %v6628, %v7234
      %v7333 = vmul.f32 %v6629, %v7239
      %v7334 = vmul.f32 %v6630, %v7239
      %v7335 = vmul.f32 %v6631, %v7244
      %v7336 = vmul.f32 %v6632, %v7244
      %v7337 = vmul.f32 %v6633, %v7249
      %v7338 = vmul.f32 %v6634, %v7249
      %v7339 = vmul.f32 %v6635, %v7254
      %v7340 = vmul.f32 %v6636, %v7254
      %v7341 = vmul.f32 %v6637, %v7259
      %v7342 = vmul.f32 %v6638, %v7259
      %v7343 = vmul.f32 %v6639, %v7264
      %v7344 = vmul.f32 %v6640, %v7264
      %v7345 = vmul.f32 %v6641, %v7269
      %v7346 = vmul.f32 %v6642, %v7269
      %v7347 = vmul.f32 %v6643, %v7274
      %v7348 = vmul.f32 %v6644, %v7274
      %v7349 = vmul.f32 %v6645, %v7279
      %v7350 = vmul.f32 %v6646, %v7279
      %v7351 = vmul.f32 %v6647, %v7284
      %v7352 = vmul.f32 %v6648, %v7284
      %v7353 = vmul.f32 %v6649, %v7289
      %v7354 = vmul.f32 %v6650, %v7289
      %v7355 = vpack.c.bf16 %v7293, %v7291
      %v7356 = vpack.c.bf16 %v7294, %v7292
      %v7357 = vpack.c.bf16 %v7297, %v7295
      %v7358 = vpack.c.bf16 %v7298, %v7296
      %v7359 = vpack.c.bf16 %v7301, %v7299
      %v7360 = vpack.c.bf16 %v7302, %v7300
      %v7361 = vpack.c.bf16 %v7305, %v7303
      %v7362 = vpack.c.bf16 %v7306, %v7304
      %v7363 = vpack.c.bf16 %v7309, %v7307
      %v7364 = vpack.c.bf16 %v7310, %v7308
      %v7365 = vpack.c.bf16 %v7313, %v7311
      %v7366 = vpack.c.bf16 %v7314, %v7312
      %v7367 = vpack.c.bf16 %v7317, %v7315
      %v7368 = vpack.c.bf16 %v7318, %v7316
      %v7369 = vpack.c.bf16 %v7321, %v7319
      %v7370 = vpack.c.bf16 %v7322, %v7320
      %v7371 = vpack.c.bf16 %v7325, %v7323
      %v7372 = vpack.c.bf16 %v7326, %v7324
      %v7373 = vpack.c.bf16 %v7329, %v7327
      %v7374 = vpack.c.bf16 %v7330, %v7328
      %v7375 = vpack.c.bf16 %v7333, %v7331
      %v7376 = vpack.c.bf16 %v7334, %v7332
      %v7377 = vpack.c.bf16 %v7337, %v7335
      %v7378 = vpack.c.bf16 %v7338, %v7336
      %v7379 = vpack.c.bf16 %v7341, %v7339
      %v7380 = vpack.c.bf16 %v7342, %v7340
      %v7381 = vpack.c.bf16 %v7345, %v7343
      %v7382 = vpack.c.bf16 %v7346, %v7344
      %v7383 = vpack.c.bf16 %v7349, %v7347
      %v7384 = vpack.c.bf16 %v7350, %v7348
      %v7385 = vpack.c.bf16 %v7353, %v7351
      %v7386 = vpack.c.bf16 %v7354, %v7352
      %7387 = vmatprep.subr.bf16.mxu0 %v7356
      %7388 = vmatpush1.bf16.xpose.msra.mxu0 %v7355
      %7389 = vmatprep.subr.bf16.mxu0 %v7358
      %7390 = vmatpush1.bf16.xpose.msra.mxu0 %v7357
      %7391 = vmatprep.subr.bf16.mxu0 %v7360
      %7392 = vmatpush1.bf16.xpose.msra.mxu0 %v7359
      %7393 = vmatprep.subr.bf16.mxu0 %v7362
      %7394 = vmatpush1.bf16.xpose.msra.mxu0 %v7361
      %7395 = vmatprep.subr.bf16.mxu0 %v7364
      %7396 = vmatpush1.bf16.xpose.msra.mxu0 %v7363
      %7397 = vmatprep.subr.bf16.mxu0 %v7366
      %7398 = vmatpush1.bf16.xpose.msra.mxu0 %v7365
      %7399 = vmatprep.subr.bf16.mxu0 %v7368
      %7400 = vmatpush1.bf16.xpose.msra.mxu0 %v7367
      %7401 = vmatprep.subr.bf16.mxu0 %v7370
      %7402 = vmatpush1.bf16.xpose.msra.mxu0 %v7369
      %7403 = vmatprep.subr.bf16.mxu0 %v7372
      %7404 = vmatpush1.bf16.xpose.msra.mxu0 %v7371
      %7405 = vmatprep.subr.bf16.mxu0 %v7374
      %7406 = vmatpush1.bf16.xpose.msra.mxu0 %v7373
      %7407 = vmatprep.subr.bf16.mxu0 %v7376
      %7408 = vmatpush1.bf16.xpose.msra.mxu0 %v7375
      %7409 = vmatprep.subr.bf16.mxu0 %v7378
      %7410 = vmatpush1.bf16.xpose.msra.mxu0 %v7377
      %7411 = vmatprep.subr.bf16.mxu0 %v7380
      %7412 = vmatpush1.bf16.xpose.msra.mxu0 %v7379
      %7413 = vmatprep.subr.bf16.mxu0 %v7382
      %7414 = vmatpush1.bf16.xpose.msra.mxu0 %v7381
      %7415 = vmatprep.subr.bf16.mxu0 %v7384
      %7416 = vmatpush1.bf16.xpose.msra.mxu0 %v7383
      %7417 = vmatprep.subr.bf16.mxu0 %v7386
      %7418 = vmatpush1.bf16.xpose.msra.mxu0 %v7385
      %7419 = vmatprep.mubr.bf16.mxu0 %v758
      %7420 = vmatmul.mubr.bf16.gmra.mrb[0].mxu0 %v757
      %v7421 = vpop.f32.mrb[0].mxu0
      %v7422 = vadd.f32 0.0, %v7421
      %v7423 = vpop.f32.mrb[0].mxu0
      %v7424 = vadd.f32 0.0, %v7423
      %v7425 = vpop.f32.mrb[0].mxu0
      %v7426 = vpop.f32.mrb[0].mxu0
      %7427 = vdwg.mxu0
      %v7428 = vsel %vm286, %v7422, 0.0
      %v7429 = vrot.slane %v7428, 4
      %v7430 = vadd.f32 %v7428, %v7429
      %v7431 = vrot.slane %v7430, 2
      %v7432 = vadd.f32 %v7430, %v7431
      %v7433 = vrot.slane %v7432, 1
      %v7434 = vadd.f32 %v7432, %v7433
      %v7435 = vsel %vm286, %v7424, 0.0
      %v7436 = vrot.slane %v7435, 4
      %v7437 = vadd.f32 %v7435, %v7436
      %v7438 = vrot.slane %v7437, 2
      %v7439 = vadd.f32 %v7437, %v7438
      %v7440 = vrot.slane %v7439, 1
      %v7441 = vadd.f32 %v7439, %v7440
      %v7442 = vmul.f32 %v7434, %v301
      %v7443 = vmul.f32 %v7441, %v301
      %v7444 = vsub.f32 %v7422, %v7442
      %v7445 = vsub.f32 %v7424, %v7443
      %v7446 = vmul.f32 %v7444, %v7444
      %v7447 = vmul.f32 %v7445, %v7445
      %v7448 = vsel %vm286, %v7446, 0.0
      %v7449 = vrot.slane %v7448, 4
      %v7450 = vadd.f32 %v7448, %v7449
      %v7451 = vrot.slane %v7450, 2
      %v7452 = vadd.f32 %v7450, %v7451
      %v7453 = vrot.slane %v7452, 1
      %v7454 = vadd.f32 %v7452, %v7453
      %v7455 = vsel %vm286, %v7447, 0.0
      %v7456 = vrot.slane %v7455, 4
      %v7457 = vadd.f32 %v7455, %v7456
      %v7458 = vrot.slane %v7457, 2
      %v7459 = vadd.f32 %v7457, %v7458
      %v7460 = vrot.slane %v7459, 1
      %v7461 = vadd.f32 %v7459, %v7460
      %v7462 = vmul.f32 %v7454, %v301
      %v7463 = vmul.f32 %v7461, %v301
      %v7464 = vadd.f32 %v7462, 1e-05
      %v7465 = vadd.f32 %v7463, 1e-05
      %v7466 = vrsqrt.pop %v7464
      %v7467 = vrsqrt.pop %v7465
      %v7468 = vmul.f32 %v7444, %v7466
      %v7469 = vmul.f32 %v7445, %v7467
      %v7470 = vlaneseq
      %v7471 = vshrl.u32 %v7470, 7
      %v7472 = vsub.s32 1, %v7471
      %v7473 = vrot.slane %v5219, %v7472
      %v7474 = vlaneseq
      %v7475 = vshrl.u32 %v7474, 7
      %v7476 = vsub.s32 1, %v7475
      %v7477 = vrot.slane %v5220, %v7476
      %7478 = vset.pattern.permute.xlu0 3
      %7479 = vperm.xlu0 %7478, %v5530
      %v7480 = vpop.permute.xlu0 %7479
      %7482 = vset.pattern.permute.xlu0 3
      %7483 = vperm.xlu0 %7482, %v5535
      %v7484 = vpop.permute.xlu0 %7483
      %7486 = vset.pattern.permute.xlu0 3
      %7487 = vperm.xlu0 %7486, %v5540
      %v7488 = vpop.permute.xlu0 %7487
      %7490 = vset.pattern.permute.xlu0 3
      %7491 = vperm.xlu0 %7490, %v5545
      %v7492 = vpop.permute.xlu0 %7491
      %7494 = vset.pattern.permute.xlu0 3
      %7495 = vperm.xlu0 %7494, %v5550
      %v7496 = vpop.permute.xlu0 %7495
      %7498 = vset.pattern.permute.xlu0 3
      %7499 = vperm.xlu0 %7498, %v5555
      %v7500 = vpop.permute.xlu0 %7499
      %7502 = vset.pattern.permute.xlu0 3
      %7503 = vperm.xlu0 %7502, %v5560
      %v7504 = vpop.permute.xlu0 %7503
      %7506 = vset.pattern.permute.xlu0 3
      %7507 = vperm.xlu0 %7506, %v5565
      %v7508 = vpop.permute.xlu0 %7507
      %7510 = vset.pattern.permute.xlu0 3
      %7511 = vperm.xlu0 %7510, %v5570
      %v7512 = vpop.permute.xlu0 %7511
      %7514 = vset.pattern.permute.xlu0 3
      %7515 = vperm.xlu0 %7514, %v5575
      %v7516 = vpop.permute.xlu0 %7515
      %7518 = vset.pattern.permute.xlu0 3
      %7519 = vperm.xlu0 %7518, %v5580
      %v7520 = vpop.permute.xlu0 %7519
      %7522 = vset.pattern.permute.xlu0 3
      %7523 = vperm.xlu0 %7522, %v5585
      %v7524 = vpop.permute.xlu0 %7523
      %7526 = vset.pattern.permute.xlu0 3
      %7527 = vperm.xlu0 %7526, %v5590
      %v7528 = vpop.permute.xlu0 %7527
      %7530 = vset.pattern.permute.xlu0 3
      %7531 = vperm.xlu0 %7530, %v5595
      %v7532 = vpop.permute.xlu0 %7531
      %7534 = vset.pattern.permute.xlu0 3
      %7535 = vperm.xlu0 %7534, %v5600
      %v7536 = vpop.permute.xlu0 %7535
      %7538 = vset.pattern.permute.xlu0 3
      %7539 = vperm.xlu0 %7538, %v5605
      %v7540 = vpop.permute.xlu0 %7539
      %7542 = vset.pattern.permute.xlu0 3
      %7543 = vperm.xlu0 %7542, %v5610
      %v7544 = vpop.permute.xlu0 %7543
      %7546 = vset.pattern.permute.xlu0 3
      %7547 = vperm.xlu0 %7546, %v5615
      %v7548 = vpop.permute.xlu0 %7547
      %7550 = vset.pattern.permute.xlu0 3
      %7551 = vperm.xlu0 %7550, %v5620
      %v7552 = vpop.permute.xlu0 %7551
      %7554 = vset.pattern.permute.xlu0 3
      %7555 = vperm.xlu0 %7554, %v5625
      %v7556 = vpop.permute.xlu0 %7555
      %7558 = vset.pattern.permute.xlu0 3
      %7559 = vperm.xlu0 %7558, %v5630
      %v7560 = vpop.permute.xlu0 %7559
      %7562 = vset.pattern.permute.xlu0 3
      %7563 = vperm.xlu0 %7562, %v5635
      %v7564 = vpop.permute.xlu0 %7563
      %7566 = vset.pattern.permute.xlu0 3
      %7567 = vperm.xlu0 %7566, %v5640
      %v7568 = vpop.permute.xlu0 %7567
      %7570 = vset.pattern.permute.xlu0 3
      %7571 = vperm.xlu0 %7570, %v5645
      %v7572 = vpop.permute.xlu0 %7571
      %7574 = vset.pattern.permute.xlu0 3
      %7575 = vperm.xlu0 %7574, %v5650
      %v7576 = vpop.permute.xlu0 %7575
      %7578 = vset.pattern.permute.xlu0 3
      %7579 = vperm.xlu0 %7578, %v5655
      %v7580 = vpop.permute.xlu0 %7579
      %7582 = vset.pattern.permute.xlu0 3
      %7583 = vperm.xlu0 %7582, %v5660
      %v7584 = vpop.permute.xlu0 %7583
      %7586 = vset.pattern.permute.xlu0 3
      %7587 = vperm.xlu0 %7586, %v5665
      %v7588 = vpop.permute.xlu0 %7587
      %7590 = vset.pattern.permute.xlu0 3
      %7591 = vperm.xlu0 %7590, %v5670
      %v7592 = vpop.permute.xlu0 %7591
      %7594 = vset.pattern.permute.xlu0 3
      %7595 = vperm.xlu0 %7594, %v5675
      %v7596 = vpop.permute.xlu0 %7595
      %7598 = vset.pattern.permute.xlu0 3
      %7599 = vperm.xlu0 %7598, %v5680
      %v7600 = vpop.permute.xlu0 %7599
      %7602 = vset.pattern.permute.xlu0 3
      %7603 = vperm.xlu0 %7602, %v5685
      %v7604 = vpop.permute.xlu0 %7603
      %v7606 = vsub.f32 %v7473, %v7480
      %v7607 = vsub.f32 %v7477, %v7480
      %v7608 = vsub.f32 %v7473, %v7484
      %v7609 = vsub.f32 %v7477, %v7484
      %v7610 = vsub.f32 %v7473, %v7488
      %v7611 = vsub.f32 %v7477, %v7488
      %v7612 = vsub.f32 %v7473, %v7492
      %v7613 = vsub.f32 %v7477, %v7492
      %v7614 = vsub.f32 %v7473, %v7496
      %v7615 = vsub.f32 %v7477, %v7496
      %v7616 = vsub.f32 %v7473, %v7500
      %v7617 = vsub.f32 %v7477, %v7500
      %v7618 = vsub.f32 %v7473, %v7504
      %v7619 = vsub.f32 %v7477, %v7504
      %v7620 = vsub.f32 %v7473, %v7508
      %v7621 = vsub.f32 %v7477, %v7508
      %v7622 = vsub.f32 %v7473, %v7512
      %v7623 = vsub.f32 %v7477, %v7512
      %v7624 = vsub.f32 %v7473, %v7516
      %v7625 = vsub.f32 %v7477, %v7516
      %v7626 = vsub.f32 %v7473, %v7520
      %v7627 = vsub.f32 %v7477, %v7520
      %v7628 = vsub.f32 %v7473, %v7524
      %v7629 = vsub.f32 %v7477, %v7524
      %v7630 = vsub.f32 %v7473, %v7528
      %v7631 = vsub.f32 %v7477, %v7528
      %v7632 = vsub.f32 %v7473, %v7532
      %v7633 = vsub.f32 %v7477, %v7532
      %v7634 = vsub.f32 %v7473, %v7536
      %v7635 = vsub.f32 %v7477, %v7536
      %v7636 = vsub.f32 %v7473, %v7540
      %v7637 = vsub.f32 %v7477, %v7540
      %v7638 = vsub.f32 %v7473, %v7544
      %v7639 = vsub.f32 %v7477, %v7544
      %v7640 = vsub.f32 %v7473, %v7548
      %v7641 = vsub.f32 %v7477, %v7548
      %v7642 = vsub.f32 %v7473, %v7552
      %v7643 = vsub.f32 %v7477, %v7552
      %v7644 = vsub.f32 %v7473, %v7556
      %v7645 = vsub.f32 %v7477, %v7556
      %v7646 = vsub.f32 %v7473, %v7560
      %v7647 = vsub.f32 %v7477, %v7560
      %v7648 = vsub.f32 %v7473, %v7564
      %v7649 = vsub.f32 %v7477, %v7564
      %v7650 = vsub.f32 %v7473, %v7568
      %v7651 = vsub.f32 %v7477, %v7568
      %v7652 = vsub.f32 %v7473, %v7572
      %v7653 = vsub.f32 %v7477, %v7572
      %v7654 = vsub.f32 %v7473, %v7576
      %v7655 = vsub.f32 %v7477, %v7576
      %v7656 = vsub.f32 %v7473, %v7580
      %v7657 = vsub.f32 %v7477, %v7580
      %v7658 = vsub.f32 %v7473, %v7584
      %v7659 = vsub.f32 %v7477, %v7584
      %v7660 = vsub.f32 %v7473, %v7588
      %v7661 = vsub.f32 %v7477, %v7588
      %v7662 = vsub.f32 %v7473, %v7592
      %v7663 = vsub.f32 %v7477, %v7592
      %v7664 = vsub.f32 %v7473, %v7596
      %v7665 = vsub.f32 %v7477, %v7596
      %v7666 = vsub.f32 %v7473, %v7600
      %v7667 = vsub.f32 %v7477, %v7600
      %v7668 = vsub.f32 %v7473, %v7604
      %v7669 = vsub.f32 %v7477, %v7604
      %v7670 = vmin.f32 %v7606, 0.0
      %v7671 = vmin.f32 %v7607, 0.0
      %v7672 = vmin.f32 %v7608, 0.0
      %v7673 = vmin.f32 %v7609, 0.0
      %v7674 = vmin.f32 %v7610, 0.0
      %v7675 = vmin.f32 %v7611, 0.0
      %v7676 = vmin.f32 %v7612, 0.0
      %v7677 = vmin.f32 %v7613, 0.0
      %v7678 = vmin.f32 %v7614, 0.0
      %v7679 = vmin.f32 %v7615, 0.0
      %v7680 = vmin.f32 %v7616, 0.0
      %v7681 = vmin.f32 %v7617, 0.0
      %v7682 = vmin.f32 %v7618, 0.0
      %v7683 = vmin.f32 %v7619, 0.0
      %v7684 = vmin.f32 %v7620, 0.0
      %v7685 = vmin.f32 %v7621, 0.0
      %v7686 = vmin.f32 %v7622, 0.0
      %v7687 = vmin.f32 %v7623, 0.0
      %v7688 = vmin.f32 %v7624, 0.0
      %v7689 = vmin.f32 %v7625, 0.0
      %v7690 = vmin.f32 %v7626, 0.0
      %v7691 = vmin.f32 %v7627, 0.0
      %v7692 = vmin.f32 %v7628, 0.0
      %v7693 = vmin.f32 %v7629, 0.0
      %v7694 = vmin.f32 %v7630, 0.0
      %v7695 = vmin.f32 %v7631, 0.0
      %v7696 = vmin.f32 %v7632, 0.0
      %v7697 = vmin.f32 %v7633, 0.0
      %v7698 = vmin.f32 %v7634, 0.0
      %v7699 = vmin.f32 %v7635, 0.0
      %v7700 = vmin.f32 %v7636, 0.0
      %v7701 = vmin.f32 %v7637, 0.0
      %v7702 = vmin.f32 %v7638, 0.0
      %v7703 = vmin.f32 %v7639, 0.0
      %v7704 = vmin.f32 %v7640, 0.0
      %v7705 = vmin.f32 %v7641, 0.0
      %v7706 = vmin.f32 %v7642, 0.0
      %v7707 = vmin.f32 %v7643, 0.0
      %v7708 = vmin.f32 %v7644, 0.0
      %v7709 = vmin.f32 %v7645, 0.0
      %v7710 = vmin.f32 %v7646, 0.0
      %v7711 = vmin.f32 %v7647, 0.0
      %v7712 = vmin.f32 %v7648, 0.0
      %v7713 = vmin.f32 %v7649, 0.0
      %v7714 = vmin.f32 %v7650, 0.0
      %v7715 = vmin.f32 %v7651, 0.0
      %v7716 = vmin.f32 %v7652, 0.0
      %v7717 = vmin.f32 %v7653, 0.0
      %v7718 = vmin.f32 %v7654, 0.0
      %v7719 = vmin.f32 %v7655, 0.0
      %v7720 = vmin.f32 %v7656, 0.0
      %v7721 = vmin.f32 %v7657, 0.0
      %v7722 = vmin.f32 %v7658, 0.0
      %v7723 = vmin.f32 %v7659, 0.0
      %v7724 = vmin.f32 %v7660, 0.0
      %v7725 = vmin.f32 %v7661, 0.0
      %v7726 = vmin.f32 %v7662, 0.0
      %v7727 = vmin.f32 %v7663, 0.0
      %v7728 = vmin.f32 %v7664, 0.0
      %v7729 = vmin.f32 %v7665, 0.0
      %v7730 = vmin.f32 %v7666, 0.0
      %v7731 = vmin.f32 %v7667, 0.0
      %v7732 = vmin.f32 %v7668, 0.0
      %v7733 = vmin.f32 %v7669, 0.0
      %v7734 = vmul.f32 %v7670, 1.442695
      %v7735 = vpow.pop %v7734
      %v7736 = vmul.f32 %v7671, 1.442695
      %v7737 = vpow.pop %v7736
      %v7738 = vmul.f32 %v7672, 1.442695
      %v7739 = vpow.pop %v7738
      %v7740 = vmul.f32 %v7673, 1.442695
      %v7741 = vpow.pop %v7740
      %v7742 = vmul.f32 %v7674, 1.442695
      %v7743 = vpow.pop %v7742
      %v7744 = vmul.f32 %v7675, 1.442695
      %v7745 = vpow.pop %v7744
      %v7746 = vmul.f32 %v7676, 1.442695
      %v7747 = vpow.pop %v7746
      %v7748 = vmul.f32 %v7677, 1.442695
      %v7749 = vpow.pop %v7748
      %v7750 = vmul.f32 %v7678, 1.442695
      %v7751 = vpow.pop %v7750
      %v7752 = vmul.f32 %v7679, 1.442695
      %v7753 = vpow.pop %v7752
      %v7754 = vmul.f32 %v7680, 1.442695
      %v7755 = vpow.pop %v7754
      %v7756 = vmul.f32 %v7681, 1.442695
      %v7757 = vpow.pop %v7756
      %v7758 = vmul.f32 %v7682, 1.442695
      %v7759 = vpow.pop %v7758
      %v7760 = vmul.f32 %v7683, 1.442695
      %v7761 = vpow.pop %v7760
      %v7762 = vmul.f32 %v7684, 1.442695
      %v7763 = vpow.pop %v7762
      %v7764 = vmul.f32 %v7685, 1.442695
      %v7765 = vpow.pop %v7764
      %v7766 = vmul.f32 %v7686, 1.442695
      %v7767 = vpow.pop %v7766
      %v7768 = vmul.f32 %v7687, 1.442695
      %v7769 = vpow.pop %v7768
      %v7770 = vmul.f32 %v7688, 1.442695
      %v7771 = vpow.pop %v7770
      %v7772 = vmul.f32 %v7689, 1.442695
      %v7773 = vpow.pop %v7772
      %v7774 = vmul.f32 %v7690, 1.442695
      %v7775 = vpow.pop %v7774
      %v7776 = vmul.f32 %v7691, 1.442695
      %v7777 = vpow.pop %v7776
      %v7778 = vmul.f32 %v7692, 1.442695
      %v7779 = vpow.pop %v7778
      %v7780 = vmul.f32 %v7693, 1.442695
      %v7781 = vpow.pop %v7780
      %v7782 = vmul.f32 %v7694, 1.442695
      %v7783 = vpow.pop %v7782
      %v7784 = vmul.f32 %v7695, 1.442695
      %v7785 = vpow.pop %v7784
      %v7786 = vmul.f32 %v7696, 1.442695
      %v7787 = vpow.pop %v7786
      %v7788 = vmul.f32 %v7697, 1.442695
      %v7789 = vpow.pop %v7788
      %v7790 = vmul.f32 %v7698, 1.442695
      %v7791 = vpow.pop %v7790
      %v7792 = vmul.f32 %v7699, 1.442695
      %v7793 = vpow.pop %v7792
      %v7794 = vmul.f32 %v7700, 1.442695
      %v7795 = vpow.pop %v7794
      %v7796 = vmul.f32 %v7701, 1.442695
      %v7797 = vpow.pop %v7796
      %v7798 = vmul.f32 %v7702, 1.442695
      %v7799 = vpow.pop %v7798
      %v7800 = vmul.f32 %v7703, 1.442695
      %v7801 = vpow.pop %v7800
      %v7802 = vmul.f32 %v7704, 1.442695
      %v7803 = vpow.pop %v7802
      %v7804 = vmul.f32 %v7705, 1.442695
      %v7805 = vpow.pop %v7804
      %v7806 = vmul.f32 %v7706, 1.442695
      %v7807 = vpow.pop %v7806
      %v7808 = vmul.f32 %v7707, 1.442695
      %v7809 = vpow.pop %v7808
      %v7810 = vmul.f32 %v7708, 1.442695
      %v7811 = vpow.pop %v7810
      %v7812 = vmul.f32 %v7709, 1.442695
      %v7813 = vpow.pop %v7812
      %v7814 = vmul.f32 %v7710, 1.442695
      %v7815 = vpow.pop %v7814
      %v7816 = vmul.f32 %v7711, 1.442695
      %v7817 = vpow.pop %v7816
      %v7818 = vmul.f32 %v7712, 1.442695
      %v7819 = vpow.pop %v7818
      %v7820 = vmul.f32 %v7713, 1.442695
      %v7821 = vpow.pop %v7820
      %v7822 = vmul.f32 %v7714, 1.442695
      %v7823 = vpow.pop %v7822
      %v7824 = vmul.f32 %v7715, 1.442695
      %v7825 = vpow.pop %v7824
      %v7826 = vmul.f32 %v7716, 1.442695
      %v7827 = vpow.pop %v7826
      %v7828 = vmul.f32 %v7717, 1.442695
      %v7829 = vpow.pop %v7828
      %v7830 = vmul.f32 %v7718, 1.442695
      %v7831 = vpow.pop %v7830
      %v7832 = vmul.f32 %v7719, 1.442695
      %v7833 = vpow.pop %v7832
      %v7834 = vmul.f32 %v7720, 1.442695
      %v7835 = vpow.pop %v7834
      %v7836 = vmul.f32 %v7721, 1.442695
      %v7837 = vpow.pop %v7836
      %v7838 = vmul.f32 %v7722, 1.442695
      %v7839 = vpow.pop %v7838
      %v7840 = vmul.f32 %v7723, 1.442695
      %v7841 = vpow.pop %v7840
      %v7842 = vmul.f32 %v7724, 1.442695
      %v7843 = vpow.pop %v7842
      %v7844 = vmul.f32 %v7725, 1.442695
      %v7845 = vpow.pop %v7844
      %v7846 = vmul.f32 %v7726, 1.442695
      %v7847 = vpow.pop %v7846
      %v7848 = vmul.f32 %v7727, 1.442695
      %v7849 = vpow.pop %v7848
      %v7850 = vmul.f32 %v7728, 1.442695
      %v7851 = vpow.pop %v7850
      %v7852 = vmul.f32 %v7729, 1.442695
      %v7853 = vpow.pop %v7852
      %v7854 = vmul.f32 %v7730, 1.442695
      %v7855 = vpow.pop %v7854
      %v7856 = vmul.f32 %v7731, 1.442695
      %v7857 = vpow.pop %v7856
      %v7858 = vmul.f32 %v7732, 1.442695
      %v7859 = vpow.pop %v7858
      %v7860 = vmul.f32 %v7733, 1.442695
      %v7861 = vpow.pop %v7860
      %v7862 = vsel %vm5688, %v7735, 0.0
      %v7863 = vsel %vm5689, %v7737, 0.0
      %v7864 = vsel %vm5690, %v7739, 0.0
      %v7865 = vsel %vm5691, %v7741, 0.0
      %v7866 = vsel %vm5692, %v7743, 0.0
      %v7867 = vsel %vm5693, %v7745, 0.0
      %v7868 = vsel %vm5694, %v7747, 0.0
      %v7869 = vsel %vm5695, %v7749, 0.0
      %v7870 = vsel %vm5696, %v7751, 0.0
      %v7871 = vsel %vm5697, %v7753, 0.0
      %v7872 = vsel %vm5698, %v7755, 0.0
      %v7873 = vsel %vm5699, %v7757, 0.0
      %v7874 = vsel %vm5700, %v7759, 0.0
      %v7875 = vsel %vm5701, %v7761, 0.0
      %v7876 = vsel %vm5702, %v7763, 0.0
      %v7877 = vsel %vm5703, %v7765, 0.0
      %v7878 = vsel %vm5704, %v7767, 0.0
      %v7879 = vsel %vm5705, %v7769, 0.0
      %v7880 = vsel %vm5706, %v7771, 0.0
      %v7881 = vsel %vm5707, %v7773, 0.0
      %v7882 = vsel %vm5708, %v7775, 0.0
      %v7883 = vsel %vm5709, %v7777, 0.0
      %v7884 = vsel %vm5710, %v7779, 0.0
      %v7885 = vsel %vm5711, %v7781, 0.0
      %v7886 = vsel %vm5712, %v7783, 0.0
      %v7887 = vsel %vm5713, %v7785, 0.0
      %v7888 = vsel %vm5714, %v7787, 0.0
      %v7889 = vsel %vm5715, %v7789, 0.0
      %v7890 = vsel %vm5716, %v7791, 0.0
      %v7891 = vsel %vm5717, %v7793, 0.0
      %v7892 = vsel %vm5718, %v7795, 0.0
      %v7893 = vsel %vm5719, %v7797, 0.0
      %v7894 = vsel %vm5720, %v7799, 0.0
      %v7895 = vsel %vm5721, %v7801, 0.0
      %v7896 = vsel %vm5722, %v7803, 0.0
      %v7897 = vsel %vm5723, %v7805, 0.0
      %v7898 = vsel %vm5724, %v7807, 0.0
      %v7899 = vsel %vm5725, %v7809, 0.0
      %v7900 = vsel %vm5726, %v7811, 0.0
      %v7901 = vsel %vm5727, %v7813, 0.0
      %v7902 = vsel %vm5728, %v7815, 0.0
      %v7903 = vsel %vm5729, %v7817, 0.0
      %v7904 = vsel %vm5730, %v7819, 0.0
      %v7905 = vsel %vm5731, %v7821, 0.0
      %v7906 = vsel %vm5732, %v7823, 0.0
      %v7907 = vsel %vm5733, %v7825, 0.0
      %v7908 = vsel %vm5734, %v7827, 0.0
      %v7909 = vsel %vm5735, %v7829, 0.0
      %v7910 = vsel %vm5736, %v7831, 0.0
      %v7911 = vsel %vm5737, %v7833, 0.0
      %v7912 = vsel %vm5738, %v7835, 0.0
      %v7913 = vsel %vm5739, %v7837, 0.0
      %v7914 = vsel %vm5740, %v7839, 0.0
      %v7915 = vsel %vm5741, %v7841, 0.0
      %v7916 = vsel %vm5742, %v7843, 0.0
      %v7917 = vsel %vm5743, %v7845, 0.0
      %v7918 = vsel %vm5744, %v7847, 0.0
      %v7919 = vsel %vm5745, %v7849, 0.0
      %v7920 = vsel %vm5746, %v7851, 0.0
      %v7921 = vsel %vm5747, %v7853, 0.0
      %v7922 = vsel %vm5748, %v7855, 0.0
      %v7923 = vsel %vm5749, %v7857, 0.0
      %v7924 = vsel %vm5750, %v7859, 0.0
      %v7925 = vsel %vm5751, %v7861, 0.0
      %v7928 = vrot.slane %v6240, 2
      %v7929 = vrot.slane %v6241, 2
      %7932 = vxpose.xlu0.c.b16.start [1/8] %v7928, 128
      %7933 = vxpose.xlu0.c.b16.cont [2/8] 0, 128
      %7934 = vxpose.xlu0.c.b16.cont [3/8] 0, 128
      %7935 = vxpose.xlu0.c.b16.cont [4/8] 0, 128
      %7936 = vxpose.xlu0.c.b16.cont [5/8] 0, 128
      %7937 = vxpose.xlu0.c.b16.cont [6/8] 0, 128
      %7938 = vxpose.xlu0.c.b16.cont [7/8] 0, 128
      %7939 = vxpose.xlu0.c.b16.end [8/8] 0, 128
      %v7940 = vpop.trf.xlu0
      %v7941 = vpop.trf.xlu0
      %v7942 = vpop.trf.xlu0
      %v7943 = vpop.trf.xlu0
      %v7944 = vpop.trf.xlu0
      %v7945 = vpop.trf.xlu0
      %v7946 = vpop.trf.xlu0
      %v7947 = vpop.trf.xlu0
      %7948 = vxpose.xlu0.c.b16.start [1/8] %v7929, 128
      %7949 = vxpose.xlu0.c.b16.cont [2/8] 0, 128
      %7950 = vxpose.xlu0.c.b16.cont [3/8] 0, 128
      %7951 = vxpose.xlu0.c.b16.cont [4/8] 0, 128
      %7952 = vxpose.xlu0.c.b16.cont [5/8] 0, 128
      %7953 = vxpose.xlu0.c.b16.cont [6/8] 0, 128
      %7954 = vxpose.xlu0.c.b16.cont [7/8] 0, 128
      %7955 = vxpose.xlu0.c.b16.end [8/8] 0, 128
      %v7956 = vpop.trf.xlu0
      %v7957 = vpop.trf.xlu0
      %v7958 = vpop.trf.xlu0
      %v7959 = vpop.trf.xlu0
      %v7960 = vpop.trf.xlu0
      %v7961 = vpop.trf.xlu0
      %v7962 = vpop.trf.xlu0
      %v7963 = vpop.trf.xlu0
      %v7966 = vrot.slane %v6242, 2
      %v7967 = vrot.slane %v6243, 2
      %v7969 = vsel %vm371, %v7940, 0
      %v7972 = vsel %vm371, %v7941, 0
      %v7975 = vsel %vm371, %v7942, 0
      %v7978 = vsel %vm371, %v7943, 0
      %v7981 = vsel %vm371, %v7944, 0
      %v7984 = vsel %vm371, %v7945, 0
      %v7987 = vsel %vm371, %v7946, 0
      %v7990 = vsel %vm371, %v7947, 0
      %v7993 = vsel %vm371, %v7956, 0
      %v7996 = vsel %vm371, %v7957, 0
      %v7999 = vsel %vm371, %v7958, 0
      %v8002 = vsel %vm371, %v7959, 0
      %v8005 = vsel %vm371, %v7960, 0
      %v8008 = vsel %vm371, %v7961, 0
      %v8011 = vsel %vm371, %v7962, 0
      %v8014 = vsel %vm371, %v7963, 0
      %v8017 = vsel %vm375, %v7966, 0
      %v8020 = vsel %vm375, %v7967, 0
      %8022 = vmatprep.subr.bf16.mxu0 %v8020
      %8023 = vmatpush1.bf16.msra.mxu0 %v8017
      %8024 = vmatprep.subr.bf16.mxu0 0
      %8025 = vmatpush1.bf16.msra.mxu0 0
      %8026 = vmatprep.subr.bf16.mxu0 0
      %8027 = vmatpush1.bf16.msra.mxu0 0
      %8028 = vmatprep.subr.bf16.mxu0 0
      %8029 = vmatpush1.bf16.msra.mxu0 0
      %8030 = vmatprep.subr.bf16.mxu0 0
      %8031 = vmatpush1.bf16.msra.mxu0 0
      %8032 = vmatprep.subr.bf16.mxu0 0
      %8033 = vmatpush1.bf16.msra.mxu0 0
      %8034 = vmatprep.subr.bf16.mxu0 0
      %8035 = vmatpush1.bf16.msra.mxu0 0
      %8036 = vmatprep.subr.bf16.mxu0 0
      %8037 = vmatpush1.bf16.msra.mxu0 0
      %8038 = vmatprep.subr.bf16.mxu0 0
      %8039 = vmatpush1.bf16.msra.mxu0 0
      %8040 = vmatprep.subr.bf16.mxu0 0
      %8041 = vmatpush1.bf16.msra.mxu0 0
      %8042 = vmatprep.subr.bf16.mxu0 0
      %8043 = vmatpush1.bf16.msra.mxu0 0
      %8044 = vmatprep.subr.bf16.mxu0 0
      %8045 = vmatpush1.bf16.msra.mxu0 0
      %8046 = vmatprep.subr.bf16.mxu0 0
      %8047 = vmatpush1.bf16.msra.mxu0 0
      %8048 = vmatprep.subr.bf16.mxu0 0
      %8049 = vmatpush1.bf16.msra.mxu0 0
      %8050 = vmatprep.subr.bf16.mxu0 0
      %8051 = vmatpush1.bf16.msra.mxu0 0
      %8052 = vmatprep.subr.bf16.mxu0 0
      %8053 = vmatpush1.bf16.msra.mxu0 0
      %8054 = vmatprep.mubr.bf16.mxu0 0
      %8055 = vmatmul.mubr.bf16.gmra.mrb[0].mxu0 %v7969
      %v8056 = vpop.f32.mrb[0].mxu0
      %v8057 = vadd.f32 0.0, %v8056
      %v8058 = vpop.f32.mrb[0].mxu0
      %v8059 = vadd.f32 0.0, %v8058
      %v8060 = vpop.f32.mrb[0].mxu0
      %v8061 = vadd.f32 0.0, %v8060
      %v8062 = vpop.f32.mrb[0].mxu0
      %v8063 = vadd.f32 0.0, %v8062
      %8064 = vmatprep.mubr.bf16.mxu0 0
      %8065 = vmatmul.mubr.bf16.gmra.mrb[0].mxu0 %v7972
      %v8066 = vpop.f32.mrb[0].mxu0
      %v8067 = vadd.f32 0.0, %v8066
      %v8068 = vpop.f32.mrb[0].mxu0
      %v8069 = vadd.f32 0.0, %v8068
      %v8070 = vpop.f32.mrb[0].mxu0
      %v8071 = vadd.f32 0.0, %v8070
      %v8072 = vpop.f32.mrb[0].mxu0
      %v8073 = vadd.f32 0.0, %v8072
      %8074 = vmatprep.mubr.bf16.mxu0 0
      %8075 = vmatmul.mubr.bf16.gmra.mrb[0].mxu0 %v7975
      %v8076 = vpop.f32.mrb[0].mxu0
      %v8077 = vadd.f32 0.0, %v8076
      %v8078 = vpop.f32.mrb[0].mxu0
      %v8079 = vadd.f32 0.0, %v8078
      %v8080 = vpop.f32.mrb[0].mxu0
      %v8081 = vadd.f32 0.0, %v8080
      %v8082 = vpop.f32.mrb[0].mxu0
      %v8083 = vadd.f32 0.0, %v8082
      %8084 = vmatprep.mubr.bf16.mxu0 0
      %8085 = vmatmul.mubr.bf16.gmra.mrb[0].mxu0 %v7978
      %v8086 = vpop.f32.mrb[0].mxu0
      %v8087 = vadd.f32 0.0, %v8086
      %v8088 = vpop.f32.mrb[0].mxu0
      %v8089 = vadd.f32 0.0, %v8088
      %v8090 = vpop.f32.mrb[0].mxu0
      %v8091 = vadd.f32 0.0, %v8090
      %v8092 = vpop.f32.mrb[0].mxu0
      %v8093 = vadd.f32 0.0, %v8092
      %8094 = vmatprep.mubr.bf16.mxu0 0
      %8095 = vmatmul.mubr.bf16.gmra.mrb[0].mxu0 %v7981
      %v8096 = vpop.f32.mrb[0].mxu0
      %v8097 = vadd.f32 0.0, %v8096
      %v8098 = vpop.f32.mrb[0].mxu0
      %v8099 = vadd.f32 0.0, %v8098
      %v8100 = vpop.f32.mrb[0].mxu0
      %v8101 = vadd.f32 0.0, %v8100
      %v8102 = vpop.f32.mrb[0].mxu0
      %v8103 = vadd.f32 0.0, %v8102
      %8104 = vmatprep.mubr.bf16.mxu0 0
      %8105 = vmatmul.mubr.bf16.gmra.mrb[0].mxu0 %v7984
      %v8106 = vpop.f32.mrb[0].mxu0
      %v8107 = vadd.f32 0.0, %v8106
      %v8108 = vpop.f32.mrb[0].mxu0
      %v8109 = vadd.f32 0.0, %v8108
      %v8110 = vpop.f32.mrb[0].mxu0
      %v8111 = vadd.f32 0.0, %v8110
      %v8112 = vpop.f32.mrb[0].mxu0
      %v8113 = vadd.f32 0.0, %v8112
      %8114 = vmatprep.mubr.bf16.mxu0 0
      %8115 = vmatmul.mubr.bf16.gmra.mrb[0].mxu0 %v7987
      %v8116 = vpop.f32.mrb[0].mxu0
      %v8117 = vadd.f32 0.0, %v8116
      %v8118 = vpop.f32.mrb[0].mxu0
      %v8119 = vadd.f32 0.0, %v8118
      %v8120 = vpop.f32.mrb[0].mxu0
      %v8121 = vadd.f32 0.0, %v8120
      %v8122 = vpop.f32.mrb[0].mxu0
      %v8123 = vadd.f32 0.0, %v8122
      %8124 = vmatprep.mubr.bf16.mxu0 0
      %8125 = vmatmul.mubr.bf16.gmra.mrb[0].mxu0 %v7990
      %v8126 = vpop.f32.mrb[0].mxu0
      %v8127 = vadd.f32 0.0, %v8126
      %v8128 = vpop.f32.mrb[0].mxu0
      %v8129 = vadd.f32 0.0, %v8128
      %v8130 = vpop.f32.mrb[0].mxu0
      %v8131 = vadd.f32 0.0, %v8130
      %v8132 = vpop.f32.mrb[0].mxu0
      %v8133 = vadd.f32 0.0, %v8132
      %8134 = vmatprep.mubr.bf16.mxu0 0
      %8135 = vmatmul.mubr.bf16.gmra.mrb[0].mxu0 %v7993
      %v8136 = vpop.f32.mrb[0].mxu0
      %v8137 = vadd.f32 0.0, %v8136
      %v8138 = vpop.f32.mrb[0].mxu0
      %v8139 = vadd.f32 0.0, %v8138
      %v8140 = vpop.f32.mrb[0].mxu0
      %v8141 = vadd.f32 0.0, %v8140
      %v8142 = vpop.f32.mrb[0].mxu0
      %v8143 = vadd.f32 0.0, %v8142
      %8144 = vmatprep.mubr.bf16.mxu0 0
      %8145 = vmatmul.mubr.bf16.gmra.mrb[0].mxu0 %v7996
      %v8146 = vpop.f32.mrb[0].mxu0
      %v8147 = vadd.f32 0.0, %v8146
      %v8148 = vpop.f32.mrb[0].mxu0
      %v8149 = vadd.f32 0.0, %v8148
      %v8150 = vpop.f32.mrb[0].mxu0
      %v8151 = vadd.f32 0.0, %v8150
      %v8152 = vpop.f32.mrb[0].mxu0
      %v8153 = vadd.f32 0.0, %v8152
      %8154 = vmatprep.mubr.bf16.mxu0 0
      %8155 = vmatmul.mubr.bf16.gmra.mrb[0].mxu0 %v7999
      %v8156 = vpop.f32.mrb[0].mxu0
      %v8157 = vadd.f32 0.0, %v8156
      %v8158 = vpop.f32.mrb[0].mxu0
      %v8159 = vadd.f32 0.0, %v8158
      %v8160 = vpop.f32.mrb[0].mxu0
      %v8161 = vadd.f32 0.0, %v8160
      %v8162 = vpop.f32.mrb[0].mxu0
      %v8163 = vadd.f32 0.0, %v8162
      %8164 = vmatprep.mubr.bf16.mxu0 0
      %8165 = vmatmul.mubr.bf16.gmra.mrb[0].mxu0 %v8002
      %v8166 = vpop.f32.mrb[0].mxu0
      %v8167 = vadd.f32 0.0, %v8166
      %v8168 = vpop.f32.mrb[0].mxu0
      %v8169 = vadd.f32 0.0, %v8168
      %v8170 = vpop.f32.mrb[0].mxu0
      %v8171 = vadd.f32 0.0, %v8170
      %v8172 = vpop.f32.mrb[0].mxu0
      %v8173 = vadd.f32 0.0, %v8172
      %8174 = vmatprep.mubr.bf16.mxu0 0
      %8175 = vmatmul.mubr.bf16.gmra.mrb[0].mxu0 %v8005
      %v8176 = vpop.f32.mrb[0].mxu0
      %v8177 = vadd.f32 0.0, %v8176
      %v8178 = vpop.f32.mrb[0].mxu0
      %v8179 = vadd.f32 0.0, %v8178
      %v8180 = vpop.f32.mrb[0].mxu0
      %v8181 = vadd.f32 0.0, %v8180
      %v8182 = vpop.f32.mrb[0].mxu0
      %v8183 = vadd.f32 0.0, %v8182
      %8184 = vmatprep.mubr.bf16.mxu0 0
      %8185 = vmatmul.mubr.bf16.gmra.mrb[0].mxu0 %v8008
      %v8186 = vpop.f32.mrb[0].mxu0
      %v8187 = vadd.f32 0.0, %v8186
      %v8188 = vpop.f32.mrb[0].mxu0
      %v8189 = vadd.f32 0.0, %v8188
      %v8190 = vpop.f32.mrb[0].mxu0
      %v8191 = vadd.f32 0.0, %v8190
      %v8192 = vpop.f32.mrb[0].mxu0
      %v8193 = vadd.f32 0.0, %v8192
      %8194 = vmatprep.mubr.bf16.mxu0 0
      %8195 = vmatmul.mubr.bf16.gmra.mrb[0].mxu0 %v8011
      %v8196 = vpop.f32.mrb[0].mxu0
      %v8197 = vadd.f32 0.0, %v8196
      %v8198 = vpop.f32.mrb[0].mxu0
      %v8199 = vadd.f32 0.0, %v8198
      %v8200 = vpop.f32.mrb[0].mxu0
      %v8201 = vadd.f32 0.0, %v8200
      %v8202 = vpop.f32.mrb[0].mxu0
      %v8203 = vadd.f32 0.0, %v8202
      %8204 = vmatprep.mubr.bf16.mxu0 0
      %8205 = vmatmul.mubr.bf16.gmra.mrb[0].mxu0 %v8014
      %v8206 = vpop.f32.mrb[0].mxu0
      %v8207 = vadd.f32 0.0, %v8206
      %v8208 = vpop.f32.mrb[0].mxu0
      %v8209 = vadd.f32 0.0, %v8208
      %v8210 = vpop.f32.mrb[0].mxu0
      %v8211 = vadd.f32 0.0, %v8210
      %v8212 = vpop.f32.mrb[0].mxu0
      %v8213 = vadd.f32 0.0, %v8212
      %8214 = vdwg.mxu0
      %v8215 = vmul.f32 %v8057, 0.5
      %v8216 = vmul.f32 %v8059, 0.5
      %v8217 = vmul.f32 %v8061, 0.5
      %v8218 = vmul.f32 %v8063, 0.5
      %v8219 = vmul.f32 %v8067, 0.5
      %v8220 = vmul.f32 %v8069, 0.5
      %v8221 = vmul.f32 %v8071, 0.5
      %v8222 = vmul.f32 %v8073, 0.5
      %v8223 = vmul.f32 %v8077, 0.5
      %v8224 = vmul.f32 %v8079, 0.5
      %v8225 = vmul.f32 %v8081, 0.5
      %v8226 = vmul.f32 %v8083, 0.5
      %v8227 = vmul.f32 %v8087, 0.5
      %v8228 = vmul.f32 %v8089, 0.5
      %v8229 = vmul.f32 %v8091, 0.5
      %v8230 = vmul.f32 %v8093, 0.5
      %v8231 = vmul.f32 %v8097, 0.5
      %v8232 = vmul.f32 %v8099, 0.5
      %v8233 = vmul.f32 %v8101, 0.5
      %v8234 = vmul.f32 %v8103, 0.5
      %v8235 = vmul.f32 %v8107, 0.5
      %v8236 = vmul.f32 %v8109, 0.5
      %v8237 = vmul.f32 %v8111, 0.5
      %v8238 = vmul.f32 %v8113, 0.5
      %v8239 = vmul.f32 %v8117, 0.5
      %v8240 = vmul.f32 %v8119, 0.5
      %v8241 = vmul.f32 %v8121, 0.5
      %v8242 = vmul.f32 %v8123, 0.5
      %v8243 = vmul.f32 %v8127, 0.5
      %v8244 = vmul.f32 %v8129, 0.5
      %v8245 = vmul.f32 %v8131, 0.5
      %v8246 = vmul.f32 %v8133, 0.5
      %v8247 = vmul.f32 %v8137, 0.5
      %v8248 = vmul.f32 %v8139, 0.5
      %v8249 = vmul.f32 %v8141, 0.5
      %v8250 = vmul.f32 %v8143, 0.5
      %v8251 = vmul.f32 %v8147, 0.5
      %v8252 = vmul.f32 %v8149, 0.5
      %v8253 = vmul.f32 %v8151, 0.5
      %v8254 = vmul.f32 %v8153, 0.5
      %v8255 = vmul.f32 %v8157, 0.5
      %v8256 = vmul.f32 %v8159, 0.5
      %v8257 = vmul.f32 %v8161, 0.5
      %v8258 = vmul.f32 %v8163, 0.5
      %v8259 = vmul.f32 %v8167, 0.5
      %v8260 = vmul.f32 %v8169, 0.5
      %v8261 = vmul.f32 %v8171, 0.5
      %v8262 = vmul.f32 %v8173, 0.5
      %v8263 = vmul.f32 %v8177, 0.5
      %v8264 = vmul.f32 %v8179, 0.5
      %v8265 = vmul.f32 %v8181, 0.5
      %v8266 = vmul.f32 %v8183, 0.5
      %v8267 = vmul.f32 %v8187, 0.5
      %v8268 = vmul.f32 %v8189, 0.5
      %v8269 = vmul.f32 %v8191, 0.5
      %v8270 = vmul.f32 %v8193, 0.5
      %v8271 = vmul.f32 %v8197, 0.5
      %v8272 = vmul.f32 %v8199, 0.5
      %v8273 = vmul.f32 %v8201, 0.5
      %v8274 = vmul.f32 %v8203, 0.5
      %v8275 = vmul.f32 %v8207, 0.5
      %v8276 = vmul.f32 %v8209, 0.5
      %v8277 = vmul.f32 %v8211, 0.5
      %v8278 = vmul.f32 %v8213, 0.5
      %v8279 = vmul.f32 %v8215, %v7862
      %v8280 = vmul.f32 %v8216, %v7863
      %v8281 = vmul.f32 %v8217, %v7864
      %v8282 = vmul.f32 %v8218, %v7865
      %v8283 = vmul.f32 %v8219, %v7866
      %v8284 = vmul.f32 %v8220, %v7867
      %v8285 = vmul.f32 %v8221, %v7868
      %v8286 = vmul.f32 %v8222, %v7869
      %v8287 = vmul.f32 %v8223, %v7870
      %v8288 = vmul.f32 %v8224, %v7871
      %v8289 = vmul.f32 %v8225, %v7872
      %v8290 = vmul.f32 %v8226, %v7873
      %v8291 = vmul.f32 %v8227, %v7874
      %v8292 = vmul.f32 %v8228, %v7875
      %v8293 = vmul.f32 %v8229, %v7876
      %v8294 = vmul.f32 %v8230, %v7877
      %v8295 = vmul.f32 %v8231, %v7878
      %v8296 = vmul.f32 %v8232, %v7879
      %v8297 = vmul.f32 %v8233, %v7880
      %v8298 = vmul.f32 %v8234, %v7881
      %v8299 = vmul.f32 %v8235, %v7882
      %v8300 = vmul.f32 %v8236, %v7883
      %v8301 = vmul.f32 %v8237, %v7884
      %v8302 = vmul.f32 %v8238, %v7885
      %v8303 = vmul.f32 %v8239, %v7886
      %v8304 = vmul.f32 %v8240, %v7887
      %v8305 = vmul.f32 %v8241, %v7888
      %v8306 = vmul.f32 %v8242, %v7889
      %v8307 = vmul.f32 %v8243, %v7890
      %v8308 = vmul.f32 %v8244, %v7891
      %v8309 = vmul.f32 %v8245, %v7892
      %v8310 = vmul.f32 %v8246, %v7893
      %v8311 = vmul.f32 %v8247, %v7894
      %v8312 = vmul.f32 %v8248, %v7895
      %v8313 = vmul.f32 %v8249, %v7896
      %v8314 = vmul.f32 %v8250, %v7897
      %v8315 = vmul.f32 %v8251, %v7898
      %v8316 = vmul.f32 %v8252, %v7899
      %v8317 = vmul.f32 %v8253, %v7900
      %v8318 = vmul.f32 %v8254, %v7901
      %v8319 = vmul.f32 %v8255, %v7902
      %v8320 = vmul.f32 %v8256, %v7903
      %v8321 = vmul.f32 %v8257, %v7904
      %v8322 = vmul.f32 %v8258, %v7905
      %v8323 = vmul.f32 %v8259, %v7906
      %v8324 = vmul.f32 %v8260, %v7907
      %v8325 = vmul.f32 %v8261, %v7908
      %v8326 = vmul.f32 %v8262, %v7909
      %v8327 = vmul.f32 %v8263, %v7910
      %v8328 = vmul.f32 %v8264, %v7911
      %v8329 = vmul.f32 %v8265, %v7912
      %v8330 = vmul.f32 %v8266, %v7913
      %v8331 = vmul.f32 %v8267, %v7914
      %v8332 = vmul.f32 %v8268, %v7915
      %v8333 = vmul.f32 %v8269, %v7916
      %v8334 = vmul.f32 %v8270, %v7917
      %v8335 = vmul.f32 %v8271, %v7918
      %v8336 = vmul.f32 %v8272, %v7919
      %v8337 = vmul.f32 %v8273, %v7920
      %v8338 = vmul.f32 %v8274, %v7921
      %v8339 = vmul.f32 %v8275, %v7922
      %v8340 = vmul.f32 %v8276, %v7923
      %v8341 = vmul.f32 %v8277, %v7924
      %v8342 = vmul.f32 %v8278, %v7925
      %v8343 = vadd.f32 %v8279, %v8280
      %8344 = vadd.xlane.f32.xlu0 %v8343
      %v8345 = vpop.xlane.xlu0 %8344
      %v8346 = vadd.f32 %v8281, %v8282
      %8347 = vadd.xlane.f32.xlu0 %v8346
      %v8348 = vpop.xlane.xlu0 %8347
      %v8349 = vadd.f32 %v8283, %v8284
      %8350 = vadd.xlane.f32.xlu0 %v8349
      %v8351 = vpop.xlane.xlu0 %8350
      %v8352 = vadd.f32 %v8285, %v8286
      %8353 = vadd.xlane.f32.xlu0 %v8352
      %v8354 = vpop.xlane.xlu0 %8353
      %v8355 = vadd.f32 %v8287, %v8288
      %8356 = vadd.xlane.f32.xlu0 %v8355
      %v8357 = vpop.xlane.xlu0 %8356
      %v8358 = vadd.f32 %v8289, %v8290
      %8359 = vadd.xlane.f32.xlu0 %v8358
      %v8360 = vpop.xlane.xlu0 %8359
      %v8361 = vadd.f32 %v8291, %v8292
      %8362 = vadd.xlane.f32.xlu0 %v8361
      %v8363 = vpop.xlane.xlu0 %8362
      %v8364 = vadd.f32 %v8293, %v8294
      %8365 = vadd.xlane.f32.xlu0 %v8364
      %v8366 = vpop.xlane.xlu0 %8365
      %v8367 = vadd.f32 %v8295, %v8296
      %8368 = vadd.xlane.f32.xlu0 %v8367
      %v8369 = vpop.xlane.xlu0 %8368
      %v8370 = vadd.f32 %v8297, %v8298
      %8371 = vadd.xlane.f32.xlu0 %v8370
      %v8372 = vpop.xlane.xlu0 %8371
      %v8373 = vadd.f32 %v8299, %v8300
      %8374 = vadd.xlane.f32.xlu0 %v8373
      %v8375 = vpop.xlane.xlu0 %8374
      %v8376 = vadd.f32 %v8301, %v8302
      %8377 = vadd.xlane.f32.xlu0 %v8376
      %v8378 = vpop.xlane.xlu0 %8377
      %v8379 = vadd.f32 %v8303, %v8304
      %8380 = vadd.xlane.f32.xlu0 %v8379
      %v8381 = vpop.xlane.xlu0 %8380
      %v8382 = vadd.f32 %v8305, %v8306
      %8383 = vadd.xlane.f32.xlu0 %v8382
      %v8384 = vpop.xlane.xlu0 %8383
      %v8385 = vadd.f32 %v8307, %v8308
      %8386 = vadd.xlane.f32.xlu0 %v8385
      %v8387 = vpop.xlane.xlu0 %8386
      %v8388 = vadd.f32 %v8309, %v8310
      %8389 = vadd.xlane.f32.xlu0 %v8388
      %v8390 = vpop.xlane.xlu0 %8389
      %v8391 = vadd.f32 %v8311, %v8312
      %8392 = vadd.xlane.f32.xlu0 %v8391
      %v8393 = vpop.xlane.xlu0 %8392
      %v8394 = vadd.f32 %v8313, %v8314
      %8395 = vadd.xlane.f32.xlu0 %v8394
      %v8396 = vpop.xlane.xlu0 %8395
      %v8397 = vadd.f32 %v8315, %v8316
      %8398 = vadd.xlane.f32.xlu0 %v8397
      %v8399 = vpop.xlane.xlu0 %8398
      %v8400 = vadd.f32 %v8317, %v8318
      %8401 = vadd.xlane.f32.xlu0 %v8400
      %v8402 = vpop.xlane.xlu0 %8401
      %v8403 = vadd.f32 %v8319, %v8320
      %8404 = vadd.xlane.f32.xlu0 %v8403
      %v8405 = vpop.xlane.xlu0 %8404
      %v8406 = vadd.f32 %v8321, %v8322
      %8407 = vadd.xlane.f32.xlu0 %v8406
      %v8408 = vpop.xlane.xlu0 %8407
      %v8409 = vadd.f32 %v8323, %v8324
      %8410 = vadd.xlane.f32.xlu0 %v8409
      %v8411 = vpop.xlane.xlu0 %8410
      %v8412 = vadd.f32 %v8325, %v8326
      %8413 = vadd.xlane.f32.xlu0 %v8412
      %v8414 = vpop.xlane.xlu0 %8413
      %v8415 = vadd.f32 %v8327, %v8328
      %8416 = vadd.xlane.f32.xlu0 %v8415
      %v8417 = vpop.xlane.xlu0 %8416
      %v8418 = vadd.f32 %v8329, %v8330
      %8419 = vadd.xlane.f32.xlu0 %v8418
      %v8420 = vpop.xlane.xlu0 %8419
      %v8421 = vadd.f32 %v8331, %v8332
      %8422 = vadd.xlane.f32.xlu0 %v8421
      %v8423 = vpop.xlane.xlu0 %8422
      %v8424 = vadd.f32 %v8333, %v8334
      %8425 = vadd.xlane.f32.xlu0 %v8424
      %v8426 = vpop.xlane.xlu0 %8425
      %v8427 = vadd.f32 %v8335, %v8336
      %8428 = vadd.xlane.f32.xlu0 %v8427
      %v8429 = vpop.xlane.xlu0 %8428
      %v8430 = vadd.f32 %v8337, %v8338
      %8431 = vadd.xlane.f32.xlu0 %v8430
      %v8432 = vpop.xlane.xlu0 %8431
      %v8433 = vadd.f32 %v8339, %v8340
      %8434 = vadd.xlane.f32.xlu0 %v8433
      %v8435 = vpop.xlane.xlu0 %8434
      %v8436 = vadd.f32 %v8341, %v8342
      %8437 = vadd.xlane.f32.xlu0 %v8436
      %v8438 = vpop.xlane.xlu0 %8437
      %v8439 = vand.u32 2147483647, %v8345
      %v8440 = vand.u32 2147483647, %v8348
      %v8441 = vand.u32 2147483647, %v8351
      %v8442 = vand.u32 2147483647, %v8354
      %v8443 = vand.u32 2147483647, %v8357
      %v8444 = vand.u32 2147483647, %v8360
      %v8445 = vand.u32 2147483647, %v8363
      %v8446 = vand.u32 2147483647, %v8366
      %v8447 = vand.u32 2147483647, %v8369
      %v8448 = vand.u32 2147483647, %v8372
      %v8449 = vand.u32 2147483647, %v8375
      %v8450 = vand.u32 2147483647, %v8378
      %v8451 = vand.u32 2147483647, %v8381
      %v8452 = vand.u32 2147483647, %v8384
      %v8453 = vand.u32 2147483647, %v8387
      %v8454 = vand.u32 2147483647, %v8390
      %v8455 = vand.u32 2147483647, %v8393
      %v8456 = vand.u32 2147483647, %v8396
      %v8457 = vand.u32 2147483647, %v8399
      %v8458 = vand.u32 2147483647, %v8402
      %v8459 = vand.u32 2147483647, %v8405
      %v8460 = vand.u32 2147483647, %v8408
      %v8461 = vand.u32 2147483647, %v8411
      %v8462 = vand.u32 2147483647, %v8414
      %v8463 = vand.u32 2147483647, %v8417
      %v8464 = vand.u32 2147483647, %v8420
      %v8465 = vand.u32 2147483647, %v8423
      %v8466 = vand.u32 2147483647, %v8426
      %v8467 = vand.u32 2147483647, %v8429
      %v8468 = vand.u32 2147483647, %v8432
      %v8469 = vand.u32 2147483647, %v8435
      %v8470 = vand.u32 2147483647, %v8438
      %v8471 = vmax.f32 %v8439, %v6972
      %v8472 = vmax.f32 %v8440, %v6974
      %v8473 = vmax.f32 %v8441, %v6976
      %v8474 = vmax.f32 %v8442, %v6978
      %v8475 = vmax.f32 %v8443, %v6980
      %v8476 = vmax.f32 %v8444, %v6982
      %v8477 = vmax.f32 %v8445, %v6984
      %v8478 = vmax.f32 %v8446, %v6986
      %v8479 = vmax.f32 %v8447, %v6988
      %v8480 = vmax.f32 %v8448, %v6990
      %v8481 = vmax.f32 %v8449, %v6992
      %v8482 = vmax.f32 %v8450, %v6994
      %v8483 = vmax.f32 %v8451, %v6996
      %v8484 = vmax.f32 %v8452, %v6998
      %v8485 = vmax.f32 %v8453, %v7000
      %v8486 = vmax.f32 %v8454, %v7002
      %v8487 = vmax.f32 %v8455, %v7004
      %v8488 = vmax.f32 %v8456, %v7006
      %v8489 = vmax.f32 %v8457, %v7008
      %v8490 = vmax.f32 %v8458, %v7010
      %v8491 = vmax.f32 %v8459, %v7012
      %v8492 = vmax.f32 %v8460, %v7014
      %v8493 = vmax.f32 %v8461, %v7016
      %v8494 = vmax.f32 %v8462, %v7018
      %v8495 = vmax.f32 %v8463, %v7020
      %v8496 = vmax.f32 %v8464, %v7022
      %v8497 = vmax.f32 %v8465, %v7024
      %v8498 = vmax.f32 %v8466, %v7026
      %v8499 = vmax.f32 %v8467, %v7028
      %v8500 = vmax.f32 %v8468, %v7030
      %v8501 = vmax.f32 %v8469, %v7032
      %v8502 = vmax.f32 %v8470, %v7034
      %v8503 = vadd.f32 %v8471, 1e-06
      %v8504 = vadd.f32 %v8472, 1e-06
      %v8505 = vadd.f32 %v8473, 1e-06
      %v8506 = vadd.f32 %v8474, 1e-06
      %v8507 = vadd.f32 %v8475, 1e-06
      %v8508 = vadd.f32 %v8476, 1e-06
      %v8509 = vadd.f32 %v8477, 1e-06
      %v8510 = vadd.f32 %v8478, 1e-06
      %v8511 = vadd.f32 %v8479, 1e-06
      %v8512 = vadd.f32 %v8480, 1e-06
      %v8513 = vadd.f32 %v8481, 1e-06
      %v8514 = vadd.f32 %v8482, 1e-06
      %v8515 = vadd.f32 %v8483, 1e-06
      %v8516 = vadd.f32 %v8484, 1e-06
      %v8517 = vadd.f32 %v8485, 1e-06
      %v8518 = vadd.f32 %v8486, 1e-06
      %v8519 = vadd.f32 %v8487, 1e-06
      %v8520 = vadd.f32 %v8488, 1e-06
      %v8521 = vadd.f32 %v8489, 1e-06
      %v8522 = vadd.f32 %v8490, 1e-06
      %v8523 = vadd.f32 %v8491, 1e-06
      %v8524 = vadd.f32 %v8492, 1e-06
      %v8525 = vadd.f32 %v8493, 1e-06
      %v8526 = vadd.f32 %v8494, 1e-06
      %v8527 = vadd.f32 %v8495, 1e-06
      %v8528 = vadd.f32 %v8496, 1e-06
      %v8529 = vadd.f32 %v8497, 1e-06
      %v8530 = vadd.f32 %v8498, 1e-06
      %v8531 = vadd.f32 %v8499, 1e-06
      %v8532 = vadd.f32 %v8500, 1e-06
      %v8533 = vadd.f32 %v8501, 1e-06
      %v8534 = vadd.f32 %v8502, 1e-06
      %v8535 = vrcp.pop %v8503
      %v8536 = vrcp.pop %v8504
      %v8537 = vrcp.pop %v8505
      %v8538 = vrcp.pop %v8506
      %v8539 = vrcp.pop %v8507
      %v8540 = vrcp.pop %v8508
      %v8541 = vrcp.pop %v8509
      %v8542 = vrcp.pop %v8510
      %v8543 = vrcp.pop %v8511
      %v8544 = vrcp.pop %v8512
      %v8545 = vrcp.pop %v8513
      %v8546 = vrcp.pop %v8514
      %v8547 = vrcp.pop %v8515
      %v8548 = vrcp.pop %v8516
      %v8549 = vrcp.pop %v8517
      %v8550 = vrcp.pop %v8518
      %v8551 = vrcp.pop %v8519
      %v8552 = vrcp.pop %v8520
      %v8553 = vrcp.pop %v8521
      %v8554 = vrcp.pop %v8522
      %v8555 = vrcp.pop %v8523
      %v8556 = vrcp.pop %v8524
      %v8557 = vrcp.pop %v8525
      %v8558 = vrcp.pop %v8526
      %v8559 = vrcp.pop %v8527
      %v8560 = vrcp.pop %v8528
      %v8561 = vrcp.pop %v8529
      %v8562 = vrcp.pop %v8530
      %v8563 = vrcp.pop %v8531
      %v8564 = vrcp.pop %v8532
      %v8565 = vrcp.pop %v8533
      %v8566 = vrcp.pop %v8534
      %8568 = vset.pattern.permute.xlu0 1
      %8569 = vperm.xlu0 %8568, %v8535
      %v8570 = vpop.permute.xlu0 %8569
      %8573 = vset.pattern.permute.xlu0 1
      %8574 = vperm.xlu0 %8573, %v8536
      %v8575 = vpop.permute.xlu0 %8574
      %8578 = vset.pattern.permute.xlu0 1
      %8579 = vperm.xlu0 %8578, %v8537
      %v8580 = vpop.permute.xlu0 %8579
      %8583 = vset.pattern.permute.xlu0 1
      %8584 = vperm.xlu0 %8583, %v8538
      %v8585 = vpop.permute.xlu0 %8584
      %8588 = vset.pattern.permute.xlu0 1
      %8589 = vperm.xlu0 %8588, %v8539
      %v8590 = vpop.permute.xlu0 %8589
      %8593 = vset.pattern.permute.xlu0 1
      %8594 = vperm.xlu0 %8593, %v8540
      %v8595 = vpop.permute.xlu0 %8594
      %8598 = vset.pattern.permute.xlu0 1
      %8599 = vperm.xlu0 %8598, %v8541
      %v8600 = vpop.permute.xlu0 %8599
      %8603 = vset.pattern.permute.xlu0 1
      %8604 = vperm.xlu0 %8603, %v8542
      %v8605 = vpop.permute.xlu0 %8604
      %8608 = vset.pattern.permute.xlu0 1
      %8609 = vperm.xlu0 %8608, %v8543
      %v8610 = vpop.permute.xlu0 %8609
      %8613 = vset.pattern.permute.xlu0 1
      %8614 = vperm.xlu0 %8613, %v8544
      %v8615 = vpop.permute.xlu0 %8614
      %8618 = vset.pattern.permute.xlu0 1
      %8619 = vperm.xlu0 %8618, %v8545
      %v8620 = vpop.permute.xlu0 %8619
      %8623 = vset.pattern.permute.xlu0 1
      %8624 = vperm.xlu0 %8623, %v8546
      %v8625 = vpop.permute.xlu0 %8624
      %8628 = vset.pattern.permute.xlu0 1
      %8629 = vperm.xlu0 %8628, %v8547
      %v8630 = vpop.permute.xlu0 %8629
      %8633 = vset.pattern.permute.xlu0 1
      %8634 = vperm.xlu0 %8633, %v8548
      %v8635 = vpop.permute.xlu0 %8634
      %8638 = vset.pattern.permute.xlu0 1
      %8639 = vperm.xlu0 %8638, %v8549
      %v8640 = vpop.permute.xlu0 %8639
      %8643 = vset.pattern.permute.xlu0 1
      %8644 = vperm.xlu0 %8643, %v8550
      %v8645 = vpop.permute.xlu0 %8644
      %8648 = vset.pattern.permute.xlu0 1
      %8649 = vperm.xlu0 %8648, %v8551
      %v8650 = vpop.permute.xlu0 %8649
      %8653 = vset.pattern.permute.xlu0 1
      %8654 = vperm.xlu0 %8653, %v8552
      %v8655 = vpop.permute.xlu0 %8654
      %8658 = vset.pattern.permute.xlu0 1
      %8659 = vperm.xlu0 %8658, %v8553
      %v8660 = vpop.permute.xlu0 %8659
      %8663 = vset.pattern.permute.xlu0 1
      %8664 = vperm.xlu0 %8663, %v8554
      %v8665 = vpop.permute.xlu0 %8664
      %8668 = vset.pattern.permute.xlu0 1
      %8669 = vperm.xlu0 %8668, %v8555
      %v8670 = vpop.permute.xlu0 %8669
      %8673 = vset.pattern.permute.xlu0 1
      %8674 = vperm.xlu0 %8673, %v8556
      %v8675 = vpop.permute.xlu0 %8674
      %8678 = vset.pattern.permute.xlu0 1
      %8679 = vperm.xlu0 %8678, %v8557
      %v8680 = vpop.permute.xlu0 %8679
      %8683 = vset.pattern.permute.xlu0 1
      %8684 = vperm.xlu0 %8683, %v8558
      %v8685 = vpop.permute.xlu0 %8684
      %8688 = vset.pattern.permute.xlu0 1
      %8689 = vperm.xlu0 %8688, %v8559
      %v8690 = vpop.permute.xlu0 %8689
      %8693 = vset.pattern.permute.xlu0 1
      %8694 = vperm.xlu0 %8693, %v8560
      %v8695 = vpop.permute.xlu0 %8694
      %8698 = vset.pattern.permute.xlu0 1
      %8699 = vperm.xlu0 %8698, %v8561
      %v8700 = vpop.permute.xlu0 %8699
      %8703 = vset.pattern.permute.xlu0 1
      %8704 = vperm.xlu0 %8703, %v8562
      %v8705 = vpop.permute.xlu0 %8704
      %8708 = vset.pattern.permute.xlu0 1
      %8709 = vperm.xlu0 %8708, %v8563
      %v8710 = vpop.permute.xlu0 %8709
      %8713 = vset.pattern.permute.xlu0 1
      %8714 = vperm.xlu0 %8713, %v8564
      %v8715 = vpop.permute.xlu0 %8714
      %8718 = vset.pattern.permute.xlu0 1
      %8719 = vperm.xlu0 %8718, %v8565
      %v8720 = vpop.permute.xlu0 %8719
      %8723 = vset.pattern.permute.xlu0 1
      %8724 = vperm.xlu0 %8723, %v8566
      %v8725 = vpop.permute.xlu0 %8724
      %v8727 = vmul.f32 %v8279, %v8570
      %v8728 = vmul.f32 %v8280, %v8570
      %v8729 = vmul.f32 %v8281, %v8575
      %v8730 = vmul.f32 %v8282, %v8575
      %v8731 = vmul.f32 %v8283, %v8580
      %v8732 = vmul.f32 %v8284, %v8580
      %v8733 = vmul.f32 %v8285, %v8585
      %v8734 = vmul.f32 %v8286, %v8585
      %v8735 = vmul.f32 %v8287, %v8590
      %v8736 = vmul.f32 %v8288, %v8590
      %v8737 = vmul.f32 %v8289, %v8595
      %v8738 = vmul.f32 %v8290, %v8595
      %v8739 = vmul.f32 %v8291, %v8600
      %v8740 = vmul.f32 %v8292, %v8600
      %v8741 = vmul.f32 %v8293, %v8605
      %v8742 = vmul.f32 %v8294, %v8605
      %v8743 = vmul.f32 %v8295, %v8610
      %v8744 = vmul.f32 %v8296, %v8610
      %v8745 = vmul.f32 %v8297, %v8615
      %v8746 = vmul.f32 %v8298, %v8615
      %v8747 = vmul.f32 %v8299, %v8620
      %v8748 = vmul.f32 %v8300, %v8620
      %v8749 = vmul.f32 %v8301, %v8625
      %v8750 = vmul.f32 %v8302, %v8625
      %v8751 = vmul.f32 %v8303, %v8630
      %v8752 = vmul.f32 %v8304, %v8630
      %v8753 = vmul.f32 %v8305, %v8635
      %v8754 = vmul.f32 %v8306, %v8635
      %v8755 = vmul.f32 %v8307, %v8640
      %v8756 = vmul.f32 %v8308, %v8640
      %v8757 = vmul.f32 %v8309, %v8645
      %v8758 = vmul.f32 %v8310, %v8645
      %v8759 = vmul.f32 %v8311, %v8650
      %v8760 = vmul.f32 %v8312, %v8650
      %v8761 = vmul.f32 %v8313, %v8655
      %v8762 = vmul.f32 %v8314, %v8655
      %v8763 = vmul.f32 %v8315, %v8660
      %v8764 = vmul.f32 %v8316, %v8660
      %v8765 = vmul.f32 %v8317, %v8665
      %v8766 = vmul.f32 %v8318, %v8665
      %v8767 = vmul.f32 %v8319, %v8670
      %v8768 = vmul.f32 %v8320, %v8670
      %v8769 = vmul.f32 %v8321, %v8675
      %v8770 = vmul.f32 %v8322, %v8675
      %v8771 = vmul.f32 %v8323, %v8680
      %v8772 = vmul.f32 %v8324, %v8680
      %v8773 = vmul.f32 %v8325, %v8685
      %v8774 = vmul.f32 %v8326, %v8685
      %v8775 = vmul.f32 %v8327, %v8690
      %v8776 = vmul.f32 %v8328, %v8690
      %v8777 = vmul.f32 %v8329, %v8695
      %v8778 = vmul.f32 %v8330, %v8695
      %v8779 = vmul.f32 %v8331, %v8700
      %v8780 = vmul.f32 %v8332, %v8700
      %v8781 = vmul.f32 %v8333, %v8705
      %v8782 = vmul.f32 %v8334, %v8705
      %v8783 = vmul.f32 %v8335, %v8710
      %v8784 = vmul.f32 %v8336, %v8710
      %v8785 = vmul.f32 %v8337, %v8715
      %v8786 = vmul.f32 %v8338, %v8715
      %v8787 = vmul.f32 %v8339, %v8720
      %v8788 = vmul.f32 %v8340, %v8720
      %v8789 = vmul.f32 %v8341, %v8725
      %v8790 = vmul.f32 %v8342, %v8725
      %v8791 = vpack.c.bf16 %v8729, %v8727
      %v8792 = vpack.c.bf16 %v8730, %v8728
      %v8793 = vpack.c.bf16 %v8733, %v8731
      %v8794 = vpack.c.bf16 %v8734, %v8732
      %v8795 = vpack.c.bf16 %v8737, %v8735
      %v8796 = vpack.c.bf16 %v8738, %v8736
      %v8797 = vpack.c.bf16 %v8741, %v8739
      %v8798 = vpack.c.bf16 %v8742, %v8740
      %v8799 = vpack.c.bf16 %v8745, %v8743
      %v8800 = vpack.c.bf16 %v8746, %v8744
      %v8801 = vpack.c.bf16 %v8749, %v8747
      %v8802 = vpack.c.bf16 %v8750, %v8748
      %v8803 = vpack.c.bf16 %v8753, %v8751
      %v8804 = vpack.c.bf16 %v8754, %v8752
      %v8805 = vpack.c.bf16 %v8757, %v8755
      %v8806 = vpack.c.bf16 %v8758, %v8756
      %v8807 = vpack.c.bf16 %v8761, %v8759
      %v8808 = vpack.c.bf16 %v8762, %v8760
      %v8809 = vpack.c.bf16 %v8765, %v8763
      %v8810 = vpack.c.bf16 %v8766, %v8764
      %v8811 = vpack.c.bf16 %v8769, %v8767
      %v8812 = vpack.c.bf16 %v8770, %v8768
      %v8813 = vpack.c.bf16 %v8773, %v8771
      %v8814 = vpack.c.bf16 %v8774, %v8772
      %v8815 = vpack.c.bf16 %v8777, %v8775
      %v8816 = vpack.c.bf16 %v8778, %v8776
      %v8817 = vpack.c.bf16 %v8781, %v8779
      %v8818 = vpack.c.bf16 %v8782, %v8780
      %v8819 = vpack.c.bf16 %v8785, %v8783
      %v8820 = vpack.c.bf16 %v8786, %v8784
      %v8821 = vpack.c.bf16 %v8789, %v8787
      %v8822 = vpack.c.bf16 %v8790, %v8788
      %8823 = vmatprep.subr.bf16.mxu0 %v8792
      %8824 = vmatpush1.bf16.xpose.msra.mxu0 %v8791
      %8825 = vmatprep.subr.bf16.mxu0 %v8794
      %8826 = vmatpush1.bf16.xpose.msra.mxu0 %v8793
      %8827 = vmatprep.subr.bf16.mxu0 %v8796
      %8828 = vmatpush1.bf16.xpose.msra.mxu0 %v8795
      %8829 = vmatprep.subr.bf16.mxu0 %v8798
      %8830 = vmatpush1.bf16.xpose.msra.mxu0 %v8797
      %8831 = vmatprep.subr.bf16.mxu0 %v8800
      %8832 = vmatpush1.bf16.xpose.msra.mxu0 %v8799
      %8833 = vmatprep.subr.bf16.mxu0 %v8802
      %8834 = vmatpush1.bf16.xpose.msra.mxu0 %v8801
      %8835 = vmatprep.subr.bf16.mxu0 %v8804
      %8836 = vmatpush1.bf16.xpose.msra.mxu0 %v8803
      %8837 = vmatprep.subr.bf16.mxu0 %v8806
      %8838 = vmatpush1.bf16.xpose.msra.mxu0 %v8805
      %8839 = vmatprep.subr.bf16.mxu0 %v8808
      %8840 = vmatpush1.bf16.xpose.msra.mxu0 %v8807
      %8841 = vmatprep.subr.bf16.mxu0 %v8810
      %8842 = vmatpush1.bf16.xpose.msra.mxu0 %v8809
      %8843 = vmatprep.subr.bf16.mxu0 %v8812
      %8844 = vmatpush1.bf16.xpose.msra.mxu0 %v8811
      %8845 = vmatprep.subr.bf16.mxu0 %v8814
      %8846 = vmatpush1.bf16.xpose.msra.mxu0 %v8813
      %8847 = vmatprep.subr.bf16.mxu0 %v8816
      %8848 = vmatpush1.bf16.xpose.msra.mxu0 %v8815
      %8849 = vmatprep.subr.bf16.mxu0 %v8818
      %8850 = vmatpush1.bf16.xpose.msra.mxu0 %v8817
      %8851 = vmatprep.subr.bf16.mxu0 %v8820
      %8852 = vmatpush1.bf16.xpose.msra.mxu0 %v8819
      %8853 = vmatprep.subr.bf16.mxu0 %v8822
      %8854 = vmatpush1.bf16.xpose.msra.mxu0 %v8821
      %8855 = vmatprep.mubr.bf16.mxu0 %v4661
      %8856 = vmatmul.mubr.bf16.gmra.mrb[0].mxu0 %v4660
      %v8857 = vpop.f32.mrb[0].mxu0
      %v8858 = vadd.f32 0.0, %v8857
      %v8859 = vpop.f32.mrb[0].mxu0
      %v8860 = vadd.f32 0.0, %v8859
      %v8861 = vpop.f32.mrb[0].mxu0
      %v8862 = vpop.f32.mrb[0].mxu0
      %8863 = vdwg.mxu0
      %v8864 = vsel %vm286, %v8858, 0.0
      %v8865 = vrot.slane %v8864, 4
      %v8866 = vadd.f32 %v8864, %v8865
      %v8867 = vrot.slane %v8866, 2
      %v8868 = vadd.f32 %v8866, %v8867
      %v8869 = vrot.slane %v8868, 1
      %v8870 = vadd.f32 %v8868, %v8869
      %v8871 = vsel %vm286, %v8860, 0.0
      %v8872 = vrot.slane %v8871, 4
      %v8873 = vadd.f32 %v8871, %v8872
      %v8874 = vrot.slane %v8873, 2
      %v8875 = vadd.f32 %v8873, %v8874
      %v8876 = vrot.slane %v8875, 1
      %v8877 = vadd.f32 %v8875, %v8876
      %v8878 = vmul.f32 %v8870, %v301
      %v8879 = vmul.f32 %v8877, %v301
      %v8880 = vsub.f32 %v8858, %v8878
      %v8881 = vsub.f32 %v8860, %v8879
      %v8882 = vmul.f32 %v8880, %v8880
      %v8883 = vmul.f32 %v8881, %v8881
      %v8884 = vsel %vm286, %v8882, 0.0
      %v8885 = vrot.slane %v8884, 4
      %v8886 = vadd.f32 %v8884, %v8885
      %v8887 = vrot.slane %v8886, 2
      %v8888 = vadd.f32 %v8886, %v8887
      %v8889 = vrot.slane %v8888, 1
      %v8890 = vadd.f32 %v8888, %v8889
      %v8891 = vsel %vm286, %v8883, 0.0
      %v8892 = vrot.slane %v8891, 4
      %v8893 = vadd.f32 %v8891, %v8892
      %v8894 = vrot.slane %v8893, 2
      %v8895 = vadd.f32 %v8893, %v8894
      %v8896 = vrot.slane %v8895, 1
      %v8897 = vadd.f32 %v8895, %v8896
      %v8898 = vmul.f32 %v8890, %v301
      %v8899 = vmul.f32 %v8897, %v301
      %v8900 = vadd.f32 %v8898, 1e-05
      %v8901 = vadd.f32 %v8899, 1e-05
      %v8902 = vrsqrt.pop %v8900
      %v8903 = vrsqrt.pop %v8901
      %v8904 = vmul.f32 %v8880, %v8902
      %v8905 = vmul.f32 %v8881, %v8903
      %v8908 = vrot.slane %v8904, 4
      %v8909 = vrot.slane %v8905, 4
      %v8912 = vsel %vm286, %v7468, %v8908
      %v8913 = vsel %vm286, %v7469, %v8909
      %v8914 = vmul.f32 %v8912, %v4757
      %v8915 = vmul.f32 %v8913, %v4757
      %v8916 = vadd.f32 %v8914, %v4763
      %v8917 = vadd.f32 %v8915, %v4763
      %v8918 = vmul.f32 %v4769, %v4850
      %v8919 = vmul.f32 %v4769, %v4851
      %v8920 = vadd.f32 %v8916, %v8918
      %v8921 = vadd.f32 %v8917, %v8919
      %v8922 = vmul.f32 %v8920, %v450
      %v8923 = vmul.f32 %v8921, %v451
      %v8924 = vadd.f32 %v4777, %v8922
      %v8925 = vadd.f32 %v4778, %v8923
      %v8926 = vpack.c.bf16 %v8924, %v8924
      %v8927 = vpack.c.bf16 %v8925, %v8925
      %v8929 = vsel %vm462, %v516, 0
      %v8932 = vsel %vm286, %v8926, 0
      %v8935 = vsel %vm286, %v8927, 0
      %8937 = vmatprep.subr.bf16.mxu0 %v8935
      %8938 = vmatpush1.bf16.msra.mxu0 %v8932
      %8939 = vmatprep.subr.bf16.mxu0 0
      %8940 = vmatpush1.bf16.msra.mxu0 0
      %8941 = vmatprep.subr.bf16.mxu0 0
      %8942 = vmatpush1.bf16.msra.mxu0 0
      %8943 = vmatprep.subr.bf16.mxu0 0
      %8944 = vmatpush1.bf16.msra.mxu0 0
      %8945 = vmatprep.subr.bf16.mxu0 0
      %8946 = vmatpush1.bf16.msra.mxu0 0
      %8947 = vmatprep.subr.bf16.mxu0 0
      %8948 = vmatpush1.bf16.msra.mxu0 0
      %8949 = vmatprep.subr.bf16.mxu0 0
      %8950 = vmatpush1.bf16.msra.mxu0 0
      %8951 = vmatprep.subr.bf16.mxu0 0
      %8952 = vmatpush1.bf16.msra.mxu0 0
      %8953 = vmatprep.subr.bf16.mxu0 0
      %8954 = vmatpush1.bf16.msra.mxu0 0
      %8955 = vmatprep.subr.bf16.mxu0 0
      %8956 = vmatpush1.bf16.msra.mxu0 0
      %8957 = vmatprep.subr.bf16.mxu0 0
      %8958 = vmatpush1.bf16.msra.mxu0 0
      %8959 = vmatprep.subr.bf16.mxu0 0
      %8960 = vmatpush1.bf16.msra.mxu0 0
      %8961 = vmatprep.subr.bf16.mxu0 0
      %8962 = vmatpush1.bf16.msra.mxu0 0
      %8963 = vmatprep.subr.bf16.mxu0 0
      %8964 = vmatpush1.bf16.msra.mxu0 0
      %8965 = vmatprep.subr.bf16.mxu0 0
      %8966 = vmatpush1.bf16.msra.mxu0 0
      %8967 = vmatprep.subr.bf16.mxu0 0
      %8968 = vmatpush1.bf16.msra.mxu0 0
      %8969 = vmatprep.mubr.bf16.mxu0 0
      %8970 = vmatmul.mubr.bf16.gmra.mrb[0].mxu0 %v8929
      %v8971 = vpop.f32.mrb[0].mxu0
      %v8972 = vadd.f32 0.0, %v8971
      %v8973 = vpop.f32.mrb[0].mxu0
      %v8974 = vadd.f32 0.0, %v8973
      %v8975 = vpop.f32.mrb[0].mxu0
      %v8976 = vpop.f32.mrb[0].mxu0
      %8977 = vdwg.mxu0
      %v8978 = vmul.f32 %v280, 2.0
      %v8981 = vcombine.low %v8972, %v8974
      %v8983 = vadd.f32 %v8978, %v8981
      %v8984 = vmul.f32 %v282, 2.0
      %8986 = vset.pattern.permute.xlu0 2
      %8987 = vperm.xlu0 %8986, %v8984
      %v8988 = vpop.permute.xlu0 %8987
      %v8990 = vunpack.c.l.s4 839922192
      %v8991 = vunpack.c.0.s8 %v8990
      %v8992 = vlaneseq
      %v8993 = vshrl.u32 %v8992, 7
      %v8994 = vsub.s32 %v8991, %v8993
      %v8995 = vrot.slane %v8988, %v8994
      %v8997 = vadd.f32 %v8983, %v8995
      %8998 = vst [vmem:[%s278] sm:$0xff] %v8997
      %p8999 = scmp.lt.s32.totalorder %s18, 1
      %s9000 = scalar_select %p8999, %s18, 1
      %s9001 = smul.addr %s9000, 2
      %s9002 = smul.addr %s9001, 4
      %s9003 = scalar_lea.vmem %s7, %s9002
      // Predicated region
      $region49: #{_lambda_.2} parent=47 // pred_check
        %p9004 = pneg %p188
      $region50: #{_lambda_.2} parent=47 // pred_check_branch
        %9006 = sbr.rel (%p9004) target = $region52
      $region51: #{_lambda_.2} parent=47 // pred_region
        _
      $region52: #{_lambda_.2} parent=47 // pred_fallthru
        _
    $region48: #{_lambda_.2} parent=5 // pred_fallthru
      _
    %p9007 = scmp.le.s32.totalorder 2, %s13
    // Predicated region
    $region53: #{_lambda_.2} parent=5 // pred_check
      %p9008 = pneg %p9007
    $region54: #{_lambda_.2} parent=5 // pred_check_branch
      %9010 = sbr.rel (%p9008) target = $region56
    $region55: #{_lambda_.2} parent=5 // pred_region
      %s9011 = ssub.s32 %s13, 2
      // Predicated region
      $region57: #{_lambda_.2} parent=55 // pred_check
        %p9012 = pneg %p194
      $region58: #{_lambda_.2} parent=55 // pred_check_branch
        %9014 = sbr.rel (%p9012) target = $region60
      $region59: #{_lambda_.2} parent=55 // pred_region
        %p9015 = scmp.lt.s32.totalorder %s19, 1
        %s9016 = scalar_select %p9015, %s19, 1
        %s9017 = smul.addr %s9016, 2
        %s9018 = smul.addr %s9017, 4
        %s9019 = scalar_lea.vmem %s7, %s9018
      $region60: #{_lambda_.2} parent=55 // pred_fallthru
        _
    $region56: #{_lambda_.2} parent=5 // pred_fallthru
      _
  $region6: #{_lambda_.2} parent=0 // loop_footer
    %s17 = sadd.s32 1, %s13
  $region7: #{_lambda_.2} parent=0 // loop_footer_branch
    %12 = sbr.rel target = $region3
  $region8: #{_lambda_.2} parent=0 // loop_exit
    _

</llo_original>
